<compile_context>
chip_gen: v5e
topology: v5e:2x2
jax: 0.10.0
libtpu: 0.0.40
codegen_flags: <defaults>
</compile_context>

<pallas_src>
import functools

import numpy as np
import jax
import jax.numpy as jnp
from jax import lax
from jax.experimental import pallas as pl
from jax.experimental.pallas import tpu as pltpu

EPS = 1e-5          # BatchNorm2d eps
SLOPE = 0.2         # LeakyReLU negative slope
LANE = 128
VMEM_LIMIT = 32 * 1024 * 1024   # explicit scoped-VMEM budget (safe on v5e/v6e/v7x)


def _rup(x, m):
    return ((x + m - 1) // m) * m


# ----------------------------------------------------------------------------
# Kernel 1: four pool branches fused into one call (grid over branches)
# ----------------------------------------------------------------------------
def _branch_kernel(cnt_ref, x_ref, w_ref, b_ref, g_ref, be_ref, o_ref):
    """1x1 conv + BatchNorm (batch stats over the valid rows) + LeakyReLU.

    cnt_ref : SMEM (4,) int32  valid-row count per branch (scalar prefetch)
    x_ref   : (M_pad, Cp)      zero-padded pooled activations of this branch
    w_ref   : (Cp, Cp)         zero-padded 1x1 conv weight
    b/g/be  : (1, Cp)          bias / gamma / beta
    o_ref   : (M_pad, Cp)
    """
    count = cnt_ref[pl.program_id(0)]
    x = x_ref[...]
    y = jnp.dot(x, w_ref[...], preferred_element_type=jnp.float32) + b_ref[...]
    rows = lax.broadcasted_iota(jnp.int32, (x.shape[0], 1), 0)
    maskf = (rows < count).astype(jnp.float32)           # padded rows -> 0
    cnt = count.astype(jnp.float32)
    # two-pass stats (small M, better conditioned than E[x^2]-E[x]^2)
    mean = jnp.sum(y * maskf, axis=0, keepdims=True) / cnt
    d = y - mean
    var = jnp.sum(d * d * maskf, axis=0, keepdims=True) / cnt
    z = d * lax.rsqrt(var + EPS) * g_ref[...] + be_ref[...]
    o_ref[...] = jnp.where(z >= 0.0, z, SLOPE * z)


def branch_1x1_bn_lrelu(counts, x_stack, w_stack, b_stack, g_stack, be_stack):
    B, M_pad, Cp = x_stack.shape
    grid_spec = pltpu.PrefetchScalarGridSpec(
        num_scalar_prefetch=1,
        grid=(B,),
        in_specs=[
            pl.BlockSpec((None, M_pad, Cp), lambda b, cnt: (b, 0, 0)),
            pl.BlockSpec((None, Cp, Cp), lambda b, cnt: (b, 0, 0)),
            pl.BlockSpec((None, 1, Cp), lambda b, cnt: (b, 0, 0)),
            pl.BlockSpec((None, 1, Cp), lambda b, cnt: (b, 0, 0)),
            pl.BlockSpec((None, 1, Cp), lambda b, cnt: (b, 0, 0)),
        ],
        out_specs=pl.BlockSpec((None, M_pad, Cp), lambda b, cnt: (b, 0, 0)),
    )
    return pl.pallas_call(
        _branch_kernel,
        out_shape=jax.ShapeDtypeStruct((B, M_pad, Cp), jnp.float32),
        grid_spec=grid_spec,
        compiler_params=pltpu.CompilerParams(
            dimension_semantics=("parallel",),
            vmem_limit_bytes=VMEM_LIMIT),
    )(counts, x_stack, w_stack, b_stack, g_stack, be_stack)


# ----------------------------------------------------------------------------
# Kernel 2: 3x3 conv + bias (gridded over N x H-tiles) + partial BN stats
# ----------------------------------------------------------------------------
def _out_conv_pass1(xp_ref, w_ref, b_ref, y_ref, st_ref, *, tile_h, W):
    """xp_ref : (tile_h+2, W+2, Cip) bf16 halo window of the concat features
       w_ref  : (9, Cip, Cop) bf16, tap index = dy*3 + dx
       b_ref  : (1, Cop) f32
       y_ref  : (tile_h*W, Cop) f32 conv+bias output for this tile
       st_ref : (2, Cop)  f32 [sum, sum-of-squares] over this tile's rows
    """
    Cop = w_ref.shape[-1]
    Cip = xp_ref.shape[-1]
    acc = jnp.zeros((tile_h * W, Cop), jnp.float32)
    for dy in range(3):
        for dx in range(3):
            patch = xp_ref[dy:dy + tile_h, dx:dx + W, :]          # bf16
            patch = patch.reshape(tile_h * W, Cip)
            acc = acc + jnp.dot(patch, w_ref[dy * 3 + dx],
                                preferred_element_type=jnp.float32)
    y = acc + b_ref[...]
    y_ref[...] = y
    st_ref[...] = jnp.concatenate(
        [jnp.sum(y, axis=0, keepdims=True),
         jnp.sum(y * y, axis=0, keepdims=True)], axis=0)


def out_conv_pass1(xph, w9, bias, *, tile_h, W):
    N, T, THp2, Wp2, Cip = xph.shape
    Cop = w9.shape[-1]
    flops = 2 * N * T * tile_h * W * 9 * Cip * Cop
    bytes_accessed = (xph.size * xph.dtype.itemsize
                      + w9.size * w9.dtype.itemsize
                      + N * T * tile_h * W * Cop * 4)
    return pl.pallas_call(
        functools.partial(_out_conv_pass1, tile_h=tile_h, W=W),
        out_shape=(jax.ShapeDtypeStruct((N, T, tile_h * W, Cop), jnp.float32),
                   jax.ShapeDtypeStruct((N, T, 2, Cop), jnp.float32)),
        grid_spec=pltpu.PrefetchScalarGridSpec(
            num_scalar_prefetch=0,
            grid=(N, T),
            in_specs=[
                pl.BlockSpec((None, None, THp2, Wp2, Cip),
                             lambda n, t: (n, t, 0, 0, 0)),
                pl.BlockSpec((9, Cip, Cop), lambda n, t: (0, 0, 0)),
                pl.BlockSpec((1, Cop), lambda n, t: (0, 0)),
            ],
            out_specs=(
                pl.BlockSpec((None, None, tile_h * W, Cop),
                             lambda n, t: (n, t, 0, 0)),
                pl.BlockSpec((None, None, 2, Cop), lambda n, t: (n, t, 0, 0)),
            )),
        compiler_params=pltpu.CompilerParams(
            dimension_semantics=("parallel", "parallel"),
            vmem_limit_bytes=VMEM_LIMIT),
        cost_estimate=pl.CostEstimate(flops=flops, transcendentals=0,
                                      bytes_accessed=bytes_accessed),
    )(xph, w9, bias)


# ----------------------------------------------------------------------------
# Kernel 3: tiled normalize + LeakyReLU (pass 2 of the output BatchNorm)
# ----------------------------------------------------------------------------
def _bn_lrelu_kernel(y_ref, sc_ref, sh_ref, o_ref):
    z = y_ref[...] * sc_ref[...] + sh_ref[...]
    o_ref[...] = jnp.where(z >= 0.0, z, SLOPE * z)


def bn_lrelu(y_flat, scale, shift, *, tile_m):
    M, Cop = y_flat.shape
    return pl.pallas_call(
        _bn_lrelu_kernel,
        out_shape=jax.ShapeDtypeStruct((M, Cop), jnp.float32),
        grid_spec=pltpu.PrefetchScalarGridSpec(
            num_scalar_prefetch=0,
            grid=(M // tile_m,),
            in_specs=[
                pl.BlockSpec((tile_m, Cop), lambda i: (i, 0)),
                pl.BlockSpec((1, Cop), lambda i: (0, 0)),
                pl.BlockSpec((1, Cop), lambda i: (0, 0)),
            ],
            out_specs=pl.BlockSpec((tile_m, Cop), lambda i: (i, 0))),
        compiler_params=pltpu.CompilerParams(
            dimension_semantics=("parallel",),
            vmem_limit_bytes=VMEM_LIMIT),
    )(y_flat, scale, shift)


# ----------------------------------------------------------------------------
# Plain-JAX glue
# ----------------------------------------------------------------------------
def interp_matrix(src, dst):
    """Row-interpolation matrix for bilinear, align_corners=True (exact)."""
    U = np.zeros((dst, src), np.float32)
    if src == 1:
        U[:, 0] = 1.0
        return jnp.asarray(U)
    t = np.arange(dst, dtype=np.float64) * (src - 1) / (dst - 1)
    i0 = np.clip(np.floor(t).astype(np.int64), 0, src - 2)
    frac = (t - i0).astype(np.float32)
    U[np.arange(dst), i0] += 1.0 - frac
    U[np.arange(dst), i0 + 1] += frac
    return jnp.asarray(U)


def _avg_pool(x, k):
    N, H, W, C = x.shape
    h, w = H // k, W // k
    return x[:, :h * k, :w * k, :].reshape(N, h, k, w, k, C).mean(axis=(2, 4))


def _pick_tile_h(H, Wp2, Cip, Cop, budget_bytes=8 * 1024 * 1024):
    """Largest H-tile whose double-buffered blocks fit a conservative budget
    (sized for v7x: 64 MiB physical / 32 MiB scoped VMEM)."""
    for th in (64, 32, 16, 8):
        if H % th == 0:
            need = 2 * ((th + 2) * Wp2 * Cip * 2      # bf16 input block x2 bufs
                        + th * (Wp2 - 2) * Cop * 4    # f32 y block x2 bufs
                        + 2 * Cop * 4)                # stats block
            if need <= budget_bytes:
                return th
    return H


def _pick_tile_m(M):
    for tm in (2048, 1024, 512, 256, 128, 64, 32, 16, 8):
        if M % tm == 0:
            return tm
    return M


def spp_forward(x_nchw, params, *, tile_h=None):
    """Forward of SPP. Input/output NCHW, float32."""
    x = jnp.transpose(x_nchw, (0, 2, 3, 1)).astype(jnp.float32)     # NHWC
    N, H, W, C = x.shape
    assert W % 8 == 0, "W must be a multiple of 8"
    Cp = _rup(C, LANE)                # lane-padded channel count (branch / out)
    Ci = 5 * C
    Cip = _rup(Ci, LANE)              # lane-padded concat channel count

    # ---- four avg-pool branches -> one fused Pallas call -------------------
    pooled_flats, counts, shapes = [], [], []
    for k in (4, 8, 16, 32):
        p = _avg_pool(x, k)
        h, w = p.shape[1], p.shape[2]
        shapes.append((h, w))
        counts.append(N * h * w)
        pooled_flats.append(p.reshape(N * h * w, C))
    M_pad = _rup(max(counts), 8)
    x_stack = jnp.stack([jnp.pad(f, ((0, M_pad - f.shape[0]), (0, Cp - C)))
                         for f in pooled_flats])                    # (4,M_pad,Cp)
    w_stack = jnp.stack([jnp.pad(params[f"pool{k}"]["w"],
                                 ((0, Cp - C), (0, Cp - C)))
                         for k in (4, 8, 16, 32)])

    def _pad_vec(name):
        return jnp.stack([jnp.pad(params[f"pool{k}"][name],
                                  ((0, 0), (0, Cp - C)))
                          for k in (4, 8, 16, 32)])

    b_stack, g_stack, be_stack = _pad_vec("b"), _pad_vec("gamma"), _pad_vec("beta")
    counts_arr = jnp.asarray(counts, jnp.int32)
    branch_out = branch_1x1_bn_lrelu(counts_arr, x_stack, w_stack,
                                     b_stack, g_stack, be_stack)    # (4,M_pad,Cp)

    # ---- bilinear (align_corners=True) upsample + concat -------------------
    # TODO(synk): fuse upsample/concat/reflect-pad into the conv kernel's input
    # path to remove the remaining full-resolution HBM round trips.
    ups = []
    for i, (h, w) in enumerate(shapes):
        feat = branch_out[i, :counts[i], :C].reshape(N, h, w, C)
        up = jnp.einsum("Hh,nhwc->nHwc", interp_matrix(h, H), feat)
        up = jnp.einsum("Ww,nHwc->nHWc", interp_matrix(w, W), up)
        ups.append(up)
    cat = jnp.concatenate(ups + [x], axis=-1).astype(jnp.bfloat16)  # (N,H,W,5C)

    # reflect-pad W, zero-pad channels to the lane multiple
    catp = jnp.pad(cat, ((0, 0), (0, 0), (1, 1), (0, 0)), mode="reflect")
    catp = jnp.pad(catp, ((0, 0), (0, 0), (0, 0), (0, Cip - Ci)))
    Wp2 = W + 2

    if tile_h is None:
        tile_h = _pick_tile_h(H, Wp2, Cip, Cp)
    assert H % tile_h == 0
    T = H // tile_h

    # gather overlapping (1-row halo, reflect at borders) windows into a
    # non-overlapping (N, T, tile_h+2, W+2, Cip) layout -> plain Blocked specs
    rows = np.empty((T, tile_h + 2), np.int32)
    for t in range(T):
        for j in range(tile_h + 2):
            r = t * tile_h + j - 1
            if r < 0:
                r = -r
            elif r > H - 1:
                r = 2 * (H - 1) - r
            rows[t, j] = r
    xph = jnp.take(catp, jnp.asarray(rows), axis=1)                 # bf16

    po = params["output"]
    w9 = jnp.pad(po["w9"], ((0, 0), (0, Cip - Ci), (0, Cp - C))).astype(jnp.bfloat16)
    bias = jnp.pad(po["b"], ((0, 0), (0, Cp - C)))
    gamma = jnp.pad(po["gamma"], ((0, 0), (0, Cp - C)))
    beta = jnp.pad(po["beta"], ((0, 0), (0, Cp - C)))

    # pass 1: tiled conv + bias, per-tile partial BN sums
    y, st = out_conv_pass1(xph, w9, bias, tile_h=tile_h, W=W)

    # global BatchNorm statistics from the per-tile partial sums
    cnt = float(N * H * W)
    s1 = jnp.sum(st[:, :, 0, :], axis=(0, 1))                       # (Cp,)
    s2 = jnp.sum(st[:, :, 1, :], axis=(0, 1))
    mean = s1 / cnt
    var = jnp.maximum(s2 / cnt - mean * mean, 0.0)
    scale = (gamma[0] * lax.rsqrt(var + EPS))[None, :]              # (1,Cp)
    shift = (beta[0] - mean * scale[0])[None, :]

    # pass 2: tiled normalize + LeakyReLU
    y_flat = y.reshape(N * H * W, Cp)
    out_flat = bn_lrelu(y_flat, scale, shift, tile_m=_pick_tile_m(N * H * W))
    out = out_flat.reshape(N, H, W, Cp)[..., :C]
    return jnp.transpose(out, (0, 3, 1, 2))                         # NCHW


# ----------------------------------------------------------------------------
# Pure-JAX reference (independent conv path) for a sanity check
# ----------------------------------------------------------------------------
def spp_reference(x_nchw, params):
    x = jnp.transpose(x_nchw, (0, 2, 3, 1)).astype(jnp.float32)
    N, H, W, C = x.shape
    ups = []
    for k in (4, 8, 16, 32):
        p = params[f"pool{k}"]
        pooled = _avg_pool(x, k)
        y = jnp.einsum("nhwc,cd->nhwd", pooled, p["w"]) + p["b"][0]
        mean = jnp.mean(y, axis=(0, 1, 2), keepdims=True)
        var = jnp.var(y, axis=(0, 1, 2), keepdims=True)
        z = (y - mean) / jnp.sqrt(var + EPS) * p["gamma"][0] + p["beta"][0]
        z = jnp.where(z >= 0, z, SLOPE * z)
        h, w = z.shape[1], z.shape[2]
        up = jnp.einsum("Hh,nhwc->nHwc", interp_matrix(h, H), z)
        up = jnp.einsum("Ww,nHwc->nHWc", interp_matrix(w, W), up)
        ups.append(up)
    cat = jnp.concatenate(ups + [x], axis=-1)
    xp = jnp.pad(cat, ((0, 0), (1, 1), (1, 1), (0, 0)), mode="reflect")
    po = params["output"]
    w_hwio = po["w9"].reshape(3, 3, 5 * C, C)
    y = lax.conv_general_dilated(xp, w_hwio, (1, 1), "VALID",
                                 dimension_numbers=("NHWC", "HWIO", "NHWC"))
    y = y + po["b"][0]
    mean = jnp.mean(y, axis=(0, 1, 2), keepdims=True)
    var = jnp.var(y, axis=(0, 1, 2), keepdims=True)
    z = (y - mean) / jnp.sqrt(var + EPS) * po["gamma"][0] + po["beta"][0]
    z = jnp.where(z >= 0, z, SLOPE * z)
    return jnp.transpose(z, (0, 3, 1, 2))


# ----------------------------------------------------------------------------
# Deterministic parameter init (synthetic, no checkpoint)
# ----------------------------------------------------------------------------
def init_params(key, C):
    params = {}
    keys = jax.random.split(key, 5)
    for k, kk in zip((4, 8, 16, 32), keys[:4]):
        k1, k2, k3, k4 = jax.random.split(kk, 4)
        params[f"pool{k}"] = dict(
            w=jax.random.normal(k1, (C, C), jnp.float32) / np.sqrt(C),
            b=0.1 * jax.random.normal(k2, (1, C), jnp.float32),
            gamma=1.0 + 0.1 * jax.random.normal(k3, (1, C), jnp.float32),
            beta=0.1 * jax.random.normal(k4, (1, C), jnp.float32),
        )
    k1, k2, k3, k4 = jax.random.split(keys[4], 4)
    params["output"] = dict(
        w9=jax.random.normal(k1, (9, 5 * C, C), jnp.float32) / np.sqrt(9 * 5 * C),
        b=0.1 * jax.random.normal(k2, (1, C), jnp.float32),
        gamma=1.0 + 0.1 * jax.random.normal(k3, (1, C), jnp.float32),
        beta=0.1 * jax.random.normal(k4, (1, C), jnp.float32),
    )
    return params


if __name__ == "__main__":
    # Smallest spatial size compatible with the 32x32 pooling branch.
    N, C, H, W = 2, 4, 32, 32
    x = jax.random.normal(jax.random.PRNGKey(0), (N, C, H, W), jnp.float32)
    params = init_params(jax.random.PRNGKey(1), C)

    fwd = jax.jit(spp_forward, static_argnames=("tile_h",))
    # tile_h=8 forces a (N=2, T=4) conv grid so the halo-tiled path is exercised.
    out = jax.block_until_ready(fwd(x, params, tile_h=8))
    assert out.shape == (N, C, H, W), out.shape

    # Sanity check against an independent pure-JAX reference (loose tolerance
    # absorbs the bf16 MXU inputs used in the Pallas conv).
    ref = jax.block_until_ready(spp_reference(x, params))
    np.testing.assert_allclose(np.asarray(out), np.asarray(ref),
                               rtol=6e-2, atol=6e-2)

    print("KERNEL_OK")
</pallas_src>

<mosaic_0001>
module attributes {stable_mosaic.version = 11 : i64} {
  func.func @_branch_kernel(%arg0: i32, %arg1: memref<4xi32, #tpu.memory_space<smem>>, %arg2: memref<1x128x128xf32, #tpu.memory_space<vmem>>, %arg3: memref<1x128x128xf32, #tpu.memory_space<vmem>>, %arg4: memref<1x1x128xf32, #tpu.memory_space<vmem>>, %arg5: memref<1x1x128xf32, #tpu.memory_space<vmem>>, %arg6: memref<1x1x128xf32, #tpu.memory_space<vmem>>, %arg7: memref<1x128x128xf32, #tpu.memory_space<vmem>>) attributes {dimension_semantics = [#tpu.dimension_semantics<parallel>], iteration_bounds = array<i64: 4>, scalar_prefetch = 1 : i64, scratch_operands = 0 : i64, tpu.core_type = #tpu.core_type<tc>, window_params = [{transform_indices = @transform_0, window_bounds = array<i64: 1, 128, 128>}, {transform_indices = @transform_1, window_bounds = array<i64: 1, 128, 128>}, {transform_indices = @transform_2, window_bounds = array<i64: 1, 1, 128>}, {transform_indices = @transform_3, window_bounds = array<i64: 1, 1, 128>}, {transform_indices = @transform_4, window_bounds = array<i64: 1, 1, 128>}, {transform_indices = @transform_5, window_bounds = array<i64: 1, 128, 128>}]} {
    %0 = arith.index_cast %arg0 : i32 to index
    %1 = memref.load %arg1[%0] : memref<4xi32, #tpu.memory_space<smem>>
    %c0 = arith.constant 0 : index
    %c0_0 = arith.constant 0 : index
    %c0_1 = arith.constant 0 : index
    %2 = vector.load %arg2[%c0, %c0_0, %c0_1] : memref<1x128x128xf32, #tpu.memory_space<vmem>>, vector<1x128x128xf32>
    %3 = vector.shape_cast %2 : vector<1x128x128xf32> to vector<128x128xf32>
    %c0_2 = arith.constant 0 : index
    %c0_3 = arith.constant 0 : index
    %c0_4 = arith.constant 0 : index
    %4 = vector.load %arg3[%c0_2, %c0_3, %c0_4] : memref<1x128x128xf32, #tpu.memory_space<vmem>>, vector<1x128x128xf32>
    %5 = vector.shape_cast %4 : vector<1x128x128xf32> to vector<128x128xf32>
    %cst = arith.constant dense<0.000000e+00> : vector<128x128xf32>
    %6 = tpu.matmul %3, %5, %cst {dimension_numbers = #tpu.dot_dimension_numbers<[1], [0], [0], [1], [0, 0, 1, 1], [], []>} : vector<128x128xf32>, vector<128x128xf32>, vector<128x128xf32> -> vector<128x128xf32>
    %c0_5 = arith.constant 0 : index
    %c0_6 = arith.constant 0 : index
    %c0_7 = arith.constant 0 : index
    %7 = vector.load %arg4[%c0_5, %c0_6, %c0_7] : memref<1x1x128xf32, #tpu.memory_space<vmem>>, vector<1x1x128xf32>
    %8 = vector.shape_cast %7 : vector<1x1x128xf32> to vector<1x128xf32>
    %9 = vector.broadcast %8 : vector<1x128xf32> to vector<128x128xf32>
    %10 = arith.addf %6, %9 : vector<128x128xf32>
    %11 = tpu.iota {dimensions = array<i32: 0>} : vector<128x1xi32>
    %12 = vector.broadcast %1 : i32 to vector<128x1xi32>
    %13 = arith.cmpi slt, %11, %12 : vector<128x1xi32>
    %14 = arith.extui %13 : vector<128x1xi1> to vector<128x1xi32>
    %15 = arith.sitofp %14 : vector<128x1xi32> to vector<128x1xf32>
    %16 = arith.sitofp %1 : i32 to f32
    %17 = vector.broadcast %15 : vector<128x1xf32> to vector<128x128xf32>
    %18 = arith.mulf %10, %17 : vector<128x128xf32>
    %cst_8 = arith.constant dense<0.000000e+00> : vector<128xf32>
    %19 = vector.multi_reduction <add>, %18, %cst_8 [0] : vector<128x128xf32> to vector<128xf32>
    %20 = vector.shape_cast %19 : vector<128xf32> to vector<1x128xf32>
    %21 = vector.broadcast %16 : f32 to vector<1x128xf32>
    %22 = arith.divf %20, %21 : vector<1x128xf32>
    %23 = vector.broadcast %22 : vector<1x128xf32> to vector<128x128xf32>
    %24 = arith.subf %10, %23 : vector<128x128xf32>
    %25 = arith.mulf %24, %24 : vector<128x128xf32>
    %26 = vector.broadcast %15 : vector<128x1xf32> to vector<128x128xf32>
    %27 = arith.mulf %25, %26 : vector<128x128xf32>
    %cst_9 = arith.constant dense<0.000000e+00> : vector<128xf32>
    %28 = vector.multi_reduction <add>, %27, %cst_9 [0] : vector<128x128xf32> to vector<128xf32>
    %29 = vector.shape_cast %28 : vector<128xf32> to vector<1x128xf32>
    %30 = vector.broadcast %16 : f32 to vector<1x128xf32>
    %31 = arith.divf %29, %30 : vector<1x128xf32>
    %cst_10 = arith.constant 9.99999974E-6 : f32
    %32 = vector.broadcast %cst_10 : f32 to vector<1x128xf32>
    %33 = arith.addf %31, %32 : vector<1x128xf32>
    %34 = math.rsqrt %33 : vector<1x128xf32>
    %35 = vector.broadcast %34 : vector<1x128xf32> to vector<128x128xf32>
    %36 = arith.mulf %24, %35 : vector<128x128xf32>
    %c0_11 = arith.constant 0 : index
    %c0_12 = arith.constant 0 : index
    %c0_13 = arith.constant 0 : index
    %37 = vector.load %arg5[%c0_11, %c0_12, %c0_13] : memref<1x1x128xf32, #tpu.memory_space<vmem>>, vector<1x1x128xf32>
    %38 = vector.shape_cast %37 : vector<1x1x128xf32> to vector<1x128xf32>
    %39 = vector.broadcast %38 : vector<1x128xf32> to vector<128x128xf32>
    %40 = arith.mulf %36, %39 : vector<128x128xf32>
    %c0_14 = arith.constant 0 : index
    %c0_15 = arith.constant 0 : index
    %c0_16 = arith.constant 0 : index
    %41 = vector.load %arg6[%c0_14, %c0_15, %c0_16] : memref<1x1x128xf32, #tpu.memory_space<vmem>>, vector<1x1x128xf32>
    %42 = vector.shape_cast %41 : vector<1x1x128xf32> to vector<1x128xf32>
    %43 = vector.broadcast %42 : vector<1x128xf32> to vector<128x128xf32>
    %44 = arith.addf %40, %43 : vector<128x128xf32>
    %cst_17 = arith.constant 0.000000e+00 : f32
    %45 = vector.broadcast %cst_17 : f32 to vector<128x128xf32>
    %46 = arith.cmpf oge, %44, %45 : vector<128x128xf32>
    %cst_18 = arith.constant 2.000000e-01 : f32
    %47 = vector.broadcast %cst_18 : f32 to vector<128x128xf32>
    %48 = arith.mulf %47, %44 : vector<128x128xf32>
    %49 = arith.select %46, %44, %48 : vector<128x128xi1>, vector<128x128xf32>
    %c0_19 = arith.constant 0 : index
    %c0_20 = arith.constant 0 : index
    %c0_21 = arith.constant 0 : index
    %50 = vector.load %arg7[%c0_19, %c0_20, %c0_21] : memref<1x128x128xf32, #tpu.memory_space<vmem>>, vector<1x128x128xf32>
    %51 = vector.shape_cast %50 : vector<1x128x128xf32> to vector<128x128xf32>
    %52 = vector.shape_cast %49 : vector<128x128xf32> to vector<1x128x128xf32>
    tpu.vector_store %arg7[%c0_19, %c0_20, %c0_21], %52 {strides = array<i32>} : memref<1x128x128xf32, #tpu.memory_space<vmem>>, vector<1x128x128xf32>,
    return
  }
  func.func @transform_0(%arg0: i32, %arg1: memref<4xi32, #tpu.memory_space<smem>>) -> (i32, i32, i32) {
    %c0_i32 = arith.constant 0 : i32
    %c0_i32_0 = arith.constant 0 : i32
    %c0_i32_1 = arith.constant 0 : i32
    return %arg0, %c0_i32, %c0_i32_0 : i32, i32, i32
  }
  func.func @transform_1(%arg0: i32, %arg1: memref<4xi32, #tpu.memory_space<smem>>) -> (i32, i32, i32) {
    %c0_i32 = arith.constant 0 : i32
    %c0_i32_0 = arith.constant 0 : i32
    %c0_i32_1 = arith.constant 0 : i32
    return %arg0, %c0_i32, %c0_i32_0 : i32, i32, i32
  }
  func.func @transform_2(%arg0: i32, %arg1: memref<4xi32, #tpu.memory_space<smem>>) -> (i32, i32, i32) {
    %c0_i32 = arith.constant 0 : i32
    %c0_i32_0 = arith.constant 0 : i32
    %c0_i32_1 = arith.constant 0 : i32
    return %arg0, %c0_i32, %c0_i32_0 : i32, i32, i32
  }
  func.func @transform_3(%arg0: i32, %arg1: memref<4xi32, #tpu.memory_space<smem>>) -> (i32, i32, i32) {
    %c0_i32 = arith.constant 0 : i32
    %c0_i32_0 = arith.constant 0 : i32
    %c0_i32_1 = arith.constant 0 : i32
    return %arg0, %c0_i32, %c0_i32_0 : i32, i32, i32
  }
  func.func @transform_4(%arg0: i32, %arg1: memref<4xi32, #tpu.memory_space<smem>>) -> (i32, i32, i32) {
    %c0_i32 = arith.constant 0 : i32
    %c0_i32_0 = arith.constant 0 : i32
    %c0_i32_1 = arith.constant 0 : i32
    return %arg0, %c0_i32, %c0_i32_0 : i32, i32, i32
  }
  func.func @transform_5(%arg0: i32, %arg1: memref<4xi32, #tpu.memory_space<smem>>) -> (i32, i32, i32) {
    %c0_i32 = arith.constant 0 : i32
    %c0_i32_0 = arith.constant 0 : i32
    %c0_i32_1 = arith.constant 0 : i32
    return %arg0, %c0_i32, %c0_i32_0 : i32, i32, i32
  }
}

module attributes {stable_mosaic.version = 11 : i64} {
  func.func @_out_conv_pass1(%arg0: i32, %arg1: i32, %arg2: memref<1x1x10x34x128xbf16, #tpu.memory_space<vmem>>, %arg3: memref<9x128x128xbf16, #tpu.memory_space<vmem>>, %arg4: memref<1x128xf32, #tpu.memory_space<vmem>>, %arg5: memref<1x1x256x128xf32, #tpu.memory_space<vmem>>, %arg6: memref<1x1x2x128xf32, #tpu.memory_space<vmem>>) attributes {dimension_semantics = [#tpu.dimension_semantics<parallel>, #tpu.dimension_semantics<parallel>], iteration_bounds = array<i64: 2, 4>, scalar_prefetch = 0 : i64, scratch_operands = 0 : i64, tpu.core_type = #tpu.core_type<tc>, window_params = [{transform_indices = @transform_0, window_bounds = array<i64: 1, 1, 10, 34, 128>}, {pipeline_mode = #tpu.pipeline_mode<synchronous>, transform_indices = @transform_1, window_bounds = array<i64: 9, 128, 128>}, {pipeline_mode = #tpu.pipeline_mode<synchronous>, transform_indices = @transform_2, window_bounds = array<i64: 1, 128>}, {transform_indices = @transform_3, window_bounds = array<i64: 1, 1, 256, 128>}, {transform_indices = @transform_4, window_bounds = array<i64: 1, 1, 2, 128>}]} {
    %cst = arith.constant 0.000000e+00 : f32
    %0 = vector.broadcast %cst : f32 to vector<256x128xf32>
    %c0 = arith.constant 0 : index
    %c0_0 = arith.constant 0 : index
    %c0_1 = arith.constant 0 : index
    %c0_2 = arith.constant 0 : index
    %c0_3 = arith.constant 0 : index
    %1 = vector.load %arg2[%c0, %c0_0, %c0_1, %c0_2, %c0_3] : memref<1x1x10x34x128xbf16, #tpu.memory_space<vmem>>, vector<1x1x8x32x128xbf16>
    %2 = vector.shape_cast %1 : vector<1x1x8x32x128xbf16> to vector<8x32x128xbf16>
    %3 = vector.shape_cast %2 : vector<8x32x128xbf16> to vector<256x128xbf16>
    %c0_4 = arith.constant 0 : index
    %c0_5 = arith.constant 0 : index
    %c0_6 = arith.constant 0 : index
    %4 = vector.load %arg3[%c0_4, %c0_5, %c0_6] : memref<9x128x128xbf16, #tpu.memory_space<vmem>>, vector<1x128x128xbf16>
    %5 = vector.shape_cast %4 : vector<1x128x128xbf16> to vector<128x128xbf16>
    %cst_7 = arith.constant dense<0.000000e+00> : vector<256x128xf32>
    %6 = tpu.matmul %3, %5, %cst_7 {dimension_numbers = #tpu.dot_dimension_numbers<[1], [0], [0], [1], [0, 0, 1, 1], [], []>} : vector<256x128xbf16>, vector<128x128xbf16>, vector<256x128xf32> -> vector<256x128xf32>
    %7 = arith.addf %0, %6 : vector<256x128xf32>
    %c0_8 = arith.constant 0 : index
    %c0_9 = arith.constant 0 : index
    %c0_10 = arith.constant 0 : index
    %c1 = arith.constant 1 : index
    %c0_11 = arith.constant 0 : index
    %8 = vector.load %arg2[%c0_8, %c0_9, %c0_10, %c1, %c0_11] : memref<1x1x10x34x128xbf16, #tpu.memory_space<vmem>>, vector<1x1x8x32x128xbf16>
    %9 = vector.shape_cast %8 : vector<1x1x8x32x128xbf16> to vector<8x32x128xbf16>
    %10 = vector.shape_cast %9 : vector<8x32x128xbf16> to vector<256x128xbf16>
    %c1_12 = arith.constant 1 : index
    %c0_13 = arith.constant 0 : index
    %c0_14 = arith.constant 0 : index
    %11 = vector.load %arg3[%c1_12, %c0_13, %c0_14] : memref<9x128x128xbf16, #tpu.memory_space<vmem>>, vector<1x128x128xbf16>
    %12 = vector.shape_cast %11 : vector<1x128x128xbf16> to vector<128x128xbf16>
    %cst_15 = arith.constant dense<0.000000e+00> : vector<256x128xf32>
    %13 = tpu.matmul %10, %12, %cst_15 {dimension_numbers = #tpu.dot_dimension_numbers<[1], [0], [0], [1], [0, 0, 1, 1], [], []>} : vector<256x128xbf16>, vector<128x128xbf16>, vector<256x128xf32> -> vector<256x128xf32>
    %14 = arith.addf %7, %13 : vector<256x128xf32>
    %c0_16 = arith.constant 0 : index
    %c0_17 = arith.constant 0 : index
    %c0_18 = arith.constant 0 : index
    %c2 = arith.constant 2 : index
    %c0_19 = arith.constant 0 : index
    %15 = vector.load %arg2[%c0_16, %c0_17, %c0_18, %c2, %c0_19] : memref<1x1x10x34x128xbf16, #tpu.memory_space<vmem>>, vector<1x1x8x32x128xbf16>
    %16 = vector.shape_cast %15 : vector<1x1x8x32x128xbf16> to vector<8x32x128xbf16>
    %17 = vector.shape_cast %16 : vector<8x32x128xbf16> to vector<256x128xbf16>
    %c2_20 = arith.constant 2 : index
    %c0_21 = arith.constant 0 : index
    %c0_22 = arith.constant 0 : index
    %18 = vector.load %arg3[%c2_20, %c0_21, %c0_22] : memref<9x128x128xbf16, #tpu.memory_space<vmem>>, vector<1x128x128xbf16>
    %19 = vector.shape_cast %18 : vector<1x128x128xbf16> to vector<128x128xbf16>
    %cst_23 = arith.constant dense<0.000000e+00> : vector<256x128xf32>
    %20 = tpu.matmul %17, %19, %cst_23 {dimension_numbers = #tpu.dot_dimension_numbers<[1], [0], [0], [1], [0, 0, 1, 1], [], []>} : vector<256x128xbf16>, vector<128x128xbf16>, vector<256x128xf32> -> vector<256x128xf32>
    %21 = arith.addf %14, %20 : vector<256x128xf32>
    %c0_24 = arith.constant 0 : index
    %c0_25 = arith.constant 0 : index
    %c1_26 = arith.constant 1 : index
    %c0_27 = arith.constant 0 : index
    %c0_28 = arith.constant 0 : index
    %22 = vector.load %arg2[%c0_24, %c0_25, %c1_26, %c0_27, %c0_28] : memref<1x1x10x34x128xbf16, #tpu.memory_space<vmem>>, vector<1x1x8x32x128xbf16>
    %23 = vector.shape_cast %22 : vector<1x1x8x32x128xbf16> to vector<8x32x128xbf16>
    %24 = vector.shape_cast %23 : vector<8x32x128xbf16> to vector<256x128xbf16>
    %c3 = arith.constant 3 : index
    %c0_29 = arith.constant 0 : index
    %c0_30 = arith.constant 0 : index
    %25 = vector.load %arg3[%c3, %c0_29, %c0_30] : memref<9x128x128xbf16, #tpu.memory_space<vmem>>, vector<1x128x128xbf16>
    %26 = vector.shape_cast %25 : vector<1x128x128xbf16> to vector<128x128xbf16>
    %cst_31 = arith.constant dense<0.000000e+00> : vector<256x128xf32>
    %27 = tpu.matmul %24, %26, %cst_31 {dimension_numbers = #tpu.dot_dimension_numbers<[1], [0], [0], [1], [0, 0, 1, 1], [], []>} : vector<256x128xbf16>, vector<128x128xbf16>, vector<256x128xf32> -> vector<256x128xf32>
    %28 = arith.addf %21, %27 : vector<256x128xf32>
    %c0_32 = arith.constant 0 : index
    %c0_33 = arith.constant 0 : index
    %c1_34 = arith.constant 1 : index
    %c1_35 = arith.constant 1 : index
    %c0_36 = arith.constant 0 : index
    %29 = vector.load %arg2[%c0_32, %c0_33, %c1_34, %c1_35, %c0_36] : memref<1x1x10x34x128xbf16, #tpu.memory_space<vmem>>, vector<1x1x8x32x128xbf16>
    %30 = vector.shape_cast %29 : vector<1x1x8x32x128xbf16> to vector<8x32x128xbf16>
    %31 = vector.shape_cast %30 : vector<8x32x128xbf16> to vector<256x128xbf16>
    %c4 = arith.constant 4 : index
    %c0_37 = arith.constant 0 : index
    %c0_38 = arith.constant 0 : index
    %32 = vector.load %arg3[%c4, %c0_37, %c0_38] : memref<9x128x128xbf16, #tpu.memory_space<vmem>>, vector<1x128x128xbf16>
    %33 = vector.shape_cast %32 : vector<1x128x128xbf16> to vector<128x128xbf16>
    %cst_39 = arith.constant dense<0.000000e+00> : vector<256x128xf32>
    %34 = tpu.matmul %31, %33, %cst_39 {dimension_numbers = #tpu.dot_dimension_numbers<[1], [0], [0], [1], [0, 0, 1, 1], [], []>} : vector<256x128xbf16>, vector<128x128xbf16>, vector<256x128xf32> -> vector<256x128xf32>
    %35 = arith.addf %28, %34 : vector<256x128xf32>
    %c0_40 = arith.constant 0 : index
    %c0_41 = arith.constant 0 : index
    %c1_42 = arith.constant 1 : index
    %c2_43 = arith.constant 2 : index
    %c0_44 = arith.constant 0 : index
    %36 = vector.load %arg2[%c0_40, %c0_41, %c1_42, %c2_43, %c0_44] : memref<1x1x10x34x128xbf16, #tpu.memory_space<vmem>>, vector<1x1x8x32x128xbf16>
    %37 = vector.shape_cast %36 : vector<1x1x8x32x128xbf16> to vector<8x32x128xbf16>
    %38 = vector.shape_cast %37 : vector<8x32x128xbf16> to vector<256x128xbf16>
    %c5 = arith.constant 5 : index
    %c0_45 = arith.constant 0 : index
    %c0_46 = arith.constant 0 : index
    %39 = vector.load %arg3[%c5, %c0_45, %c0_46] : memref<9x128x128xbf16, #tpu.memory_space<vmem>>, vector<1x128x128xbf16>
    %40 = vector.shape_cast %39 : vector<1x128x128xbf16> to vector<128x128xbf16>
    %cst_47 = arith.constant dense<0.000000e+00> : vector<256x128xf32>
    %41 = tpu.matmul %38, %40, %cst_47 {dimension_numbers = #tpu.dot_dimension_numbers<[1], [0], [0], [1], [0, 0, 1, 1], [], []>} : vector<256x128xbf16>, vector<128x128xbf16>, vector<256x128xf32> -> vector<256x128xf32>
    %42 = arith.addf %35, %41 : vector<256x128xf32>
    %c0_48 = arith.constant 0 : index
    %c0_49 = arith.constant 0 : index
    %c2_50 = arith.constant 2 : index
    %c0_51 = arith.constant 0 : index
    %c0_52 = arith.constant 0 : index
    %43 = vector.load %arg2[%c0_48, %c0_49, %c2_50, %c0_51, %c0_52] : memref<1x1x10x34x128xbf16, #tpu.memory_space<vmem>>, vector<1x1x8x32x128xbf16>
    %44 = vector.shape_cast %43 : vector<1x1x8x32x128xbf16> to vector<8x32x128xbf16>
    %45 = vector.shape_cast %44 : vector<8x32x128xbf16> to vector<256x128xbf16>
    %c6 = arith.constant 6 : index
    %c0_53 = arith.constant 0 : index
    %c0_54 = arith.constant 0 : index
    %46 = vector.load %arg3[%c6, %c0_53, %c0_54] : memref<9x128x128xbf16, #tpu.memory_space<vmem>>, vector<1x128x128xbf16>
    %47 = vector.shape_cast %46 : vector<1x128x128xbf16> to vector<128x128xbf16>
    %cst_55 = arith.constant dense<0.000000e+00> : vector<256x128xf32>
    %48 = tpu.matmul %45, %47, %cst_55 {dimension_numbers = #tpu.dot_dimension_numbers<[1], [0], [0], [1], [0, 0, 1, 1], [], []>} : vector<256x128xbf16>, vector<128x128xbf16>, vector<256x128xf32> -> vector<256x128xf32>
    %49 = arith.addf %42, %48 : vector<256x128xf32>
    %c0_56 = arith.constant 0 : index
    %c0_57 = arith.constant 0 : index
    %c2_58 = arith.constant 2 : index
    %c1_59 = arith.constant 1 : index
    %c0_60 = arith.constant 0 : index
    %50 = vector.load %arg2[%c0_56, %c0_57, %c2_58, %c1_59, %c0_60] : memref<1x1x10x34x128xbf16, #tpu.memory_space<vmem>>, vector<1x1x8x32x128xbf16>
    %51 = vector.shape_cast %50 : vector<1x1x8x32x128xbf16> to vector<8x32x128xbf16>
    %52 = vector.shape_cast %51 : vector<8x32x128xbf16> to vector<256x128xbf16>
    %c7 = arith.constant 7 : index
    %c0_61 = arith.constant 0 : index
    %c0_62 = arith.constant 0 : index
    %53 = vector.load %arg3[%c7, %c0_61, %c0_62] : memref<9x128x128xbf16, #tpu.memory_space<vmem>>, vector<1x128x128xbf16>
    %54 = vector.shape_cast %53 : vector<1x128x128xbf16> to vector<128x128xbf16>
    %cst_63 = arith.constant dense<0.000000e+00> : vector<256x128xf32>
    %55 = tpu.matmul %52, %54, %cst_63 {dimension_numbers = #tpu.dot_dimension_numbers<[1], [0], [0], [1], [0, 0, 1, 1], [], []>} : vector<256x128xbf16>, vector<128x128xbf16>, vector<256x128xf32> -> vector<256x128xf32>
    %56 = arith.addf %49, %55 : vector<256x128xf32>
    %c0_64 = arith.constant 0 : index
    %c0_65 = arith.constant 0 : index
    %c2_66 = arith.constant 2 : index
    %c2_67 = arith.constant 2 : index
    %c0_68 = arith.constant 0 : index
    %57 = vector.load %arg2[%c0_64, %c0_65, %c2_66, %c2_67, %c0_68] : memref<1x1x10x34x128xbf16, #tpu.memory_space<vmem>>, vector<1x1x8x32x128xbf16>
    %58 = vector.shape_cast %57 : vector<1x1x8x32x128xbf16> to vector<8x32x128xbf16>
    %59 = vector.shape_cast %58 : vector<8x32x128xbf16> to vector<256x128xbf16>
    %c8 = arith.constant 8 : index
    %c0_69 = arith.constant 0 : index
    %c0_70 = arith.constant 0 : index
    %60 = vector.load %arg3[%c8, %c0_69, %c0_70] : memref<9x128x128xbf16, #tpu.memory_space<vmem>>, vector<1x128x128xbf16>
    %61 = vector.shape_cast %60 : vector<1x128x128xbf16> to vector<128x128xbf16>
    %cst_71 = arith.constant dense<0.000000e+00> : vector<256x128xf32>
    %62 = tpu.matmul %59, %61, %cst_71 {dimension_numbers = #tpu.dot_dimension_numbers<[1], [0], [0], [1], [0, 0, 1, 1], [], []>} : vector<256x128xbf16>, vector<128x128xbf16>, vector<256x128xf32> -> vector<256x128xf32>
    %63 = arith.addf %56, %62 : vector<256x128xf32>
    %c0_72 = arith.constant 0 : index
    %c0_73 = arith.constant 0 : index
    %64 = vector.load %arg4[%c0_72, %c0_73] : memref<1x128xf32, #tpu.memory_space<vmem>>, vector<1x128xf32>
    %65 = vector.broadcast %64 : vector<1x128xf32> to vector<256x128xf32>
    %66 = arith.addf %63, %65 : vector<256x128xf32>
    %c0_74 = arith.constant 0 : index
    %c0_75 = arith.constant 0 : index
    %c0_76 = arith.constant 0 : index
    %c0_77 = arith.constant 0 : index
    %67 = vector.load %arg5[%c0_74, %c0_75, %c0_76, %c0_77] : memref<1x1x256x128xf32, #tpu.memory_space<vmem>>, vector<1x1x256x128xf32>
    %68 = vector.shape_cast %67 : vector<1x1x256x128xf32> to vector<256x128xf32>
    %69 = vector.shape_cast %66 : vector<256x128xf32> to vector<1x1x256x128xf32>
    tpu.vector_store %arg5[%c0_74, %c0_75, %c0_76, %c0_77], %69 {strides = array<i32>} : memref<1x1x256x128xf32, #tpu.memory_space<vmem>>, vector<1x1x256x128xf32>,
    %cst_78 = arith.constant dense<0.000000e+00> : vector<128xf32>
    %70 = vector.multi_reduction <add>, %66, %cst_78 [0] : vector<256x128xf32> to vector<128xf32>
    %71 = vector.shape_cast %70 : vector<128xf32> to vector<1x128xf32>
    %72 = arith.mulf %66, %66 : vector<256x128xf32>
    %cst_79 = arith.constant dense<0.000000e+00> : vector<128xf32>
    %73 = vector.multi_reduction <add>, %72, %cst_79 [0] : vector<256x128xf32> to vector<128xf32>
    %74 = vector.shape_cast %73 : vector<128xf32> to vector<1x128xf32>
    %75 = tpu.concatenate %71, %74 in 0 : vector<1x128xf32>, vector<1x128xf32> -> vector<2x128xf32>
    %c0_80 = arith.constant 0 : index
    %c0_81 = arith.constant 0 : index
    %c0_82 = arith.constant 0 : index
    %c0_83 = arith.constant 0 : index
    %76 = vector.load %arg6[%c0_80, %c0_81, %c0_82, %c0_83] : memref<1x1x2x128xf32, #tpu.memory_space<vmem>>, vector<1x1x2x128xf32>
    %77 = vector.shape_cast %76 : vector<1x1x2x128xf32> to vector<2x128xf32>
    %78 = vector.shape_cast %75 : vector<2x128xf32> to vector<1x1x2x128xf32>
    tpu.vector_store %arg6[%c0_80, %c0_81, %c0_82, %c0_83], %78 {strides = array<i32>} : memref<1x1x2x128xf32, #tpu.memory_space<vmem>>, vector<1x1x2x128xf32>,
    return
  }
  func.func @transform_0(%arg0: i32, %arg1: i32) -> (i32, i32, i32, i32, i32) {
    %c0_i32 = arith.constant 0 : i32
    %c0_i32_0 = arith.constant 0 : i32
    %c0_i32_1 = arith.constant 0 : i32
    %c0_i32_2 = arith.constant 0 : i32
    return %arg0, %arg1, %c0_i32, %c0_i32_0, %c0_i32_1 : i32, i32, i32, i32, i32
  }
  func.func @transform_1(%arg0: i32, %arg1: i32) -> (i32, i32, i32) {
    %c0_i32 = arith.constant 0 : i32
    %c0_i32_0 = arith.constant 0 : i32
    %c0_i32_1 = arith.constant 0 : i32
    %c0_i32_2 = arith.constant 0 : i32
    return %c0_i32, %c0_i32_0, %c0_i32_1 : i32, i32, i32
  }
  func.func @transform_2(%arg0: i32, %arg1: i32) -> (i32, i32) {
    %c0_i32 = arith.constant 0 : i32
    %c0_i32_0 = arith.constant 0 : i32
    %c0_i32_1 = arith.constant 0 : i32
    return %c0_i32, %c0_i32_0 : i32, i32
  }
  func.func @transform_3(%arg0: i32, %arg1: i32) -> (i32, i32, i32, i32) {
    %c0_i32 = arith.constant 0 : i32
    %c0_i32_0 = arith.constant 0 : i32
    %c0_i32_1 = arith.constant 0 : i32
    return %arg0, %arg1, %c0_i32, %c0_i32_0 : i32, i32, i32, i32
  }
  func.func @transform_4(%arg0: i32, %arg1: i32) -> (i32, i32, i32, i32) {
    %c0_i32 = arith.constant 0 : i32
    %c0_i32_0 = arith.constant 0 : i32
    %c0_i32_1 = arith.constant 0 : i32
    return %arg0, %arg1, %c0_i32, %c0_i32_0 : i32, i32, i32, i32
  }
}

module attributes {stable_mosaic.version = 11 : i64} {
  func.func @_bn_lrelu_kernel(%arg0: i32, %arg1: memref<2048x128xf32, #tpu.memory_space<vmem>>, %arg2: memref<1x128xf32, #tpu.memory_space<vmem>>, %arg3: memref<1x128xf32, #tpu.memory_space<vmem>>, %arg4: memref<2048x128xf32, #tpu.memory_space<vmem>>) attributes {dimension_semantics = [#tpu.dimension_semantics<parallel>], iteration_bounds = array<i64: 1>, scalar_prefetch = 0 : i64, scratch_operands = 0 : i64, tpu.core_type = #tpu.core_type<tc>, window_params = [{transform_indices = @transform_0, window_bounds = array<i64: 2048, 128>}, {pipeline_mode = #tpu.pipeline_mode<synchronous>, transform_indices = @transform_1, window_bounds = array<i64: 1, 128>}, {pipeline_mode = #tpu.pipeline_mode<synchronous>, transform_indices = @transform_2, window_bounds = array<i64: 1, 128>}, {transform_indices = @transform_3, window_bounds = array<i64: 2048, 128>}]} {
    %c0 = arith.constant 0 : index
    %c0_0 = arith.constant 0 : index
    %0 = vector.load %arg1[%c0, %c0_0] : memref<2048x128xf32, #tpu.memory_space<vmem>>, vector<2048x128xf32>
    %c0_1 = arith.constant 0 : index
    %c0_2 = arith.constant 0 : index
    %1 = vector.load %arg2[%c0_1, %c0_2] : memref<1x128xf32, #tpu.memory_space<vmem>>, vector<1x128xf32>
    %2 = vector.broadcast %1 : vector<1x128xf32> to vector<2048x128xf32>
    %3 = arith.mulf %0, %2 : vector<2048x128xf32>
    %c0_3 = arith.constant 0 : index
    %c0_4 = arith.constant 0 : index
    %4 = vector.load %arg3[%c0_3, %c0_4] : memref<1x128xf32, #tpu.memory_space<vmem>>, vector<1x128xf32>
    %5 = vector.broadcast %4 : vector<1x128xf32> to vector<2048x128xf32>
    %6 = arith.addf %3, %5 : vector<2048x128xf32>
    %cst = arith.constant 0.000000e+00 : f32
    %7 = vector.broadcast %cst : f32 to vector<2048x128xf32>
    %8 = arith.cmpf oge, %6, %7 : vector<2048x128xf32>
    %cst_5 = arith.constant 2.000000e-01 : f32
    %9 = vector.broadcast %cst_5 : f32 to vector<2048x128xf32>
    %10 = arith.mulf %9, %6 : vector<2048x128xf32>
    %11 = arith.select %8, %6, %10 : vector<2048x128xi1>, vector<2048x128xf32>
    %c0_6 = arith.constant 0 : index
    %c0_7 = arith.constant 0 : index
    %12 = vector.load %arg4[%c0_6, %c0_7] : memref<2048x128xf32, #tpu.memory_space<vmem>>, vector<2048x128xf32>
    tpu.vector_store %arg4[%c0_6, %c0_7], %11 {strides = array<i32>} : memref<2048x128xf32, #tpu.memory_space<vmem>>, vector<2048x128xf32>,
    return
  }
  func.func @transform_0(%arg0: i32) -> (i32, i32) {
    %c0_i32 = arith.constant 0 : i32
    %c0_i32_0 = arith.constant 0 : i32
    return %arg0, %c0_i32 : i32, i32
  }
  func.func @transform_1(%arg0: i32) -> (i32, i32) {
    %c0_i32 = arith.constant 0 : i32
    %c0_i32_0 = arith.constant 0 : i32
    %c0_i32_1 = arith.constant 0 : i32
    return %c0_i32, %c0_i32_0 : i32, i32
  }
  func.func @transform_2(%arg0: i32) -> (i32, i32) {
    %c0_i32 = arith.constant 0 : i32
    %c0_i32_0 = arith.constant 0 : i32
    %c0_i32_1 = arith.constant 0 : i32
    return %c0_i32, %c0_i32_0 : i32, i32
  }
  func.func @transform_3(%arg0: i32) -> (i32, i32) {
    %c0_i32 = arith.constant 0 : i32
    %c0_i32_0 = arith.constant 0 : i32
    return %arg0, %c0_i32 : i32, i32
  }
}

</mosaic_0001>

<llo_original>
// kernel: spp_forward.3
$region0: #{spp_forward.3}
  #allocation0 [shape = 'u32[]', space=smem, size = 0x4, offset = 0x4, fixed_abs, tag = 'smem constant byte address 0x4 - core index']
  #allocation1 [shape = 'u32[72,128]{1,0:T(1,128)}', space=vmem, size = 0x9000, scoped, tag = 'internal scratch']
  #allocation2 [shape = 's32[1]{0}', space=sflag, size = 0x4, scoped, tag = 'scoped memory for spp_forward.3']
  #allocation3 [shape = 'u8[512]{0}', space=smem, size = 0x200, scoped, tag = 'prefetched SMEM operand 0']
  %s0 = inlined_call_operand.vmem [shape: s32[4], index: 0, kind: input, shape index: {}]
  %s1 = inlined_call_operand.vmem [shape: f32[4,128,128], index: 1, kind: input, shape index: {}]
  %s2 = inlined_call_operand.vmem [shape: f32[4,128,128], index: 2, kind: input, shape index: {}]
  %s3 = inlined_call_operand.vmem [shape: f32[4,1,128], index: 3, kind: input, shape index: {}]
  %s4 = inlined_call_operand.vmem [shape: f32[4,1,128], index: 4, kind: input, shape index: {}]
  %s5 = inlined_call_operand.vmem [shape: f32[4,1,128], index: 5, kind: input, shape index: {}]
  %s6 = inlined_call_operand.vmem [shape: f32[4,128,128], index: 6, kind: output, shape index: {}]
  %s7 = sld [smem:[#allocation0]]
  $region53: #{spp_forward.3} parent=0
    _
  %s9 = ssub.s32 1, %s7
  %s10 = scalar_select 0, %s9, %s7
  %s12 = sshll.u32 %s0, 4
  %s13 = int_to_ptr.vmem [resolvable:$true] %s12
  %15 = dma.vmem_to_smem %s13, 16, [#allocation3], [#allocation2]
  %17 = dma.done [#allocation2], 16
  %18 = sfence
  loop: start=0, step=1, limit=6
  $region2: #{spp_forward.3} parent=0 // loop_pre_header
    _
  $region3: #{spp_forward.3} parent=0 // loop_header
    %s20 = sphi 0, %s24
    %p21 = scmp.ge.s32.totalorder %s20, 6
    %s30 = sphi 0, %s32
    %s33 = sphi 0, %s30
    %s34 = sphi 0, %s33
    %s50 = sphi 0, %s34
    %s56 = sphi 0, %s58
    %s59 = sphi 0, %s56
    %s60 = sphi 0, %s59
    %s76 = sphi 0, %s60
    %s82 = sphi 0, %s84
    %s85 = sphi 0, %s82
    %s86 = sphi 0, %s85
    %s102 = sphi 0, %s86
    %s108 = sphi 0, %s110
    %s111 = sphi 0, %s108
    %s112 = sphi 0, %s111
    %s128 = sphi 0, %s112
    %s134 = sphi 0, %s136
    %s137 = sphi 0, %s134
    %s138 = sphi 0, %s137
    %s154 = sphi 0, %s138
    %s160 = sphi 0, %s162
    %s163 = sphi 0, %s160
    %s164 = sphi 0, %s163
    %s180 = sphi 0, %s164
  $region4: #{spp_forward.3} parent=0 // loop_header_branch
    %23 = sbr.rel (%p21) target = $region8
  $region5: #{spp_forward.3} parent=0 // loop_body
    %s25 = ssub.s32 %s20, 1
    %s26 = ssub.s32 %s20, 2
    %s27 = sadd.s32 %s20, 1
    %s28 = ssub.s32 %s20, %s27
    %p29 = scmp.eq.s32.totalorder %s28, 0
    %s31 = sadd.s32 %s30, 1
    %s32 = scalar_select %p29, %s30, %s31
    %p35 = pneg %p29
    %p36 = scmp.eq.s32.totalorder %s20, 3
    %p37 = por %p35, %p36
    %p38 = scmp.ne.s32.totalorder %s30, %s33
    %p39 = scmp.eq.s32.totalorder %s20, 0
    %p40 = por %p38, %p39
    %p41 = scmp.ne.s32.totalorder %s30, %s33
    %p42 = scmp.eq.s32.totalorder %s25, 3
    %p43 = por %p41, %p42
    %p44 = scmp.ne.s32.totalorder %s33, %s34
    %p45 = scmp.eq.s32.totalorder %s25, 0
    %p46 = por %p44, %p45
    %p47 = scmp.ne.s32.totalorder %s33, %s34
    %p48 = scmp.eq.s32.totalorder %s26, 3
    %p49 = por %p47, %p48
    %p51 = scmp.ne.s32.totalorder %s34, %s50
    %p52 = scmp.eq.s32.totalorder %s26, 0
    %p53 = por %p51, %p52
    %s54 = ssub.s32 %s20, %s27
    %p55 = scmp.eq.s32.totalorder %s54, 0
    %s57 = sadd.s32 %s56, 1
    %s58 = scalar_select %p55, %s56, %s57
    %p61 = pneg %p55
    %p62 = scmp.eq.s32.totalorder %s20, 3
    %p63 = por %p61, %p62
    %p64 = scmp.ne.s32.totalorder %s56, %s59
    %p65 = scmp.eq.s32.totalorder %s20, 0
    %p66 = por %p64, %p65
    %p67 = scmp.ne.s32.totalorder %s56, %s59
    %p68 = scmp.eq.s32.totalorder %s25, 3
    %p69 = por %p67, %p68
    %p70 = scmp.ne.s32.totalorder %s59, %s60
    %p71 = scmp.eq.s32.totalorder %s25, 0
    %p72 = por %p70, %p71
    %p73 = scmp.ne.s32.totalorder %s59, %s60
    %p74 = scmp.eq.s32.totalorder %s26, 3
    %p75 = por %p73, %p74
    %p77 = scmp.ne.s32.totalorder %s60, %s76
    %p78 = scmp.eq.s32.totalorder %s26, 0
    %p79 = por %p77, %p78
    %s80 = ssub.s32 %s20, %s27
    %p81 = scmp.eq.s32.totalorder %s80, 0
    %s83 = sadd.s32 %s82, 1
    %s84 = scalar_select %p81, %s82, %s83
    %p87 = pneg %p81
    %p88 = scmp.eq.s32.totalorder %s20, 3
    %p89 = por %p87, %p88
    %p90 = scmp.ne.s32.totalorder %s82, %s85
    %p91 = scmp.eq.s32.totalorder %s20, 0
    %p92 = por %p90, %p91
    %p93 = scmp.ne.s32.totalorder %s82, %s85
    %p94 = scmp.eq.s32.totalorder %s25, 3
    %p95 = por %p93, %p94
    %p96 = scmp.ne.s32.totalorder %s85, %s86
    %p97 = scmp.eq.s32.totalorder %s25, 0
    %p98 = por %p96, %p97
    %p99 = scmp.ne.s32.totalorder %s85, %s86
    %p100 = scmp.eq.s32.totalorder %s26, 3
    %p101 = por %p99, %p100
    %p103 = scmp.ne.s32.totalorder %s86, %s102
    %p104 = scmp.eq.s32.totalorder %s26, 0
    %p105 = por %p103, %p104
    %s106 = ssub.s32 %s20, %s27
    %p107 = scmp.eq.s32.totalorder %s106, 0
    %s109 = sadd.s32 %s108, 1
    %s110 = scalar_select %p107, %s108, %s109
    %p113 = pneg %p107
    %p114 = scmp.eq.s32.totalorder %s20, 3
    %p115 = por %p113, %p114
    %p116 = scmp.ne.s32.totalorder %s108, %s111
    %p117 = scmp.eq.s32.totalorder %s20, 0
    %p118 = por %p116, %p117
    %p119 = scmp.ne.s32.totalorder %s108, %s111
    %p120 = scmp.eq.s32.totalorder %s25, 3
    %p121 = por %p119, %p120
    %p122 = scmp.ne.s32.totalorder %s111, %s112
    %p123 = scmp.eq.s32.totalorder %s25, 0
    %p124 = por %p122, %p123
    %p125 = scmp.ne.s32.totalorder %s111, %s112
    %p126 = scmp.eq.s32.totalorder %s26, 3
    %p127 = por %p125, %p126
    %p129 = scmp.ne.s32.totalorder %s112, %s128
    %p130 = scmp.eq.s32.totalorder %s26, 0
    %p131 = por %p129, %p130
    %s132 = ssub.s32 %s20, %s27
    %p133 = scmp.eq.s32.totalorder %s132, 0
    %s135 = sadd.s32 %s134, 1
    %s136 = scalar_select %p133, %s134, %s135
    %p139 = pneg %p133
    %p140 = scmp.eq.s32.totalorder %s20, 3
    %p141 = por %p139, %p140
    %p142 = scmp.ne.s32.totalorder %s134, %s137
    %p143 = scmp.eq.s32.totalorder %s20, 0
    %p144 = por %p142, %p143
    %p145 = scmp.ne.s32.totalorder %s134, %s137
    %p146 = scmp.eq.s32.totalorder %s25, 3
    %p147 = por %p145, %p146
    %p148 = scmp.ne.s32.totalorder %s137, %s138
    %p149 = scmp.eq.s32.totalorder %s25, 0
    %p150 = por %p148, %p149
    %p151 = scmp.ne.s32.totalorder %s137, %s138
    %p152 = scmp.eq.s32.totalorder %s26, 3
    %p153 = por %p151, %p152
    %p155 = scmp.ne.s32.totalorder %s138, %s154
    %p156 = scmp.eq.s32.totalorder %s26, 0
    %p157 = por %p155, %p156
    %s158 = ssub.s32 %s20, %s27
    %p159 = scmp.eq.s32.totalorder %s158, 0
    %s161 = sadd.s32 %s160, 1
    %s162 = scalar_select %p159, %s160, %s161
    %p165 = pneg %p159
    %p166 = scmp.eq.s32.totalorder %s20, 3
    %p167 = por %p165, %p166
    %p168 = scmp.ne.s32.totalorder %s160, %s163
    %p169 = scmp.eq.s32.totalorder %s20, 0
    %p170 = por %p168, %p169
    %p171 = scmp.ne.s32.totalorder %s160, %s163
    %p172 = scmp.eq.s32.totalorder %s25, 3
    %p173 = por %p171, %p172
    %p174 = scmp.ne.s32.totalorder %s163, %s164
    %p175 = scmp.eq.s32.totalorder %s25, 0
    %p176 = por %p174, %p175
    %p177 = scmp.ne.s32.totalorder %s163, %s164
    %p178 = scmp.eq.s32.totalorder %s26, 3
    %p179 = por %p177, %p178
    %p181 = scmp.ne.s32.totalorder %s164, %s180
    %p182 = scmp.eq.s32.totalorder %s26, 0
    %p183 = por %p181, %p182
    %p184 = scmp.le.s32.totalorder 1, %s20
    %p185 = scmp.lt.s32.totalorder %s20, 5
    %p186 = pnand %p184, %p185
    %p187 = pneg %p186
    // Predicated region
    $region9: #{spp_forward.3} parent=5 // pred_check
      _
    $region10: #{spp_forward.3} parent=5 // pred_check_branch
      %189 = sbr.rel (%p186) target = $region12
    $region11: #{spp_forward.3} parent=5 // pred_region
      %s190 = ssub.s32 %s20, 1
    $region12: #{spp_forward.3} parent=5 // pred_fallthru
      _
    %p191 = scmp.lt.s32.totalorder %s20, 4
    // Predicated region
    $region13: #{spp_forward.3} parent=5 // pred_check
      %p192 = pneg %p191
    $region14: #{spp_forward.3} parent=5 // pred_check_branch
      %194 = sbr.rel (%p192) target = $region16
    $region15: #{spp_forward.3} parent=5 // pred_region
      // Predicated region
      $region17: #{spp_forward.3} parent=15 // pred_check
        %p195 = pneg %p40
      $region18: #{spp_forward.3} parent=15 // pred_check_branch
        %197 = sbr.rel (%p195) target = $region20
      $region19: #{spp_forward.3} parent=15 // pred_region
        %p198 = scmp.lt.s32.totalorder %s20, 3
        %s199 = scalar_select %p198, %s20, 3
        %s200 = smul.addr %s199, 16
        %s201 = smul.addr %s200, 8
        %s202 = scalar_lea.vmem %s1, %s201
      $region20: #{spp_forward.3} parent=15 // pred_fallthru
        _
      // Predicated region
      $region21: #{spp_forward.3} parent=15 // pred_check
        %p203 = pneg %p66
      $region22: #{spp_forward.3} parent=15 // pred_check_branch
        %205 = sbr.rel (%p203) target = $region24
      $region23: #{spp_forward.3} parent=15 // pred_region
        %p206 = scmp.lt.s32.totalorder %s20, 3
        %s207 = scalar_select %p206, %s20, 3
        %s208 = smul.addr %s207, 16
        %s209 = smul.addr %s208, 8
        %s210 = scalar_lea.vmem %s2, %s209
      $region24: #{spp_forward.3} parent=15 // pred_fallthru
        _
      // Predicated region
      $region25: #{spp_forward.3} parent=15 // pred_check
        %p211 = pneg %p92
      $region26: #{spp_forward.3} parent=15 // pred_check_branch
        %213 = sbr.rel (%p211) target = $region28
      $region27: #{spp_forward.3} parent=15 // pred_region
        %p214 = scmp.lt.s32.totalorder %s20, 3
        %s215 = scalar_select %p214, %s20, 3
        %s216 = scalar_lea.vmem %s3, %s215
      $region28: #{spp_forward.3} parent=15 // pred_fallthru
        _
      // Predicated region
      $region29: #{spp_forward.3} parent=15 // pred_check
        %p217 = pneg %p118
      $region30: #{spp_forward.3} parent=15 // pred_check_branch
        %219 = sbr.rel (%p217) target = $region32
      $region31: #{spp_forward.3} parent=15 // pred_region
        %p220 = scmp.lt.s32.totalorder %s20, 3
        %s221 = scalar_select %p220, %s20, 3
        %s222 = scalar_lea.vmem %s4, %s221
      $region32: #{spp_forward.3} parent=15 // pred_fallthru
        _
      // Predicated region
      $region33: #{spp_forward.3} parent=15 // pred_check
        %p223 = pneg %p144
      $region34: #{spp_forward.3} parent=15 // pred_check_branch
        %225 = sbr.rel (%p223) target = $region36
      $region35: #{spp_forward.3} parent=15 // pred_region
        %p226 = scmp.lt.s32.totalorder %s20, 3
        %s227 = scalar_select %p226, %s20, 3
        %s228 = scalar_lea.vmem %s5, %s227
      $region36: #{spp_forward.3} parent=15 // pred_fallthru
        _
    $region16: #{spp_forward.3} parent=5 // pred_fallthru
      _
    %p229 = scmp.le.s32.totalorder 1, %s20
    %p230 = scmp.lt.s32.totalorder %s20, 5
    %p231 = pnand %p229, %p230
    %p232 = pneg %p231
    // Predicated region
    $region37: #{spp_forward.3} parent=5 // pred_check
      _
    $region38: #{spp_forward.3} parent=5 // pred_check_branch
      %234 = sbr.rel (%p231) target = $region40
    $region39: #{spp_forward.3} parent=5 // pred_region
      %s235 = ssub.s32 %s20, 1
      %p236 = scmp.lt.s32.totalorder %s25, 3
      %s237 = scalar_select %p236, %s25, 3
      %s238 = smul.addr %s237, 16
      %s239 = smul.addr %s238, 8
      %s240 = scalar_lea.vmem %s1, %s239
      %p241 = pneg %p46
      %p242 = pneg %p43
      %p243 = scmp.lt.s32.totalorder %s25, 3
      %s244 = scalar_select %p243, %s25, 3
      %s245 = smul.addr %s244, 16
      %s246 = smul.addr %s245, 8
      %s247 = scalar_lea.vmem %s2, %s246
      %p248 = pneg %p72
      %p249 = pneg %p69
      %p250 = scmp.lt.s32.totalorder %s25, 3
      %s251 = scalar_select %p250, %s25, 3
      %s252 = scalar_lea.vmem %s3, %s251
      %p253 = pneg %p98
      %p254 = pneg %p95
      %p255 = scmp.lt.s32.totalorder %s25, 3
      %s256 = scalar_select %p255, %s25, 3
      %s257 = scalar_lea.vmem %s4, %s256
      %p258 = pneg %p124
      %p259 = pneg %p121
      %p260 = scmp.lt.s32.totalorder %s25, 3
      %s261 = scalar_select %p260, %s25, 3
      %s262 = scalar_lea.vmem %s5, %s261
      %p263 = pneg %p150
      %p264 = pneg %p147
      %p265 = pneg %p176
      %p266 = pneg %p173
      %p267 = scmp.lt.s32.totalorder %s25, 3
      %s268 = scalar_select %p267, %s25, 3
      %s269 = smul.addr %s268, 16
      %s270 = smul.addr %s269, 8
      %s271 = scalar_lea.vmem %s6, %s270
      %p272 = scmp.lt.s32.totalorder %s25, 3
      %s273 = scalar_select %p272, %s25, 3
      %s274 = smul.addr %s273, 16
      %s275 = smul.addr %s274, 8
      %s276 = scalar_lea.vmem %s1, %s275
      %p277 = scmp.lt.s32.totalorder %s25, 3
      %s278 = scalar_select %p277, %s25, 3
      %s279 = smul.addr %s278, 16
      %s280 = smul.addr %s279, 8
      %s281 = scalar_lea.vmem %s2, %s280
      %p282 = scmp.lt.s32.totalorder %s25, 3
      %s283 = scalar_select %p282, %s25, 3
      %s284 = scalar_lea.vmem %s3, %s283
      %p285 = scmp.lt.s32.totalorder %s25, 3
      %s286 = scalar_select %p285, %s25, 3
      %s287 = scalar_lea.vmem %s4, %s286
      %p288 = scmp.lt.s32.totalorder %s25, 3
      %s289 = scalar_select %p288, %s25, 3
      %s290 = scalar_lea.vmem %s5, %s289
      %p291 = scmp.lt.s32.totalorder %s25, 3
      %s292 = scalar_select %p291, %s25, 3
      %s293 = smul.addr %s292, 16
      %s294 = smul.addr %s293, 8
      %s295 = scalar_lea.vmem %s6, %s294
      %s296 = sld [smem:[#allocation3 + %s25]]
      %v297 = vld [vmem:[%s276] sm:$0xff]
      %v298 = vld [vmem:[%s276 + $0x8] sm:$0xff]
      %v299 = vld [vmem:[%s276 + $0x10] sm:$0xff]
      %v300 = vld [vmem:[%s276 + $0x18] sm:$0xff]
      %v301 = vld [vmem:[%s276 + $0x20] sm:$0xff]
      %v302 = vld [vmem:[%s276 + $0x28] sm:$0xff]
      %v303 = vld [vmem:[%s276 + $0x30] sm:$0xff]
      %v304 = vld [vmem:[%s276 + $0x38] sm:$0xff]
      %v305 = vld [vmem:[%s276 + $0x40] sm:$0xff]
      %v306 = vld [vmem:[%s276 + $0x48] sm:$0xff]
      %v307 = vld [vmem:[%s276 + $0x50] sm:$0xff]
      %v308 = vld [vmem:[%s276 + $0x58] sm:$0xff]
      %v309 = vld [vmem:[%s276 + $0x60] sm:$0xff]
      %v310 = vld [vmem:[%s276 + $0x68] sm:$0xff]
      %v311 = vld [vmem:[%s276 + $0x70] sm:$0xff]
      %v312 = vld [vmem:[%s276 + $0x78] sm:$0xff]
      %v313 = vld [vmem:[%s281] sm:$0xff]
      %v314 = vld [vmem:[%s281 + $0x8] sm:$0xff]
      %v315 = vld [vmem:[%s281 + $0x10] sm:$0xff]
      %v316 = vld [vmem:[%s281 + $0x18] sm:$0xff]
      %v317 = vld [vmem:[%s281 + $0x20] sm:$0xff]
      %v318 = vld [vmem:[%s281 + $0x28] sm:$0xff]
      %v319 = vld [vmem:[%s281 + $0x30] sm:$0xff]
      %v320 = vld [vmem:[%s281 + $0x38] sm:$0xff]
      %v321 = vld [vmem:[%s281 + $0x40] sm:$0xff]
      %v322 = vld [vmem:[%s281 + $0x48] sm:$0xff]
      %v323 = vld [vmem:[%s281 + $0x50] sm:$0xff]
      %v324 = vld [vmem:[%s281 + $0x58] sm:$0xff]
      %v325 = vld [vmem:[%s281 + $0x60] sm:$0xff]
      %v326 = vld [vmem:[%s281 + $0x68] sm:$0xff]
      %v327 = vld [vmem:[%s281 + $0x70] sm:$0xff]
      %v328 = vld [vmem:[%s281 + $0x78] sm:$0xff]
      %v329 = vld [vmem:[%s284] sm:$0x1]
      %v331 = vperm.slane %v329, 0
      %333 = vmatpush.msra.mxu0 %v328
      %334 = vmatpush.msra.mxu0 %v327
      %335 = vmatpush.msra.mxu0 %v326
      %336 = vmatpush.msra.mxu0 %v325
      %337 = vmatpush.msra.mxu0 %v324
      %338 = vmatpush.msra.mxu0 %v323
      %339 = vmatpush.msra.mxu0 %v322
      %340 = vmatpush.msra.mxu0 %v321
      %341 = vmatpush.msra.mxu0 %v320
      %342 = vmatpush.msra.mxu0 %v319
      %343 = vmatpush.msra.mxu0 %v318
      %344 = vmatpush.msra.mxu0 %v317
      %345 = vmatpush.msra.mxu0 %v316
      %346 = vmatpush.msra.mxu0 %v315
      %347 = vmatpush.msra.mxu0 %v314
      %348 = vmatpush.msra.mxu0 %v313
      %349 = vmatmul.f32.gmra.mxu0 %v297
      %v350 = vpop.f32.mrf.mxu0
      %v351 = vadd.f32 %v331, %v350
      %352 = vmatmul.f32.gmra.mxu0 %v298
      %v353 = vpop.f32.mrf.mxu0
      %v354 = vadd.f32 %v331, %v353
      %355 = vmatmul.f32.gmra.mxu0 %v299
      %v356 = vpop.f32.mrf.mxu0
      %v357 = vadd.f32 %v331, %v356
      %358 = vmatmul.f32.gmra.mxu0 %v300
      %v359 = vpop.f32.mrf.mxu0
      %v360 = vadd.f32 %v331, %v359
      %361 = vmatmul.f32.gmra.mxu0 %v301
      %v362 = vpop.f32.mrf.mxu0
      %v363 = vadd.f32 %v331, %v362
      %364 = vmatmul.f32.gmra.mxu0 %v302
      %v365 = vpop.f32.mrf.mxu0
      %v366 = vadd.f32 %v331, %v365
      %367 = vmatmul.f32.gmra.mxu0 %v303
      %v368 = vpop.f32.mrf.mxu0
      %v369 = vadd.f32 %v331, %v368
      %370 = vmatmul.f32.gmra.mxu0 %v304
      %v371 = vpop.f32.mrf.mxu0
      %v372 = vadd.f32 %v331, %v371
      %373 = vmatmul.f32.gmra.mxu0 %v305
      %v374 = vpop.f32.mrf.mxu0
      %v375 = vadd.f32 %v331, %v374
      %376 = vmatmul.f32.gmra.mxu0 %v306
      %v377 = vpop.f32.mrf.mxu0
      %v378 = vadd.f32 %v331, %v377
      %379 = vmatmul.f32.gmra.mxu0 %v307
      %v380 = vpop.f32.mrf.mxu0
      %v381 = vadd.f32 %v331, %v380
      %382 = vmatmul.f32.gmra.mxu0 %v308
      %v383 = vpop.f32.mrf.mxu0
      %v384 = vadd.f32 %v331, %v383
      %385 = vmatmul.f32.gmra.mxu0 %v309
      %v386 = vpop.f32.mrf.mxu0
      %v387 = vadd.f32 %v331, %v386
      %388 = vmatmul.f32.gmra.mxu0 %v310
      %v389 = vpop.f32.mrf.mxu0
      %v390 = vadd.f32 %v331, %v389
      %391 = vmatmul.f32.gmra.mxu0 %v311
      %v392 = vpop.f32.mrf.mxu0
      %v393 = vadd.f32 %v331, %v392
      %394 = vmatmul.f32.gmra.mxu0 %v312
      %v395 = vpop.f32.mrf.mxu0
      %v396 = vadd.f32 %v331, %v395
      %397 = vdwg.mxu0
      %v398 = vlaneseq
      %v399 = vshrl.u32 %v398, 7
      %v400 = vadd.s32 %v399, 8
      %v401 = vadd.s32 %v399, 16
      %v402 = vadd.s32 %v399, 24
      %v403 = vadd.s32 %v399, 32
      %v404 = vadd.s32 %v399, 40
      %v405 = vadd.s32 %v399, 48
      %v406 = vadd.s32 %v399, 56
      %v407 = vadd.s32 %v399, 64
      %v408 = vadd.s32 %v399, 72
      %v409 = vadd.s32 %v399, 80
      %v410 = vadd.s32 %v399, 88
      %v411 = vadd.s32 %v399, 96
      %v412 = vadd.s32 %v399, 104
      %v413 = vadd.s32 %v399, 112
      %v414 = vadd.s32 %v399, 120
      %v415 = vstv %s296
      %vm416 = vcmp.lt.s32.totalorder %v399, %v415
      %vm417 = vcmp.lt.s32.totalorder %v400, %v415
      %vm418 = vcmp.lt.s32.totalorder %v401, %v415
      %vm419 = vcmp.lt.s32.totalorder %v402, %v415
      %vm420 = vcmp.lt.s32.totalorder %v403, %v415
      %vm421 = vcmp.lt.s32.totalorder %v404, %v415
      %vm422 = vcmp.lt.s32.totalorder %v405, %v415
      %vm423 = vcmp.lt.s32.totalorder %v406, %v415
      %vm424 = vcmp.lt.s32.totalorder %v407, %v415
      %vm425 = vcmp.lt.s32.totalorder %v408, %v415
      %vm426 = vcmp.lt.s32.totalorder %v409, %v415
      %vm427 = vcmp.lt.s32.totalorder %v410, %v415
      %vm428 = vcmp.lt.s32.totalorder %v411, %v415
      %vm429 = vcmp.lt.s32.totalorder %v412, %v415
      %vm430 = vcmp.lt.s32.totalorder %v413, %v415
      %vm431 = vcmp.lt.s32.totalorder %v414, %v415
      %v432 = vsel %vm416, 1, 0
      %v433 = vsel %vm417, 1, 0
      %v434 = vsel %vm418, 1, 0
      %v435 = vsel %vm419, 1, 0
      %v436 = vsel %vm420, 1, 0
      %v437 = vsel %vm421, 1, 0
      %v438 = vsel %vm422, 1, 0
      %v439 = vsel %vm423, 1, 0
      %v440 = vsel %vm424, 1, 0
      %v441 = vsel %vm425, 1, 0
      %v442 = vsel %vm426, 1, 0
      %v443 = vsel %vm427, 1, 0
      %v444 = vsel %vm428, 1, 0
      %v445 = vsel %vm429, 1, 0
      %v446 = vsel %vm430, 1, 0
      %v447 = vsel %vm431, 1, 0
      %v448 = vcvt.s32.f32 %v432
      %v449 = vcvt.s32.f32 %v433
      %v450 = vcvt.s32.f32 %v434
      %v451 = vcvt.s32.f32 %v435
      %v452 = vcvt.s32.f32 %v436
      %v453 = vcvt.s32.f32 %v437
      %v454 = vcvt.s32.f32 %v438
      %v455 = vcvt.s32.f32 %v439
      %v456 = vcvt.s32.f32 %v440
      %v457 = vcvt.s32.f32 %v441
      %v458 = vcvt.s32.f32 %v442
      %v459 = vcvt.s32.f32 %v443
      %v460 = vcvt.s32.f32 %v444
      %v461 = vcvt.s32.f32 %v445
      %v462 = vcvt.s32.f32 %v446
      %v463 = vcvt.s32.f32 %v447
      %s464 = scvt.s32.f32 %s296
      %v465 = vmul.f32 %v351, %v448
      %v466 = vmul.f32 %v354, %v449
      %v467 = vmul.f32 %v357, %v450
      %v468 = vmul.f32 %v360, %v451
      %v469 = vmul.f32 %v363, %v452
      %v470 = vmul.f32 %v366, %v453
      %v471 = vmul.f32 %v369, %v454
      %v472 = vmul.f32 %v372, %v455
      %v473 = vmul.f32 %v375, %v456
      %v474 = vmul.f32 %v378, %v457
      %v475 = vmul.f32 %v381, %v458
      %v476 = vmul.f32 %v384, %v459
      %v477 = vmul.f32 %v387, %v460
      %v478 = vmul.f32 %v390, %v461
      %v479 = vmul.f32 %v393, %v462
      %v480 = vmul.f32 %v396, %v463
      %v481 = vadd.f32 %v465, %v466
      %v482 = vadd.f32 %v481, %v467
      %v483 = vadd.f32 %v482, %v468
      %v484 = vadd.f32 %v483, %v469
      %v485 = vadd.f32 %v484, %v470
      %v486 = vadd.f32 %v485, %v471
      %v487 = vadd.f32 %v486, %v472
      %v488 = vadd.f32 %v487, %v473
      %v489 = vadd.f32 %v488, %v474
      %v490 = vadd.f32 %v489, %v475
      %v491 = vadd.f32 %v490, %v476
      %v492 = vadd.f32 %v491, %v477
      %v493 = vadd.f32 %v492, %v478
      %v494 = vadd.f32 %v493, %v479
      %v495 = vadd.f32 %v494, %v480
      %v496 = vrot.slane %v495, 4
      %v497 = vadd.f32 %v495, %v496
      %v498 = vrot.slane %v497, 2
      %v499 = vadd.f32 %v497, %v498
      %v500 = vrot.slane %v499, 1
      %v501 = vadd.f32 %v499, %v500
      %v502 = vstv %s464
      %v503 = vrcp.pop %v502
      %v504 = vmul.f32 %v502, %v503
      %v505 = vsub.f32 1.0, %v504
      %v506 = vmul.f32 %v503, %v505
      %v507 = vadd.f32 %v503, %v506
      %vm508 = vweird.f32 %v502
      %vm509 = vweird.f32 %v503
      %vm510 = vmor %vm508, %vm509
      %v511 = vsel %vm510, %v503, %v507
      %v512 = vand.u32 2147483647, %v502
      %vm513 = vcmp.eq.f32.partialorder %v512, 8.507059e+37
      %v514 = vand.u32 %v502, 2147483648
      %v515 = vor.u32 1.1754944e-38, %v514
      %v516 = vsel %vm513, %v515, %v511
      %v517 = vmul.f32 %v501, %v516
      %v518 = vsub.f32 %v351, %v517
      %v519 = vsub.f32 %v354, %v517
      %v520 = vsub.f32 %v357, %v517
      %v521 = vsub.f32 %v360, %v517
      %v522 = vsub.f32 %v363, %v517
      %v523 = vsub.f32 %v366, %v517
      %v524 = vsub.f32 %v369, %v517
      %v525 = vsub.f32 %v372, %v517
      %v526 = vsub.f32 %v375, %v517
      %v527 = vsub.f32 %v378, %v517
      %v528 = vsub.f32 %v381, %v517
      %v529 = vsub.f32 %v384, %v517
      %v530 = vsub.f32 %v387, %v517
      %v531 = vsub.f32 %v390, %v517
      %v532 = vsub.f32 %v393, %v517
      %v533 = vsub.f32 %v396, %v517
      %v534 = vmul.f32 %v518, %v518
      %v535 = vmul.f32 %v519, %v519
      %v536 = vmul.f32 %v520, %v520
      %v537 = vmul.f32 %v521, %v521
      %v538 = vmul.f32 %v522, %v522
      %v539 = vmul.f32 %v523, %v523
      %v540 = vmul.f32 %v524, %v524
      %v541 = vmul.f32 %v525, %v525
      %v542 = vmul.f32 %v526, %v526
      %v543 = vmul.f32 %v527, %v527
      %v544 = vmul.f32 %v528, %v528
      %v545 = vmul.f32 %v529, %v529
      %v546 = vmul.f32 %v530, %v530
      %v547 = vmul.f32 %v531, %v531
      %v548 = vmul.f32 %v532, %v532
      %v549 = vmul.f32 %v533, %v533
      %v550 = vmul.f32 %v534, %v448
      %v551 = vmul.f32 %v535, %v449
      %v552 = vmul.f32 %v536, %v450
      %v553 = vmul.f32 %v537, %v451
      %v554 = vmul.f32 %v538, %v452
      %v555 = vmul.f32 %v539, %v453
      %v556 = vmul.f32 %v540, %v454
      %v557 = vmul.f32 %v541, %v455
      %v558 = vmul.f32 %v542, %v456
      %v559 = vmul.f32 %v543, %v457
      %v560 = vmul.f32 %v544, %v458
      %v561 = vmul.f32 %v545, %v459
      %v562 = vmul.f32 %v546, %v460
      %v563 = vmul.f32 %v547, %v461
      %v564 = vmul.f32 %v548, %v462
      %v565 = vmul.f32 %v549, %v463
      %v566 = vadd.f32 %v550, %v551
      %v567 = vadd.f32 %v566, %v552
      %v568 = vadd.f32 %v567, %v553
      %v569 = vadd.f32 %v568, %v554
      %v570 = vadd.f32 %v569, %v555
      %v571 = vadd.f32 %v570, %v556
      %v572 = vadd.f32 %v571, %v557
      %v573 = vadd.f32 %v572, %v558
      %v574 = vadd.f32 %v573, %v559
      %v575 = vadd.f32 %v574, %v560
      %v576 = vadd.f32 %v575, %v561
      %v577 = vadd.f32 %v576, %v562
      %v578 = vadd.f32 %v577, %v563
      %v579 = vadd.f32 %v578, %v564
      %v580 = vadd.f32 %v579, %v565
      %v581 = vrot.slane %v580, 4
      %v582 = vadd.f32 %v580, %v581
      %v583 = vrot.slane %v582, 2
      %v584 = vadd.f32 %v582, %v583
      %v585 = vrot.slane %v584, 1
      %v586 = vadd.f32 %v584, %v585
      %v587 = vmul.f32 %v586, %v516
      %v588 = vadd.f32 %v587, 1e-05
      %v589 = vrsqrt.pop %v588
      %v590 = vmul.f32 %v589, %v588
      %v591 = vmul.f32 %v590, %v589
      %v592 = vmul.f32 0.5, %v591
      %v593 = vsub.f32 1.5, %v592
      %v594 = vmul.f32 %v589, %v593
      %vm595 = vweird.f32 %v588
      %vm596 = vweird.f32 %v589
      %vm597 = vmor %vm595, %vm596
      %v598 = vsel %vm597, %v589, %v594
      %v599 = vmul.f32 %v518, %v598
      %v600 = vmul.f32 %v519, %v598
      %v601 = vmul.f32 %v520, %v598
      %v602 = vmul.f32 %v521, %v598
      %v603 = vmul.f32 %v522, %v598
      %v604 = vmul.f32 %v523, %v598
      %v605 = vmul.f32 %v524, %v598
      %v606 = vmul.f32 %v525, %v598
      %v607 = vmul.f32 %v526, %v598
      %v608 = vmul.f32 %v527, %v598
      %v609 = vmul.f32 %v528, %v598
      %v610 = vmul.f32 %v529, %v598
      %v611 = vmul.f32 %v530, %v598
      %v612 = vmul.f32 %v531, %v598
      %v613 = vmul.f32 %v532, %v598
      %v614 = vmul.f32 %v533, %v598
      %v615 = vld [vmem:[%s287] sm:$0x1]
      %v617 = vperm.slane %v615, 0
      %v619 = vmul.f32 %v599, %v617
      %v620 = vmul.f32 %v600, %v617
      %v621 = vmul.f32 %v601, %v617
      %v622 = vmul.f32 %v602, %v617
      %v623 = vmul.f32 %v603, %v617
      %v624 = vmul.f32 %v604, %v617
      %v625 = vmul.f32 %v605, %v617
      %v626 = vmul.f32 %v606, %v617
      %v627 = vmul.f32 %v607, %v617
      %v628 = vmul.f32 %v608, %v617
      %v629 = vmul.f32 %v609, %v617
      %v630 = vmul.f32 %v610, %v617
      %v631 = vmul.f32 %v611, %v617
      %v632 = vmul.f32 %v612, %v617
      %v633 = vmul.f32 %v613, %v617
      %v634 = vmul.f32 %v614, %v617
      %v635 = vld [vmem:[%s290] sm:$0x1]
      %v637 = vperm.slane %v635, 0
      %v639 = vadd.f32 %v619, %v637
      %v640 = vadd.f32 %v620, %v637
      %v641 = vadd.f32 %v621, %v637
      %v642 = vadd.f32 %v622, %v637
      %v643 = vadd.f32 %v623, %v637
      %v644 = vadd.f32 %v624, %v637
      %v645 = vadd.f32 %v625, %v637
      %v646 = vadd.f32 %v626, %v637
      %v647 = vadd.f32 %v627, %v637
      %v648 = vadd.f32 %v628, %v637
      %v649 = vadd.f32 %v629, %v637
      %v650 = vadd.f32 %v630, %v637
      %v651 = vadd.f32 %v631, %v637
      %v652 = vadd.f32 %v632, %v637
      %v653 = vadd.f32 %v633, %v637
      %v654 = vadd.f32 %v634, %v637
      %vm655 = vcmp.ge.f32.partialorder %v639, 0.0
      %vm656 = vcmp.ge.f32.partialorder %v640, 0.0
      %vm657 = vcmp.ge.f32.partialorder %v641, 0.0
      %vm658 = vcmp.ge.f32.partialorder %v642, 0.0
      %vm659 = vcmp.ge.f32.partialorder %v643, 0.0
      %vm660 = vcmp.ge.f32.partialorder %v644, 0.0
      %vm661 = vcmp.ge.f32.partialorder %v645, 0.0
      %vm662 = vcmp.ge.f32.partialorder %v646, 0.0
      %vm663 = vcmp.ge.f32.partialorder %v647, 0.0
      %vm664 = vcmp.ge.f32.partialorder %v648, 0.0
      %vm665 = vcmp.ge.f32.partialorder %v649, 0.0
      %vm666 = vcmp.ge.f32.partialorder %v650, 0.0
      %vm667 = vcmp.ge.f32.partialorder %v651, 0.0
      %vm668 = vcmp.ge.f32.partialorder %v652, 0.0
      %vm669 = vcmp.ge.f32.partialorder %v653, 0.0
      %vm670 = vcmp.ge.f32.partialorder %v654, 0.0
      %v671 = vmul.f32 %v639, 0.2
      %v672 = vmul.f32 %v640, 0.2
      %v673 = vmul.f32 %v641, 0.2
      %v674 = vmul.f32 %v642, 0.2
      %v675 = vmul.f32 %v643, 0.2
      %v676 = vmul.f32 %v644, 0.2
      %v677 = vmul.f32 %v645, 0.2
      %v678 = vmul.f32 %v646, 0.2
      %v679 = vmul.f32 %v647, 0.2
      %v680 = vmul.f32 %v648, 0.2
      %v681 = vmul.f32 %v649, 0.2
      %v682 = vmul.f32 %v650, 0.2
      %v683 = vmul.f32 %v651, 0.2
      %v684 = vmul.f32 %v652, 0.2
      %v685 = vmul.f32 %v653, 0.2
      %v686 = vmul.f32 %v654, 0.2
      %v687 = vsel %vm655, %v639, %v671
      %v688 = vsel %vm656, %v640, %v672
      %v689 = vsel %vm657, %v641, %v673
      %v690 = vsel %vm658, %v642, %v674
      %v691 = vsel %vm659, %v643, %v675
      %v692 = vsel %vm660, %v644, %v676
      %v693 = vsel %vm661, %v645, %v677
      %v694 = vsel %vm662, %v646, %v678
      %v695 = vsel %vm663, %v647, %v679
      %v696 = vsel %vm664, %v648, %v680
      %v697 = vsel %vm665, %v649, %v681
      %v698 = vsel %vm666, %v650, %v682
      %v699 = vsel %vm667, %v651, %v683
      %v700 = vsel %vm668, %v652, %v684
      %v701 = vsel %vm669, %v653, %v685
      %v702 = vsel %vm670, %v654, %v686
      %703 = vst [vmem:[%s295] sm:$0xff] %v687
      %704 = vst [vmem:[%s295 + $0x8] sm:$0xff] %v688
      %705 = vst [vmem:[%s295 + $0x10] sm:$0xff] %v689
      %706 = vst [vmem:[%s295 + $0x18] sm:$0xff] %v690
      %707 = vst [vmem:[%s295 + $0x20] sm:$0xff] %v691
      %708 = vst [vmem:[%s295 + $0x28] sm:$0xff] %v692
      %709 = vst [vmem:[%s295 + $0x30] sm:$0xff] %v693
      %710 = vst [vmem:[%s295 + $0x38] sm:$0xff] %v694
      %711 = vst [vmem:[%s295 + $0x40] sm:$0xff] %v695
      %712 = vst [vmem:[%s295 + $0x48] sm:$0xff] %v696
      %713 = vst [vmem:[%s295 + $0x50] sm:$0xff] %v697
      %714 = vst [vmem:[%s295 + $0x58] sm:$0xff] %v698
      %715 = vst [vmem:[%s295 + $0x60] sm:$0xff] %v699
      %716 = vst [vmem:[%s295 + $0x68] sm:$0xff] %v700
      %717 = vst [vmem:[%s295 + $0x70] sm:$0xff] %v701
      %718 = vst [vmem:[%s295 + $0x78] sm:$0xff] %v702
      %p719 = scmp.lt.s32.totalorder %s25, 3
      %s720 = scalar_select %p719, %s25, 3
      %s721 = smul.addr %s720, 16
      %s722 = smul.addr %s721, 8
      %s723 = scalar_lea.vmem %s6, %s722
      // Predicated region
      $region41: #{spp_forward.3} parent=39 // pred_check
        %p724 = pneg %p173
      $region42: #{spp_forward.3} parent=39 // pred_check_branch
        %726 = sbr.rel (%p724) target = $region44
      $region43: #{spp_forward.3} parent=39 // pred_region
        _
      $region44: #{spp_forward.3} parent=39 // pred_fallthru
        _
    $region40: #{spp_forward.3} parent=5 // pred_fallthru
      _
    %p727 = scmp.le.s32.totalorder 2, %s20
    // Predicated region
    $region45: #{spp_forward.3} parent=5 // pred_check
      %p728 = pneg %p727
    $region46: #{spp_forward.3} parent=5 // pred_check_branch
      %730 = sbr.rel (%p728) target = $region48
    $region47: #{spp_forward.3} parent=5 // pred_region
      %s731 = ssub.s32 %s20, 2
      // Predicated region
      $region49: #{spp_forward.3} parent=47 // pred_check
        %p732 = pneg %p179
      $region50: #{spp_forward.3} parent=47 // pred_check_branch
        %734 = sbr.rel (%p732) target = $region52
      $region51: #{spp_forward.3} parent=47 // pred_region
        %p735 = scmp.lt.s32.totalorder %s26, 3
        %s736 = scalar_select %p735, %s26, 3
        %s737 = smul.addr %s736, 16
        %s738 = smul.addr %s737, 8
        %s739 = scalar_lea.vmem %s6, %s738
      $region52: #{spp_forward.3} parent=47 // pred_fallthru
        _
    $region48: #{spp_forward.3} parent=5 // pred_fallthru
      _
  $region6: #{spp_forward.3} parent=0 // loop_footer
    %s24 = sadd.s32 1, %s20
  $region7: #{spp_forward.3} parent=0 // loop_footer_branch
    %19 = sbr.rel target = $region3
  $region8: #{spp_forward.3} parent=0 // loop_exit
    _

// kernel: spp_forward.5
$region0: #{spp_forward.5}
  #allocation0 [shape = 'u32[]', space=smem, size = 0x4, offset = 0x4, fixed_abs, tag = 'smem constant byte address 0x4 - core index']
  #allocation1 [shape = 'u32[72,128]{1,0:T(1,128)}', space=vmem, size = 0x9000, scoped, tag = 'internal scratch']
  %s0 = inlined_call_operand.vmem [shape: f32[2048,128], index: 0, kind: input, shape index: {}]
  %s1 = inlined_call_operand.vmem [shape: f32[1,128], index: 1, kind: input, shape index: {}]
  %s2 = inlined_call_operand.vmem [shape: f32[1,128], index: 2, kind: input, shape index: {}]
  %s3 = inlined_call_operand.vmem [shape: f32[2048,128], index: 3, kind: output, shape index: {}]
  %s4 = sld [smem:[#allocation0]]
  $region22: #{spp_forward.5} parent=0
    _
  %s6 = ssub.s32 1, %s4
  %s7 = scalar_select 0, %s6, %s4
  // Predicated region
  $region2: #{spp_forward.5} parent=0 // pred_check
    _
  $region3: #{spp_forward.5} parent=0 // pred_check_branch
    %9 = sbr.rel (0) target = $region5
  $region4: #{spp_forward.5} parent=0 // pred_region
    _
  $region5: #{spp_forward.5} parent=0 // pred_fallthru
    _
  // Predicated region
  $region6: #{spp_forward.5} parent=0 // pred_check
    _
  $region7: #{spp_forward.5} parent=0 // pred_check_branch
    %11 = sbr.rel (0) target = $region9
  $region8: #{spp_forward.5} parent=0 // pred_region
    _
  $region9: #{spp_forward.5} parent=0 // pred_fallthru
    _
  // Predicated region
  $region10: #{spp_forward.5} parent=0 // pred_check
    _
  $region11: #{spp_forward.5} parent=0 // pred_check_branch
    %13 = sbr.rel (0) target = $region13
  $region12: #{spp_forward.5} parent=0 // pred_region
    _
  $region13: #{spp_forward.5} parent=0 // pred_fallthru
    _
  %v14 = vld [vmem:[%s0] sm:$0xff]
  %v15 = vld [vmem:[%s0 + $0x8] sm:$0xff]
  %v16 = vld [vmem:[%s0 + $0x10] sm:$0xff]
  %v17 = vld [vmem:[%s0 + $0x18] sm:$0xff]
  %v18 = vld [vmem:[%s0 + $0x20] sm:$0xff]
  %v19 = vld [vmem:[%s0 + $0x28] sm:$0xff]
  %v20 = vld [vmem:[%s0 + $0x30] sm:$0xff]
  %v21 = vld [vmem:[%s0 + $0x38] sm:$0xff]
  %v22 = vld [vmem:[%s0 + $0x40] sm:$0xff]
  %v23 = vld [vmem:[%s0 + $0x48] sm:$0xff]
  %v24 = vld [vmem:[%s0 + $0x50] sm:$0xff]
  %v25 = vld [vmem:[%s0 + $0x58] sm:$0xff]
  %v26 = vld [vmem:[%s0 + $0x60] sm:$0xff]
  %v27 = vld [vmem:[%s0 + $0x68] sm:$0xff]
  %v28 = vld [vmem:[%s0 + $0x70] sm:$0xff]
  %v29 = vld [vmem:[%s0 + $0x78] sm:$0xff]
  %v30 = vld [vmem:[%s0 + $0x80] sm:$0xff]
  %v31 = vld [vmem:[%s0 + $0x88] sm:$0xff]
  %v32 = vld [vmem:[%s0 + $0x90] sm:$0xff]
  %v33 = vld [vmem:[%s0 + $0x98] sm:$0xff]
  %v34 = vld [vmem:[%s0 + $0xa0] sm:$0xff]
  %v35 = vld [vmem:[%s0 + $0xa8] sm:$0xff]
  %v36 = vld [vmem:[%s0 + $0xb0] sm:$0xff]
  %v37 = vld [vmem:[%s0 + $0xb8] sm:$0xff]
  %v38 = vld [vmem:[%s0 + $0xc0] sm:$0xff]
  %v39 = vld [vmem:[%s0 + $0xc8] sm:$0xff]
  %v40 = vld [vmem:[%s0 + $0xd0] sm:$0xff]
  %v41 = vld [vmem:[%s0 + $0xd8] sm:$0xff]
  %v42 = vld [vmem:[%s0 + $0xe0] sm:$0xff]
  %v43 = vld [vmem:[%s0 + $0xe8] sm:$0xff]
  %v44 = vld [vmem:[%s0 + $0xf0] sm:$0xff]
  %v45 = vld [vmem:[%s0 + $0xf8] sm:$0xff]
  %v46 = vld [vmem:[%s0 + $0x100] sm:$0xff]
  %v47 = vld [vmem:[%s0 + $0x108] sm:$0xff]
  %v48 = vld [vmem:[%s0 + $0x110] sm:$0xff]
  %v49 = vld [vmem:[%s0 + $0x118] sm:$0xff]
  %v50 = vld [vmem:[%s0 + $0x120] sm:$0xff]
  %v51 = vld [vmem:[%s0 + $0x128] sm:$0xff]
  %v52 = vld [vmem:[%s0 + $0x130] sm:$0xff]
  %v53 = vld [vmem:[%s0 + $0x138] sm:$0xff]
  %v54 = vld [vmem:[%s0 + $0x140] sm:$0xff]
  %v55 = vld [vmem:[%s0 + $0x148] sm:$0xff]
  %v56 = vld [vmem:[%s0 + $0x150] sm:$0xff]
  %v57 = vld [vmem:[%s0 + $0x158] sm:$0xff]
  %v58 = vld [vmem:[%s0 + $0x160] sm:$0xff]
  %v59 = vld [vmem:[%s0 + $0x168] sm:$0xff]
  %v60 = vld [vmem:[%s0 + $0x170] sm:$0xff]
  %v61 = vld [vmem:[%s0 + $0x178] sm:$0xff]
  %v62 = vld [vmem:[%s0 + $0x180] sm:$0xff]
  %v63 = vld [vmem:[%s0 + $0x188] sm:$0xff]
  %v64 = vld [vmem:[%s0 + $0x190] sm:$0xff]
  %v65 = vld [vmem:[%s0 + $0x198] sm:$0xff]
  %v66 = vld [vmem:[%s0 + $0x1a0] sm:$0xff]
  %v67 = vld [vmem:[%s0 + $0x1a8] sm:$0xff]
  %v68 = vld [vmem:[%s0 + $0x1b0] sm:$0xff]
  %v69 = vld [vmem:[%s0 + $0x1b8] sm:$0xff]
  %v70 = vld [vmem:[%s0 + $0x1c0] sm:$0xff]
  %v71 = vld [vmem:[%s0 + $0x1c8] sm:$0xff]
  %v72 = vld [vmem:[%s0 + $0x1d0] sm:$0xff]
  %v73 = vld [vmem:[%s0 + $0x1d8] sm:$0xff]
  %v74 = vld [vmem:[%s0 + $0x1e0] sm:$0xff]
  %v75 = vld [vmem:[%s0 + $0x1e8] sm:$0xff]
  %v76 = vld [vmem:[%s0 + $0x1f0] sm:$0xff]
  %v77 = vld [vmem:[%s0 + $0x1f8] sm:$0xff]
  %v78 = vld [vmem:[%s0 + $0x200] sm:$0xff]
  %v79 = vld [vmem:[%s0 + $0x208] sm:$0xff]
  %v80 = vld [vmem:[%s0 + $0x210] sm:$0xff]
  %v81 = vld [vmem:[%s0 + $0x218] sm:$0xff]
  %v82 = vld [vmem:[%s0 + $0x220] sm:$0xff]
  %v83 = vld [vmem:[%s0 + $0x228] sm:$0xff]
  %v84 = vld [vmem:[%s0 + $0x230] sm:$0xff]
  %v85 = vld [vmem:[%s0 + $0x238] sm:$0xff]
  %v86 = vld [vmem:[%s0 + $0x240] sm:$0xff]
  %v87 = vld [vmem:[%s0 + $0x248] sm:$0xff]
  %v88 = vld [vmem:[%s0 + $0x250] sm:$0xff]
  %v89 = vld [vmem:[%s0 + $0x258] sm:$0xff]
  %v90 = vld [vmem:[%s0 + $0x260] sm:$0xff]
  %v91 = vld [vmem:[%s0 + $0x268] sm:$0xff]
  %v92 = vld [vmem:[%s0 + $0x270] sm:$0xff]
  %v93 = vld [vmem:[%s0 + $0x278] sm:$0xff]
  %v94 = vld [vmem:[%s0 + $0x280] sm:$0xff]
  %v95 = vld [vmem:[%s0 + $0x288] sm:$0xff]
  %v96 = vld [vmem:[%s0 + $0x290] sm:$0xff]
  %v97 = vld [vmem:[%s0 + $0x298] sm:$0xff]
  %v98 = vld [vmem:[%s0 + $0x2a0] sm:$0xff]
  %v99 = vld [vmem:[%s0 + $0x2a8] sm:$0xff]
  %v100 = vld [vmem:[%s0 + $0x2b0] sm:$0xff]
  %v101 = vld [vmem:[%s0 + $0x2b8] sm:$0xff]
  %v102 = vld [vmem:[%s0 + $0x2c0] sm:$0xff]
  %v103 = vld [vmem:[%s0 + $0x2c8] sm:$0xff]
  %v104 = vld [vmem:[%s0 + $0x2d0] sm:$0xff]
  %v105 = vld [vmem:[%s0 + $0x2d8] sm:$0xff]
  %v106 = vld [vmem:[%s0 + $0x2e0] sm:$0xff]
  %v107 = vld [vmem:[%s0 + $0x2e8] sm:$0xff]
  %v108 = vld [vmem:[%s0 + $0x2f0] sm:$0xff]
  %v109 = vld [vmem:[%s0 + $0x2f8] sm:$0xff]
  %v110 = vld [vmem:[%s0 + $0x300] sm:$0xff]
  %v111 = vld [vmem:[%s0 + $0x308] sm:$0xff]
  %v112 = vld [vmem:[%s0 + $0x310] sm:$0xff]
  %v113 = vld [vmem:[%s0 + $0x318] sm:$0xff]
  %v114 = vld [vmem:[%s0 + $0x320] sm:$0xff]
  %v115 = vld [vmem:[%s0 + $0x328] sm:$0xff]
  %v116 = vld [vmem:[%s0 + $0x330] sm:$0xff]
  %v117 = vld [vmem:[%s0 + $0x338] sm:$0xff]
  %v118 = vld [vmem:[%s0 + $0x340] sm:$0xff]
  %v119 = vld [vmem:[%s0 + $0x348] sm:$0xff]
  %v120 = vld [vmem:[%s0 + $0x350] sm:$0xff]
  %v121 = vld [vmem:[%s0 + $0x358] sm:$0xff]
  %v122 = vld [vmem:[%s0 + $0x360] sm:$0xff]
  %v123 = vld [vmem:[%s0 + $0x368] sm:$0xff]
  %v124 = vld [vmem:[%s0 + $0x370] sm:$0xff]
  %v125 = vld [vmem:[%s0 + $0x378] sm:$0xff]
  %v126 = vld [vmem:[%s0 + $0x380] sm:$0xff]
  %v127 = vld [vmem:[%s0 + $0x388] sm:$0xff]
  %v128 = vld [vmem:[%s0 + $0x390] sm:$0xff]
  %v129 = vld [vmem:[%s0 + $0x398] sm:$0xff]
  %v130 = vld [vmem:[%s0 + $0x3a0] sm:$0xff]
  %v131 = vld [vmem:[%s0 + $0x3a8] sm:$0xff]
  %v132 = vld [vmem:[%s0 + $0x3b0] sm:$0xff]
  %v133 = vld [vmem:[%s0 + $0x3b8] sm:$0xff]
  %v134 = vld [vmem:[%s0 + $0x3c0] sm:$0xff]
  %v135 = vld [vmem:[%s0 + $0x3c8] sm:$0xff]
  %v136 = vld [vmem:[%s0 + $0x3d0] sm:$0xff]
  %v137 = vld [vmem:[%s0 + $0x3d8] sm:$0xff]
  %v138 = vld [vmem:[%s0 + $0x3e0] sm:$0xff]
  %v139 = vld [vmem:[%s0 + $0x3e8] sm:$0xff]
  %v140 = vld [vmem:[%s0 + $0x3f0] sm:$0xff]
  %v141 = vld [vmem:[%s0 + $0x3f8] sm:$0xff]
  %v142 = vld [vmem:[%s0 + $0x400] sm:$0xff]
  %v143 = vld [vmem:[%s0 + $0x408] sm:$0xff]
  %v144 = vld [vmem:[%s0 + $0x410] sm:$0xff]
  %v145 = vld [vmem:[%s0 + $0x418] sm:$0xff]
  %v146 = vld [vmem:[%s0 + $0x420] sm:$0xff]
  %v147 = vld [vmem:[%s0 + $0x428] sm:$0xff]
  %v148 = vld [vmem:[%s0 + $0x430] sm:$0xff]
  %v149 = vld [vmem:[%s0 + $0x438] sm:$0xff]
  %v150 = vld [vmem:[%s0 + $0x440] sm:$0xff]
  %v151 = vld [vmem:[%s0 + $0x448] sm:$0xff]
  %v152 = vld [vmem:[%s0 + $0x450] sm:$0xff]
  %v153 = vld [vmem:[%s0 + $0x458] sm:$0xff]
  %v154 = vld [vmem:[%s0 + $0x460] sm:$0xff]
  %v155 = vld [vmem:[%s0 + $0x468] sm:$0xff]
  %v156 = vld [vmem:[%s0 + $0x470] sm:$0xff]
  %v157 = vld [vmem:[%s0 + $0x478] sm:$0xff]
  %v158 = vld [vmem:[%s0 + $0x480] sm:$0xff]
  %v159 = vld [vmem:[%s0 + $0x488] sm:$0xff]
  %v160 = vld [vmem:[%s0 + $0x490] sm:$0xff]
  %v161 = vld [vmem:[%s0 + $0x498] sm:$0xff]
  %v162 = vld [vmem:[%s0 + $0x4a0] sm:$0xff]
  %v163 = vld [vmem:[%s0 + $0x4a8] sm:$0xff]
  %v164 = vld [vmem:[%s0 + $0x4b0] sm:$0xff]
  %v165 = vld [vmem:[%s0 + $0x4b8] sm:$0xff]
  %v166 = vld [vmem:[%s0 + $0x4c0] sm:$0xff]
  %v167 = vld [vmem:[%s0 + $0x4c8] sm:$0xff]
  %v168 = vld [vmem:[%s0 + $0x4d0] sm:$0xff]
  %v169 = vld [vmem:[%s0 + $0x4d8] sm:$0xff]
  %v170 = vld [vmem:[%s0 + $0x4e0] sm:$0xff]
  %v171 = vld [vmem:[%s0 + $0x4e8] sm:$0xff]
  %v172 = vld [vmem:[%s0 + $0x4f0] sm:$0xff]
  %v173 = vld [vmem:[%s0 + $0x4f8] sm:$0xff]
  %v174 = vld [vmem:[%s0 + $0x500] sm:$0xff]
  %v175 = vld [vmem:[%s0 + $0x508] sm:$0xff]
  %v176 = vld [vmem:[%s0 + $0x510] sm:$0xff]
  %v177 = vld [vmem:[%s0 + $0x518] sm:$0xff]
  %v178 = vld [vmem:[%s0 + $0x520] sm:$0xff]
  %v179 = vld [vmem:[%s0 + $0x528] sm:$0xff]
  %v180 = vld [vmem:[%s0 + $0x530] sm:$0xff]
  %v181 = vld [vmem:[%s0 + $0x538] sm:$0xff]
  %v182 = vld [vmem:[%s0 + $0x540] sm:$0xff]
  %v183 = vld [vmem:[%s0 + $0x548] sm:$0xff]
  %v184 = vld [vmem:[%s0 + $0x550] sm:$0xff]
  %v185 = vld [vmem:[%s0 + $0x558] sm:$0xff]
  %v186 = vld [vmem:[%s0 + $0x560] sm:$0xff]
  %v187 = vld [vmem:[%s0 + $0x568] sm:$0xff]
  %v188 = vld [vmem:[%s0 + $0x570] sm:$0xff]
  %v189 = vld [vmem:[%s0 + $0x578] sm:$0xff]
  %v190 = vld [vmem:[%s0 + $0x580] sm:$0xff]
  %v191 = vld [vmem:[%s0 + $0x588] sm:$0xff]
  %v192 = vld [vmem:[%s0 + $0x590] sm:$0xff]
  %v193 = vld [vmem:[%s0 + $0x598] sm:$0xff]
  %v194 = vld [vmem:[%s0 + $0x5a0] sm:$0xff]
  %v195 = vld [vmem:[%s0 + $0x5a8] sm:$0xff]
  %v196 = vld [vmem:[%s0 + $0x5b0] sm:$0xff]
  %v197 = vld [vmem:[%s0 + $0x5b8] sm:$0xff]
  %v198 = vld [vmem:[%s0 + $0x5c0] sm:$0xff]
  %v199 = vld [vmem:[%s0 + $0x5c8] sm:$0xff]
  %v200 = vld [vmem:[%s0 + $0x5d0] sm:$0xff]
  %v201 = vld [vmem:[%s0 + $0x5d8] sm:$0xff]
  %v202 = vld [vmem:[%s0 + $0x5e0] sm:$0xff]
  %v203 = vld [vmem:[%s0 + $0x5e8] sm:$0xff]
  %v204 = vld [vmem:[%s0 + $0x5f0] sm:$0xff]
  %v205 = vld [vmem:[%s0 + $0x5f8] sm:$0xff]
  %v206 = vld [vmem:[%s0 + $0x600] sm:$0xff]
  %v207 = vld [vmem:[%s0 + $0x608] sm:$0xff]
  %v208 = vld [vmem:[%s0 + $0x610] sm:$0xff]
  %v209 = vld [vmem:[%s0 + $0x618] sm:$0xff]
  %v210 = vld [vmem:[%s0 + $0x620] sm:$0xff]
  %v211 = vld [vmem:[%s0 + $0x628] sm:$0xff]
  %v212 = vld [vmem:[%s0 + $0x630] sm:$0xff]
  %v213 = vld [vmem:[%s0 + $0x638] sm:$0xff]
  %v214 = vld [vmem:[%s0 + $0x640] sm:$0xff]
  %v215 = vld [vmem:[%s0 + $0x648] sm:$0xff]
  %v216 = vld [vmem:[%s0 + $0x650] sm:$0xff]
  %v217 = vld [vmem:[%s0 + $0x658] sm:$0xff]
  %v218 = vld [vmem:[%s0 + $0x660] sm:$0xff]
  %v219 = vld [vmem:[%s0 + $0x668] sm:$0xff]
  %v220 = vld [vmem:[%s0 + $0x670] sm:$0xff]
  %v221 = vld [vmem:[%s0 + $0x678] sm:$0xff]
  %v222 = vld [vmem:[%s0 + $0x680] sm:$0xff]
  %v223 = vld [vmem:[%s0 + $0x688] sm:$0xff]
  %v224 = vld [vmem:[%s0 + $0x690] sm:$0xff]
  %v225 = vld [vmem:[%s0 + $0x698] sm:$0xff]
  %v226 = vld [vmem:[%s0 + $0x6a0] sm:$0xff]
  %v227 = vld [vmem:[%s0 + $0x6a8] sm:$0xff]
  %v228 = vld [vmem:[%s0 + $0x6b0] sm:$0xff]
  %v229 = vld [vmem:[%s0 + $0x6b8] sm:$0xff]
  %v230 = vld [vmem:[%s0 + $0x6c0] sm:$0xff]
  %v231 = vld [vmem:[%s0 + $0x6c8] sm:$0xff]
  %v232 = vld [vmem:[%s0 + $0x6d0] sm:$0xff]
  %v233 = vld [vmem:[%s0 + $0x6d8] sm:$0xff]
  %v234 = vld [vmem:[%s0 + $0x6e0] sm:$0xff]
  %v235 = vld [vmem:[%s0 + $0x6e8] sm:$0xff]
  %v236 = vld [vmem:[%s0 + $0x6f0] sm:$0xff]
  %v237 = vld [vmem:[%s0 + $0x6f8] sm:$0xff]
  %v238 = vld [vmem:[%s0 + $0x700] sm:$0xff]
  %v239 = vld [vmem:[%s0 + $0x708] sm:$0xff]
  %v240 = vld [vmem:[%s0 + $0x710] sm:$0xff]
  %v241 = vld [vmem:[%s0 + $0x718] sm:$0xff]
  %v242 = vld [vmem:[%s0 + $0x720] sm:$0xff]
  %v243 = vld [vmem:[%s0 + $0x728] sm:$0xff]
  %v244 = vld [vmem:[%s0 + $0x730] sm:$0xff]
  %v245 = vld [vmem:[%s0 + $0x738] sm:$0xff]
  %v246 = vld [vmem:[%s0 + $0x740] sm:$0xff]
  %v247 = vld [vmem:[%s0 + $0x748] sm:$0xff]
  %v248 = vld [vmem:[%s0 + $0x750] sm:$0xff]
  %v249 = vld [vmem:[%s0 + $0x758] sm:$0xff]
  %v250 = vld [vmem:[%s0 + $0x760] sm:$0xff]
  %v251 = vld [vmem:[%s0 + $0x768] sm:$0xff]
  %v252 = vld [vmem:[%s0 + $0x770] sm:$0xff]
  %v253 = vld [vmem:[%s0 + $0x778] sm:$0xff]
  %v254 = vld [vmem:[%s0 + $0x780] sm:$0xff]
  %v255 = vld [vmem:[%s0 + $0x788] sm:$0xff]
  %v256 = vld [vmem:[%s0 + $0x790] sm:$0xff]
  %v257 = vld [vmem:[%s0 + $0x798] sm:$0xff]
  %v258 = vld [vmem:[%s0 + $0x7a0] sm:$0xff]
  %v259 = vld [vmem:[%s0 + $0x7a8] sm:$0xff]
  %v260 = vld [vmem:[%s0 + $0x7b0] sm:$0xff]
  %v261 = vld [vmem:[%s0 + $0x7b8] sm:$0xff]
  %v262 = vld [vmem:[%s0 + $0x7c0] sm:$0xff]
  %v263 = vld [vmem:[%s0 + $0x7c8] sm:$0xff]
  %v264 = vld [vmem:[%s0 + $0x7d0] sm:$0xff]
  %v265 = vld [vmem:[%s0 + $0x7d8] sm:$0xff]
  %v266 = vld [vmem:[%s0 + $0x7e0] sm:$0xff]
  %v267 = vld [vmem:[%s0 + $0x7e8] sm:$0xff]
  %v268 = vld [vmem:[%s0 + $0x7f0] sm:$0xff]
  %v269 = vld [vmem:[%s0 + $0x7f8] sm:$0xff]
  %v270 = vld [vmem:[%s1] sm:$0x1]
  %v272 = vperm.slane %v270, 0
  %v274 = vmul.f32 %v14, %v272
  %v275 = vmul.f32 %v15, %v272
  %v276 = vmul.f32 %v16, %v272
  %v277 = vmul.f32 %v17, %v272
  %v278 = vmul.f32 %v18, %v272
  %v279 = vmul.f32 %v19, %v272
  %v280 = vmul.f32 %v20, %v272
  %v281 = vmul.f32 %v21, %v272
  %v282 = vmul.f32 %v22, %v272
  %v283 = vmul.f32 %v23, %v272
  %v284 = vmul.f32 %v24, %v272
  %v285 = vmul.f32 %v25, %v272
  %v286 = vmul.f32 %v26, %v272
  %v287 = vmul.f32 %v27, %v272
  %v288 = vmul.f32 %v28, %v272
  %v289 = vmul.f32 %v29, %v272
  %v290 = vmul.f32 %v30, %v272
  %v291 = vmul.f32 %v31, %v272
  %v292 = vmul.f32 %v32, %v272
  %v293 = vmul.f32 %v33, %v272
  %v294 = vmul.f32 %v34, %v272
  %v295 = vmul.f32 %v35, %v272
  %v296 = vmul.f32 %v36, %v272
  %v297 = vmul.f32 %v37, %v272
  %v298 = vmul.f32 %v38, %v272
  %v299 = vmul.f32 %v39, %v272
  %v300 = vmul.f32 %v40, %v272
  %v301 = vmul.f32 %v41, %v272
  %v302 = vmul.f32 %v42, %v272
  %v303 = vmul.f32 %v43, %v272
  %v304 = vmul.f32 %v44, %v272
  %v305 = vmul.f32 %v45, %v272
  %v306 = vmul.f32 %v46, %v272
  %v307 = vmul.f32 %v47, %v272
  %v308 = vmul.f32 %v48, %v272
  %v309 = vmul.f32 %v49, %v272
  %v310 = vmul.f32 %v50, %v272
  %v311 = vmul.f32 %v51, %v272
  %v312 = vmul.f32 %v52, %v272
  %v313 = vmul.f32 %v53, %v272
  %v314 = vmul.f32 %v54, %v272
  %v315 = vmul.f32 %v55, %v272
  %v316 = vmul.f32 %v56, %v272
  %v317 = vmul.f32 %v57, %v272
  %v318 = vmul.f32 %v58, %v272
  %v319 = vmul.f32 %v59, %v272
  %v320 = vmul.f32 %v60, %v272
  %v321 = vmul.f32 %v61, %v272
  %v322 = vmul.f32 %v62, %v272
  %v323 = vmul.f32 %v63, %v272
  %v324 = vmul.f32 %v64, %v272
  %v325 = vmul.f32 %v65, %v272
  %v326 = vmul.f32 %v66, %v272
  %v327 = vmul.f32 %v67, %v272
  %v328 = vmul.f32 %v68, %v272
  %v329 = vmul.f32 %v69, %v272
  %v330 = vmul.f32 %v70, %v272
  %v331 = vmul.f32 %v71, %v272
  %v332 = vmul.f32 %v72, %v272
  %v333 = vmul.f32 %v73, %v272
  %v334 = vmul.f32 %v74, %v272
  %v335 = vmul.f32 %v75, %v272
  %v336 = vmul.f32 %v76, %v272
  %v337 = vmul.f32 %v77, %v272
  %v338 = vmul.f32 %v78, %v272
  %v339 = vmul.f32 %v79, %v272
  %v340 = vmul.f32 %v80, %v272
  %v341 = vmul.f32 %v81, %v272
  %v342 = vmul.f32 %v82, %v272
  %v343 = vmul.f32 %v83, %v272
  %v344 = vmul.f32 %v84, %v272
  %v345 = vmul.f32 %v85, %v272
  %v346 = vmul.f32 %v86, %v272
  %v347 = vmul.f32 %v87, %v272
  %v348 = vmul.f32 %v88, %v272
  %v349 = vmul.f32 %v89, %v272
  %v350 = vmul.f32 %v90, %v272
  %v351 = vmul.f32 %v91, %v272
  %v352 = vmul.f32 %v92, %v272
  %v353 = vmul.f32 %v93, %v272
  %v354 = vmul.f32 %v94, %v272
  %v355 = vmul.f32 %v95, %v272
  %v356 = vmul.f32 %v96, %v272
  %v357 = vmul.f32 %v97, %v272
  %v358 = vmul.f32 %v98, %v272
  %v359 = vmul.f32 %v99, %v272
  %v360 = vmul.f32 %v100, %v272
  %v361 = vmul.f32 %v101, %v272
  %v362 = vmul.f32 %v102, %v272
  %v363 = vmul.f32 %v103, %v272
  %v364 = vmul.f32 %v104, %v272
  %v365 = vmul.f32 %v105, %v272
  %v366 = vmul.f32 %v106, %v272
  %v367 = vmul.f32 %v107, %v272
  %v368 = vmul.f32 %v108, %v272
  %v369 = vmul.f32 %v109, %v272
  %v370 = vmul.f32 %v110, %v272
  %v371 = vmul.f32 %v111, %v272
  %v372 = vmul.f32 %v112, %v272
  %v373 = vmul.f32 %v113, %v272
  %v374 = vmul.f32 %v114, %v272
  %v375 = vmul.f32 %v115, %v272
  %v376 = vmul.f32 %v116, %v272
  %v377 = vmul.f32 %v117, %v272
  %v378 = vmul.f32 %v118, %v272
  %v379 = vmul.f32 %v119, %v272
  %v380 = vmul.f32 %v120, %v272
  %v381 = vmul.f32 %v121, %v272
  %v382 = vmul.f32 %v122, %v272
  %v383 = vmul.f32 %v123, %v272
  %v384 = vmul.f32 %v124, %v272
  %v385 = vmul.f32 %v125, %v272
  %v386 = vmul.f32 %v126, %v272
  %v387 = vmul.f32 %v127, %v272
  %v388 = vmul.f32 %v128, %v272
  %v389 = vmul.f32 %v129, %v272
  %v390 = vmul.f32 %v130, %v272
  %v391 = vmul.f32 %v131, %v272
  %v392 = vmul.f32 %v132, %v272
  %v393 = vmul.f32 %v133, %v272
  %v394 = vmul.f32 %v134, %v272
  %v395 = vmul.f32 %v135, %v272
  %v396 = vmul.f32 %v136, %v272
  %v397 = vmul.f32 %v137, %v272
  %v398 = vmul.f32 %v138, %v272
  %v399 = vmul.f32 %v139, %v272
  %v400 = vmul.f32 %v140, %v272
  %v401 = vmul.f32 %v141, %v272
  %v402 = vmul.f32 %v142, %v272
  %v403 = vmul.f32 %v143, %v272
  %v404 = vmul.f32 %v144, %v272
  %v405 = vmul.f32 %v145, %v272
  %v406 = vmul.f32 %v146, %v272
  %v407 = vmul.f32 %v147, %v272
  %v408 = vmul.f32 %v148, %v272
  %v409 = vmul.f32 %v149, %v272
  %v410 = vmul.f32 %v150, %v272
  %v411 = vmul.f32 %v151, %v272
  %v412 = vmul.f32 %v152, %v272
  %v413 = vmul.f32 %v153, %v272
  %v414 = vmul.f32 %v154, %v272
  %v415 = vmul.f32 %v155, %v272
  %v416 = vmul.f32 %v156, %v272
  %v417 = vmul.f32 %v157, %v272
  %v418 = vmul.f32 %v158, %v272
  %v419 = vmul.f32 %v159, %v272
  %v420 = vmul.f32 %v160, %v272
  %v421 = vmul.f32 %v161, %v272
  %v422 = vmul.f32 %v162, %v272
  %v423 = vmul.f32 %v163, %v272
  %v424 = vmul.f32 %v164, %v272
  %v425 = vmul.f32 %v165, %v272
  %v426 = vmul.f32 %v166, %v272
  %v427 = vmul.f32 %v167, %v272
  %v428 = vmul.f32 %v168, %v272
  %v429 = vmul.f32 %v169, %v272
  %v430 = vmul.f32 %v170, %v272
  %v431 = vmul.f32 %v171, %v272
  %v432 = vmul.f32 %v172, %v272
  %v433 = vmul.f32 %v173, %v272
  %v434 = vmul.f32 %v174, %v272
  %v435 = vmul.f32 %v175, %v272
  %v436 = vmul.f32 %v176, %v272
  %v437 = vmul.f32 %v177, %v272
  %v438 = vmul.f32 %v178, %v272
  %v439 = vmul.f32 %v179, %v272
  %v440 = vmul.f32 %v180, %v272
  %v441 = vmul.f32 %v181, %v272
  %v442 = vmul.f32 %v182, %v272
  %v443 = vmul.f32 %v183, %v272
  %v444 = vmul.f32 %v184, %v272
  %v445 = vmul.f32 %v185, %v272
  %v446 = vmul.f32 %v186, %v272
  %v447 = vmul.f32 %v187, %v272
  %v448 = vmul.f32 %v188, %v272
  %v449 = vmul.f32 %v189, %v272
  %v450 = vmul.f32 %v190, %v272
  %v451 = vmul.f32 %v191, %v272
  %v452 = vmul.f32 %v192, %v272
  %v453 = vmul.f32 %v193, %v272
  %v454 = vmul.f32 %v194, %v272
  %v455 = vmul.f32 %v195, %v272
  %v456 = vmul.f32 %v196, %v272
  %v457 = vmul.f32 %v197, %v272
  %v458 = vmul.f32 %v198, %v272
  %v459 = vmul.f32 %v199, %v272
  %v460 = vmul.f32 %v200, %v272
  %v461 = vmul.f32 %v201, %v272
  %v462 = vmul.f32 %v202, %v272
  %v463 = vmul.f32 %v203, %v272
  %v464 = vmul.f32 %v204, %v272
  %v465 = vmul.f32 %v205, %v272
  %v466 = vmul.f32 %v206, %v272
  %v467 = vmul.f32 %v207, %v272
  %v468 = vmul.f32 %v208, %v272
  %v469 = vmul.f32 %v209, %v272
  %v470 = vmul.f32 %v210, %v272
  %v471 = vmul.f32 %v211, %v272
  %v472 = vmul.f32 %v212, %v272
  %v473 = vmul.f32 %v213, %v272
  %v474 = vmul.f32 %v214, %v272
  %v475 = vmul.f32 %v215, %v272
  %v476 = vmul.f32 %v216, %v272
  %v477 = vmul.f32 %v217, %v272
  %v478 = vmul.f32 %v218, %v272
  %v479 = vmul.f32 %v219, %v272
  %v480 = vmul.f32 %v220, %v272
  %v481 = vmul.f32 %v221, %v272
  %v482 = vmul.f32 %v222, %v272
  %v483 = vmul.f32 %v223, %v272
  %v484 = vmul.f32 %v224, %v272
  %v485 = vmul.f32 %v225, %v272
  %v486 = vmul.f32 %v226, %v272
  %v487 = vmul.f32 %v227, %v272
  %v488 = vmul.f32 %v228, %v272
  %v489 = vmul.f32 %v229, %v272
  %v490 = vmul.f32 %v230, %v272
  %v491 = vmul.f32 %v231, %v272
  %v492 = vmul.f32 %v232, %v272
  %v493 = vmul.f32 %v233, %v272
  %v494 = vmul.f32 %v234, %v272
  %v495 = vmul.f32 %v235, %v272
  %v496 = vmul.f32 %v236, %v272
  %v497 = vmul.f32 %v237, %v272
  %v498 = vmul.f32 %v238, %v272
  %v499 = vmul.f32 %v239, %v272
  %v500 = vmul.f32 %v240, %v272
  %v501 = vmul.f32 %v241, %v272
  %v502 = vmul.f32 %v242, %v272
  %v503 = vmul.f32 %v243, %v272
  %v504 = vmul.f32 %v244, %v272
  %v505 = vmul.f32 %v245, %v272
  %v506 = vmul.f32 %v246, %v272
  %v507 = vmul.f32 %v247, %v272
  %v508 = vmul.f32 %v248, %v272
  %v509 = vmul.f32 %v249, %v272
  %v510 = vmul.f32 %v250, %v272
  %v511 = vmul.f32 %v251, %v272
  %v512 = vmul.f32 %v252, %v272
  %v513 = vmul.f32 %v253, %v272
  %v514 = vmul.f32 %v254, %v272
  %v515 = vmul.f32 %v255, %v272
  %v516 = vmul.f32 %v256, %v272
  %v517 = vmul.f32 %v257, %v272
  %v518 = vmul.f32 %v258, %v272
  %v519 = vmul.f32 %v259, %v272
  %v520 = vmul.f32 %v260, %v272
  %v521 = vmul.f32 %v261, %v272
  %v522 = vmul.f32 %v262, %v272
  %v523 = vmul.f32 %v263, %v272
  %v524 = vmul.f32 %v264, %v272
  %v525 = vmul.f32 %v265, %v272
  %v526 = vmul.f32 %v266, %v272
  %v527 = vmul.f32 %v267, %v272
  %v528 = vmul.f32 %v268, %v272
  %v529 = vmul.f32 %v269, %v272
  %v530 = vld [vmem:[%s2] sm:$0x1]
  %v532 = vperm.slane %v530, 0
  %v534 = vadd.f32 %v274, %v532
  %v535 = vadd.f32 %v275, %v532
  %v536 = vadd.f32 %v276, %v532
  %v537 = vadd.f32 %v277, %v532
  %v538 = vadd.f32 %v278, %v532
  %v539 = vadd.f32 %v279, %v532
  %v540 = vadd.f32 %v280, %v532
  %v541 = vadd.f32 %v281, %v532
  %v542 = vadd.f32 %v282, %v532
  %v543 = vadd.f32 %v283, %v532
  %v544 = vadd.f32 %v284, %v532
  %v545 = vadd.f32 %v285, %v532
  %v546 = vadd.f32 %v286, %v532
  %v547 = vadd.f32 %v287, %v532
  %v548 = vadd.f32 %v288, %v532
  %v549 = vadd.f32 %v289, %v532
  %v550 = vadd.f32 %v290, %v532
  %v551 = vadd.f32 %v291, %v532
  %v552 = vadd.f32 %v292, %v532
  %v553 = vadd.f32 %v293, %v532
  %v554 = vadd.f32 %v294, %v532
  %v555 = vadd.f32 %v295, %v532
  %v556 = vadd.f32 %v296, %v532
  %v557 = vadd.f32 %v297, %v532
  %v558 = vadd.f32 %v298, %v532
  %v559 = vadd.f32 %v299, %v532
  %v560 = vadd.f32 %v300, %v532
  %v561 = vadd.f32 %v301, %v532
  %v562 = vadd.f32 %v302, %v532
  %v563 = vadd.f32 %v303, %v532
  %v564 = vadd.f32 %v304, %v532
  %v565 = vadd.f32 %v305, %v532
  %v566 = vadd.f32 %v306, %v532
  %v567 = vadd.f32 %v307, %v532
  %v568 = vadd.f32 %v308, %v532
  %v569 = vadd.f32 %v309, %v532
  %v570 = vadd.f32 %v310, %v532
  %v571 = vadd.f32 %v311, %v532
  %v572 = vadd.f32 %v312, %v532
  %v573 = vadd.f32 %v313, %v532
  %v574 = vadd.f32 %v314, %v532
  %v575 = vadd.f32 %v315, %v532
  %v576 = vadd.f32 %v316, %v532
  %v577 = vadd.f32 %v317, %v532
  %v578 = vadd.f32 %v318, %v532
  %v579 = vadd.f32 %v319, %v532
  %v580 = vadd.f32 %v320, %v532
  %v581 = vadd.f32 %v321, %v532
  %v582 = vadd.f32 %v322, %v532
  %v583 = vadd.f32 %v323, %v532
  %v584 = vadd.f32 %v324, %v532
  %v585 = vadd.f32 %v325, %v532
  %v586 = vadd.f32 %v326, %v532
  %v587 = vadd.f32 %v327, %v532
  %v588 = vadd.f32 %v328, %v532
  %v589 = vadd.f32 %v329, %v532
  %v590 = vadd.f32 %v330, %v532
  %v591 = vadd.f32 %v331, %v532
  %v592 = vadd.f32 %v332, %v532
  %v593 = vadd.f32 %v333, %v532
  %v594 = vadd.f32 %v334, %v532
  %v595 = vadd.f32 %v335, %v532
  %v596 = vadd.f32 %v336, %v532
  %v597 = vadd.f32 %v337, %v532
  %v598 = vadd.f32 %v338, %v532
  %v599 = vadd.f32 %v339, %v532
  %v600 = vadd.f32 %v340, %v532
  %v601 = vadd.f32 %v341, %v532
  %v602 = vadd.f32 %v342, %v532
  %v603 = vadd.f32 %v343, %v532
  %v604 = vadd.f32 %v344, %v532
  %v605 = vadd.f32 %v345, %v532
  %v606 = vadd.f32 %v346, %v532
  %v607 = vadd.f32 %v347, %v532
  %v608 = vadd.f32 %v348, %v532
  %v609 = vadd.f32 %v349, %v532
  %v610 = vadd.f32 %v350, %v532
  %v611 = vadd.f32 %v351, %v532
  %v612 = vadd.f32 %v352, %v532
  %v613 = vadd.f32 %v353, %v532
  %v614 = vadd.f32 %v354, %v532
  %v615 = vadd.f32 %v355, %v532
  %v616 = vadd.f32 %v356, %v532
  %v617 = vadd.f32 %v357, %v532
  %v618 = vadd.f32 %v358, %v532
  %v619 = vadd.f32 %v359, %v532
  %v620 = vadd.f32 %v360, %v532
  %v621 = vadd.f32 %v361, %v532
  %v622 = vadd.f32 %v362, %v532
  %v623 = vadd.f32 %v363, %v532
  %v624 = vadd.f32 %v364, %v532
  %v625 = vadd.f32 %v365, %v532
  %v626 = vadd.f32 %v366, %v532
  %v627 = vadd.f32 %v367, %v532
  %v628 = vadd.f32 %v368, %v532
  %v629 = vadd.f32 %v369, %v532
  %v630 = vadd.f32 %v370, %v532
  %v631 = vadd.f32 %v371, %v532
  %v632 = vadd.f32 %v372, %v532
  %v633 = vadd.f32 %v373, %v532
  %v634 = vadd.f32 %v374, %v532
  %v635 = vadd.f32 %v375, %v532
  %v636 = vadd.f32 %v376, %v532
  %v637 = vadd.f32 %v377, %v532
  %v638 = vadd.f32 %v378, %v532
  %v639 = vadd.f32 %v379, %v532
  %v640 = vadd.f32 %v380, %v532
  %v641 = vadd.f32 %v381, %v532
  %v642 = vadd.f32 %v382, %v532
  %v643 = vadd.f32 %v383, %v532
  %v644 = vadd.f32 %v384, %v532
  %v645 = vadd.f32 %v385, %v532
  %v646 = vadd.f32 %v386, %v532
  %v647 = vadd.f32 %v387, %v532
  %v648 = vadd.f32 %v388, %v532
  %v649 = vadd.f32 %v389, %v532
  %v650 = vadd.f32 %v390, %v532
  %v651 = vadd.f32 %v391, %v532
  %v652 = vadd.f32 %v392, %v532
  %v653 = vadd.f32 %v393, %v532
  %v654 = vadd.f32 %v394, %v532
  %v655 = vadd.f32 %v395, %v532
  %v656 = vadd.f32 %v396, %v532
  %v657 = vadd.f32 %v397, %v532
  %v658 = vadd.f32 %v398, %v532
  %v659 = vadd.f32 %v399, %v532
  %v660 = vadd.f32 %v400, %v532
  %v661 = vadd.f32 %v401, %v532
  %v662 = vadd.f32 %v402, %v532
  %v663 = vadd.f32 %v403, %v532
  %v664 = vadd.f32 %v404, %v532
  %v665 = vadd.f32 %v405, %v532
  %v666 = vadd.f32 %v406, %v532
  %v667 = vadd.f32 %v407, %v532
  %v668 = vadd.f32 %v408, %v532
  %v669 = vadd.f32 %v409, %v532
  %v670 = vadd.f32 %v410, %v532
  %v671 = vadd.f32 %v411, %v532
  %v672 = vadd.f32 %v412, %v532
  %v673 = vadd.f32 %v413, %v532
  %v674 = vadd.f32 %v414, %v532
  %v675 = vadd.f32 %v415, %v532
  %v676 = vadd.f32 %v416, %v532
  %v677 = vadd.f32 %v417, %v532
  %v678 = vadd.f32 %v418, %v532
  %v679 = vadd.f32 %v419, %v532
  %v680 = vadd.f32 %v420, %v532
  %v681 = vadd.f32 %v421, %v532
  %v682 = vadd.f32 %v422, %v532
  %v683 = vadd.f32 %v423, %v532
  %v684 = vadd.f32 %v424, %v532
  %v685 = vadd.f32 %v425, %v532
  %v686 = vadd.f32 %v426, %v532
  %v687 = vadd.f32 %v427, %v532
  %v688 = vadd.f32 %v428, %v532
  %v689 = vadd.f32 %v429, %v532
  %v690 = vadd.f32 %v430, %v532
  %v691 = vadd.f32 %v431, %v532
  %v692 = vadd.f32 %v432, %v532
  %v693 = vadd.f32 %v433, %v532
  %v694 = vadd.f32 %v434, %v532
  %v695 = vadd.f32 %v435, %v532
  %v696 = vadd.f32 %v436, %v532
  %v697 = vadd.f32 %v437, %v532
  %v698 = vadd.f32 %v438, %v532
  %v699 = vadd.f32 %v439, %v532
  %v700 = vadd.f32 %v440, %v532
  %v701 = vadd.f32 %v441, %v532
  %v702 = vadd.f32 %v442, %v532
  %v703 = vadd.f32 %v443, %v532
  %v704 = vadd.f32 %v444, %v532
  %v705 = vadd.f32 %v445, %v532
  %v706 = vadd.f32 %v446, %v532
  %v707 = vadd.f32 %v447, %v532
  %v708 = vadd.f32 %v448, %v532
  %v709 = vadd.f32 %v449, %v532
  %v710 = vadd.f32 %v450, %v532
  %v711 = vadd.f32 %v451, %v532
  %v712 = vadd.f32 %v452, %v532
  %v713 = vadd.f32 %v453, %v532
  %v714 = vadd.f32 %v454, %v532
  %v715 = vadd.f32 %v455, %v532
  %v716 = vadd.f32 %v456, %v532
  %v717 = vadd.f32 %v457, %v532
  %v718 = vadd.f32 %v458, %v532
  %v719 = vadd.f32 %v459, %v532
  %v720 = vadd.f32 %v460, %v532
  %v721 = vadd.f32 %v461, %v532
  %v722 = vadd.f32 %v462, %v532
  %v723 = vadd.f32 %v463, %v532
  %v724 = vadd.f32 %v464, %v532
  %v725 = vadd.f32 %v465, %v532
  %v726 = vadd.f32 %v466, %v532
  %v727 = vadd.f32 %v467, %v532
  %v728 = vadd.f32 %v468, %v532
  %v729 = vadd.f32 %v469, %v532
  %v730 = vadd.f32 %v470, %v532
  %v731 = vadd.f32 %v471, %v532
  %v732 = vadd.f32 %v472, %v532
  %v733 = vadd.f32 %v473, %v532
  %v734 = vadd.f32 %v474, %v532
  %v735 = vadd.f32 %v475, %v532
  %v736 = vadd.f32 %v476, %v532
  %v737 = vadd.f32 %v477, %v532
  %v738 = vadd.f32 %v478, %v532
  %v739 = vadd.f32 %v479, %v532
  %v740 = vadd.f32 %v480, %v532
  %v741 = vadd.f32 %v481, %v532
  %v742 = vadd.f32 %v482, %v532
  %v743 = vadd.f32 %v483, %v532
  %v744 = vadd.f32 %v484, %v532
  %v745 = vadd.f32 %v485, %v532
  %v746 = vadd.f32 %v486, %v532
  %v747 = vadd.f32 %v487, %v532
  %v748 = vadd.f32 %v488, %v532
  %v749 = vadd.f32 %v489, %v532
  %v750 = vadd.f32 %v490, %v532
  %v751 = vadd.f32 %v491, %v532
  %v752 = vadd.f32 %v492, %v532
  %v753 = vadd.f32 %v493, %v532
  %v754 = vadd.f32 %v494, %v532
  %v755 = vadd.f32 %v495, %v532
  %v756 = vadd.f32 %v496, %v532
  %v757 = vadd.f32 %v497, %v532
  %v758 = vadd.f32 %v498, %v532
  %v759 = vadd.f32 %v499, %v532
  %v760 = vadd.f32 %v500, %v532
  %v761 = vadd.f32 %v501, %v532
  %v762 = vadd.f32 %v502, %v532
  %v763 = vadd.f32 %v503, %v532
  %v764 = vadd.f32 %v504, %v532
  %v765 = vadd.f32 %v505, %v532
  %v766 = vadd.f32 %v506, %v532
  %v767 = vadd.f32 %v507, %v532
  %v768 = vadd.f32 %v508, %v532
  %v769 = vadd.f32 %v509, %v532
  %v770 = vadd.f32 %v510, %v532
  %v771 = vadd.f32 %v511, %v532
  %v772 = vadd.f32 %v512, %v532
  %v773 = vadd.f32 %v513, %v532
  %v774 = vadd.f32 %v514, %v532
  %v775 = vadd.f32 %v515, %v532
  %v776 = vadd.f32 %v516, %v532
  %v777 = vadd.f32 %v517, %v532
  %v778 = vadd.f32 %v518, %v532
  %v779 = vadd.f32 %v519, %v532
  %v780 = vadd.f32 %v520, %v532
  %v781 = vadd.f32 %v521, %v532
  %v782 = vadd.f32 %v522, %v532
  %v783 = vadd.f32 %v523, %v532
  %v784 = vadd.f32 %v524, %v532
  %v785 = vadd.f32 %v525, %v532
  %v786 = vadd.f32 %v526, %v532
  %v787 = vadd.f32 %v527, %v532
  %v788 = vadd.f32 %v528, %v532
  %v789 = vadd.f32 %v529, %v532
  %vm790 = vcmp.ge.f32.partialorder %v534, 0.0
  %vm791 = vcmp.ge.f32.partialorder %v535, 0.0
  %vm792 = vcmp.ge.f32.partialorder %v536, 0.0
  %vm793 = vcmp.ge.f32.partialorder %v537, 0.0
  %vm794 = vcmp.ge.f32.partialorder %v538, 0.0
  %vm795 = vcmp.ge.f32.partialorder %v539, 0.0
  %vm796 = vcmp.ge.f32.partialorder %v540, 0.0
  %vm797 = vcmp.ge.f32.partialorder %v541, 0.0
  %vm798 = vcmp.ge.f32.partialorder %v542, 0.0
  %vm799 = vcmp.ge.f32.partialorder %v543, 0.0
  %vm800 = vcmp.ge.f32.partialorder %v544, 0.0
  %vm801 = vcmp.ge.f32.partialorder %v545, 0.0
  %vm802 = vcmp.ge.f32.partialorder %v546, 0.0
  %vm803 = vcmp.ge.f32.partialorder %v547, 0.0
  %vm804 = vcmp.ge.f32.partialorder %v548, 0.0
  %vm805 = vcmp.ge.f32.partialorder %v549, 0.0
  %vm806 = vcmp.ge.f32.partialorder %v550, 0.0
  %vm807 = vcmp.ge.f32.partialorder %v551, 0.0
  %vm808 = vcmp.ge.f32.partialorder %v552, 0.0
  %vm809 = vcmp.ge.f32.partialorder %v553, 0.0
  %vm810 = vcmp.ge.f32.partialorder %v554, 0.0
  %vm811 = vcmp.ge.f32.partialorder %v555, 0.0
  %vm812 = vcmp.ge.f32.partialorder %v556, 0.0
  %vm813 = vcmp.ge.f32.partialorder %v557, 0.0
  %vm814 = vcmp.ge.f32.partialorder %v558, 0.0
  %vm815 = vcmp.ge.f32.partialorder %v559, 0.0
  %vm816 = vcmp.ge.f32.partialorder %v560, 0.0
  %vm817 = vcmp.ge.f32.partialorder %v561, 0.0
  %vm818 = vcmp.ge.f32.partialorder %v562, 0.0
  %vm819 = vcmp.ge.f32.partialorder %v563, 0.0
  %vm820 = vcmp.ge.f32.partialorder %v564, 0.0
  %vm821 = vcmp.ge.f32.partialorder %v565, 0.0
  %vm822 = vcmp.ge.f32.partialorder %v566, 0.0
  %vm823 = vcmp.ge.f32.partialorder %v567, 0.0
  %vm824 = vcmp.ge.f32.partialorder %v568, 0.0
  %vm825 = vcmp.ge.f32.partialorder %v569, 0.0
  %vm826 = vcmp.ge.f32.partialorder %v570, 0.0
  %vm827 = vcmp.ge.f32.partialorder %v571, 0.0
  %vm828 = vcmp.ge.f32.partialorder %v572, 0.0
  %vm829 = vcmp.ge.f32.partialorder %v573, 0.0
  %vm830 = vcmp.ge.f32.partialorder %v574, 0.0
  %vm831 = vcmp.ge.f32.partialorder %v575, 0.0
  %vm832 = vcmp.ge.f32.partialorder %v576, 0.0
  %vm833 = vcmp.ge.f32.partialorder %v577, 0.0
  %vm834 = vcmp.ge.f32.partialorder %v578, 0.0
  %vm835 = vcmp.ge.f32.partialorder %v579, 0.0
  %vm836 = vcmp.ge.f32.partialorder %v580, 0.0
  %vm837 = vcmp.ge.f32.partialorder %v581, 0.0
  %vm838 = vcmp.ge.f32.partialorder %v582, 0.0
  %vm839 = vcmp.ge.f32.partialorder %v583, 0.0
  %vm840 = vcmp.ge.f32.partialorder %v584, 0.0
  %vm841 = vcmp.ge.f32.partialorder %v585, 0.0
  %vm842 = vcmp.ge.f32.partialorder %v586, 0.0
  %vm843 = vcmp.ge.f32.partialorder %v587, 0.0
  %vm844 = vcmp.ge.f32.partialorder %v588, 0.0
  %vm845 = vcmp.ge.f32.partialorder %v589, 0.0
  %vm846 = vcmp.ge.f32.partialorder %v590, 0.0
  %vm847 = vcmp.ge.f32.partialorder %v591, 0.0
  %vm848 = vcmp.ge.f32.partialorder %v592, 0.0
  %vm849 = vcmp.ge.f32.partialorder %v593, 0.0
  %vm850 = vcmp.ge.f32.partialorder %v594, 0.0
  %vm851 = vcmp.ge.f32.partialorder %v595, 0.0
  %vm852 = vcmp.ge.f32.partialorder %v596, 0.0
  %vm853 = vcmp.ge.f32.partialorder %v597, 0.0
  %vm854 = vcmp.ge.f32.partialorder %v598, 0.0
  %vm855 = vcmp.ge.f32.partialorder %v599, 0.0
  %vm856 = vcmp.ge.f32.partialorder %v600, 0.0
  %vm857 = vcmp.ge.f32.partialorder %v601, 0.0
  %vm858 = vcmp.ge.f32.partialorder %v602, 0.0
  %vm859 = vcmp.ge.f32.partialorder %v603, 0.0
  %vm860 = vcmp.ge.f32.partialorder %v604, 0.0
  %vm861 = vcmp.ge.f32.partialorder %v605, 0.0
  %vm862 = vcmp.ge.f32.partialorder %v606, 0.0
  %vm863 = vcmp.ge.f32.partialorder %v607, 0.0
  %vm864 = vcmp.ge.f32.partialorder %v608, 0.0
  %vm865 = vcmp.ge.f32.partialorder %v609, 0.0
  %vm866 = vcmp.ge.f32.partialorder %v610, 0.0
  %vm867 = vcmp.ge.f32.partialorder %v611, 0.0
  %vm868 = vcmp.ge.f32.partialorder %v612, 0.0
  %vm869 = vcmp.ge.f32.partialorder %v613, 0.0
  %vm870 = vcmp.ge.f32.partialorder %v614, 0.0
  %vm871 = vcmp.ge.f32.partialorder %v615, 0.0
  %vm872 = vcmp.ge.f32.partialorder %v616, 0.0
  %vm873 = vcmp.ge.f32.partialorder %v617, 0.0
  %vm874 = vcmp.ge.f32.partialorder %v618, 0.0
  %vm875 = vcmp.ge.f32.partialorder %v619, 0.0
  %vm876 = vcmp.ge.f32.partialorder %v620, 0.0
  %vm877 = vcmp.ge.f32.partialorder %v621, 0.0
  %vm878 = vcmp.ge.f32.partialorder %v622, 0.0
  %vm879 = vcmp.ge.f32.partialorder %v623, 0.0
  %vm880 = vcmp.ge.f32.partialorder %v624, 0.0
  %vm881 = vcmp.ge.f32.partialorder %v625, 0.0
  %vm882 = vcmp.ge.f32.partialorder %v626, 0.0
  %vm883 = vcmp.ge.f32.partialorder %v627, 0.0
  %vm884 = vcmp.ge.f32.partialorder %v628, 0.0
  %vm885 = vcmp.ge.f32.partialorder %v629, 0.0
  %vm886 = vcmp.ge.f32.partialorder %v630, 0.0
  %vm887 = vcmp.ge.f32.partialorder %v631, 0.0
  %vm888 = vcmp.ge.f32.partialorder %v632, 0.0
  %vm889 = vcmp.ge.f32.partialorder %v633, 0.0
  %vm890 = vcmp.ge.f32.partialorder %v634, 0.0
  %vm891 = vcmp.ge.f32.partialorder %v635, 0.0
  %vm892 = vcmp.ge.f32.partialorder %v636, 0.0
  %vm893 = vcmp.ge.f32.partialorder %v637, 0.0
  %vm894 = vcmp.ge.f32.partialorder %v638, 0.0
  %vm895 = vcmp.ge.f32.partialorder %v639, 0.0
  %vm896 = vcmp.ge.f32.partialorder %v640, 0.0
  %vm897 = vcmp.ge.f32.partialorder %v641, 0.0
  %vm898 = vcmp.ge.f32.partialorder %v642, 0.0
  %vm899 = vcmp.ge.f32.partialorder %v643, 0.0
  %vm900 = vcmp.ge.f32.partialorder %v644, 0.0
  %vm901 = vcmp.ge.f32.partialorder %v645, 0.0
  %vm902 = vcmp.ge.f32.partialorder %v646, 0.0
  %vm903 = vcmp.ge.f32.partialorder %v647, 0.0
  %vm904 = vcmp.ge.f32.partialorder %v648, 0.0
  %vm905 = vcmp.ge.f32.partialorder %v649, 0.0
  %vm906 = vcmp.ge.f32.partialorder %v650, 0.0
  %vm907 = vcmp.ge.f32.partialorder %v651, 0.0
  %vm908 = vcmp.ge.f32.partialorder %v652, 0.0
  %vm909 = vcmp.ge.f32.partialorder %v653, 0.0
  %vm910 = vcmp.ge.f32.partialorder %v654, 0.0
  %vm911 = vcmp.ge.f32.partialorder %v655, 0.0
  %vm912 = vcmp.ge.f32.partialorder %v656, 0.0
  %vm913 = vcmp.ge.f32.partialorder %v657, 0.0
  %vm914 = vcmp.ge.f32.partialorder %v658, 0.0
  %vm915 = vcmp.ge.f32.partialorder %v659, 0.0
  %vm916 = vcmp.ge.f32.partialorder %v660, 0.0
  %vm917 = vcmp.ge.f32.partialorder %v661, 0.0
  %vm918 = vcmp.ge.f32.partialorder %v662, 0.0
  %vm919 = vcmp.ge.f32.partialorder %v663, 0.0
  %vm920 = vcmp.ge.f32.partialorder %v664, 0.0
  %vm921 = vcmp.ge.f32.partialorder %v665, 0.0
  %vm922 = vcmp.ge.f32.partialorder %v666, 0.0
  %vm923 = vcmp.ge.f32.partialorder %v667, 0.0
  %vm924 = vcmp.ge.f32.partialorder %v668, 0.0
  %vm925 = vcmp.ge.f32.partialorder %v669, 0.0
  %vm926 = vcmp.ge.f32.partialorder %v670, 0.0
  %vm927 = vcmp.ge.f32.partialorder %v671, 0.0
  %vm928 = vcmp.ge.f32.partialorder %v672, 0.0
  %vm929 = vcmp.ge.f32.partialorder %v673, 0.0
  %vm930 = vcmp.ge.f32.partialorder %v674, 0.0
  %vm931 = vcmp.ge.f32.partialorder %v675, 0.0
  %vm932 = vcmp.ge.f32.partialorder %v676, 0.0
  %vm933 = vcmp.ge.f32.partialorder %v677, 0.0
  %vm934 = vcmp.ge.f32.partialorder %v678, 0.0
  %vm935 = vcmp.ge.f32.partialorder %v679, 0.0
  %vm936 = vcmp.ge.f32.partialorder %v680, 0.0
  %vm937 = vcmp.ge.f32.partialorder %v681, 0.0
  %vm938 = vcmp.ge.f32.partialorder %v682, 0.0
  %vm939 = vcmp.ge.f32.partialorder %v683, 0.0
  %vm940 = vcmp.ge.f32.partialorder %v684, 0.0
  %vm941 = vcmp.ge.f32.partialorder %v685, 0.0
  %vm942 = vcmp.ge.f32.partialorder %v686, 0.0
  %vm943 = vcmp.ge.f32.partialorder %v687, 0.0
  %vm944 = vcmp.ge.f32.partialorder %v688, 0.0
  %vm945 = vcmp.ge.f32.partialorder %v689, 0.0
  %vm946 = vcmp.ge.f32.partialorder %v690, 0.0
  %vm947 = vcmp.ge.f32.partialorder %v691, 0.0
  %vm948 = vcmp.ge.f32.partialorder %v692, 0.0
  %vm949 = vcmp.ge.f32.partialorder %v693, 0.0
  %vm950 = vcmp.ge.f32.partialorder %v694, 0.0
  %vm951 = vcmp.ge.f32.partialorder %v695, 0.0
  %vm952 = vcmp.ge.f32.partialorder %v696, 0.0
  %vm953 = vcmp.ge.f32.partialorder %v697, 0.0
  %vm954 = vcmp.ge.f32.partialorder %v698, 0.0
  %vm955 = vcmp.ge.f32.partialorder %v699, 0.0
  %vm956 = vcmp.ge.f32.partialorder %v700, 0.0
  %vm957 = vcmp.ge.f32.partialorder %v701, 0.0
  %vm958 = vcmp.ge.f32.partialorder %v702, 0.0
  %vm959 = vcmp.ge.f32.partialorder %v703, 0.0
  %vm960 = vcmp.ge.f32.partialorder %v704, 0.0
  %vm961 = vcmp.ge.f32.partialorder %v705, 0.0
  %vm962 = vcmp.ge.f32.partialorder %v706, 0.0
  %vm963 = vcmp.ge.f32.partialorder %v707, 0.0
  %vm964 = vcmp.ge.f32.partialorder %v708, 0.0
  %vm965 = vcmp.ge.f32.partialorder %v709, 0.0
  %vm966 = vcmp.ge.f32.partialorder %v710, 0.0
  %vm967 = vcmp.ge.f32.partialorder %v711, 0.0
  %vm968 = vcmp.ge.f32.partialorder %v712, 0.0
  %vm969 = vcmp.ge.f32.partialorder %v713, 0.0
  %vm970 = vcmp.ge.f32.partialorder %v714, 0.0
  %vm971 = vcmp.ge.f32.partialorder %v715, 0.0
  %vm972 = vcmp.ge.f32.partialorder %v716, 0.0
  %vm973 = vcmp.ge.f32.partialorder %v717, 0.0
  %vm974 = vcmp.ge.f32.partialorder %v718, 0.0
  %vm975 = vcmp.ge.f32.partialorder %v719, 0.0
  %vm976 = vcmp.ge.f32.partialorder %v720, 0.0
  %vm977 = vcmp.ge.f32.partialorder %v721, 0.0
  %vm978 = vcmp.ge.f32.partialorder %v722, 0.0
  %vm979 = vcmp.ge.f32.partialorder %v723, 0.0
  %vm980 = vcmp.ge.f32.partialorder %v724, 0.0
  %vm981 = vcmp.ge.f32.partialorder %v725, 0.0
  %vm982 = vcmp.ge.f32.partialorder %v726, 0.0
  %vm983 = vcmp.ge.f32.partialorder %v727, 0.0
  %vm984 = vcmp.ge.f32.partialorder %v728, 0.0
  %vm985 = vcmp.ge.f32.partialorder %v729, 0.0
  %vm986 = vcmp.ge.f32.partialorder %v730, 0.0
  %vm987 = vcmp.ge.f32.partialorder %v731, 0.0
  %vm988 = vcmp.ge.f32.partialorder %v732, 0.0
  %vm989 = vcmp.ge.f32.partialorder %v733, 0.0
  %vm990 = vcmp.ge.f32.partialorder %v734, 0.0
  %vm991 = vcmp.ge.f32.partialorder %v735, 0.0
  %vm992 = vcmp.ge.f32.partialorder %v736, 0.0
  %vm993 = vcmp.ge.f32.partialorder %v737, 0.0
  %vm994 = vcmp.ge.f32.partialorder %v738, 0.0
  %vm995 = vcmp.ge.f32.partialorder %v739, 0.0
  %vm996 = vcmp.ge.f32.partialorder %v740, 0.0
  %vm997 = vcmp.ge.f32.partialorder %v741, 0.0
  %vm998 = vcmp.ge.f32.partialorder %v742, 0.0
  %vm999 = vcmp.ge.f32.partialorder %v743, 0.0
  %vm1000 = vcmp.ge.f32.partialorder %v744, 0.0
  %vm1001 = vcmp.ge.f32.partialorder %v745, 0.0
  %vm1002 = vcmp.ge.f32.partialorder %v746, 0.0
  %vm1003 = vcmp.ge.f32.partialorder %v747, 0.0
  %vm1004 = vcmp.ge.f32.partialorder %v748, 0.0
  %vm1005 = vcmp.ge.f32.partialorder %v749, 0.0
  %vm1006 = vcmp.ge.f32.partialorder %v750, 0.0
  %vm1007 = vcmp.ge.f32.partialorder %v751, 0.0
  %vm1008 = vcmp.ge.f32.partialorder %v752, 0.0
  %vm1009 = vcmp.ge.f32.partialorder %v753, 0.0
  %vm1010 = vcmp.ge.f32.partialorder %v754, 0.0
  %vm1011 = vcmp.ge.f32.partialorder %v755, 0.0
  %vm1012 = vcmp.ge.f32.partialorder %v756, 0.0
  %vm1013 = vcmp.ge.f32.partialorder %v757, 0.0
  %vm1014 = vcmp.ge.f32.partialorder %v758, 0.0
  %vm1015 = vcmp.ge.f32.partialorder %v759, 0.0
  %vm1016 = vcmp.ge.f32.partialorder %v760, 0.0
  %vm1017 = vcmp.ge.f32.partialorder %v761, 0.0
  %vm1018 = vcmp.ge.f32.partialorder %v762, 0.0
  %vm1019 = vcmp.ge.f32.partialorder %v763, 0.0
  %vm1020 = vcmp.ge.f32.partialorder %v764, 0.0
  %vm1021 = vcmp.ge.f32.partialorder %v765, 0.0
  %vm1022 = vcmp.ge.f32.partialorder %v766, 0.0
  %vm1023 = vcmp.ge.f32.partialorder %v767, 0.0
  %vm1024 = vcmp.ge.f32.partialorder %v768, 0.0
  %vm1025 = vcmp.ge.f32.partialorder %v769, 0.0
  %vm1026 = vcmp.ge.f32.partialorder %v770, 0.0
  %vm1027 = vcmp.ge.f32.partialorder %v771, 0.0
  %vm1028 = vcmp.ge.f32.partialorder %v772, 0.0
  %vm1029 = vcmp.ge.f32.partialorder %v773, 0.0
  %vm1030 = vcmp.ge.f32.partialorder %v774, 0.0
  %vm1031 = vcmp.ge.f32.partialorder %v775, 0.0
  %vm1032 = vcmp.ge.f32.partialorder %v776, 0.0
  %vm1033 = vcmp.ge.f32.partialorder %v777, 0.0
  %vm1034 = vcmp.ge.f32.partialorder %v778, 0.0
  %vm1035 = vcmp.ge.f32.partialorder %v779, 0.0
  %vm1036 = vcmp.ge.f32.partialorder %v780, 0.0
  %vm1037 = vcmp.ge.f32.partialorder %v781, 0.0
  %vm1038 = vcmp.ge.f32.partialorder %v782, 0.0
  %vm1039 = vcmp.ge.f32.partialorder %v783, 0.0
  %vm1040 = vcmp.ge.f32.partialorder %v784, 0.0
  %vm1041 = vcmp.ge.f32.partialorder %v785, 0.0
  %vm1042 = vcmp.ge.f32.partialorder %v786, 0.0
  %vm1043 = vcmp.ge.f32.partialorder %v787, 0.0
  %vm1044 = vcmp.ge.f32.partialorder %v788, 0.0
  %vm1045 = vcmp.ge.f32.partialorder %v789, 0.0
  %v1046 = vmul.f32 %v534, 0.2
  %v1047 = vmul.f32 %v535, 0.2
  %v1048 = vmul.f32 %v536, 0.2
  %v1049 = vmul.f32 %v537, 0.2
  %v1050 = vmul.f32 %v538, 0.2
  %v1051 = vmul.f32 %v539, 0.2
  %v1052 = vmul.f32 %v540, 0.2
  %v1053 = vmul.f32 %v541, 0.2
  %v1054 = vmul.f32 %v542, 0.2
  %v1055 = vmul.f32 %v543, 0.2
  %v1056 = vmul.f32 %v544, 0.2
  %v1057 = vmul.f32 %v545, 0.2
  %v1058 = vmul.f32 %v546, 0.2
  %v1059 = vmul.f32 %v547, 0.2
  %v1060 = vmul.f32 %v548, 0.2
  %v1061 = vmul.f32 %v549, 0.2
  %v1062 = vmul.f32 %v550, 0.2
  %v1063 = vmul.f32 %v551, 0.2
  %v1064 = vmul.f32 %v552, 0.2
  %v1065 = vmul.f32 %v553, 0.2
  %v1066 = vmul.f32 %v554, 0.2
  %v1067 = vmul.f32 %v555, 0.2
  %v1068 = vmul.f32 %v556, 0.2
  %v1069 = vmul.f32 %v557, 0.2
  %v1070 = vmul.f32 %v558, 0.2
  %v1071 = vmul.f32 %v559, 0.2
  %v1072 = vmul.f32 %v560, 0.2
  %v1073 = vmul.f32 %v561, 0.2
  %v1074 = vmul.f32 %v562, 0.2
  %v1075 = vmul.f32 %v563, 0.2
  %v1076 = vmul.f32 %v564, 0.2
  %v1077 = vmul.f32 %v565, 0.2
  %v1078 = vmul.f32 %v566, 0.2
  %v1079 = vmul.f32 %v567, 0.2
  %v1080 = vmul.f32 %v568, 0.2
  %v1081 = vmul.f32 %v569, 0.2
  %v1082 = vmul.f32 %v570, 0.2
  %v1083 = vmul.f32 %v571, 0.2
  %v1084 = vmul.f32 %v572, 0.2
  %v1085 = vmul.f32 %v573, 0.2
  %v1086 = vmul.f32 %v574, 0.2
  %v1087 = vmul.f32 %v575, 0.2
  %v1088 = vmul.f32 %v576, 0.2
  %v1089 = vmul.f32 %v577, 0.2
  %v1090 = vmul.f32 %v578, 0.2
  %v1091 = vmul.f32 %v579, 0.2
  %v1092 = vmul.f32 %v580, 0.2
  %v1093 = vmul.f32 %v581, 0.2
  %v1094 = vmul.f32 %v582, 0.2
  %v1095 = vmul.f32 %v583, 0.2
  %v1096 = vmul.f32 %v584, 0.2
  %v1097 = vmul.f32 %v585, 0.2
  %v1098 = vmul.f32 %v586, 0.2
  %v1099 = vmul.f32 %v587, 0.2
  %v1100 = vmul.f32 %v588, 0.2
  %v1101 = vmul.f32 %v589, 0.2
  %v1102 = vmul.f32 %v590, 0.2
  %v1103 = vmul.f32 %v591, 0.2
  %v1104 = vmul.f32 %v592, 0.2
  %v1105 = vmul.f32 %v593, 0.2
  %v1106 = vmul.f32 %v594, 0.2
  %v1107 = vmul.f32 %v595, 0.2
  %v1108 = vmul.f32 %v596, 0.2
  %v1109 = vmul.f32 %v597, 0.2
  %v1110 = vmul.f32 %v598, 0.2
  %v1111 = vmul.f32 %v599, 0.2
  %v1112 = vmul.f32 %v600, 0.2
  %v1113 = vmul.f32 %v601, 0.2
  %v1114 = vmul.f32 %v602, 0.2
  %v1115 = vmul.f32 %v603, 0.2
  %v1116 = vmul.f32 %v604, 0.2
  %v1117 = vmul.f32 %v605, 0.2
  %v1118 = vmul.f32 %v606, 0.2
  %v1119 = vmul.f32 %v607, 0.2
  %v1120 = vmul.f32 %v608, 0.2
  %v1121 = vmul.f32 %v609, 0.2
  %v1122 = vmul.f32 %v610, 0.2
  %v1123 = vmul.f32 %v611, 0.2
  %v1124 = vmul.f32 %v612, 0.2
  %v1125 = vmul.f32 %v613, 0.2
  %v1126 = vmul.f32 %v614, 0.2
  %v1127 = vmul.f32 %v615, 0.2
  %v1128 = vmul.f32 %v616, 0.2
  %v1129 = vmul.f32 %v617, 0.2
  %v1130 = vmul.f32 %v618, 0.2
  %v1131 = vmul.f32 %v619, 0.2
  %v1132 = vmul.f32 %v620, 0.2
  %v1133 = vmul.f32 %v621, 0.2
  %v1134 = vmul.f32 %v622, 0.2
  %v1135 = vmul.f32 %v623, 0.2
  %v1136 = vmul.f32 %v624, 0.2
  %v1137 = vmul.f32 %v625, 0.2
  %v1138 = vmul.f32 %v626, 0.2
  %v1139 = vmul.f32 %v627, 0.2
  %v1140 = vmul.f32 %v628, 0.2
  %v1141 = vmul.f32 %v629, 0.2
  %v1142 = vmul.f32 %v630, 0.2
  %v1143 = vmul.f32 %v631, 0.2
  %v1144 = vmul.f32 %v632, 0.2
  %v1145 = vmul.f32 %v633, 0.2
  %v1146 = vmul.f32 %v634, 0.2
  %v1147 = vmul.f32 %v635, 0.2
  %v1148 = vmul.f32 %v636, 0.2
  %v1149 = vmul.f32 %v637, 0.2
  %v1150 = vmul.f32 %v638, 0.2
  %v1151 = vmul.f32 %v639, 0.2
  %v1152 = vmul.f32 %v640, 0.2
  %v1153 = vmul.f32 %v641, 0.2
  %v1154 = vmul.f32 %v642, 0.2
  %v1155 = vmul.f32 %v643, 0.2
  %v1156 = vmul.f32 %v644, 0.2
  %v1157 = vmul.f32 %v645, 0.2
  %v1158 = vmul.f32 %v646, 0.2
  %v1159 = vmul.f32 %v647, 0.2
  %v1160 = vmul.f32 %v648, 0.2
  %v1161 = vmul.f32 %v649, 0.2
  %v1162 = vmul.f32 %v650, 0.2
  %v1163 = vmul.f32 %v651, 0.2
  %v1164 = vmul.f32 %v652, 0.2
  %v1165 = vmul.f32 %v653, 0.2
  %v1166 = vmul.f32 %v654, 0.2
  %v1167 = vmul.f32 %v655, 0.2
  %v1168 = vmul.f32 %v656, 0.2
  %v1169 = vmul.f32 %v657, 0.2
  %v1170 = vmul.f32 %v658, 0.2
  %v1171 = vmul.f32 %v659, 0.2
  %v1172 = vmul.f32 %v660, 0.2
  %v1173 = vmul.f32 %v661, 0.2
  %v1174 = vmul.f32 %v662, 0.2
  %v1175 = vmul.f32 %v663, 0.2
  %v1176 = vmul.f32 %v664, 0.2
  %v1177 = vmul.f32 %v665, 0.2
  %v1178 = vmul.f32 %v666, 0.2
  %v1179 = vmul.f32 %v667, 0.2
  %v1180 = vmul.f32 %v668, 0.2
  %v1181 = vmul.f32 %v669, 0.2
  %v1182 = vmul.f32 %v670, 0.2
  %v1183 = vmul.f32 %v671, 0.2
  %v1184 = vmul.f32 %v672, 0.2
  %v1185 = vmul.f32 %v673, 0.2
  %v1186 = vmul.f32 %v674, 0.2
  %v1187 = vmul.f32 %v675, 0.2
  %v1188 = vmul.f32 %v676, 0.2
  %v1189 = vmul.f32 %v677, 0.2
  %v1190 = vmul.f32 %v678, 0.2
  %v1191 = vmul.f32 %v679, 0.2
  %v1192 = vmul.f32 %v680, 0.2
  %v1193 = vmul.f32 %v681, 0.2
  %v1194 = vmul.f32 %v682, 0.2
  %v1195 = vmul.f32 %v683, 0.2
  %v1196 = vmul.f32 %v684, 0.2
  %v1197 = vmul.f32 %v685, 0.2
  %v1198 = vmul.f32 %v686, 0.2
  %v1199 = vmul.f32 %v687, 0.2
  %v1200 = vmul.f32 %v688, 0.2
  %v1201 = vmul.f32 %v689, 0.2
  %v1202 = vmul.f32 %v690, 0.2
  %v1203 = vmul.f32 %v691, 0.2
  %v1204 = vmul.f32 %v692, 0.2
  %v1205 = vmul.f32 %v693, 0.2
  %v1206 = vmul.f32 %v694, 0.2
  %v1207 = vmul.f32 %v695, 0.2
  %v1208 = vmul.f32 %v696, 0.2
  %v1209 = vmul.f32 %v697, 0.2
  %v1210 = vmul.f32 %v698, 0.2
  %v1211 = vmul.f32 %v699, 0.2
  %v1212 = vmul.f32 %v700, 0.2
  %v1213 = vmul.f32 %v701, 0.2
  %v1214 = vmul.f32 %v702, 0.2
  %v1215 = vmul.f32 %v703, 0.2
  %v1216 = vmul.f32 %v704, 0.2
  %v1217 = vmul.f32 %v705, 0.2
  %v1218 = vmul.f32 %v706, 0.2
  %v1219 = vmul.f32 %v707, 0.2
  %v1220 = vmul.f32 %v708, 0.2
  %v1221 = vmul.f32 %v709, 0.2
  %v1222 = vmul.f32 %v710, 0.2
  %v1223 = vmul.f32 %v711, 0.2
  %v1224 = vmul.f32 %v712, 0.2
  %v1225 = vmul.f32 %v713, 0.2
  %v1226 = vmul.f32 %v714, 0.2
  %v1227 = vmul.f32 %v715, 0.2
  %v1228 = vmul.f32 %v716, 0.2
  %v1229 = vmul.f32 %v717, 0.2
  %v1230 = vmul.f32 %v718, 0.2
  %v1231 = vmul.f32 %v719, 0.2
  %v1232 = vmul.f32 %v720, 0.2
  %v1233 = vmul.f32 %v721, 0.2
  %v1234 = vmul.f32 %v722, 0.2
  %v1235 = vmul.f32 %v723, 0.2
  %v1236 = vmul.f32 %v724, 0.2
  %v1237 = vmul.f32 %v725, 0.2
  %v1238 = vmul.f32 %v726, 0.2
  %v1239 = vmul.f32 %v727, 0.2
  %v1240 = vmul.f32 %v728, 0.2
  %v1241 = vmul.f32 %v729, 0.2
  %v1242 = vmul.f32 %v730, 0.2
  %v1243 = vmul.f32 %v731, 0.2
  %v1244 = vmul.f32 %v732, 0.2
  %v1245 = vmul.f32 %v733, 0.2
  %v1246 = vmul.f32 %v734, 0.2
  %v1247 = vmul.f32 %v735, 0.2
  %v1248 = vmul.f32 %v736, 0.2
  %v1249 = vmul.f32 %v737, 0.2
  %v1250 = vmul.f32 %v738, 0.2
  %v1251 = vmul.f32 %v739, 0.2
  %v1252 = vmul.f32 %v740, 0.2
  %v1253 = vmul.f32 %v741, 0.2
  %v1254 = vmul.f32 %v742, 0.2
  %v1255 = vmul.f32 %v743, 0.2
  %v1256 = vmul.f32 %v744, 0.2
  %v1257 = vmul.f32 %v745, 0.2
  %v1258 = vmul.f32 %v746, 0.2
  %v1259 = vmul.f32 %v747, 0.2
  %v1260 = vmul.f32 %v748, 0.2
  %v1261 = vmul.f32 %v749, 0.2
  %v1262 = vmul.f32 %v750, 0.2
  %v1263 = vmul.f32 %v751, 0.2
  %v1264 = vmul.f32 %v752, 0.2
  %v1265 = vmul.f32 %v753, 0.2
  %v1266 = vmul.f32 %v754, 0.2
  %v1267 = vmul.f32 %v755, 0.2
  %v1268 = vmul.f32 %v756, 0.2
  %v1269 = vmul.f32 %v757, 0.2
  %v1270 = vmul.f32 %v758, 0.2
  %v1271 = vmul.f32 %v759, 0.2
  %v1272 = vmul.f32 %v760, 0.2
  %v1273 = vmul.f32 %v761, 0.2
  %v1274 = vmul.f32 %v762, 0.2
  %v1275 = vmul.f32 %v763, 0.2
  %v1276 = vmul.f32 %v764, 0.2
  %v1277 = vmul.f32 %v765, 0.2
  %v1278 = vmul.f32 %v766, 0.2
  %v1279 = vmul.f32 %v767, 0.2
  %v1280 = vmul.f32 %v768, 0.2
  %v1281 = vmul.f32 %v769, 0.2
  %v1282 = vmul.f32 %v770, 0.2
  %v1283 = vmul.f32 %v771, 0.2
  %v1284 = vmul.f32 %v772, 0.2
  %v1285 = vmul.f32 %v773, 0.2
  %v1286 = vmul.f32 %v774, 0.2
  %v1287 = vmul.f32 %v775, 0.2
  %v1288 = vmul.f32 %v776, 0.2
  %v1289 = vmul.f32 %v777, 0.2
  %v1290 = vmul.f32 %v778, 0.2
  %v1291 = vmul.f32 %v779, 0.2
  %v1292 = vmul.f32 %v780, 0.2
  %v1293 = vmul.f32 %v781, 0.2
  %v1294 = vmul.f32 %v782, 0.2
  %v1295 = vmul.f32 %v783, 0.2
  %v1296 = vmul.f32 %v784, 0.2
  %v1297 = vmul.f32 %v785, 0.2
  %v1298 = vmul.f32 %v786, 0.2
  %v1299 = vmul.f32 %v787, 0.2
  %v1300 = vmul.f32 %v788, 0.2
  %v1301 = vmul.f32 %v789, 0.2
  %v1302 = vsel %vm790, %v534, %v1046
  %v1303 = vsel %vm791, %v535, %v1047
  %v1304 = vsel %vm792, %v536, %v1048
  %v1305 = vsel %vm793, %v537, %v1049
  %v1306 = vsel %vm794, %v538, %v1050
  %v1307 = vsel %vm795, %v539, %v1051
  %v1308 = vsel %vm796, %v540, %v1052
  %v1309 = vsel %vm797, %v541, %v1053
  %v1310 = vsel %vm798, %v542, %v1054
  %v1311 = vsel %vm799, %v543, %v1055
  %v1312 = vsel %vm800, %v544, %v1056
  %v1313 = vsel %vm801, %v545, %v1057
  %v1314 = vsel %vm802, %v546, %v1058
  %v1315 = vsel %vm803, %v547, %v1059
  %v1316 = vsel %vm804, %v548, %v1060
  %v1317 = vsel %vm805, %v549, %v1061
  %v1318 = vsel %vm806, %v550, %v1062
  %v1319 = vsel %vm807, %v551, %v1063
  %v1320 = vsel %vm808, %v552, %v1064
  %v1321 = vsel %vm809, %v553, %v1065
  %v1322 = vsel %vm810, %v554, %v1066
  %v1323 = vsel %vm811, %v555, %v1067
  %v1324 = vsel %vm812, %v556, %v1068
  %v1325 = vsel %vm813, %v557, %v1069
  %v1326 = vsel %vm814, %v558, %v1070
  %v1327 = vsel %vm815, %v559, %v1071
  %v1328 = vsel %vm816, %v560, %v1072
  %v1329 = vsel %vm817, %v561, %v1073
  %v1330 = vsel %vm818, %v562, %v1074
  %v1331 = vsel %vm819, %v563, %v1075
  %v1332 = vsel %vm820, %v564, %v1076
  %v1333 = vsel %vm821, %v565, %v1077
  %v1334 = vsel %vm822, %v566, %v1078
  %v1335 = vsel %vm823, %v567, %v1079
  %v1336 = vsel %vm824, %v568, %v1080
  %v1337 = vsel %vm825, %v569, %v1081
  %v1338 = vsel %vm826, %v570, %v1082
  %v1339 = vsel %vm827, %v571, %v1083
  %v1340 = vsel %vm828, %v572, %v1084
  %v1341 = vsel %vm829, %v573, %v1085
  %v1342 = vsel %vm830, %v574, %v1086
  %v1343 = vsel %vm831, %v575, %v1087
  %v1344 = vsel %vm832, %v576, %v1088
  %v1345 = vsel %vm833, %v577, %v1089
  %v1346 = vsel %vm834, %v578, %v1090
  %v1347 = vsel %vm835, %v579, %v1091
  %v1348 = vsel %vm836, %v580, %v1092
  %v1349 = vsel %vm837, %v581, %v1093
  %v1350 = vsel %vm838, %v582, %v1094
  %v1351 = vsel %vm839, %v583, %v1095
  %v1352 = vsel %vm840, %v584, %v1096
  %v1353 = vsel %vm841, %v585, %v1097
  %v1354 = vsel %vm842, %v586, %v1098
  %v1355 = vsel %vm843, %v587, %v1099
  %v1356 = vsel %vm844, %v588, %v1100
  %v1357 = vsel %vm845, %v589, %v1101
  %v1358 = vsel %vm846, %v590, %v1102
  %v1359 = vsel %vm847, %v591, %v1103
  %v1360 = vsel %vm848, %v592, %v1104
  %v1361 = vsel %vm849, %v593, %v1105
  %v1362 = vsel %vm850, %v594, %v1106
  %v1363 = vsel %vm851, %v595, %v1107
  %v1364 = vsel %vm852, %v596, %v1108
  %v1365 = vsel %vm853, %v597, %v1109
  %v1366 = vsel %vm854, %v598, %v1110
  %v1367 = vsel %vm855, %v599, %v1111
  %v1368 = vsel %vm856, %v600, %v1112
  %v1369 = vsel %vm857, %v601, %v1113
  %v1370 = vsel %vm858, %v602, %v1114
  %v1371 = vsel %vm859, %v603, %v1115
  %v1372 = vsel %vm860, %v604, %v1116
  %v1373 = vsel %vm861, %v605, %v1117
  %v1374 = vsel %vm862, %v606, %v1118
  %v1375 = vsel %vm863, %v607, %v1119
  %v1376 = vsel %vm864, %v608, %v1120
  %v1377 = vsel %vm865, %v609, %v1121
  %v1378 = vsel %vm866, %v610, %v1122
  %v1379 = vsel %vm867, %v611, %v1123
  %v1380 = vsel %vm868, %v612, %v1124
  %v1381 = vsel %vm869, %v613, %v1125
  %v1382 = vsel %vm870, %v614, %v1126
  %v1383 = vsel %vm871, %v615, %v1127
  %v1384 = vsel %vm872, %v616, %v1128
  %v1385 = vsel %vm873, %v617, %v1129
  %v1386 = vsel %vm874, %v618, %v1130
  %v1387 = vsel %vm875, %v619, %v1131
  %v1388 = vsel %vm876, %v620, %v1132
  %v1389 = vsel %vm877, %v621, %v1133
  %v1390 = vsel %vm878, %v622, %v1134
  %v1391 = vsel %vm879, %v623, %v1135
  %v1392 = vsel %vm880, %v624, %v1136
  %v1393 = vsel %vm881, %v625, %v1137
  %v1394 = vsel %vm882, %v626, %v1138
  %v1395 = vsel %vm883, %v627, %v1139
  %v1396 = vsel %vm884, %v628, %v1140
  %v1397 = vsel %vm885, %v629, %v1141
  %v1398 = vsel %vm886, %v630, %v1142
  %v1399 = vsel %vm887, %v631, %v1143
  %v1400 = vsel %vm888, %v632, %v1144
  %v1401 = vsel %vm889, %v633, %v1145
  %v1402 = vsel %vm890, %v634, %v1146
  %v1403 = vsel %vm891, %v635, %v1147
  %v1404 = vsel %vm892, %v636, %v1148
  %v1405 = vsel %vm893, %v637, %v1149
  %v1406 = vsel %vm894, %v638, %v1150
  %v1407 = vsel %vm895, %v639, %v1151
  %v1408 = vsel %vm896, %v640, %v1152
  %v1409 = vsel %vm897, %v641, %v1153
  %v1410 = vsel %vm898, %v642, %v1154
  %v1411 = vsel %vm899, %v643, %v1155
  %v1412 = vsel %vm900, %v644, %v1156
  %v1413 = vsel %vm901, %v645, %v1157
  %v1414 = vsel %vm902, %v646, %v1158
  %v1415 = vsel %vm903, %v647, %v1159
  %v1416 = vsel %vm904, %v648, %v1160
  %v1417 = vsel %vm905, %v649, %v1161
  %v1418 = vsel %vm906, %v650, %v1162
  %v1419 = vsel %vm907, %v651, %v1163
  %v1420 = vsel %vm908, %v652, %v1164
  %v1421 = vsel %vm909, %v653, %v1165
  %v1422 = vsel %vm910, %v654, %v1166
  %v1423 = vsel %vm911, %v655, %v1167
  %v1424 = vsel %vm912, %v656, %v1168
  %v1425 = vsel %vm913, %v657, %v1169
  %v1426 = vsel %vm914, %v658, %v1170
  %v1427 = vsel %vm915, %v659, %v1171
  %v1428 = vsel %vm916, %v660, %v1172
  %v1429 = vsel %vm917, %v661, %v1173
  %v1430 = vsel %vm918, %v662, %v1174
  %v1431 = vsel %vm919, %v663, %v1175
  %v1432 = vsel %vm920, %v664, %v1176
  %v1433 = vsel %vm921, %v665, %v1177
  %v1434 = vsel %vm922, %v666, %v1178
  %v1435 = vsel %vm923, %v667, %v1179
  %v1436 = vsel %vm924, %v668, %v1180
  %v1437 = vsel %vm925, %v669, %v1181
  %v1438 = vsel %vm926, %v670, %v1182
  %v1439 = vsel %vm927, %v671, %v1183
  %v1440 = vsel %vm928, %v672, %v1184
  %v1441 = vsel %vm929, %v673, %v1185
  %v1442 = vsel %vm930, %v674, %v1186
  %v1443 = vsel %vm931, %v675, %v1187
  %v1444 = vsel %vm932, %v676, %v1188
  %v1445 = vsel %vm933, %v677, %v1189
  %v1446 = vsel %vm934, %v678, %v1190
  %v1447 = vsel %vm935, %v679, %v1191
  %v1448 = vsel %vm936, %v680, %v1192
  %v1449 = vsel %vm937, %v681, %v1193
  %v1450 = vsel %vm938, %v682, %v1194
  %v1451 = vsel %vm939, %v683, %v1195
  %v1452 = vsel %vm940, %v684, %v1196
  %v1453 = vsel %vm941, %v685, %v1197
  %v1454 = vsel %vm942, %v686, %v1198
  %v1455 = vsel %vm943, %v687, %v1199
  %v1456 = vsel %vm944, %v688, %v1200
  %v1457 = vsel %vm945, %v689, %v1201
  %v1458 = vsel %vm946, %v690, %v1202
  %v1459 = vsel %vm947, %v691, %v1203
  %v1460 = vsel %vm948, %v692, %v1204
  %v1461 = vsel %vm949, %v693, %v1205
  %v1462 = vsel %vm950, %v694, %v1206
  %v1463 = vsel %vm951, %v695, %v1207
  %v1464 = vsel %vm952, %v696, %v1208
  %v1465 = vsel %vm953, %v697, %v1209
  %v1466 = vsel %vm954, %v698, %v1210
  %v1467 = vsel %vm955, %v699, %v1211
  %v1468 = vsel %vm956, %v700, %v1212
  %v1469 = vsel %vm957, %v701, %v1213
  %v1470 = vsel %vm958, %v702, %v1214
  %v1471 = vsel %vm959, %v703, %v1215
  %v1472 = vsel %vm960, %v704, %v1216
  %v1473 = vsel %vm961, %v705, %v1217
  %v1474 = vsel %vm962, %v706, %v1218
  %v1475 = vsel %vm963, %v707, %v1219
  %v1476 = vsel %vm964, %v708, %v1220
  %v1477 = vsel %vm965, %v709, %v1221
  %v1478 = vsel %vm966, %v710, %v1222
  %v1479 = vsel %vm967, %v711, %v1223
  %v1480 = vsel %vm968, %v712, %v1224
  %v1481 = vsel %vm969, %v713, %v1225
  %v1482 = vsel %vm970, %v714, %v1226
  %v1483 = vsel %vm971, %v715, %v1227
  %v1484 = vsel %vm972, %v716, %v1228
  %v1485 = vsel %vm973, %v717, %v1229
  %v1486 = vsel %vm974, %v718, %v1230
  %v1487 = vsel %vm975, %v719, %v1231
  %v1488 = vsel %vm976, %v720, %v1232
  %v1489 = vsel %vm977, %v721, %v1233
  %v1490 = vsel %vm978, %v722, %v1234
  %v1491 = vsel %vm979, %v723, %v1235
  %v1492 = vsel %vm980, %v724, %v1236
  %v1493 = vsel %vm981, %v725, %v1237
  %v1494 = vsel %vm982, %v726, %v1238
  %v1495 = vsel %vm983, %v727, %v1239
  %v1496 = vsel %vm984, %v728, %v1240
  %v1497 = vsel %vm985, %v729, %v1241
  %v1498 = vsel %vm986, %v730, %v1242
  %v1499 = vsel %vm987, %v731, %v1243
  %v1500 = vsel %vm988, %v732, %v1244
  %v1501 = vsel %vm989, %v733, %v1245
  %v1502 = vsel %vm990, %v734, %v1246
  %v1503 = vsel %vm991, %v735, %v1247
  %v1504 = vsel %vm992, %v736, %v1248
  %v1505 = vsel %vm993, %v737, %v1249
  %v1506 = vsel %vm994, %v738, %v1250
  %v1507 = vsel %vm995, %v739, %v1251
  %v1508 = vsel %vm996, %v740, %v1252
  %v1509 = vsel %vm997, %v741, %v1253
  %v1510 = vsel %vm998, %v742, %v1254
  %v1511 = vsel %vm999, %v743, %v1255
  %v1512 = vsel %vm1000, %v744, %v1256
  %v1513 = vsel %vm1001, %v745, %v1257
  %v1514 = vsel %vm1002, %v746, %v1258
  %v1515 = vsel %vm1003, %v747, %v1259
  %v1516 = vsel %vm1004, %v748, %v1260
  %v1517 = vsel %vm1005, %v749, %v1261
  %v1518 = vsel %vm1006, %v750, %v1262
  %v1519 = vsel %vm1007, %v751, %v1263
  %v1520 = vsel %vm1008, %v752, %v1264
  %v1521 = vsel %vm1009, %v753, %v1265
  %v1522 = vsel %vm1010, %v754, %v1266
  %v1523 = vsel %vm1011, %v755, %v1267
  %v1524 = vsel %vm1012, %v756, %v1268
  %v1525 = vsel %vm1013, %v757, %v1269
  %v1526 = vsel %vm1014, %v758, %v1270
  %v1527 = vsel %vm1015, %v759, %v1271
  %v1528 = vsel %vm1016, %v760, %v1272
  %v1529 = vsel %vm1017, %v761, %v1273
  %v1530 = vsel %vm1018, %v762, %v1274
  %v1531 = vsel %vm1019, %v763, %v1275
  %v1532 = vsel %vm1020, %v764, %v1276
  %v1533 = vsel %vm1021, %v765, %v1277
  %v1534 = vsel %vm1022, %v766, %v1278
  %v1535 = vsel %vm1023, %v767, %v1279
  %v1536 = vsel %vm1024, %v768, %v1280
  %v1537 = vsel %vm1025, %v769, %v1281
  %v1538 = vsel %vm1026, %v770, %v1282
  %v1539 = vsel %vm1027, %v771, %v1283
  %v1540 = vsel %vm1028, %v772, %v1284
  %v1541 = vsel %vm1029, %v773, %v1285
  %v1542 = vsel %vm1030, %v774, %v1286
  %v1543 = vsel %vm1031, %v775, %v1287
  %v1544 = vsel %vm1032, %v776, %v1288
  %v1545 = vsel %vm1033, %v777, %v1289
  %v1546 = vsel %vm1034, %v778, %v1290
  %v1547 = vsel %vm1035, %v779, %v1291
  %v1548 = vsel %vm1036, %v780, %v1292
  %v1549 = vsel %vm1037, %v781, %v1293
  %v1550 = vsel %vm1038, %v782, %v1294
  %v1551 = vsel %vm1039, %v783, %v1295
  %v1552 = vsel %vm1040, %v784, %v1296
  %v1553 = vsel %vm1041, %v785, %v1297
  %v1554 = vsel %vm1042, %v786, %v1298
  %v1555 = vsel %vm1043, %v787, %v1299
  %v1556 = vsel %vm1044, %v788, %v1300
  %v1557 = vsel %vm1045, %v789, %v1301
  %1558 = vst [vmem:[%s3] sm:$0xff] %v1302
  %1559 = vst [vmem:[%s3 + $0x8] sm:$0xff] %v1303
  %1560 = vst [vmem:[%s3 + $0x10] sm:$0xff] %v1304
  %1561 = vst [vmem:[%s3 + $0x18] sm:$0xff] %v1305
  %1562 = vst [vmem:[%s3 + $0x20] sm:$0xff] %v1306
  %1563 = vst [vmem:[%s3 + $0x28] sm:$0xff] %v1307
  %1564 = vst [vmem:[%s3 + $0x30] sm:$0xff] %v1308
  %1565 = vst [vmem:[%s3 + $0x38] sm:$0xff] %v1309
  %1566 = vst [vmem:[%s3 + $0x40] sm:$0xff] %v1310
  %1567 = vst [vmem:[%s3 + $0x48] sm:$0xff] %v1311
  %1568 = vst [vmem:[%s3 + $0x50] sm:$0xff] %v1312
  %1569 = vst [vmem:[%s3 + $0x58] sm:$0xff] %v1313
  %1570 = vst [vmem:[%s3 + $0x60] sm:$0xff] %v1314
  %1571 = vst [vmem:[%s3 + $0x68] sm:$0xff] %v1315
  %1572 = vst [vmem:[%s3 + $0x70] sm:$0xff] %v1316
  %1573 = vst [vmem:[%s3 + $0x78] sm:$0xff] %v1317
  %1574 = vst [vmem:[%s3 + $0x80] sm:$0xff] %v1318
  %1575 = vst [vmem:[%s3 + $0x88] sm:$0xff] %v1319
  %1576 = vst [vmem:[%s3 + $0x90] sm:$0xff] %v1320
  %1577 = vst [vmem:[%s3 + $0x98] sm:$0xff] %v1321
  %1578 = vst [vmem:[%s3 + $0xa0] sm:$0xff] %v1322
  %1579 = vst [vmem:[%s3 + $0xa8] sm:$0xff] %v1323
  %1580 = vst [vmem:[%s3 + $0xb0] sm:$0xff] %v1324
  %1581 = vst [vmem:[%s3 + $0xb8] sm:$0xff] %v1325
  %1582 = vst [vmem:[%s3 + $0xc0] sm:$0xff] %v1326
  %1583 = vst [vmem:[%s3 + $0xc8] sm:$0xff] %v1327
  %1584 = vst [vmem:[%s3 + $0xd0] sm:$0xff] %v1328
  %1585 = vst [vmem:[%s3 + $0xd8] sm:$0xff] %v1329
  %1586 = vst [vmem:[%s3 + $0xe0] sm:$0xff] %v1330
  %1587 = vst [vmem:[%s3 + $0xe8] sm:$0xff] %v1331
  %1588 = vst [vmem:[%s3 + $0xf0] sm:$0xff] %v1332
  %1589 = vst [vmem:[%s3 + $0xf8] sm:$0xff] %v1333
  %1590 = vst [vmem:[%s3 + $0x100] sm:$0xff] %v1334
  %1591 = vst [vmem:[%s3 + $0x108] sm:$0xff] %v1335
  %1592 = vst [vmem:[%s3 + $0x110] sm:$0xff] %v1336
  %1593 = vst [vmem:[%s3 + $0x118] sm:$0xff] %v1337
  %1594 = vst [vmem:[%s3 + $0x120] sm:$0xff] %v1338
  %1595 = vst [vmem:[%s3 + $0x128] sm:$0xff] %v1339
  %1596 = vst [vmem:[%s3 + $0x130] sm:$0xff] %v1340
  %1597 = vst [vmem:[%s3 + $0x138] sm:$0xff] %v1341
  %1598 = vst [vmem:[%s3 + $0x140] sm:$0xff] %v1342
  %1599 = vst [vmem:[%s3 + $0x148] sm:$0xff] %v1343
  %1600 = vst [vmem:[%s3 + $0x150] sm:$0xff] %v1344
  %1601 = vst [vmem:[%s3 + $0x158] sm:$0xff] %v1345
  %1602 = vst [vmem:[%s3 + $0x160] sm:$0xff] %v1346
  %1603 = vst [vmem:[%s3 + $0x168] sm:$0xff] %v1347
  %1604 = vst [vmem:[%s3 + $0x170] sm:$0xff] %v1348
  %1605 = vst [vmem:[%s3 + $0x178] sm:$0xff] %v1349
  %1606 = vst [vmem:[%s3 + $0x180] sm:$0xff] %v1350
  %1607 = vst [vmem:[%s3 + $0x188] sm:$0xff] %v1351
  %1608 = vst [vmem:[%s3 + $0x190] sm:$0xff] %v1352
  %1609 = vst [vmem:[%s3 + $0x198] sm:$0xff] %v1353
  %1610 = vst [vmem:[%s3 + $0x1a0] sm:$0xff] %v1354
  %1611 = vst [vmem:[%s3 + $0x1a8] sm:$0xff] %v1355
  %1612 = vst [vmem:[%s3 + $0x1b0] sm:$0xff] %v1356
  %1613 = vst [vmem:[%s3 + $0x1b8] sm:$0xff] %v1357
  %1614 = vst [vmem:[%s3 + $0x1c0] sm:$0xff] %v1358
  %1615 = vst [vmem:[%s3 + $0x1c8] sm:$0xff] %v1359
  %1616 = vst [vmem:[%s3 + $0x1d0] sm:$0xff] %v1360
  %1617 = vst [vmem:[%s3 + $0x1d8] sm:$0xff] %v1361
  %1618 = vst [vmem:[%s3 + $0x1e0] sm:$0xff] %v1362
  %1619 = vst [vmem:[%s3 + $0x1e8] sm:$0xff] %v1363
  %1620 = vst [vmem:[%s3 + $0x1f0] sm:$0xff] %v1364
  %1621 = vst [vmem:[%s3 + $0x1f8] sm:$0xff] %v1365
  %1622 = vst [vmem:[%s3 + $0x200] sm:$0xff] %v1366
  %1623 = vst [vmem:[%s3 + $0x208] sm:$0xff] %v1367
  %1624 = vst [vmem:[%s3 + $0x210] sm:$0xff] %v1368
  %1625 = vst [vmem:[%s3 + $0x218] sm:$0xff] %v1369
  %1626 = vst [vmem:[%s3 + $0x220] sm:$0xff] %v1370
  %1627 = vst [vmem:[%s3 + $0x228] sm:$0xff] %v1371
  %1628 = vst [vmem:[%s3 + $0x230] sm:$0xff] %v1372
  %1629 = vst [vmem:[%s3 + $0x238] sm:$0xff] %v1373
  %1630 = vst [vmem:[%s3 + $0x240] sm:$0xff] %v1374
  %1631 = vst [vmem:[%s3 + $0x248] sm:$0xff] %v1375
  %1632 = vst [vmem:[%s3 + $0x250] sm:$0xff] %v1376
  %1633 = vst [vmem:[%s3 + $0x258] sm:$0xff] %v1377
  %1634 = vst [vmem:[%s3 + $0x260] sm:$0xff] %v1378
  %1635 = vst [vmem:[%s3 + $0x268] sm:$0xff] %v1379
  %1636 = vst [vmem:[%s3 + $0x270] sm:$0xff] %v1380
  %1637 = vst [vmem:[%s3 + $0x278] sm:$0xff] %v1381
  %1638 = vst [vmem:[%s3 + $0x280] sm:$0xff] %v1382
  %1639 = vst [vmem:[%s3 + $0x288] sm:$0xff] %v1383
  %1640 = vst [vmem:[%s3 + $0x290] sm:$0xff] %v1384
  %1641 = vst [vmem:[%s3 + $0x298] sm:$0xff] %v1385
  %1642 = vst [vmem:[%s3 + $0x2a0] sm:$0xff] %v1386
  %1643 = vst [vmem:[%s3 + $0x2a8] sm:$0xff] %v1387
  %1644 = vst [vmem:[%s3 + $0x2b0] sm:$0xff] %v1388
  %1645 = vst [vmem:[%s3 + $0x2b8] sm:$0xff] %v1389
  %1646 = vst [vmem:[%s3 + $0x2c0] sm:$0xff] %v1390
  %1647 = vst [vmem:[%s3 + $0x2c8] sm:$0xff] %v1391
  %1648 = vst [vmem:[%s3 + $0x2d0] sm:$0xff] %v1392
  %1649 = vst [vmem:[%s3 + $0x2d8] sm:$0xff] %v1393
  %1650 = vst [vmem:[%s3 + $0x2e0] sm:$0xff] %v1394
  %1651 = vst [vmem:[%s3 + $0x2e8] sm:$0xff] %v1395
  %1652 = vst [vmem:[%s3 + $0x2f0] sm:$0xff] %v1396
  %1653 = vst [vmem:[%s3 + $0x2f8] sm:$0xff] %v1397
  %1654 = vst [vmem:[%s3 + $0x300] sm:$0xff] %v1398
  %1655 = vst [vmem:[%s3 + $0x308] sm:$0xff] %v1399
  %1656 = vst [vmem:[%s3 + $0x310] sm:$0xff] %v1400
  %1657 = vst [vmem:[%s3 + $0x318] sm:$0xff] %v1401
  %1658 = vst [vmem:[%s3 + $0x320] sm:$0xff] %v1402
  %1659 = vst [vmem:[%s3 + $0x328] sm:$0xff] %v1403
  %1660 = vst [vmem:[%s3 + $0x330] sm:$0xff] %v1404
  %1661 = vst [vmem:[%s3 + $0x338] sm:$0xff] %v1405
  %1662 = vst [vmem:[%s3 + $0x340] sm:$0xff] %v1406
  %1663 = vst [vmem:[%s3 + $0x348] sm:$0xff] %v1407
  %1664 = vst [vmem:[%s3 + $0x350] sm:$0xff] %v1408
  %1665 = vst [vmem:[%s3 + $0x358] sm:$0xff] %v1409
  %1666 = vst [vmem:[%s3 + $0x360] sm:$0xff] %v1410
  %1667 = vst [vmem:[%s3 + $0x368] sm:$0xff] %v1411
  %1668 = vst [vmem:[%s3 + $0x370] sm:$0xff] %v1412
  %1669 = vst [vmem:[%s3 + $0x378] sm:$0xff] %v1413
  %1670 = vst [vmem:[%s3 + $0x380] sm:$0xff] %v1414
  %1671 = vst [vmem:[%s3 + $0x388] sm:$0xff] %v1415
  %1672 = vst [vmem:[%s3 + $0x390] sm:$0xff] %v1416
  %1673 = vst [vmem:[%s3 + $0x398] sm:$0xff] %v1417
  %1674 = vst [vmem:[%s3 + $0x3a0] sm:$0xff] %v1418
  %1675 = vst [vmem:[%s3 + $0x3a8] sm:$0xff] %v1419
  %1676 = vst [vmem:[%s3 + $0x3b0] sm:$0xff] %v1420
  %1677 = vst [vmem:[%s3 + $0x3b8] sm:$0xff] %v1421
  %1678 = vst [vmem:[%s3 + $0x3c0] sm:$0xff] %v1422
  %1679 = vst [vmem:[%s3 + $0x3c8] sm:$0xff] %v1423
  %1680 = vst [vmem:[%s3 + $0x3d0] sm:$0xff] %v1424
  %1681 = vst [vmem:[%s3 + $0x3d8] sm:$0xff] %v1425
  %1682 = vst [vmem:[%s3 + $0x3e0] sm:$0xff] %v1426
  %1683 = vst [vmem:[%s3 + $0x3e8] sm:$0xff] %v1427
  %1684 = vst [vmem:[%s3 + $0x3f0] sm:$0xff] %v1428
  %1685 = vst [vmem:[%s3 + $0x3f8] sm:$0xff] %v1429
  %1686 = vst [vmem:[%s3 + $0x400] sm:$0xff] %v1430
  %1687 = vst [vmem:[%s3 + $0x408] sm:$0xff] %v1431
  %1688 = vst [vmem:[%s3 + $0x410] sm:$0xff] %v1432
  %1689 = vst [vmem:[%s3 + $0x418] sm:$0xff] %v1433
  %1690 = vst [vmem:[%s3 + $0x420] sm:$0xff] %v1434
  %1691 = vst [vmem:[%s3 + $0x428] sm:$0xff] %v1435
  %1692 = vst [vmem:[%s3 + $0x430] sm:$0xff] %v1436
  %1693 = vst [vmem:[%s3 + $0x438] sm:$0xff] %v1437
  %1694 = vst [vmem:[%s3 + $0x440] sm:$0xff] %v1438
  %1695 = vst [vmem:[%s3 + $0x448] sm:$0xff] %v1439
  %1696 = vst [vmem:[%s3 + $0x450] sm:$0xff] %v1440
  %1697 = vst [vmem:[%s3 + $0x458] sm:$0xff] %v1441
  %1698 = vst [vmem:[%s3 + $0x460] sm:$0xff] %v1442
  %1699 = vst [vmem:[%s3 + $0x468] sm:$0xff] %v1443
  %1700 = vst [vmem:[%s3 + $0x470] sm:$0xff] %v1444
  %1701 = vst [vmem:[%s3 + $0x478] sm:$0xff] %v1445
  %1702 = vst [vmem:[%s3 + $0x480] sm:$0xff] %v1446
  %1703 = vst [vmem:[%s3 + $0x488] sm:$0xff] %v1447
  %1704 = vst [vmem:[%s3 + $0x490] sm:$0xff] %v1448
  %1705 = vst [vmem:[%s3 + $0x498] sm:$0xff] %v1449
  %1706 = vst [vmem:[%s3 + $0x4a0] sm:$0xff] %v1450
  %1707 = vst [vmem:[%s3 + $0x4a8] sm:$0xff] %v1451
  %1708 = vst [vmem:[%s3 + $0x4b0] sm:$0xff] %v1452
  %1709 = vst [vmem:[%s3 + $0x4b8] sm:$0xff] %v1453
  %1710 = vst [vmem:[%s3 + $0x4c0] sm:$0xff] %v1454
  %1711 = vst [vmem:[%s3 + $0x4c8] sm:$0xff] %v1455
  %1712 = vst [vmem:[%s3 + $0x4d0] sm:$0xff] %v1456
  %1713 = vst [vmem:[%s3 + $0x4d8] sm:$0xff] %v1457
  %1714 = vst [vmem:[%s3 + $0x4e0] sm:$0xff] %v1458
  %1715 = vst [vmem:[%s3 + $0x4e8] sm:$0xff] %v1459
  %1716 = vst [vmem:[%s3 + $0x4f0] sm:$0xff] %v1460
  %1717 = vst [vmem:[%s3 + $0x4f8] sm:$0xff] %v1461
  %1718 = vst [vmem:[%s3 + $0x500] sm:$0xff] %v1462
  %1719 = vst [vmem:[%s3 + $0x508] sm:$0xff] %v1463
  %1720 = vst [vmem:[%s3 + $0x510] sm:$0xff] %v1464
  %1721 = vst [vmem:[%s3 + $0x518] sm:$0xff] %v1465
  %1722 = vst [vmem:[%s3 + $0x520] sm:$0xff] %v1466
  %1723 = vst [vmem:[%s3 + $0x528] sm:$0xff] %v1467
  %1724 = vst [vmem:[%s3 + $0x530] sm:$0xff] %v1468
  %1725 = vst [vmem:[%s3 + $0x538] sm:$0xff] %v1469
  %1726 = vst [vmem:[%s3 + $0x540] sm:$0xff] %v1470
  %1727 = vst [vmem:[%s3 + $0x548] sm:$0xff] %v1471
  %1728 = vst [vmem:[%s3 + $0x550] sm:$0xff] %v1472
  %1729 = vst [vmem:[%s3 + $0x558] sm:$0xff] %v1473
  %1730 = vst [vmem:[%s3 + $0x560] sm:$0xff] %v1474
  %1731 = vst [vmem:[%s3 + $0x568] sm:$0xff] %v1475
  %1732 = vst [vmem:[%s3 + $0x570] sm:$0xff] %v1476
  %1733 = vst [vmem:[%s3 + $0x578] sm:$0xff] %v1477
  %1734 = vst [vmem:[%s3 + $0x580] sm:$0xff] %v1478
  %1735 = vst [vmem:[%s3 + $0x588] sm:$0xff] %v1479
  %1736 = vst [vmem:[%s3 + $0x590] sm:$0xff] %v1480
  %1737 = vst [vmem:[%s3 + $0x598] sm:$0xff] %v1481
  %1738 = vst [vmem:[%s3 + $0x5a0] sm:$0xff] %v1482
  %1739 = vst [vmem:[%s3 + $0x5a8] sm:$0xff] %v1483
  %1740 = vst [vmem:[%s3 + $0x5b0] sm:$0xff] %v1484
  %1741 = vst [vmem:[%s3 + $0x5b8] sm:$0xff] %v1485
  %1742 = vst [vmem:[%s3 + $0x5c0] sm:$0xff] %v1486
  %1743 = vst [vmem:[%s3 + $0x5c8] sm:$0xff] %v1487
  %1744 = vst [vmem:[%s3 + $0x5d0] sm:$0xff] %v1488
  %1745 = vst [vmem:[%s3 + $0x5d8] sm:$0xff] %v1489
  %1746 = vst [vmem:[%s3 + $0x5e0] sm:$0xff] %v1490
  %1747 = vst [vmem:[%s3 + $0x5e8] sm:$0xff] %v1491
  %1748 = vst [vmem:[%s3 + $0x5f0] sm:$0xff] %v1492
  %1749 = vst [vmem:[%s3 + $0x5f8] sm:$0xff] %v1493
  %1750 = vst [vmem:[%s3 + $0x600] sm:$0xff] %v1494
  %1751 = vst [vmem:[%s3 + $0x608] sm:$0xff] %v1495
  %1752 = vst [vmem:[%s3 + $0x610] sm:$0xff] %v1496
  %1753 = vst [vmem:[%s3 + $0x618] sm:$0xff] %v1497
  %1754 = vst [vmem:[%s3 + $0x620] sm:$0xff] %v1498
  %1755 = vst [vmem:[%s3 + $0x628] sm:$0xff] %v1499
  %1756 = vst [vmem:[%s3 + $0x630] sm:$0xff] %v1500
  %1757 = vst [vmem:[%s3 + $0x638] sm:$0xff] %v1501
  %1758 = vst [vmem:[%s3 + $0x640] sm:$0xff] %v1502
  %1759 = vst [vmem:[%s3 + $0x648] sm:$0xff] %v1503
  %1760 = vst [vmem:[%s3 + $0x650] sm:$0xff] %v1504
  %1761 = vst [vmem:[%s3 + $0x658] sm:$0xff] %v1505
  %1762 = vst [vmem:[%s3 + $0x660] sm:$0xff] %v1506
  %1763 = vst [vmem:[%s3 + $0x668] sm:$0xff] %v1507
  %1764 = vst [vmem:[%s3 + $0x670] sm:$0xff] %v1508
  %1765 = vst [vmem:[%s3 + $0x678] sm:$0xff] %v1509
  %1766 = vst [vmem:[%s3 + $0x680] sm:$0xff] %v1510
  %1767 = vst [vmem:[%s3 + $0x688] sm:$0xff] %v1511
  %1768 = vst [vmem:[%s3 + $0x690] sm:$0xff] %v1512
  %1769 = vst [vmem:[%s3 + $0x698] sm:$0xff] %v1513
  %1770 = vst [vmem:[%s3 + $0x6a0] sm:$0xff] %v1514
  %1771 = vst [vmem:[%s3 + $0x6a8] sm:$0xff] %v1515
  %1772 = vst [vmem:[%s3 + $0x6b0] sm:$0xff] %v1516
  %1773 = vst [vmem:[%s3 + $0x6b8] sm:$0xff] %v1517
  %1774 = vst [vmem:[%s3 + $0x6c0] sm:$0xff] %v1518
  %1775 = vst [vmem:[%s3 + $0x6c8] sm:$0xff] %v1519
  %1776 = vst [vmem:[%s3 + $0x6d0] sm:$0xff] %v1520
  %1777 = vst [vmem:[%s3 + $0x6d8] sm:$0xff] %v1521
  %1778 = vst [vmem:[%s3 + $0x6e0] sm:$0xff] %v1522
  %1779 = vst [vmem:[%s3 + $0x6e8] sm:$0xff] %v1523
  %1780 = vst [vmem:[%s3 + $0x6f0] sm:$0xff] %v1524
  %1781 = vst [vmem:[%s3 + $0x6f8] sm:$0xff] %v1525
  %1782 = vst [vmem:[%s3 + $0x700] sm:$0xff] %v1526
  %1783 = vst [vmem:[%s3 + $0x708] sm:$0xff] %v1527
  %1784 = vst [vmem:[%s3 + $0x710] sm:$0xff] %v1528
  %1785 = vst [vmem:[%s3 + $0x718] sm:$0xff] %v1529
  %1786 = vst [vmem:[%s3 + $0x720] sm:$0xff] %v1530
  %1787 = vst [vmem:[%s3 + $0x728] sm:$0xff] %v1531
  %1788 = vst [vmem:[%s3 + $0x730] sm:$0xff] %v1532
  %1789 = vst [vmem:[%s3 + $0x738] sm:$0xff] %v1533
  %1790 = vst [vmem:[%s3 + $0x740] sm:$0xff] %v1534
  %1791 = vst [vmem:[%s3 + $0x748] sm:$0xff] %v1535
  %1792 = vst [vmem:[%s3 + $0x750] sm:$0xff] %v1536
  %1793 = vst [vmem:[%s3 + $0x758] sm:$0xff] %v1537
  %1794 = vst [vmem:[%s3 + $0x760] sm:$0xff] %v1538
  %1795 = vst [vmem:[%s3 + $0x768] sm:$0xff] %v1539
  %1796 = vst [vmem:[%s3 + $0x770] sm:$0xff] %v1540
  %1797 = vst [vmem:[%s3 + $0x778] sm:$0xff] %v1541
  %1798 = vst [vmem:[%s3 + $0x780] sm:$0xff] %v1542
  %1799 = vst [vmem:[%s3 + $0x788] sm:$0xff] %v1543
  %1800 = vst [vmem:[%s3 + $0x790] sm:$0xff] %v1544
  %1801 = vst [vmem:[%s3 + $0x798] sm:$0xff] %v1545
  %1802 = vst [vmem:[%s3 + $0x7a0] sm:$0xff] %v1546
  %1803 = vst [vmem:[%s3 + $0x7a8] sm:$0xff] %v1547
  %1804 = vst [vmem:[%s3 + $0x7b0] sm:$0xff] %v1548
  %1805 = vst [vmem:[%s3 + $0x7b8] sm:$0xff] %v1549
  %1806 = vst [vmem:[%s3 + $0x7c0] sm:$0xff] %v1550
  %1807 = vst [vmem:[%s3 + $0x7c8] sm:$0xff] %v1551
  %1808 = vst [vmem:[%s3 + $0x7d0] sm:$0xff] %v1552
  %1809 = vst [vmem:[%s3 + $0x7d8] sm:$0xff] %v1553
  %1810 = vst [vmem:[%s3 + $0x7e0] sm:$0xff] %v1554
  %1811 = vst [vmem:[%s3 + $0x7e8] sm:$0xff] %v1555
  %1812 = vst [vmem:[%s3 + $0x7f0] sm:$0xff] %v1556
  %1813 = vst [vmem:[%s3 + $0x7f8] sm:$0xff] %v1557
  // Predicated region
  $region14: #{spp_forward.5} parent=0 // pred_check
    _
  $region15: #{spp_forward.5} parent=0 // pred_check_branch
    %1815 = sbr.rel (0) target = $region17
  $region16: #{spp_forward.5} parent=0 // pred_region
    _
  $region17: #{spp_forward.5} parent=0 // pred_fallthru
    _
  // Predicated region
  $region18: #{spp_forward.5} parent=0 // pred_check
    _
  $region19: #{spp_forward.5} parent=0 // pred_check_branch
    %1817 = sbr.rel (0) target = $region21
  $region20: #{spp_forward.5} parent=0 // pred_region
    _
  $region21: #{spp_forward.5} parent=0 // pred_fallthru
    _

// kernel: spp_forward.4
$region0: #{spp_forward.4}
  #allocation0 [shape = 'u32[]', space=smem, size = 0x4, offset = 0x4, fixed_abs, tag = 'smem constant byte address 0x4 - core index']
  #allocation1 [shape = 'u32[72,128]{1,0:T(1,128)}', space=vmem, size = 0x9000, scoped, tag = 'internal scratch']
  %s0 = inlined_call_operand.vmem [shape: bf16[2,4,10,34,128], index: 0, kind: input, shape index: {}]
  %s1 = inlined_call_operand.vmem [shape: bf16[9,128,128], index: 1, kind: input, shape index: {}]
  %s2 = inlined_call_operand.vmem [shape: f32[1,128], index: 2, kind: input, shape index: {}]
  %s3 = inlined_call_operand.vmem [shape: f32[2,4,256,128], index: 3, kind: output, shape index: {0}]
  %s4 = inlined_call_operand.vmem [shape: f32[2,4,2,128], index: 4, kind: output, shape index: {1}]
  %5 = xla_tuple %s3, %s4
  %s6 = sld [smem:[#allocation0]]
  $region53: #{spp_forward.4} parent=0
    _
  %s8 = ssub.s32 1, %s6
  %s9 = scalar_select 0, %s8, %s6
  loop: start=0, step=1, limit=10
  $region2: #{spp_forward.4} parent=0 // loop_pre_header
    _
  $region3: #{spp_forward.4} parent=0 // loop_header
    %s11 = sphi 0, %s15
    %p12 = scmp.ge.s32.totalorder %s11, 10
    %s18 = sphi 0, %s30
    %s19 = sphi 0, %s26
    %s20 = sphi 0, %s18
    %s21 = sphi 0, %s19
    %s22 = sphi 0, %s20
    %s23 = sphi 0, %s21
    %s35 = sphi 0, %s37
    %s38 = sphi 0, %s35
    %s39 = sphi 0, %s38
    %s55 = sphi 0, %s39
    %s59 = sphi 0, %s59
    %s61 = sphi 0, %s59
    %s62 = sphi 0, %s61
    %s76 = sphi 0, %s62
    %s80 = sphi 0, %s80
    %s82 = sphi 0, %s80
    %s83 = sphi 0, %s82
    %s97 = sphi 0, %s83
    %s105 = sphi 0, %s107
    %s108 = sphi 0, %s105
    %s109 = sphi 0, %s108
    %s125 = sphi 0, %s109
    %s133 = sphi 0, %s135
    %s136 = sphi 0, %s133
    %s137 = sphi 0, %s136
    %s153 = sphi 0, %s137
  $region4: #{spp_forward.4} parent=0 // loop_header_branch
    %14 = sbr.rel (%p12) target = $region8
  $region5: #{spp_forward.4} parent=0 // loop_body
    %s16 = ssub.s32 %s11, 1
    %s17 = ssub.s32 %s11, 2
    %s24 = sadd.s32 1, %s19
    %p25 = scmp.ge.s32.totalorder %s24, 4
    %s26 = scalar_select %p25, 0, %s24
    %s27 = sadd.s32 1, %s18
    %s28 = scalar_select %p25, %s27, %s18
    %p29 = scmp.ge.s32.totalorder %s28, 2
    %s30 = scalar_select %p29, 0, %s28
    %s31 = ssub.s32 %s18, %s30
    %s32 = ssub.s32 %s19, %s26
    %s33 = sor.u32 %s31, %s32
    %p34 = scmp.eq.s32.totalorder %s33, 0
    %s36 = sadd.s32 %s35, 1
    %s37 = scalar_select %p34, %s35, %s36
    %p40 = pneg %p34
    %p41 = scmp.eq.s32.totalorder %s11, 7
    %p42 = por %p40, %p41
    %p43 = scmp.ne.s32.totalorder %s35, %s38
    %p44 = scmp.eq.s32.totalorder %s11, 0
    %p45 = por %p43, %p44
    %p46 = scmp.ne.s32.totalorder %s35, %s38
    %p47 = scmp.eq.s32.totalorder %s16, 7
    %p48 = por %p46, %p47
    %p49 = scmp.ne.s32.totalorder %s38, %s39
    %p50 = scmp.eq.s32.totalorder %s16, 0
    %p51 = por %p49, %p50
    %p52 = scmp.ne.s32.totalorder %s38, %s39
    %p53 = scmp.eq.s32.totalorder %s17, 7
    %p54 = por %p52, %p53
    %p56 = scmp.ne.s32.totalorder %s39, %s55
    %p57 = scmp.eq.s32.totalorder %s17, 0
    %p58 = por %p56, %p57
    %s60 = sadd.s32 %s59, 1
    %p63 = scmp.eq.s32.totalorder %s11, 7
    %p64 = scmp.ne.s32.totalorder %s59, %s61
    %p65 = scmp.eq.s32.totalorder %s11, 0
    %p66 = por %p64, %p65
    %p67 = scmp.ne.s32.totalorder %s59, %s61
    %p68 = scmp.eq.s32.totalorder %s16, 7
    %p69 = por %p67, %p68
    %p70 = scmp.ne.s32.totalorder %s61, %s62
    %p71 = scmp.eq.s32.totalorder %s16, 0
    %p72 = por %p70, %p71
    %p73 = scmp.ne.s32.totalorder %s61, %s62
    %p74 = scmp.eq.s32.totalorder %s17, 7
    %p75 = por %p73, %p74
    %p77 = scmp.ne.s32.totalorder %s62, %s76
    %p78 = scmp.eq.s32.totalorder %s17, 0
    %p79 = por %p77, %p78
    %s81 = sadd.s32 %s80, 1
    %p84 = scmp.eq.s32.totalorder %s11, 7
    %p85 = scmp.ne.s32.totalorder %s80, %s82
    %p86 = scmp.eq.s32.totalorder %s11, 0
    %p87 = por %p85, %p86
    %p88 = scmp.ne.s32.totalorder %s80, %s82
    %p89 = scmp.eq.s32.totalorder %s16, 7
    %p90 = por %p88, %p89
    %p91 = scmp.ne.s32.totalorder %s82, %s83
    %p92 = scmp.eq.s32.totalorder %s16, 0
    %p93 = por %p91, %p92
    %p94 = scmp.ne.s32.totalorder %s82, %s83
    %p95 = scmp.eq.s32.totalorder %s17, 7
    %p96 = por %p94, %p95
    %p98 = scmp.ne.s32.totalorder %s83, %s97
    %p99 = scmp.eq.s32.totalorder %s17, 0
    %p100 = por %p98, %p99
    %s101 = ssub.s32 %s18, %s30
    %s102 = ssub.s32 %s19, %s26
    %s103 = sor.u32 %s101, %s102
    %p104 = scmp.eq.s32.totalorder %s103, 0
    %s106 = sadd.s32 %s105, 1
    %s107 = scalar_select %p104, %s105, %s106
    %p110 = pneg %p104
    %p111 = scmp.eq.s32.totalorder %s11, 7
    %p112 = por %p110, %p111
    %p113 = scmp.ne.s32.totalorder %s105, %s108
    %p114 = scmp.eq.s32.totalorder %s11, 0
    %p115 = por %p113, %p114
    %p116 = scmp.ne.s32.totalorder %s105, %s108
    %p117 = scmp.eq.s32.totalorder %s16, 7
    %p118 = por %p116, %p117
    %p119 = scmp.ne.s32.totalorder %s108, %s109
    %p120 = scmp.eq.s32.totalorder %s16, 0
    %p121 = por %p119, %p120
    %p122 = scmp.ne.s32.totalorder %s108, %s109
    %p123 = scmp.eq.s32.totalorder %s17, 7
    %p124 = por %p122, %p123
    %p126 = scmp.ne.s32.totalorder %s109, %s125
    %p127 = scmp.eq.s32.totalorder %s17, 0
    %p128 = por %p126, %p127
    %s129 = ssub.s32 %s18, %s30
    %s130 = ssub.s32 %s19, %s26
    %s131 = sor.u32 %s129, %s130
    %p132 = scmp.eq.s32.totalorder %s131, 0
    %s134 = sadd.s32 %s133, 1
    %s135 = scalar_select %p132, %s133, %s134
    %p138 = pneg %p132
    %p139 = scmp.eq.s32.totalorder %s11, 7
    %p140 = por %p138, %p139
    %p141 = scmp.ne.s32.totalorder %s133, %s136
    %p142 = scmp.eq.s32.totalorder %s11, 0
    %p143 = por %p141, %p142
    %p144 = scmp.ne.s32.totalorder %s133, %s136
    %p145 = scmp.eq.s32.totalorder %s16, 7
    %p146 = por %p144, %p145
    %p147 = scmp.ne.s32.totalorder %s136, %s137
    %p148 = scmp.eq.s32.totalorder %s16, 0
    %p149 = por %p147, %p148
    %p150 = scmp.ne.s32.totalorder %s136, %s137
    %p151 = scmp.eq.s32.totalorder %s17, 7
    %p152 = por %p150, %p151
    %p154 = scmp.ne.s32.totalorder %s137, %s153
    %p155 = scmp.eq.s32.totalorder %s17, 0
    %p156 = por %p154, %p155
    %p157 = scmp.le.s32.totalorder 1, %s11
    %p158 = scmp.lt.s32.totalorder %s11, 9
    %p159 = pnand %p157, %p158
    %p160 = pneg %p159
    // Predicated region
    $region9: #{spp_forward.4} parent=5 // pred_check
      _
    $region10: #{spp_forward.4} parent=5 // pred_check_branch
      %162 = sbr.rel (%p159) target = $region12
    $region11: #{spp_forward.4} parent=5 // pred_region
      %s163 = ssub.s32 %s11, 1
      // Predicated region
      $region13: #{spp_forward.4} parent=11 // pred_check
        %p164 = pneg %p72
      $region14: #{spp_forward.4} parent=11 // pred_check_branch
        %166 = sbr.rel (%p164) target = $region16
      $region15: #{spp_forward.4} parent=11 // pred_region
        _
      $region16: #{spp_forward.4} parent=11 // pred_fallthru
        _
      // Predicated region
      $region17: #{spp_forward.4} parent=11 // pred_check
        %p167 = pneg %p93
      $region18: #{spp_forward.4} parent=11 // pred_check_branch
        %169 = sbr.rel (%p167) target = $region20
      $region19: #{spp_forward.4} parent=11 // pred_region
        _
      $region20: #{spp_forward.4} parent=11 // pred_fallthru
        _
    $region12: #{spp_forward.4} parent=5 // pred_fallthru
      _
    %p170 = scmp.lt.s32.totalorder %s11, 8
    // Predicated region
    $region21: #{spp_forward.4} parent=5 // pred_check
      %p171 = pneg %p170
    $region22: #{spp_forward.4} parent=5 // pred_check_branch
      %173 = sbr.rel (%p171) target = $region24
    $region23: #{spp_forward.4} parent=5 // pred_region
      // Predicated region
      $region25: #{spp_forward.4} parent=23 // pred_check
        %p174 = pneg %p45
      $region26: #{spp_forward.4} parent=23 // pred_check_branch
        %176 = sbr.rel (%p174) target = $region28
      $region27: #{spp_forward.4} parent=23 // pred_region
        %p177 = scmp.lt.s32.totalorder %s18, 1
        %s178 = scalar_select %p177, %s18, 1
        %p179 = scmp.lt.s32.totalorder %s19, 3
        %s180 = scalar_select %p179, %s19, 3
        %s181 = smul.addr %s180, 50
        %s182 = smul.addr %s178, 200
        %s183 = sadd.s32 %s181, %s182
        %s184 = smul.addr %s183, 4
        %s185 = scalar_lea.vmem %s0, %s184
      $region28: #{spp_forward.4} parent=23 // pred_fallthru
        _
    $region24: #{spp_forward.4} parent=5 // pred_fallthru
      _
    %p186 = scmp.le.s32.totalorder 1, %s11
    %p187 = scmp.lt.s32.totalorder %s11, 9
    %p188 = pnand %p186, %p187
    %p189 = pneg %p188
    // Predicated region
    $region29: #{spp_forward.4} parent=5 // pred_check
      _
    $region30: #{spp_forward.4} parent=5 // pred_check_branch
      %191 = sbr.rel (%p188) target = $region32
    $region31: #{spp_forward.4} parent=5 // pred_region
      %s192 = ssub.s32 %s11, 1
      %p193 = scmp.lt.s32.totalorder %s20, 1
      %s194 = scalar_select %p193, %s20, 1
      %p195 = scmp.lt.s32.totalorder %s21, 3
      %s196 = scalar_select %p195, %s21, 3
      %s197 = smul.addr %s196, 50
      %s198 = smul.addr %s194, 200
      %s199 = sadd.s32 %s197, %s198
      %s200 = smul.addr %s199, 4
      %s201 = scalar_lea.vmem %s0, %s200
      %p202 = pneg %p51
      %p203 = pneg %p48
      %p204 = pneg %p72
      %p205 = pneg %p69
      %p206 = pneg %p93
      %p207 = pneg %p90
      %p208 = pneg %p121
      %p209 = pneg %p118
      %p210 = scmp.lt.s32.totalorder %s20, 1
      %s211 = scalar_select %p210, %s20, 1
      %p212 = scmp.lt.s32.totalorder %s21, 3
      %s213 = scalar_select %p212, %s21, 3
      %s214 = smul.addr %s213, 32
      %s215 = smul.addr %s211, 128
      %s216 = sadd.s32 %s214, %s215
      %s217 = smul.addr %s216, 8
      %s218 = scalar_lea.vmem %s3, %s217
      %p219 = pneg %p149
      %p220 = pneg %p146
      %p221 = scmp.lt.s32.totalorder %s20, 1
      %s222 = scalar_select %p221, %s20, 1
      %p223 = scmp.lt.s32.totalorder %s21, 3
      %s224 = scalar_select %p223, %s21, 3
      %s225 = smul.addr %s222, 4
      %s226 = sadd.s32 %s224, %s225
      %s227 = smul.addr %s226, 2
      %s228 = scalar_lea.vmem %s4, %s227
      %p229 = scmp.lt.s32.totalorder %s20, 1
      %s230 = scalar_select %p229, %s20, 1
      %p231 = scmp.lt.s32.totalorder %s21, 3
      %s232 = scalar_select %p231, %s21, 3
      %s233 = smul.addr %s232, 50
      %s234 = smul.addr %s230, 200
      %s235 = sadd.s32 %s233, %s234
      %s236 = smul.addr %s235, 4
      %s237 = scalar_lea.vmem %s0, %s236
      %p238 = scmp.lt.s32.totalorder %s20, 1
      %s239 = scalar_select %p238, %s20, 1
      %p240 = scmp.lt.s32.totalorder %s21, 3
      %s241 = scalar_select %p240, %s21, 3
      %s242 = smul.addr %s241, 32
      %s243 = smul.addr %s239, 128
      %s244 = sadd.s32 %s242, %s243
      %s245 = smul.addr %s244, 8
      %s246 = scalar_lea.vmem %s3, %s245
      %p247 = scmp.lt.s32.totalorder %s20, 1
      %s248 = scalar_select %p247, %s20, 1
      %p249 = scmp.lt.s32.totalorder %s21, 3
      %s250 = scalar_select %p249, %s21, 3
      %s251 = smul.addr %s248, 4
      %s252 = sadd.s32 %s250, %s251
      %s253 = smul.addr %s252, 2
      %s254 = scalar_lea.vmem %s4, %s253
      %v255 = vld [vmem:[%s237] sm:$0xf]
      %v256 = vld [vmem:[%s237 + $0x4] sm:$0xf]
      %v257 = vld [vmem:[%s237 + $0x8] sm:$0xf]
      %v258 = vld [vmem:[%s237 + $0xc] sm:$0xf]
      %v259 = vld [vmem:[%s237 + $0x14] sm:$0xf]
      %v260 = vld [vmem:[%s237 + $0x18] sm:$0xf]
      %v261 = vld [vmem:[%s237 + $0x1c] sm:$0xf]
      %v262 = vld [vmem:[%s237 + $0x20] sm:$0xf]
      %v263 = vld [vmem:[%s237 + $0x28] sm:$0xf]
      %v264 = vld [vmem:[%s237 + $0x2c] sm:$0xf]
      %v265 = vld [vmem:[%s237 + $0x30] sm:$0xf]
      %v266 = vld [vmem:[%s237 + $0x34] sm:$0xf]
      %v267 = vld [vmem:[%s237 + $0x3c] sm:$0xf]
      %v268 = vld [vmem:[%s237 + $0x40] sm:$0xf]
      %v269 = vld [vmem:[%s237 + $0x44] sm:$0xf]
      %v270 = vld [vmem:[%s237 + $0x48] sm:$0xf]
      %v271 = vld [vmem:[%s237 + $0x50] sm:$0xf]
      %v272 = vld [vmem:[%s237 + $0x54] sm:$0xf]
      %v273 = vld [vmem:[%s237 + $0x58] sm:$0xf]
      %v274 = vld [vmem:[%s237 + $0x5c] sm:$0xf]
      %v275 = vld [vmem:[%s237 + $0x64] sm:$0xf]
      %v276 = vld [vmem:[%s237 + $0x68] sm:$0xf]
      %v277 = vld [vmem:[%s237 + $0x6c] sm:$0xf]
      %v278 = vld [vmem:[%s237 + $0x70] sm:$0xf]
      %v279 = vld [vmem:[%s237 + $0x78] sm:$0xf]
      %v280 = vld [vmem:[%s237 + $0x7c] sm:$0xf]
      %v281 = vld [vmem:[%s237 + $0x80] sm:$0xf]
      %v282 = vld [vmem:[%s237 + $0x84] sm:$0xf]
      %v283 = vld [vmem:[%s237 + $0x8c] sm:$0xf]
      %v284 = vld [vmem:[%s237 + $0x90] sm:$0xf]
      %v285 = vld [vmem:[%s237 + $0x94] sm:$0xf]
      %v286 = vld [vmem:[%s237 + $0x98] sm:$0xf]
      %v287 = vld [vmem:[%s1] sm:$0xf]
      %v288 = vld [vmem:[%s1 + $0x4] sm:$0xf]
      %v289 = vld [vmem:[%s1 + $0x8] sm:$0xf]
      %v290 = vld [vmem:[%s1 + $0xc] sm:$0xf]
      %v291 = vld [vmem:[%s1 + $0x10] sm:$0xf]
      %v292 = vld [vmem:[%s1 + $0x14] sm:$0xf]
      %v293 = vld [vmem:[%s1 + $0x18] sm:$0xf]
      %v294 = vld [vmem:[%s1 + $0x1c] sm:$0xf]
      %v295 = vld [vmem:[%s1 + $0x20] sm:$0xf]
      %v296 = vld [vmem:[%s1 + $0x24] sm:$0xf]
      %v297 = vld [vmem:[%s1 + $0x28] sm:$0xf]
      %v298 = vld [vmem:[%s1 + $0x2c] sm:$0xf]
      %v299 = vld [vmem:[%s1 + $0x30] sm:$0xf]
      %v300 = vld [vmem:[%s1 + $0x34] sm:$0xf]
      %v301 = vld [vmem:[%s1 + $0x38] sm:$0xf]
      %v302 = vld [vmem:[%s1 + $0x3c] sm:$0xf]
      %v303 = vld [vmem:[%s237 + $0x10] sm:$0x1]
      %v304 = vld [vmem:[%s237 + $0x24] sm:$0x1]
      %v305 = vld [vmem:[%s237 + $0x38] sm:$0x1]
      %v306 = vld [vmem:[%s237 + $0x4c] sm:$0x1]
      %v307 = vld [vmem:[%s237 + $0x60] sm:$0x1]
      %v308 = vld [vmem:[%s237 + $0x74] sm:$0x1]
      %v309 = vld [vmem:[%s237 + $0x88] sm:$0x1]
      %v310 = vld [vmem:[%s237 + $0x9c] sm:$0x1]
      %vm311 = vsmask.f32 3328
      %vm312 = vsmask.f32 7440
      %vm313 = vmor %vm311, %vm312
      %v315 = vshrl.u32 %v255, 16
      %v317 = vrot.slane %v315, 4
      %v318 = vshll.u32 %v255, 16
      %v320 = vrot.slane %v318, 5
      %v321 = vor.u32 %v317, %v320
      %v322 = vrot.slane %v321, 4
      %v324 = vshll.u32 %v256, 16
      %v326 = vrot.slane %v324, 5
      %v327 = vsel %vm313, %v322, %v326
      %v328 = vshrl.u32 %v256, 16
      %v330 = vrot.slane %v328, 4
      %v331 = vor.u32 %v330, %v326
      %v332 = vrot.slane %v331, 4
      %v334 = vshll.u32 %v257, 16
      %v336 = vrot.slane %v334, 5
      %v337 = vsel %vm313, %v332, %v336
      %v338 = vshrl.u32 %v257, 16
      %v340 = vrot.slane %v338, 4
      %v341 = vor.u32 %v340, %v336
      %v342 = vrot.slane %v341, 4
      %v344 = vshll.u32 %v258, 16
      %v346 = vrot.slane %v344, 5
      %v347 = vsel %vm313, %v342, %v346
      %v348 = vshrl.u32 %v258, 16
      %v350 = vrot.slane %v348, 4
      %v351 = vor.u32 %v350, %v346
      %v352 = vrot.slane %v351, 4
      %v354 = vshll.u32 %v303, 16
      %v356 = vrot.slane %v354, 5
      %v357 = vsel %vm313, %v352, %v356
      %v359 = vshrl.u32 %v259, 16
      %v361 = vrot.slane %v359, 4
      %v362 = vshll.u32 %v259, 16
      %v364 = vrot.slane %v362, 5
      %v365 = vor.u32 %v361, %v364
      %v366 = vrot.slane %v365, 4
      %v368 = vshll.u32 %v260, 16
      %v370 = vrot.slane %v368, 5
      %v371 = vsel %vm313, %v366, %v370
      %v372 = vshrl.u32 %v260, 16
      %v374 = vrot.slane %v372, 4
      %v375 = vor.u32 %v374, %v370
      %v376 = vrot.slane %v375, 4
      %v378 = vshll.u32 %v261, 16
      %v380 = vrot.slane %v378, 5
      %v381 = vsel %vm313, %v376, %v380
      %v382 = vshrl.u32 %v261, 16
      %v384 = vrot.slane %v382, 4
      %v385 = vor.u32 %v384, %v380
      %v386 = vrot.slane %v385, 4
      %v388 = vshll.u32 %v262, 16
      %v390 = vrot.slane %v388, 5
      %v391 = vsel %vm313, %v386, %v390
      %v392 = vshrl.u32 %v262, 16
      %v394 = vrot.slane %v392, 4
      %v395 = vor.u32 %v394, %v390
      %v396 = vrot.slane %v395, 4
      %v398 = vshll.u32 %v304, 16
      %v400 = vrot.slane %v398, 5
      %v401 = vsel %vm313, %v396, %v400
      %v403 = vshrl.u32 %v263, 16
      %v405 = vrot.slane %v403, 4
      %v406 = vshll.u32 %v263, 16
      %v408 = vrot.slane %v406, 5
      %v409 = vor.u32 %v405, %v408
      %v410 = vrot.slane %v409, 4
      %v412 = vshll.u32 %v264, 16
      %v414 = vrot.slane %v412, 5
      %v415 = vsel %vm313, %v410, %v414
      %v416 = vshrl.u32 %v264, 16
      %v418 = vrot.slane %v416, 4
      %v419 = vor.u32 %v418, %v414
      %v420 = vrot.slane %v419, 4
      %v422 = vshll.u32 %v265, 16
      %v424 = vrot.slane %v422, 5
      %v425 = vsel %vm313, %v420, %v424
      %v426 = vshrl.u32 %v265, 16
      %v428 = vrot.slane %v426, 4
      %v429 = vor.u32 %v428, %v424
      %v430 = vrot.slane %v429, 4
      %v432 = vshll.u32 %v266, 16
      %v434 = vrot.slane %v432, 5
      %v435 = vsel %vm313, %v430, %v434
      %v436 = vshrl.u32 %v266, 16
      %v438 = vrot.slane %v436, 4
      %v439 = vor.u32 %v438, %v434
      %v440 = vrot.slane %v439, 4
      %v442 = vshll.u32 %v305, 16
      %v444 = vrot.slane %v442, 5
      %v445 = vsel %vm313, %v440, %v444
      %v447 = vshrl.u32 %v267, 16
      %v449 = vrot.slane %v447, 4
      %v450 = vshll.u32 %v267, 16
      %v452 = vrot.slane %v450, 5
      %v453 = vor.u32 %v449, %v452
      %v454 = vrot.slane %v453, 4
      %v456 = vshll.u32 %v268, 16
      %v458 = vrot.slane %v456, 5
      %v459 = vsel %vm313, %v454, %v458
      %v460 = vshrl.u32 %v268, 16
      %v462 = vrot.slane %v460, 4
      %v463 = vor.u32 %v462, %v458
      %v464 = vrot.slane %v463, 4
      %v466 = vshll.u32 %v269, 16
      %v468 = vrot.slane %v466, 5
      %v469 = vsel %vm313, %v464, %v468
      %v470 = vshrl.u32 %v269, 16
      %v472 = vrot.slane %v470, 4
      %v473 = vor.u32 %v472, %v468
      %v474 = vrot.slane %v473, 4
      %v476 = vshll.u32 %v270, 16
      %v478 = vrot.slane %v476, 5
      %v479 = vsel %vm313, %v474, %v478
      %v480 = vshrl.u32 %v270, 16
      %v482 = vrot.slane %v480, 4
      %v483 = vor.u32 %v482, %v478
      %v484 = vrot.slane %v483, 4
      %v486 = vshll.u32 %v306, 16
      %v488 = vrot.slane %v486, 5
      %v489 = vsel %vm313, %v484, %v488
      %v491 = vshrl.u32 %v271, 16
      %v493 = vrot.slane %v491, 4
      %v494 = vshll.u32 %v271, 16
      %v496 = vrot.slane %v494, 5
      %v497 = vor.u32 %v493, %v496
      %v498 = vrot.slane %v497, 4
      %v500 = vshll.u32 %v272, 16
      %v502 = vrot.slane %v500, 5
      %v503 = vsel %vm313, %v498, %v502
      %v504 = vshrl.u32 %v272, 16
      %v506 = vrot.slane %v504, 4
      %v507 = vor.u32 %v506, %v502
      %v508 = vrot.slane %v507, 4
      %v510 = vshll.u32 %v273, 16
      %v512 = vrot.slane %v510, 5
      %v513 = vsel %vm313, %v508, %v512
      %v514 = vshrl.u32 %v273, 16
      %v516 = vrot.slane %v514, 4
      %v517 = vor.u32 %v516, %v512
      %v518 = vrot.slane %v517, 4
      %v520 = vshll.u32 %v274, 16
      %v522 = vrot.slane %v520, 5
      %v523 = vsel %vm313, %v518, %v522
      %v524 = vshrl.u32 %v274, 16
      %v526 = vrot.slane %v524, 4
      %v527 = vor.u32 %v526, %v522
      %v528 = vrot.slane %v527, 4
      %v530 = vshll.u32 %v307, 16
      %v532 = vrot.slane %v530, 5
      %v533 = vsel %vm313, %v528, %v532
      %v535 = vshrl.u32 %v275, 16
      %v537 = vrot.slane %v535, 4
      %v538 = vshll.u32 %v275, 16
      %v540 = vrot.slane %v538, 5
      %v541 = vor.u32 %v537, %v540
      %v542 = vrot.slane %v541, 4
      %v544 = vshll.u32 %v276, 16
      %v546 = vrot.slane %v544, 5
      %v547 = vsel %vm313, %v542, %v546
      %v548 = vshrl.u32 %v276, 16
      %v550 = vrot.slane %v548, 4
      %v551 = vor.u32 %v550, %v546
      %v552 = vrot.slane %v551, 4
      %v554 = vshll.u32 %v277, 16
      %v556 = vrot.slane %v554, 5
      %v557 = vsel %vm313, %v552, %v556
      %v558 = vshrl.u32 %v277, 16
      %v560 = vrot.slane %v558, 4
      %v561 = vor.u32 %v560, %v556
      %v562 = vrot.slane %v561, 4
      %v564 = vshll.u32 %v278, 16
      %v566 = vrot.slane %v564, 5
      %v567 = vsel %vm313, %v562, %v566
      %v568 = vshrl.u32 %v278, 16
      %v570 = vrot.slane %v568, 4
      %v571 = vor.u32 %v570, %v566
      %v572 = vrot.slane %v571, 4
      %v574 = vshll.u32 %v308, 16
      %v576 = vrot.slane %v574, 5
      %v577 = vsel %vm313, %v572, %v576
      %v579 = vshrl.u32 %v279, 16
      %v581 = vrot.slane %v579, 4
      %v582 = vshll.u32 %v279, 16
      %v584 = vrot.slane %v582, 5
      %v585 = vor.u32 %v581, %v584
      %v586 = vrot.slane %v585, 4
      %v588 = vshll.u32 %v280, 16
      %v590 = vrot.slane %v588, 5
      %v591 = vsel %vm313, %v586, %v590
      %v592 = vshrl.u32 %v280, 16
      %v594 = vrot.slane %v592, 4
      %v595 = vor.u32 %v594, %v590
      %v596 = vrot.slane %v595, 4
      %v598 = vshll.u32 %v281, 16
      %v600 = vrot.slane %v598, 5
      %v601 = vsel %vm313, %v596, %v600
      %v602 = vshrl.u32 %v281, 16
      %v604 = vrot.slane %v602, 4
      %v605 = vor.u32 %v604, %v600
      %v606 = vrot.slane %v605, 4
      %v608 = vshll.u32 %v282, 16
      %v610 = vrot.slane %v608, 5
      %v611 = vsel %vm313, %v606, %v610
      %v612 = vshrl.u32 %v282, 16
      %v614 = vrot.slane %v612, 4
      %v615 = vor.u32 %v614, %v610
      %v616 = vrot.slane %v615, 4
      %v618 = vshll.u32 %v309, 16
      %v620 = vrot.slane %v618, 5
      %v621 = vsel %vm313, %v616, %v620
      %v623 = vshrl.u32 %v283, 16
      %v625 = vrot.slane %v623, 4
      %v626 = vshll.u32 %v283, 16
      %v628 = vrot.slane %v626, 5
      %v629 = vor.u32 %v625, %v628
      %v630 = vrot.slane %v629, 4
      %v632 = vshll.u32 %v284, 16
      %v634 = vrot.slane %v632, 5
      %v635 = vsel %vm313, %v630, %v634
      %v636 = vshrl.u32 %v284, 16
      %v638 = vrot.slane %v636, 4
      %v639 = vor.u32 %v638, %v634
      %v640 = vrot.slane %v639, 4
      %v642 = vshll.u32 %v285, 16
      %v644 = vrot.slane %v642, 5
      %v645 = vsel %vm313, %v640, %v644
      %v646 = vshrl.u32 %v285, 16
      %v648 = vrot.slane %v646, 4
      %v649 = vor.u32 %v648, %v644
      %v650 = vrot.slane %v649, 4
      %v652 = vshll.u32 %v286, 16
      %v654 = vrot.slane %v652, 5
      %v655 = vsel %vm313, %v650, %v654
      %v656 = vshrl.u32 %v286, 16
      %v658 = vrot.slane %v656, 4
      %v659 = vor.u32 %v658, %v654
      %v660 = vrot.slane %v659, 4
      %v662 = vshll.u32 %v310, 16
      %v664 = vrot.slane %v662, 5
      %v665 = vsel %vm313, %v660, %v664
      %s666 = scalar_lea.vmem %s1, 64
      %v667 = vld [vmem:[%s666] sm:$0xf]
      %v668 = vld [vmem:[%s666 + $0x4] sm:$0xf]
      %v669 = vld [vmem:[%s666 + $0x8] sm:$0xf]
      %v670 = vld [vmem:[%s666 + $0xc] sm:$0xf]
      %v671 = vld [vmem:[%s666 + $0x10] sm:$0xf]
      %v672 = vld [vmem:[%s666 + $0x14] sm:$0xf]
      %v673 = vld [vmem:[%s666 + $0x18] sm:$0xf]
      %v674 = vld [vmem:[%s666 + $0x1c] sm:$0xf]
      %v675 = vld [vmem:[%s666 + $0x20] sm:$0xf]
      %v676 = vld [vmem:[%s666 + $0x24] sm:$0xf]
      %v677 = vld [vmem:[%s666 + $0x28] sm:$0xf]
      %v678 = vld [vmem:[%s666 + $0x2c] sm:$0xf]
      %v679 = vld [vmem:[%s666 + $0x30] sm:$0xf]
      %v680 = vld [vmem:[%s666 + $0x34] sm:$0xf]
      %v681 = vld [vmem:[%s666 + $0x38] sm:$0xf]
      %v682 = vld [vmem:[%s666 + $0x3c] sm:$0xf]
      %v683 = vunpack.c.l.b16 %v327
      %v684 = vunpack.c.l.b16 %v337
      %v685 = vunpack.c.l.b16 %v347
      %v686 = vunpack.c.l.b16 %v357
      %v687 = vunpack.c.l.b16 %v371
      %v688 = vunpack.c.l.b16 %v381
      %v689 = vunpack.c.l.b16 %v391
      %v690 = vunpack.c.l.b16 %v401
      %v691 = vunpack.c.l.b16 %v415
      %v692 = vunpack.c.l.b16 %v425
      %v693 = vunpack.c.l.b16 %v435
      %v694 = vunpack.c.l.b16 %v445
      %v695 = vunpack.c.l.b16 %v459
      %v696 = vunpack.c.l.b16 %v469
      %v697 = vunpack.c.l.b16 %v479
      %v698 = vunpack.c.l.b16 %v489
      %v699 = vunpack.c.l.b16 %v503
      %v700 = vunpack.c.l.b16 %v513
      %v701 = vunpack.c.l.b16 %v523
      %v702 = vunpack.c.l.b16 %v533
      %v703 = vunpack.c.l.b16 %v547
      %v704 = vunpack.c.l.b16 %v557
      %v705 = vunpack.c.l.b16 %v567
      %v706 = vunpack.c.l.b16 %v577
      %v707 = vunpack.c.l.b16 %v591
      %v708 = vunpack.c.l.b16 %v601
      %v709 = vunpack.c.l.b16 %v611
      %v710 = vunpack.c.l.b16 %v621
      %v711 = vunpack.c.l.b16 %v635
      %v712 = vunpack.c.l.b16 %v645
      %v713 = vunpack.c.l.b16 %v655
      %v714 = vunpack.c.l.b16 %v665
      %v715 = vpack.c.b16 %v684, %v683
      %v716 = vpack.c.b16 %v686, %v685
      %v717 = vpack.c.b16 %v688, %v687
      %v718 = vpack.c.b16 %v690, %v689
      %v719 = vpack.c.b16 %v692, %v691
      %v720 = vpack.c.b16 %v694, %v693
      %v721 = vpack.c.b16 %v696, %v695
      %v722 = vpack.c.b16 %v698, %v697
      %v723 = vpack.c.b16 %v700, %v699
      %v724 = vpack.c.b16 %v702, %v701
      %v725 = vpack.c.b16 %v704, %v703
      %v726 = vpack.c.b16 %v706, %v705
      %v727 = vpack.c.b16 %v708, %v707
      %v728 = vpack.c.b16 %v710, %v709
      %v729 = vpack.c.b16 %v712, %v711
      %v730 = vpack.c.b16 %v714, %v713
      %v763 = vunpack.c.l.b16 %v667
      %v764 = vunpack.c.l.b16 %v668
      %v765 = vunpack.c.l.b16 %v669
      %v766 = vunpack.c.l.b16 %v670
      %v767 = vunpack.c.l.b16 %v671
      %v768 = vunpack.c.l.b16 %v672
      %v769 = vunpack.c.l.b16 %v673
      %v770 = vunpack.c.l.b16 %v674
      %v771 = vunpack.c.l.b16 %v675
      %v772 = vunpack.c.l.b16 %v676
      %v773 = vunpack.c.l.b16 %v677
      %v774 = vunpack.c.l.b16 %v678
      %v775 = vunpack.c.l.b16 %v679
      %v776 = vunpack.c.l.b16 %v680
      %v777 = vunpack.c.l.b16 %v681
      %v778 = vunpack.c.l.b16 %v682
      %v779 = vpack.c.b16 %v764, %v763
      %v780 = vpack.c.b16 %v766, %v765
      %v781 = vpack.c.b16 %v768, %v767
      %v782 = vpack.c.b16 %v770, %v769
      %v783 = vpack.c.b16 %v772, %v771
      %v784 = vpack.c.b16 %v774, %v773
      %v785 = vpack.c.b16 %v776, %v775
      %v786 = vpack.c.b16 %v778, %v777
      %795 = vmatpush.bf16.msra.mxu0 %v786
      %796 = vmatpush.bf16.msra.mxu0 %v785
      %797 = vmatpush.bf16.msra.mxu0 %v784
      %798 = vmatpush.bf16.msra.mxu0 %v783
      %799 = vmatpush.bf16.msra.mxu0 %v782
      %800 = vmatpush.bf16.msra.mxu0 %v781
      %801 = vmatpush.bf16.msra.mxu0 %v780
      %802 = vmatpush.bf16.msra.mxu0 %v779
      %803 = vmatmul.bf16.gmra.mxu0 %v715
      %v804 = vpop.f32.mrf.mxu0
      %v805 = vadd.f32 0.0, %v804
      %v806 = vpop.f32.mrf.mxu0
      %v807 = vadd.f32 0.0, %v806
      %808 = vmatmul.bf16.gmra.mxu0 %v716
      %v809 = vpop.f32.mrf.mxu0
      %v810 = vadd.f32 0.0, %v809
      %v811 = vpop.f32.mrf.mxu0
      %v812 = vadd.f32 0.0, %v811
      %813 = vmatmul.bf16.gmra.mxu0 %v717
      %v814 = vpop.f32.mrf.mxu0
      %v815 = vadd.f32 0.0, %v814
      %v816 = vpop.f32.mrf.mxu0
      %v817 = vadd.f32 0.0, %v816
      %818 = vmatmul.bf16.gmra.mxu0 %v718
      %v819 = vpop.f32.mrf.mxu0
      %v820 = vadd.f32 0.0, %v819
      %v821 = vpop.f32.mrf.mxu0
      %v822 = vadd.f32 0.0, %v821
      %823 = vmatmul.bf16.gmra.mxu0 %v719
      %v824 = vpop.f32.mrf.mxu0
      %v825 = vadd.f32 0.0, %v824
      %v826 = vpop.f32.mrf.mxu0
      %v827 = vadd.f32 0.0, %v826
      %828 = vmatmul.bf16.gmra.mxu0 %v720
      %v829 = vpop.f32.mrf.mxu0
      %v830 = vadd.f32 0.0, %v829
      %v831 = vpop.f32.mrf.mxu0
      %v832 = vadd.f32 0.0, %v831
      %833 = vmatmul.bf16.gmra.mxu0 %v721
      %v834 = vpop.f32.mrf.mxu0
      %v835 = vadd.f32 0.0, %v834
      %v836 = vpop.f32.mrf.mxu0
      %v837 = vadd.f32 0.0, %v836
      %838 = vmatmul.bf16.gmra.mxu0 %v722
      %v839 = vpop.f32.mrf.mxu0
      %v840 = vadd.f32 0.0, %v839
      %v841 = vpop.f32.mrf.mxu0
      %v842 = vadd.f32 0.0, %v841
      %843 = vmatmul.bf16.gmra.mxu0 %v723
      %v844 = vpop.f32.mrf.mxu0
      %v845 = vadd.f32 0.0, %v844
      %v846 = vpop.f32.mrf.mxu0
      %v847 = vadd.f32 0.0, %v846
      %848 = vmatmul.bf16.gmra.mxu0 %v724
      %v849 = vpop.f32.mrf.mxu0
      %v850 = vadd.f32 0.0, %v849
      %v851 = vpop.f32.mrf.mxu0
      %v852 = vadd.f32 0.0, %v851
      %853 = vmatmul.bf16.gmra.mxu0 %v725
      %v854 = vpop.f32.mrf.mxu0
      %v855 = vadd.f32 0.0, %v854
      %v856 = vpop.f32.mrf.mxu0
      %v857 = vadd.f32 0.0, %v856
      %858 = vmatmul.bf16.gmra.mxu0 %v726
      %v859 = vpop.f32.mrf.mxu0
      %v860 = vadd.f32 0.0, %v859
      %v861 = vpop.f32.mrf.mxu0
      %v862 = vadd.f32 0.0, %v861
      %863 = vmatmul.bf16.gmra.mxu0 %v727
      %v864 = vpop.f32.mrf.mxu0
      %v865 = vadd.f32 0.0, %v864
      %v866 = vpop.f32.mrf.mxu0
      %v867 = vadd.f32 0.0, %v866
      %868 = vmatmul.bf16.gmra.mxu0 %v728
      %v869 = vpop.f32.mrf.mxu0
      %v870 = vadd.f32 0.0, %v869
      %v871 = vpop.f32.mrf.mxu0
      %v872 = vadd.f32 0.0, %v871
      %873 = vmatmul.bf16.gmra.mxu0 %v729
      %v874 = vpop.f32.mrf.mxu0
      %v875 = vadd.f32 0.0, %v874
      %v876 = vpop.f32.mrf.mxu0
      %v877 = vadd.f32 0.0, %v876
      %878 = vmatmul.bf16.gmra.mxu0 %v730
      %v879 = vpop.f32.mrf.mxu0
      %v880 = vadd.f32 0.0, %v879
      %v881 = vpop.f32.mrf.mxu0
      %v882 = vadd.f32 0.0, %v881
      %883 = vdwg.mxu0
      %v916 = vunpack.c.l.b16 %v255
      %v917 = vunpack.c.l.b16 %v256
      %v918 = vunpack.c.l.b16 %v257
      %v919 = vunpack.c.l.b16 %v258
      %v920 = vunpack.c.l.b16 %v259
      %v921 = vunpack.c.l.b16 %v260
      %v922 = vunpack.c.l.b16 %v261
      %v923 = vunpack.c.l.b16 %v262
      %v924 = vunpack.c.l.b16 %v263
      %v925 = vunpack.c.l.b16 %v264
      %v926 = vunpack.c.l.b16 %v265
      %v927 = vunpack.c.l.b16 %v266
      %v928 = vunpack.c.l.b16 %v267
      %v929 = vunpack.c.l.b16 %v268
      %v930 = vunpack.c.l.b16 %v269
      %v931 = vunpack.c.l.b16 %v270
      %v932 = vunpack.c.l.b16 %v271
      %v933 = vunpack.c.l.b16 %v272
      %v934 = vunpack.c.l.b16 %v273
      %v935 = vunpack.c.l.b16 %v274
      %v936 = vunpack.c.l.b16 %v275
      %v937 = vunpack.c.l.b16 %v276
      %v938 = vunpack.c.l.b16 %v277
      %v939 = vunpack.c.l.b16 %v278
      %v940 = vunpack.c.l.b16 %v279
      %v941 = vunpack.c.l.b16 %v280
      %v942 = vunpack.c.l.b16 %v281
      %v943 = vunpack.c.l.b16 %v282
      %v944 = vunpack.c.l.b16 %v283
      %v945 = vunpack.c.l.b16 %v284
      %v946 = vunpack.c.l.b16 %v285
      %v947 = vunpack.c.l.b16 %v286
      %v948 = vpack.c.b16 %v917, %v916
      %v949 = vpack.c.b16 %v919, %v918
      %v950 = vpack.c.b16 %v921, %v920
      %v951 = vpack.c.b16 %v923, %v922
      %v952 = vpack.c.b16 %v925, %v924
      %v953 = vpack.c.b16 %v927, %v926
      %v954 = vpack.c.b16 %v929, %v928
      %v955 = vpack.c.b16 %v931, %v930
      %v956 = vpack.c.b16 %v933, %v932
      %v957 = vpack.c.b16 %v935, %v934
      %v958 = vpack.c.b16 %v937, %v936
      %v959 = vpack.c.b16 %v939, %v938
      %v960 = vpack.c.b16 %v941, %v940
      %v961 = vpack.c.b16 %v943, %v942
      %v962 = vpack.c.b16 %v945, %v944
      %v963 = vpack.c.b16 %v947, %v946
      %v996 = vunpack.c.l.b16 %v287
      %v997 = vunpack.c.l.b16 %v288
      %v998 = vunpack.c.l.b16 %v289
      %v999 = vunpack.c.l.b16 %v290
      %v1000 = vunpack.c.l.b16 %v291
      %v1001 = vunpack.c.l.b16 %v292
      %v1002 = vunpack.c.l.b16 %v293
      %v1003 = vunpack.c.l.b16 %v294
      %v1004 = vunpack.c.l.b16 %v295
      %v1005 = vunpack.c.l.b16 %v296
      %v1006 = vunpack.c.l.b16 %v297
      %v1007 = vunpack.c.l.b16 %v298
      %v1008 = vunpack.c.l.b16 %v299
      %v1009 = vunpack.c.l.b16 %v300
      %v1010 = vunpack.c.l.b16 %v301
      %v1011 = vunpack.c.l.b16 %v302
      %v1012 = vpack.c.b16 %v997, %v996
      %v1013 = vpack.c.b16 %v999, %v998
      %v1014 = vpack.c.b16 %v1001, %v1000
      %v1015 = vpack.c.b16 %v1003, %v1002
      %v1016 = vpack.c.b16 %v1005, %v1004
      %v1017 = vpack.c.b16 %v1007, %v1006
      %v1018 = vpack.c.b16 %v1009, %v1008
      %v1019 = vpack.c.b16 %v1011, %v1010
      %1028 = vmatpush.bf16.msra.mxu0 %v1019
      %1029 = vmatpush.bf16.msra.mxu0 %v1018
      %1030 = vmatpush.bf16.msra.mxu0 %v1017
      %1031 = vmatpush.bf16.msra.mxu0 %v1016
      %1032 = vmatpush.bf16.msra.mxu0 %v1015
      %1033 = vmatpush.bf16.msra.mxu0 %v1014
      %1034 = vmatpush.bf16.msra.mxu0 %v1013
      %1035 = vmatpush.bf16.msra.mxu0 %v1012
      %1036 = vmatmul.bf16.gmra.mxu0 %v948
      %v1037 = vpop.f32.mrf.mxu0
      %v1038 = vadd.f32 %v805, %v1037
      %v1039 = vpop.f32.mrf.mxu0
      %v1040 = vadd.f32 %v807, %v1039
      %1041 = vmatmul.bf16.gmra.mxu0 %v949
      %v1042 = vpop.f32.mrf.mxu0
      %v1043 = vadd.f32 %v810, %v1042
      %v1044 = vpop.f32.mrf.mxu0
      %v1045 = vadd.f32 %v812, %v1044
      %1046 = vmatmul.bf16.gmra.mxu0 %v950
      %v1047 = vpop.f32.mrf.mxu0
      %v1048 = vadd.f32 %v815, %v1047
      %v1049 = vpop.f32.mrf.mxu0
      %v1050 = vadd.f32 %v817, %v1049
      %1051 = vmatmul.bf16.gmra.mxu0 %v951
      %v1052 = vpop.f32.mrf.mxu0
      %v1053 = vadd.f32 %v820, %v1052
      %v1054 = vpop.f32.mrf.mxu0
      %v1055 = vadd.f32 %v822, %v1054
      %1056 = vmatmul.bf16.gmra.mxu0 %v952
      %v1057 = vpop.f32.mrf.mxu0
      %v1058 = vadd.f32 %v825, %v1057
      %v1059 = vpop.f32.mrf.mxu0
      %v1060 = vadd.f32 %v827, %v1059
      %1061 = vmatmul.bf16.gmra.mxu0 %v953
      %v1062 = vpop.f32.mrf.mxu0
      %v1063 = vadd.f32 %v830, %v1062
      %v1064 = vpop.f32.mrf.mxu0
      %v1065 = vadd.f32 %v832, %v1064
      %1066 = vmatmul.bf16.gmra.mxu0 %v954
      %v1067 = vpop.f32.mrf.mxu0
      %v1068 = vadd.f32 %v835, %v1067
      %v1069 = vpop.f32.mrf.mxu0
      %v1070 = vadd.f32 %v837, %v1069
      %1071 = vmatmul.bf16.gmra.mxu0 %v955
      %v1072 = vpop.f32.mrf.mxu0
      %v1073 = vadd.f32 %v840, %v1072
      %v1074 = vpop.f32.mrf.mxu0
      %v1075 = vadd.f32 %v842, %v1074
      %1076 = vmatmul.bf16.gmra.mxu0 %v956
      %v1077 = vpop.f32.mrf.mxu0
      %v1078 = vadd.f32 %v845, %v1077
      %v1079 = vpop.f32.mrf.mxu0
      %v1080 = vadd.f32 %v847, %v1079
      %1081 = vmatmul.bf16.gmra.mxu0 %v957
      %v1082 = vpop.f32.mrf.mxu0
      %v1083 = vadd.f32 %v850, %v1082
      %v1084 = vpop.f32.mrf.mxu0
      %v1085 = vadd.f32 %v852, %v1084
      %1086 = vmatmul.bf16.gmra.mxu0 %v958
      %v1087 = vpop.f32.mrf.mxu0
      %v1088 = vadd.f32 %v855, %v1087
      %v1089 = vpop.f32.mrf.mxu0
      %v1090 = vadd.f32 %v857, %v1089
      %1091 = vmatmul.bf16.gmra.mxu0 %v959
      %v1092 = vpop.f32.mrf.mxu0
      %v1093 = vadd.f32 %v860, %v1092
      %v1094 = vpop.f32.mrf.mxu0
      %v1095 = vadd.f32 %v862, %v1094
      %1096 = vmatmul.bf16.gmra.mxu0 %v960
      %v1097 = vpop.f32.mrf.mxu0
      %v1098 = vadd.f32 %v865, %v1097
      %v1099 = vpop.f32.mrf.mxu0
      %v1100 = vadd.f32 %v867, %v1099
      %1101 = vmatmul.bf16.gmra.mxu0 %v961
      %v1102 = vpop.f32.mrf.mxu0
      %v1103 = vadd.f32 %v870, %v1102
      %v1104 = vpop.f32.mrf.mxu0
      %v1105 = vadd.f32 %v872, %v1104
      %1106 = vmatmul.bf16.gmra.mxu0 %v962
      %v1107 = vpop.f32.mrf.mxu0
      %v1108 = vadd.f32 %v875, %v1107
      %v1109 = vpop.f32.mrf.mxu0
      %v1110 = vadd.f32 %v877, %v1109
      %1111 = vmatmul.bf16.gmra.mxu0 %v963
      %v1112 = vpop.f32.mrf.mxu0
      %v1113 = vadd.f32 %v880, %v1112
      %v1114 = vpop.f32.mrf.mxu0
      %v1115 = vadd.f32 %v882, %v1114
      %1116 = vdwg.mxu0
      %v1117 = vld [vmem:[%s237] sm:$0xe]
      %v1118 = vld [vmem:[%s237 + $0x14] sm:$0xe]
      %v1119 = vld [vmem:[%s237 + $0x28] sm:$0xe]
      %v1120 = vld [vmem:[%s237 + $0x3c] sm:$0xe]
      %v1121 = vld [vmem:[%s237 + $0x50] sm:$0xe]
      %v1122 = vld [vmem:[%s237 + $0x64] sm:$0xe]
      %v1123 = vld [vmem:[%s237 + $0x78] sm:$0xe]
      %v1124 = vld [vmem:[%s237 + $0x8c] sm:$0xe]
      %vm1141 = vcmask 1042432
      %vm1142 = vcmask 1046532
      %vm1143 = vmor %vm1141, %vm1142
      %v1144 = vrot.slane %v1117, 5
      %v1145 = vrot.slane %v1144, 4
      %v1146 = vrot.slane %v256, 5
      %v1147 = vsel %vm1143, %v1145, %v1146
      %v1148 = vrot.slane %v1146, 4
      %v1149 = vrot.slane %v257, 5
      %v1150 = vsel %vm1143, %v1148, %v1149
      %v1151 = vrot.slane %v1149, 4
      %v1152 = vrot.slane %v258, 5
      %v1153 = vsel %vm1143, %v1151, %v1152
      %v1154 = vrot.slane %v1152, 4
      %v1155 = vrot.slane %v303, 5
      %v1156 = vsel %vm1143, %v1154, %v1155
      %v1157 = vrot.slane %v1118, 5
      %v1158 = vrot.slane %v1157, 4
      %v1159 = vrot.slane %v260, 5
      %v1160 = vsel %vm1143, %v1158, %v1159
      %v1161 = vrot.slane %v1159, 4
      %v1162 = vrot.slane %v261, 5
      %v1163 = vsel %vm1143, %v1161, %v1162
      %v1164 = vrot.slane %v1162, 4
      %v1165 = vrot.slane %v262, 5
      %v1166 = vsel %vm1143, %v1164, %v1165
      %v1167 = vrot.slane %v1165, 4
      %v1168 = vrot.slane %v304, 5
      %v1169 = vsel %vm1143, %v1167, %v1168
      %v1170 = vrot.slane %v1119, 5
      %v1171 = vrot.slane %v1170, 4
      %v1172 = vrot.slane %v264, 5
      %v1173 = vsel %vm1143, %v1171, %v1172
      %v1174 = vrot.slane %v1172, 4
      %v1175 = vrot.slane %v265, 5
      %v1176 = vsel %vm1143, %v1174, %v1175
      %v1177 = vrot.slane %v1175, 4
      %v1178 = vrot.slane %v266, 5
      %v1179 = vsel %vm1143, %v1177, %v1178
      %v1180 = vrot.slane %v1178, 4
      %v1181 = vrot.slane %v305, 5
      %v1182 = vsel %vm1143, %v1180, %v1181
      %v1183 = vrot.slane %v1120, 5
      %v1184 = vrot.slane %v1183, 4
      %v1185 = vrot.slane %v268, 5
      %v1186 = vsel %vm1143, %v1184, %v1185
      %v1187 = vrot.slane %v1185, 4
      %v1188 = vrot.slane %v269, 5
      %v1189 = vsel %vm1143, %v1187, %v1188
      %v1190 = vrot.slane %v1188, 4
      %v1191 = vrot.slane %v270, 5
      %v1192 = vsel %vm1143, %v1190, %v1191
      %v1193 = vrot.slane %v1191, 4
      %v1194 = vrot.slane %v306, 5
      %v1195 = vsel %vm1143, %v1193, %v1194
      %v1196 = vrot.slane %v1121, 5
      %v1197 = vrot.slane %v1196, 4
      %v1198 = vrot.slane %v272, 5
      %v1199 = vsel %vm1143, %v1197, %v1198
      %v1200 = vrot.slane %v1198, 4
      %v1201 = vrot.slane %v273, 5
      %v1202 = vsel %vm1143, %v1200, %v1201
      %v1203 = vrot.slane %v1201, 4
      %v1204 = vrot.slane %v274, 5
      %v1205 = vsel %vm1143, %v1203, %v1204
      %v1206 = vrot.slane %v1204, 4
      %v1207 = vrot.slane %v307, 5
      %v1208 = vsel %vm1143, %v1206, %v1207
      %v1209 = vrot.slane %v1122, 5
      %v1210 = vrot.slane %v1209, 4
      %v1211 = vrot.slane %v276, 5
      %v1212 = vsel %vm1143, %v1210, %v1211
      %v1213 = vrot.slane %v1211, 4
      %v1214 = vrot.slane %v277, 5
      %v1215 = vsel %vm1143, %v1213, %v1214
      %v1216 = vrot.slane %v1214, 4
      %v1217 = vrot.slane %v278, 5
      %v1218 = vsel %vm1143, %v1216, %v1217
      %v1219 = vrot.slane %v1217, 4
      %v1220 = vrot.slane %v308, 5
      %v1221 = vsel %vm1143, %v1219, %v1220
      %v1222 = vrot.slane %v1123, 5
      %v1223 = vrot.slane %v1222, 4
      %v1224 = vrot.slane %v280, 5
      %v1225 = vsel %vm1143, %v1223, %v1224
      %v1226 = vrot.slane %v1224, 4
      %v1227 = vrot.slane %v281, 5
      %v1228 = vsel %vm1143, %v1226, %v1227
      %v1229 = vrot.slane %v1227, 4
      %v1230 = vrot.slane %v282, 5
      %v1231 = vsel %vm1143, %v1229, %v1230
      %v1232 = vrot.slane %v1230, 4
      %v1233 = vrot.slane %v309, 5
      %v1234 = vsel %vm1143, %v1232, %v1233
      %v1235 = vrot.slane %v1124, 5
      %v1236 = vrot.slane %v1235, 4
      %v1237 = vrot.slane %v284, 5
      %v1238 = vsel %vm1143, %v1236, %v1237
      %v1239 = vrot.slane %v1237, 4
      %v1240 = vrot.slane %v285, 5
      %v1241 = vsel %vm1143, %v1239, %v1240
      %v1242 = vrot.slane %v1240, 4
      %v1243 = vrot.slane %v286, 5
      %v1244 = vsel %vm1143, %v1242, %v1243
      %v1245 = vrot.slane %v1243, 4
      %v1246 = vrot.slane %v310, 5
      %v1247 = vsel %vm1143, %v1245, %v1246
      %s1248 = scalar_lea.vmem %s1, 128
      %v1249 = vld [vmem:[%s1248] sm:$0xf]
      %v1250 = vld [vmem:[%s1248 + $0x4] sm:$0xf]
      %v1251 = vld [vmem:[%s1248 + $0x8] sm:$0xf]
      %v1252 = vld [vmem:[%s1248 + $0xc] sm:$0xf]
      %v1253 = vld [vmem:[%s1248 + $0x10] sm:$0xf]
      %v1254 = vld [vmem:[%s1248 + $0x14] sm:$0xf]
      %v1255 = vld [vmem:[%s1248 + $0x18] sm:$0xf]
      %v1256 = vld [vmem:[%s1248 + $0x1c] sm:$0xf]
      %v1257 = vld [vmem:[%s1248 + $0x20] sm:$0xf]
      %v1258 = vld [vmem:[%s1248 + $0x24] sm:$0xf]
      %v1259 = vld [vmem:[%s1248 + $0x28] sm:$0xf]
      %v1260 = vld [vmem:[%s1248 + $0x2c] sm:$0xf]
      %v1261 = vld [vmem:[%s1248 + $0x30] sm:$0xf]
      %v1262 = vld [vmem:[%s1248 + $0x34] sm:$0xf]
      %v1263 = vld [vmem:[%s1248 + $0x38] sm:$0xf]
      %v1264 = vld [vmem:[%s1248 + $0x3c] sm:$0xf]
      %v1265 = vunpack.c.l.b16 %v1147
      %v1266 = vunpack.c.l.b16 %v1150
      %v1267 = vunpack.c.l.b16 %v1153
      %v1268 = vunpack.c.l.b16 %v1156
      %v1269 = vunpack.c.l.b16 %v1160
      %v1270 = vunpack.c.l.b16 %v1163
      %v1271 = vunpack.c.l.b16 %v1166
      %v1272 = vunpack.c.l.b16 %v1169
      %v1273 = vunpack.c.l.b16 %v1173
      %v1274 = vunpack.c.l.b16 %v1176
      %v1275 = vunpack.c.l.b16 %v1179
      %v1276 = vunpack.c.l.b16 %v1182
      %v1277 = vunpack.c.l.b16 %v1186
      %v1278 = vunpack.c.l.b16 %v1189
      %v1279 = vunpack.c.l.b16 %v1192
      %v1280 = vunpack.c.l.b16 %v1195
      %v1281 = vunpack.c.l.b16 %v1199
      %v1282 = vunpack.c.l.b16 %v1202
      %v1283 = vunpack.c.l.b16 %v1205
      %v1284 = vunpack.c.l.b16 %v1208
      %v1285 = vunpack.c.l.b16 %v1212
      %v1286 = vunpack.c.l.b16 %v1215
      %v1287 = vunpack.c.l.b16 %v1218
      %v1288 = vunpack.c.l.b16 %v1221
      %v1289 = vunpack.c.l.b16 %v1225
      %v1290 = vunpack.c.l.b16 %v1228
      %v1291 = vunpack.c.l.b16 %v1231
      %v1292 = vunpack.c.l.b16 %v1234
      %v1293 = vunpack.c.l.b16 %v1238
      %v1294 = vunpack.c.l.b16 %v1241
      %v1295 = vunpack.c.l.b16 %v1244
      %v1296 = vunpack.c.l.b16 %v1247
      %v1297 = vpack.c.b16 %v1266, %v1265
      %v1298 = vpack.c.b16 %v1268, %v1267
      %v1299 = vpack.c.b16 %v1270, %v1269
      %v1300 = vpack.c.b16 %v1272, %v1271
      %v1301 = vpack.c.b16 %v1274, %v1273
      %v1302 = vpack.c.b16 %v1276, %v1275
      %v1303 = vpack.c.b16 %v1278, %v1277
      %v1304 = vpack.c.b16 %v1280, %v1279
      %v1305 = vpack.c.b16 %v1282, %v1281
      %v1306 = vpack.c.b16 %v1284, %v1283
      %v1307 = vpack.c.b16 %v1286, %v1285
      %v1308 = vpack.c.b16 %v1288, %v1287
      %v1309 = vpack.c.b16 %v1290, %v1289
      %v1310 = vpack.c.b16 %v1292, %v1291
      %v1311 = vpack.c.b16 %v1294, %v1293
      %v1312 = vpack.c.b16 %v1296, %v1295
      %v1345 = vunpack.c.l.b16 %v1249
      %v1346 = vunpack.c.l.b16 %v1250
      %v1347 = vunpack.c.l.b16 %v1251
      %v1348 = vunpack.c.l.b16 %v1252
      %v1349 = vunpack.c.l.b16 %v1253
      %v1350 = vunpack.c.l.b16 %v1254
      %v1351 = vunpack.c.l.b16 %v1255
      %v1352 = vunpack.c.l.b16 %v1256
      %v1353 = vunpack.c.l.b16 %v1257
      %v1354 = vunpack.c.l.b16 %v1258
      %v1355 = vunpack.c.l.b16 %v1259
      %v1356 = vunpack.c.l.b16 %v1260
      %v1357 = vunpack.c.l.b16 %v1261
      %v1358 = vunpack.c.l.b16 %v1262
      %v1359 = vunpack.c.l.b16 %v1263
      %v1360 = vunpack.c.l.b16 %v1264
      %v1361 = vpack.c.b16 %v1346, %v1345
      %v1362 = vpack.c.b16 %v1348, %v1347
      %v1363 = vpack.c.b16 %v1350, %v1349
      %v1364 = vpack.c.b16 %v1352, %v1351
      %v1365 = vpack.c.b16 %v1354, %v1353
      %v1366 = vpack.c.b16 %v1356, %v1355
      %v1367 = vpack.c.b16 %v1358, %v1357
      %v1368 = vpack.c.b16 %v1360, %v1359
      %1377 = vmatpush.bf16.msra.mxu0 %v1368
      %1378 = vmatpush.bf16.msra.mxu0 %v1367
      %1379 = vmatpush.bf16.msra.mxu0 %v1366
      %1380 = vmatpush.bf16.msra.mxu0 %v1365
      %1381 = vmatpush.bf16.msra.mxu0 %v1364
      %1382 = vmatpush.bf16.msra.mxu0 %v1363
      %1383 = vmatpush.bf16.msra.mxu0 %v1362
      %1384 = vmatpush.bf16.msra.mxu0 %v1361
      %1385 = vmatmul.bf16.gmra.mxu0 %v1297
      %v1386 = vpop.f32.mrf.mxu0
      %v1387 = vadd.f32 0.0, %v1386
      %v1388 = vpop.f32.mrf.mxu0
      %v1389 = vadd.f32 0.0, %v1388
      %1390 = vmatmul.bf16.gmra.mxu0 %v1298
      %v1391 = vpop.f32.mrf.mxu0
      %v1392 = vadd.f32 0.0, %v1391
      %v1393 = vpop.f32.mrf.mxu0
      %v1394 = vadd.f32 0.0, %v1393
      %1395 = vmatmul.bf16.gmra.mxu0 %v1299
      %v1396 = vpop.f32.mrf.mxu0
      %v1397 = vadd.f32 0.0, %v1396
      %v1398 = vpop.f32.mrf.mxu0
      %v1399 = vadd.f32 0.0, %v1398
      %1400 = vmatmul.bf16.gmra.mxu0 %v1300
      %v1401 = vpop.f32.mrf.mxu0
      %v1402 = vadd.f32 0.0, %v1401
      %v1403 = vpop.f32.mrf.mxu0
      %v1404 = vadd.f32 0.0, %v1403
      %1405 = vmatmul.bf16.gmra.mxu0 %v1301
      %v1406 = vpop.f32.mrf.mxu0
      %v1407 = vadd.f32 0.0, %v1406
      %v1408 = vpop.f32.mrf.mxu0
      %v1409 = vadd.f32 0.0, %v1408
      %1410 = vmatmul.bf16.gmra.mxu0 %v1302
      %v1411 = vpop.f32.mrf.mxu0
      %v1412 = vadd.f32 0.0, %v1411
      %v1413 = vpop.f32.mrf.mxu0
      %v1414 = vadd.f32 0.0, %v1413
      %1415 = vmatmul.bf16.gmra.mxu0 %v1303
      %v1416 = vpop.f32.mrf.mxu0
      %v1417 = vadd.f32 0.0, %v1416
      %v1418 = vpop.f32.mrf.mxu0
      %v1419 = vadd.f32 0.0, %v1418
      %1420 = vmatmul.bf16.gmra.mxu0 %v1304
      %v1421 = vpop.f32.mrf.mxu0
      %v1422 = vadd.f32 0.0, %v1421
      %v1423 = vpop.f32.mrf.mxu0
      %v1424 = vadd.f32 0.0, %v1423
      %1425 = vmatmul.bf16.gmra.mxu0 %v1305
      %v1426 = vpop.f32.mrf.mxu0
      %v1427 = vadd.f32 0.0, %v1426
      %v1428 = vpop.f32.mrf.mxu0
      %v1429 = vadd.f32 0.0, %v1428
      %1430 = vmatmul.bf16.gmra.mxu0 %v1306
      %v1431 = vpop.f32.mrf.mxu0
      %v1432 = vadd.f32 0.0, %v1431
      %v1433 = vpop.f32.mrf.mxu0
      %v1434 = vadd.f32 0.0, %v1433
      %1435 = vmatmul.bf16.gmra.mxu0 %v1307
      %v1436 = vpop.f32.mrf.mxu0
      %v1437 = vadd.f32 0.0, %v1436
      %v1438 = vpop.f32.mrf.mxu0
      %v1439 = vadd.f32 0.0, %v1438
      %1440 = vmatmul.bf16.gmra.mxu0 %v1308
      %v1441 = vpop.f32.mrf.mxu0
      %v1442 = vadd.f32 0.0, %v1441
      %v1443 = vpop.f32.mrf.mxu0
      %v1444 = vadd.f32 0.0, %v1443
      %1445 = vmatmul.bf16.gmra.mxu0 %v1309
      %v1446 = vpop.f32.mrf.mxu0
      %v1447 = vadd.f32 0.0, %v1446
      %v1448 = vpop.f32.mrf.mxu0
      %v1449 = vadd.f32 0.0, %v1448
      %1450 = vmatmul.bf16.gmra.mxu0 %v1310
      %v1451 = vpop.f32.mrf.mxu0
      %v1452 = vadd.f32 0.0, %v1451
      %v1453 = vpop.f32.mrf.mxu0
      %v1454 = vadd.f32 0.0, %v1453
      %1455 = vmatmul.bf16.gmra.mxu0 %v1311
      %v1456 = vpop.f32.mrf.mxu0
      %v1457 = vadd.f32 0.0, %v1456
      %v1458 = vpop.f32.mrf.mxu0
      %v1459 = vadd.f32 0.0, %v1458
      %1460 = vmatmul.bf16.gmra.mxu0 %v1312
      %v1461 = vpop.f32.mrf.mxu0
      %v1462 = vadd.f32 0.0, %v1461
      %v1463 = vpop.f32.mrf.mxu0
      %v1464 = vadd.f32 0.0, %v1463
      %1465 = vdwg.mxu0
      %v1466 = vadd.f32 %v1038, %v1387
      %v1467 = vadd.f32 %v1040, %v1389
      %v1468 = vadd.f32 %v1043, %v1392
      %v1469 = vadd.f32 %v1045, %v1394
      %v1470 = vadd.f32 %v1048, %v1397
      %v1471 = vadd.f32 %v1050, %v1399
      %v1472 = vadd.f32 %v1053, %v1402
      %v1473 = vadd.f32 %v1055, %v1404
      %v1474 = vadd.f32 %v1058, %v1407
      %v1475 = vadd.f32 %v1060, %v1409
      %v1476 = vadd.f32 %v1063, %v1412
      %v1477 = vadd.f32 %v1065, %v1414
      %v1478 = vadd.f32 %v1068, %v1417
      %v1479 = vadd.f32 %v1070, %v1419
      %v1480 = vadd.f32 %v1073, %v1422
      %v1481 = vadd.f32 %v1075, %v1424
      %v1482 = vadd.f32 %v1078, %v1427
      %v1483 = vadd.f32 %v1080, %v1429
      %v1484 = vadd.f32 %v1083, %v1432
      %v1485 = vadd.f32 %v1085, %v1434
      %v1486 = vadd.f32 %v1088, %v1437
      %v1487 = vadd.f32 %v1090, %v1439
      %v1488 = vadd.f32 %v1093, %v1442
      %v1489 = vadd.f32 %v1095, %v1444
      %v1490 = vadd.f32 %v1098, %v1447
      %v1491 = vadd.f32 %v1100, %v1449
      %v1492 = vadd.f32 %v1103, %v1452
      %v1493 = vadd.f32 %v1105, %v1454
      %v1494 = vadd.f32 %v1108, %v1457
      %v1495 = vadd.f32 %v1110, %v1459
      %v1496 = vadd.f32 %v1113, %v1462
      %v1497 = vadd.f32 %v1115, %v1464
      %s1498 = scalar_lea.vmem %s237, 20
      %v1499 = vld [vmem:[%s1498] sm:$0xf]
      %v1500 = vld [vmem:[%s1498 + $0x4] sm:$0xf]
      %v1501 = vld [vmem:[%s1498 + $0x8] sm:$0xf]
      %v1502 = vld [vmem:[%s1498 + $0xc] sm:$0xf]
      %v1503 = vld [vmem:[%s1498 + $0x14] sm:$0xf]
      %v1504 = vld [vmem:[%s1498 + $0x18] sm:$0xf]
      %v1505 = vld [vmem:[%s1498 + $0x1c] sm:$0xf]
      %v1506 = vld [vmem:[%s1498 + $0x20] sm:$0xf]
      %v1507 = vld [vmem:[%s1498 + $0x28] sm:$0xf]
      %v1508 = vld [vmem:[%s1498 + $0x2c] sm:$0xf]
      %v1509 = vld [vmem:[%s1498 + $0x30] sm:$0xf]
      %v1510 = vld [vmem:[%s1498 + $0x34] sm:$0xf]
      %v1511 = vld [vmem:[%s1498 + $0x3c] sm:$0xf]
      %v1512 = vld [vmem:[%s1498 + $0x40] sm:$0xf]
      %v1513 = vld [vmem:[%s1498 + $0x44] sm:$0xf]
      %v1514 = vld [vmem:[%s1498 + $0x48] sm:$0xf]
      %v1515 = vld [vmem:[%s1498 + $0x50] sm:$0xf]
      %v1516 = vld [vmem:[%s1498 + $0x54] sm:$0xf]
      %v1517 = vld [vmem:[%s1498 + $0x58] sm:$0xf]
      %v1518 = vld [vmem:[%s1498 + $0x5c] sm:$0xf]
      %v1519 = vld [vmem:[%s1498 + $0x64] sm:$0xf]
      %v1520 = vld [vmem:[%s1498 + $0x68] sm:$0xf]
      %v1521 = vld [vmem:[%s1498 + $0x6c] sm:$0xf]
      %v1522 = vld [vmem:[%s1498 + $0x70] sm:$0xf]
      %v1523 = vld [vmem:[%s1498 + $0x78] sm:$0xf]
      %v1524 = vld [vmem:[%s1498 + $0x7c] sm:$0xf]
      %v1525 = vld [vmem:[%s1498 + $0x80] sm:$0xf]
      %v1526 = vld [vmem:[%s1498 + $0x84] sm:$0xf]
      %v1527 = vld [vmem:[%s1498 + $0x8c] sm:$0xf]
      %v1528 = vld [vmem:[%s1498 + $0x90] sm:$0xf]
      %v1529 = vld [vmem:[%s1498 + $0x94] sm:$0xf]
      %v1530 = vld [vmem:[%s1498 + $0x98] sm:$0xf]
      %s1531 = scalar_lea.vmem %s1, 192
      %v1532 = vld [vmem:[%s1531] sm:$0xf]
      %v1533 = vld [vmem:[%s1531 + $0x4] sm:$0xf]
      %v1534 = vld [vmem:[%s1531 + $0x8] sm:$0xf]
      %v1535 = vld [vmem:[%s1531 + $0xc] sm:$0xf]
      %v1536 = vld [vmem:[%s1531 + $0x10] sm:$0xf]
      %v1537 = vld [vmem:[%s1531 + $0x14] sm:$0xf]
      %v1538 = vld [vmem:[%s1531 + $0x18] sm:$0xf]
      %v1539 = vld [vmem:[%s1531 + $0x1c] sm:$0xf]
      %v1540 = vld [vmem:[%s1531 + $0x20] sm:$0xf]
      %v1541 = vld [vmem:[%s1531 + $0x24] sm:$0xf]
      %v1542 = vld [vmem:[%s1531 + $0x28] sm:$0xf]
      %v1543 = vld [vmem:[%s1531 + $0x2c] sm:$0xf]
      %v1544 = vld [vmem:[%s1531 + $0x30] sm:$0xf]
      %v1545 = vld [vmem:[%s1531 + $0x34] sm:$0xf]
      %v1546 = vld [vmem:[%s1531 + $0x38] sm:$0xf]
      %v1547 = vld [vmem:[%s1531 + $0x3c] sm:$0xf]
      %v1580 = vunpack.c.l.b16 %v1499
      %v1581 = vunpack.c.l.b16 %v1500
      %v1582 = vunpack.c.l.b16 %v1501
      %v1583 = vunpack.c.l.b16 %v1502
      %v1584 = vunpack.c.l.b16 %v1503
      %v1585 = vunpack.c.l.b16 %v1504
      %v1586 = vunpack.c.l.b16 %v1505
      %v1587 = vunpack.c.l.b16 %v1506
      %v1588 = vunpack.c.l.b16 %v1507
      %v1589 = vunpack.c.l.b16 %v1508
      %v1590 = vunpack.c.l.b16 %v1509
      %v1591 = vunpack.c.l.b16 %v1510
      %v1592 = vunpack.c.l.b16 %v1511
      %v1593 = vunpack.c.l.b16 %v1512
      %v1594 = vunpack.c.l.b16 %v1513
      %v1595 = vunpack.c.l.b16 %v1514
      %v1596 = vunpack.c.l.b16 %v1515
      %v1597 = vunpack.c.l.b16 %v1516
      %v1598 = vunpack.c.l.b16 %v1517
      %v1599 = vunpack.c.l.b16 %v1518
      %v1600 = vunpack.c.l.b16 %v1519
      %v1601 = vunpack.c.l.b16 %v1520
      %v1602 = vunpack.c.l.b16 %v1521
      %v1603 = vunpack.c.l.b16 %v1522
      %v1604 = vunpack.c.l.b16 %v1523
      %v1605 = vunpack.c.l.b16 %v1524
      %v1606 = vunpack.c.l.b16 %v1525
      %v1607 = vunpack.c.l.b16 %v1526
      %v1608 = vunpack.c.l.b16 %v1527
      %v1609 = vunpack.c.l.b16 %v1528
      %v1610 = vunpack.c.l.b16 %v1529
      %v1611 = vunpack.c.l.b16 %v1530
      %v1612 = vpack.c.b16 %v1581, %v1580
      %v1613 = vpack.c.b16 %v1583, %v1582
      %v1614 = vpack.c.b16 %v1585, %v1584
      %v1615 = vpack.c.b16 %v1587, %v1586
      %v1616 = vpack.c.b16 %v1589, %v1588
      %v1617 = vpack.c.b16 %v1591, %v1590
      %v1618 = vpack.c.b16 %v1593, %v1592
      %v1619 = vpack.c.b16 %v1595, %v1594
      %v1620 = vpack.c.b16 %v1597, %v1596
      %v1621 = vpack.c.b16 %v1599, %v1598
      %v1622 = vpack.c.b16 %v1601, %v1600
      %v1623 = vpack.c.b16 %v1603, %v1602
      %v1624 = vpack.c.b16 %v1605, %v1604
      %v1625 = vpack.c.b16 %v1607, %v1606
      %v1626 = vpack.c.b16 %v1609, %v1608
      %v1627 = vpack.c.b16 %v1611, %v1610
      %v1660 = vunpack.c.l.b16 %v1532
      %v1661 = vunpack.c.l.b16 %v1533
      %v1662 = vunpack.c.l.b16 %v1534
      %v1663 = vunpack.c.l.b16 %v1535
      %v1664 = vunpack.c.l.b16 %v1536
      %v1665 = vunpack.c.l.b16 %v1537
      %v1666 = vunpack.c.l.b16 %v1538
      %v1667 = vunpack.c.l.b16 %v1539
      %v1668 = vunpack.c.l.b16 %v1540
      %v1669 = vunpack.c.l.b16 %v1541
      %v1670 = vunpack.c.l.b16 %v1542
      %v1671 = vunpack.c.l.b16 %v1543
      %v1672 = vunpack.c.l.b16 %v1544
      %v1673 = vunpack.c.l.b16 %v1545
      %v1674 = vunpack.c.l.b16 %v1546
      %v1675 = vunpack.c.l.b16 %v1547
      %v1676 = vpack.c.b16 %v1661, %v1660
      %v1677 = vpack.c.b16 %v1663, %v1662
      %v1678 = vpack.c.b16 %v1665, %v1664
      %v1679 = vpack.c.b16 %v1667, %v1666
      %v1680 = vpack.c.b16 %v1669, %v1668
      %v1681 = vpack.c.b16 %v1671, %v1670
      %v1682 = vpack.c.b16 %v1673, %v1672
      %v1683 = vpack.c.b16 %v1675, %v1674
      %1692 = vmatpush.bf16.msra.mxu0 %v1683
      %1693 = vmatpush.bf16.msra.mxu0 %v1682
      %1694 = vmatpush.bf16.msra.mxu0 %v1681
      %1695 = vmatpush.bf16.msra.mxu0 %v1680
      %1696 = vmatpush.bf16.msra.mxu0 %v1679
      %1697 = vmatpush.bf16.msra.mxu0 %v1678
      %1698 = vmatpush.bf16.msra.mxu0 %v1677
      %1699 = vmatpush.bf16.msra.mxu0 %v1676
      %1700 = vmatmul.bf16.gmra.mxu0 %v1612
      %v1701 = vpop.f32.mrf.mxu0
      %v1702 = vadd.f32 0.0, %v1701
      %v1703 = vpop.f32.mrf.mxu0
      %v1704 = vadd.f32 0.0, %v1703
      %1705 = vmatmul.bf16.gmra.mxu0 %v1613
      %v1706 = vpop.f32.mrf.mxu0
      %v1707 = vadd.f32 0.0, %v1706
      %v1708 = vpop.f32.mrf.mxu0
      %v1709 = vadd.f32 0.0, %v1708
      %1710 = vmatmul.bf16.gmra.mxu0 %v1614
      %v1711 = vpop.f32.mrf.mxu0
      %v1712 = vadd.f32 0.0, %v1711
      %v1713 = vpop.f32.mrf.mxu0
      %v1714 = vadd.f32 0.0, %v1713
      %1715 = vmatmul.bf16.gmra.mxu0 %v1615
      %v1716 = vpop.f32.mrf.mxu0
      %v1717 = vadd.f32 0.0, %v1716
      %v1718 = vpop.f32.mrf.mxu0
      %v1719 = vadd.f32 0.0, %v1718
      %1720 = vmatmul.bf16.gmra.mxu0 %v1616
      %v1721 = vpop.f32.mrf.mxu0
      %v1722 = vadd.f32 0.0, %v1721
      %v1723 = vpop.f32.mrf.mxu0
      %v1724 = vadd.f32 0.0, %v1723
      %1725 = vmatmul.bf16.gmra.mxu0 %v1617
      %v1726 = vpop.f32.mrf.mxu0
      %v1727 = vadd.f32 0.0, %v1726
      %v1728 = vpop.f32.mrf.mxu0
      %v1729 = vadd.f32 0.0, %v1728
      %1730 = vmatmul.bf16.gmra.mxu0 %v1618
      %v1731 = vpop.f32.mrf.mxu0
      %v1732 = vadd.f32 0.0, %v1731
      %v1733 = vpop.f32.mrf.mxu0
      %v1734 = vadd.f32 0.0, %v1733
      %1735 = vmatmul.bf16.gmra.mxu0 %v1619
      %v1736 = vpop.f32.mrf.mxu0
      %v1737 = vadd.f32 0.0, %v1736
      %v1738 = vpop.f32.mrf.mxu0
      %v1739 = vadd.f32 0.0, %v1738
      %1740 = vmatmul.bf16.gmra.mxu0 %v1620
      %v1741 = vpop.f32.mrf.mxu0
      %v1742 = vadd.f32 0.0, %v1741
      %v1743 = vpop.f32.mrf.mxu0
      %v1744 = vadd.f32 0.0, %v1743
      %1745 = vmatmul.bf16.gmra.mxu0 %v1621
      %v1746 = vpop.f32.mrf.mxu0
      %v1747 = vadd.f32 0.0, %v1746
      %v1748 = vpop.f32.mrf.mxu0
      %v1749 = vadd.f32 0.0, %v1748
      %1750 = vmatmul.bf16.gmra.mxu0 %v1622
      %v1751 = vpop.f32.mrf.mxu0
      %v1752 = vadd.f32 0.0, %v1751
      %v1753 = vpop.f32.mrf.mxu0
      %v1754 = vadd.f32 0.0, %v1753
      %1755 = vmatmul.bf16.gmra.mxu0 %v1623
      %v1756 = vpop.f32.mrf.mxu0
      %v1757 = vadd.f32 0.0, %v1756
      %v1758 = vpop.f32.mrf.mxu0
      %v1759 = vadd.f32 0.0, %v1758
      %1760 = vmatmul.bf16.gmra.mxu0 %v1624
      %v1761 = vpop.f32.mrf.mxu0
      %v1762 = vadd.f32 0.0, %v1761
      %v1763 = vpop.f32.mrf.mxu0
      %v1764 = vadd.f32 0.0, %v1763
      %1765 = vmatmul.bf16.gmra.mxu0 %v1625
      %v1766 = vpop.f32.mrf.mxu0
      %v1767 = vadd.f32 0.0, %v1766
      %v1768 = vpop.f32.mrf.mxu0
      %v1769 = vadd.f32 0.0, %v1768
      %1770 = vmatmul.bf16.gmra.mxu0 %v1626
      %v1771 = vpop.f32.mrf.mxu0
      %v1772 = vadd.f32 0.0, %v1771
      %v1773 = vpop.f32.mrf.mxu0
      %v1774 = vadd.f32 0.0, %v1773
      %1775 = vmatmul.bf16.gmra.mxu0 %v1627
      %v1776 = vpop.f32.mrf.mxu0
      %v1777 = vadd.f32 0.0, %v1776
      %v1778 = vpop.f32.mrf.mxu0
      %v1779 = vadd.f32 0.0, %v1778
      %1780 = vdwg.mxu0
      %v1781 = vadd.f32 %v1466, %v1702
      %v1782 = vadd.f32 %v1467, %v1704
      %v1783 = vadd.f32 %v1468, %v1707
      %v1784 = vadd.f32 %v1469, %v1709
      %v1785 = vadd.f32 %v1470, %v1712
      %v1786 = vadd.f32 %v1471, %v1714
      %v1787 = vadd.f32 %v1472, %v1717
      %v1788 = vadd.f32 %v1473, %v1719
      %v1789 = vadd.f32 %v1474, %v1722
      %v1790 = vadd.f32 %v1475, %v1724
      %v1791 = vadd.f32 %v1476, %v1727
      %v1792 = vadd.f32 %v1477, %v1729
      %v1793 = vadd.f32 %v1478, %v1732
      %v1794 = vadd.f32 %v1479, %v1734
      %v1795 = vadd.f32 %v1480, %v1737
      %v1796 = vadd.f32 %v1481, %v1739
      %v1797 = vadd.f32 %v1482, %v1742
      %v1798 = vadd.f32 %v1483, %v1744
      %v1799 = vadd.f32 %v1484, %v1747
      %v1800 = vadd.f32 %v1485, %v1749
      %v1801 = vadd.f32 %v1486, %v1752
      %v1802 = vadd.f32 %v1487, %v1754
      %v1803 = vadd.f32 %v1488, %v1757
      %v1804 = vadd.f32 %v1489, %v1759
      %v1805 = vadd.f32 %v1490, %v1762
      %v1806 = vadd.f32 %v1491, %v1764
      %v1807 = vadd.f32 %v1492, %v1767
      %v1808 = vadd.f32 %v1493, %v1769
      %v1809 = vadd.f32 %v1494, %v1772
      %v1810 = vadd.f32 %v1495, %v1774
      %v1811 = vadd.f32 %v1496, %v1777
      %v1812 = vadd.f32 %v1497, %v1779
      %v1813 = vld [vmem:[%s1498] sm:$0xf]
      %v1814 = vld [vmem:[%s1498 + $0x4] sm:$0xf]
      %v1815 = vld [vmem:[%s1498 + $0x8] sm:$0xf]
      %v1816 = vld [vmem:[%s1498 + $0xc] sm:$0xf]
      %v1817 = vld [vmem:[%s1498 + $0x10] sm:$0x1]
      %v1818 = vld [vmem:[%s1498 + $0x14] sm:$0xf]
      %v1819 = vld [vmem:[%s1498 + $0x18] sm:$0xf]
      %v1820 = vld [vmem:[%s1498 + $0x1c] sm:$0xf]
      %v1821 = vld [vmem:[%s1498 + $0x20] sm:$0xf]
      %v1822 = vld [vmem:[%s1498 + $0x24] sm:$0x1]
      %v1823 = vld [vmem:[%s1498 + $0x28] sm:$0xf]
      %v1824 = vld [vmem:[%s1498 + $0x2c] sm:$0xf]
      %v1825 = vld [vmem:[%s1498 + $0x30] sm:$0xf]
      %v1826 = vld [vmem:[%s1498 + $0x34] sm:$0xf]
      %v1827 = vld [vmem:[%s1498 + $0x38] sm:$0x1]
      %v1828 = vld [vmem:[%s1498 + $0x3c] sm:$0xf]
      %v1829 = vld [vmem:[%s1498 + $0x40] sm:$0xf]
      %v1830 = vld [vmem:[%s1498 + $0x44] sm:$0xf]
      %v1831 = vld [vmem:[%s1498 + $0x48] sm:$0xf]
      %v1832 = vld [vmem:[%s1498 + $0x4c] sm:$0x1]
      %v1833 = vld [vmem:[%s1498 + $0x50] sm:$0xf]
      %v1834 = vld [vmem:[%s1498 + $0x54] sm:$0xf]
      %v1835 = vld [vmem:[%s1498 + $0x58] sm:$0xf]
      %v1836 = vld [vmem:[%s1498 + $0x5c] sm:$0xf]
      %v1837 = vld [vmem:[%s1498 + $0x60] sm:$0x1]
      %v1838 = vld [vmem:[%s1498 + $0x64] sm:$0xf]
      %v1839 = vld [vmem:[%s1498 + $0x68] sm:$0xf]
      %v1840 = vld [vmem:[%s1498 + $0x6c] sm:$0xf]
      %v1841 = vld [vmem:[%s1498 + $0x70] sm:$0xf]
      %v1842 = vld [vmem:[%s1498 + $0x74] sm:$0x1]
      %v1843 = vld [vmem:[%s1498 + $0x78] sm:$0xf]
      %v1844 = vld [vmem:[%s1498 + $0x7c] sm:$0xf]
      %v1845 = vld [vmem:[%s1498 + $0x80] sm:$0xf]
      %v1846 = vld [vmem:[%s1498 + $0x84] sm:$0xf]
      %v1847 = vld [vmem:[%s1498 + $0x88] sm:$0x1]
      %v1848 = vld [vmem:[%s1498 + $0x8c] sm:$0xf]
      %v1849 = vld [vmem:[%s1498 + $0x90] sm:$0xf]
      %v1850 = vld [vmem:[%s1498 + $0x94] sm:$0xf]
      %v1851 = vld [vmem:[%s1498 + $0x98] sm:$0xf]
      %v1852 = vld [vmem:[%s1498 + $0x9c] sm:$0x1]
      %v1854 = vshrl.u32 %v1813, 16
      %v1856 = vrot.slane %v1854, 4
      %v1857 = vshll.u32 %v1813, 16
      %v1859 = vrot.slane %v1857, 5
      %v1860 = vor.u32 %v1856, %v1859
      %v1861 = vrot.slane %v1860, 4
      %v1863 = vshll.u32 %v1814, 16
      %v1865 = vrot.slane %v1863, 5
      %v1866 = vsel %vm313, %v1861, %v1865
      %v1867 = vshrl.u32 %v1814, 16
      %v1869 = vrot.slane %v1867, 4
      %v1870 = vor.u32 %v1869, %v1865
      %v1871 = vrot.slane %v1870, 4
      %v1873 = vshll.u32 %v1815, 16
      %v1875 = vrot.slane %v1873, 5
      %v1876 = vsel %vm313, %v1871, %v1875
      %v1877 = vshrl.u32 %v1815, 16
      %v1879 = vrot.slane %v1877, 4
      %v1880 = vor.u32 %v1879, %v1875
      %v1881 = vrot.slane %v1880, 4
      %v1883 = vshll.u32 %v1816, 16
      %v1885 = vrot.slane %v1883, 5
      %v1886 = vsel %vm313, %v1881, %v1885
      %v1887 = vshrl.u32 %v1816, 16
      %v1889 = vrot.slane %v1887, 4
      %v1890 = vor.u32 %v1889, %v1885
      %v1891 = vrot.slane %v1890, 4
      %v1893 = vshll.u32 %v1817, 16
      %v1895 = vrot.slane %v1893, 5
      %v1896 = vsel %vm313, %v1891, %v1895
      %v1898 = vshrl.u32 %v1818, 16
      %v1900 = vrot.slane %v1898, 4
      %v1901 = vshll.u32 %v1818, 16
      %v1903 = vrot.slane %v1901, 5
      %v1904 = vor.u32 %v1900, %v1903
      %v1905 = vrot.slane %v1904, 4
      %v1907 = vshll.u32 %v1819, 16
      %v1909 = vrot.slane %v1907, 5
      %v1910 = vsel %vm313, %v1905, %v1909
      %v1911 = vshrl.u32 %v1819, 16
      %v1913 = vrot.slane %v1911, 4
      %v1914 = vor.u32 %v1913, %v1909
      %v1915 = vrot.slane %v1914, 4
      %v1917 = vshll.u32 %v1820, 16
      %v1919 = vrot.slane %v1917, 5
      %v1920 = vsel %vm313, %v1915, %v1919
      %v1921 = vshrl.u32 %v1820, 16
      %v1923 = vrot.slane %v1921, 4
      %v1924 = vor.u32 %v1923, %v1919
      %v1925 = vrot.slane %v1924, 4
      %v1927 = vshll.u32 %v1821, 16
      %v1929 = vrot.slane %v1927, 5
      %v1930 = vsel %vm313, %v1925, %v1929
      %v1931 = vshrl.u32 %v1821, 16
      %v1933 = vrot.slane %v1931, 4
      %v1934 = vor.u32 %v1933, %v1929
      %v1935 = vrot.slane %v1934, 4
      %v1937 = vshll.u32 %v1822, 16
      %v1939 = vrot.slane %v1937, 5
      %v1940 = vsel %vm313, %v1935, %v1939
      %v1942 = vshrl.u32 %v1823, 16
      %v1944 = vrot.slane %v1942, 4
      %v1945 = vshll.u32 %v1823, 16
      %v1947 = vrot.slane %v1945, 5
      %v1948 = vor.u32 %v1944, %v1947
      %v1949 = vrot.slane %v1948, 4
      %v1951 = vshll.u32 %v1824, 16
      %v1953 = vrot.slane %v1951, 5
      %v1954 = vsel %vm313, %v1949, %v1953
      %v1955 = vshrl.u32 %v1824, 16
      %v1957 = vrot.slane %v1955, 4
      %v1958 = vor.u32 %v1957, %v1953
      %v1959 = vrot.slane %v1958, 4
      %v1961 = vshll.u32 %v1825, 16
      %v1963 = vrot.slane %v1961, 5
      %v1964 = vsel %vm313, %v1959, %v1963
      %v1965 = vshrl.u32 %v1825, 16
      %v1967 = vrot.slane %v1965, 4
      %v1968 = vor.u32 %v1967, %v1963
      %v1969 = vrot.slane %v1968, 4
      %v1971 = vshll.u32 %v1826, 16
      %v1973 = vrot.slane %v1971, 5
      %v1974 = vsel %vm313, %v1969, %v1973
      %v1975 = vshrl.u32 %v1826, 16
      %v1977 = vrot.slane %v1975, 4
      %v1978 = vor.u32 %v1977, %v1973
      %v1979 = vrot.slane %v1978, 4
      %v1981 = vshll.u32 %v1827, 16
      %v1983 = vrot.slane %v1981, 5
      %v1984 = vsel %vm313, %v1979, %v1983
      %v1986 = vshrl.u32 %v1828, 16
      %v1988 = vrot.slane %v1986, 4
      %v1989 = vshll.u32 %v1828, 16
      %v1991 = vrot.slane %v1989, 5
      %v1992 = vor.u32 %v1988, %v1991
      %v1993 = vrot.slane %v1992, 4
      %v1995 = vshll.u32 %v1829, 16
      %v1997 = vrot.slane %v1995, 5
      %v1998 = vsel %vm313, %v1993, %v1997
      %v1999 = vshrl.u32 %v1829, 16
      %v2001 = vrot.slane %v1999, 4
      %v2002 = vor.u32 %v2001, %v1997
      %v2003 = vrot.slane %v2002, 4
      %v2005 = vshll.u32 %v1830, 16
      %v2007 = vrot.slane %v2005, 5
      %v2008 = vsel %vm313, %v2003, %v2007
      %v2009 = vshrl.u32 %v1830, 16
      %v2011 = vrot.slane %v2009, 4
      %v2012 = vor.u32 %v2011, %v2007
      %v2013 = vrot.slane %v2012, 4
      %v2015 = vshll.u32 %v1831, 16
      %v2017 = vrot.slane %v2015, 5
      %v2018 = vsel %vm313, %v2013, %v2017
      %v2019 = vshrl.u32 %v1831, 16
      %v2021 = vrot.slane %v2019, 4
      %v2022 = vor.u32 %v2021, %v2017
      %v2023 = vrot.slane %v2022, 4
      %v2025 = vshll.u32 %v1832, 16
      %v2027 = vrot.slane %v2025, 5
      %v2028 = vsel %vm313, %v2023, %v2027
      %v2030 = vshrl.u32 %v1833, 16
      %v2032 = vrot.slane %v2030, 4
      %v2033 = vshll.u32 %v1833, 16
      %v2035 = vrot.slane %v2033, 5
      %v2036 = vor.u32 %v2032, %v2035
      %v2037 = vrot.slane %v2036, 4
      %v2039 = vshll.u32 %v1834, 16
      %v2041 = vrot.slane %v2039, 5
      %v2042 = vsel %vm313, %v2037, %v2041
      %v2043 = vshrl.u32 %v1834, 16
      %v2045 = vrot.slane %v2043, 4
      %v2046 = vor.u32 %v2045, %v2041
      %v2047 = vrot.slane %v2046, 4
      %v2049 = vshll.u32 %v1835, 16
      %v2051 = vrot.slane %v2049, 5
      %v2052 = vsel %vm313, %v2047, %v2051
      %v2053 = vshrl.u32 %v1835, 16
      %v2055 = vrot.slane %v2053, 4
      %v2056 = vor.u32 %v2055, %v2051
      %v2057 = vrot.slane %v2056, 4
      %v2059 = vshll.u32 %v1836, 16
      %v2061 = vrot.slane %v2059, 5
      %v2062 = vsel %vm313, %v2057, %v2061
      %v2063 = vshrl.u32 %v1836, 16
      %v2065 = vrot.slane %v2063, 4
      %v2066 = vor.u32 %v2065, %v2061
      %v2067 = vrot.slane %v2066, 4
      %v2069 = vshll.u32 %v1837, 16
      %v2071 = vrot.slane %v2069, 5
      %v2072 = vsel %vm313, %v2067, %v2071
      %v2074 = vshrl.u32 %v1838, 16
      %v2076 = vrot.slane %v2074, 4
      %v2077 = vshll.u32 %v1838, 16
      %v2079 = vrot.slane %v2077, 5
      %v2080 = vor.u32 %v2076, %v2079
      %v2081 = vrot.slane %v2080, 4
      %v2083 = vshll.u32 %v1839, 16
      %v2085 = vrot.slane %v2083, 5
      %v2086 = vsel %vm313, %v2081, %v2085
      %v2087 = vshrl.u32 %v1839, 16
      %v2089 = vrot.slane %v2087, 4
      %v2090 = vor.u32 %v2089, %v2085
      %v2091 = vrot.slane %v2090, 4
      %v2093 = vshll.u32 %v1840, 16
      %v2095 = vrot.slane %v2093, 5
      %v2096 = vsel %vm313, %v2091, %v2095
      %v2097 = vshrl.u32 %v1840, 16
      %v2099 = vrot.slane %v2097, 4
      %v2100 = vor.u32 %v2099, %v2095
      %v2101 = vrot.slane %v2100, 4
      %v2103 = vshll.u32 %v1841, 16
      %v2105 = vrot.slane %v2103, 5
      %v2106 = vsel %vm313, %v2101, %v2105
      %v2107 = vshrl.u32 %v1841, 16
      %v2109 = vrot.slane %v2107, 4
      %v2110 = vor.u32 %v2109, %v2105
      %v2111 = vrot.slane %v2110, 4
      %v2113 = vshll.u32 %v1842, 16
      %v2115 = vrot.slane %v2113, 5
      %v2116 = vsel %vm313, %v2111, %v2115
      %v2118 = vshrl.u32 %v1843, 16
      %v2120 = vrot.slane %v2118, 4
      %v2121 = vshll.u32 %v1843, 16
      %v2123 = vrot.slane %v2121, 5
      %v2124 = vor.u32 %v2120, %v2123
      %v2125 = vrot.slane %v2124, 4
      %v2127 = vshll.u32 %v1844, 16
      %v2129 = vrot.slane %v2127, 5
      %v2130 = vsel %vm313, %v2125, %v2129
      %v2131 = vshrl.u32 %v1844, 16
      %v2133 = vrot.slane %v2131, 4
      %v2134 = vor.u32 %v2133, %v2129
      %v2135 = vrot.slane %v2134, 4
      %v2137 = vshll.u32 %v1845, 16
      %v2139 = vrot.slane %v2137, 5
      %v2140 = vsel %vm313, %v2135, %v2139
      %v2141 = vshrl.u32 %v1845, 16
      %v2143 = vrot.slane %v2141, 4
      %v2144 = vor.u32 %v2143, %v2139
      %v2145 = vrot.slane %v2144, 4
      %v2147 = vshll.u32 %v1846, 16
      %v2149 = vrot.slane %v2147, 5
      %v2150 = vsel %vm313, %v2145, %v2149
      %v2151 = vshrl.u32 %v1846, 16
      %v2153 = vrot.slane %v2151, 4
      %v2154 = vor.u32 %v2153, %v2149
      %v2155 = vrot.slane %v2154, 4
      %v2157 = vshll.u32 %v1847, 16
      %v2159 = vrot.slane %v2157, 5
      %v2160 = vsel %vm313, %v2155, %v2159
      %v2162 = vshrl.u32 %v1848, 16
      %v2164 = vrot.slane %v2162, 4
      %v2165 = vshll.u32 %v1848, 16
      %v2167 = vrot.slane %v2165, 5
      %v2168 = vor.u32 %v2164, %v2167
      %v2169 = vrot.slane %v2168, 4
      %v2171 = vshll.u32 %v1849, 16
      %v2173 = vrot.slane %v2171, 5
      %v2174 = vsel %vm313, %v2169, %v2173
      %v2175 = vshrl.u32 %v1849, 16
      %v2177 = vrot.slane %v2175, 4
      %v2178 = vor.u32 %v2177, %v2173
      %v2179 = vrot.slane %v2178, 4
      %v2181 = vshll.u32 %v1850, 16
      %v2183 = vrot.slane %v2181, 5
      %v2184 = vsel %vm313, %v2179, %v2183
      %v2185 = vshrl.u32 %v1850, 16
      %v2187 = vrot.slane %v2185, 4
      %v2188 = vor.u32 %v2187, %v2183
      %v2189 = vrot.slane %v2188, 4
      %v2191 = vshll.u32 %v1851, 16
      %v2193 = vrot.slane %v2191, 5
      %v2194 = vsel %vm313, %v2189, %v2193
      %v2195 = vshrl.u32 %v1851, 16
      %v2197 = vrot.slane %v2195, 4
      %v2198 = vor.u32 %v2197, %v2193
      %v2199 = vrot.slane %v2198, 4
      %v2201 = vshll.u32 %v1852, 16
      %v2203 = vrot.slane %v2201, 5
      %v2204 = vsel %vm313, %v2199, %v2203
      %s2205 = scalar_lea.vmem %s1, 256
      %v2206 = vld [vmem:[%s2205] sm:$0xf]
      %v2207 = vld [vmem:[%s2205 + $0x4] sm:$0xf]
      %v2208 = vld [vmem:[%s2205 + $0x8] sm:$0xf]
      %v2209 = vld [vmem:[%s2205 + $0xc] sm:$0xf]
      %v2210 = vld [vmem:[%s2205 + $0x10] sm:$0xf]
      %v2211 = vld [vmem:[%s2205 + $0x14] sm:$0xf]
      %v2212 = vld [vmem:[%s2205 + $0x18] sm:$0xf]
      %v2213 = vld [vmem:[%s2205 + $0x1c] sm:$0xf]
      %v2214 = vld [vmem:[%s2205 + $0x20] sm:$0xf]
      %v2215 = vld [vmem:[%s2205 + $0x24] sm:$0xf]
      %v2216 = vld [vmem:[%s2205 + $0x28] sm:$0xf]
      %v2217 = vld [vmem:[%s2205 + $0x2c] sm:$0xf]
      %v2218 = vld [vmem:[%s2205 + $0x30] sm:$0xf]
      %v2219 = vld [vmem:[%s2205 + $0x34] sm:$0xf]
      %v2220 = vld [vmem:[%s2205 + $0x38] sm:$0xf]
      %v2221 = vld [vmem:[%s2205 + $0x3c] sm:$0xf]
      %v2222 = vunpack.c.l.b16 %v1866
      %v2223 = vunpack.c.l.b16 %v1876
      %v2224 = vunpack.c.l.b16 %v1886
      %v2225 = vunpack.c.l.b16 %v1896
      %v2226 = vunpack.c.l.b16 %v1910
      %v2227 = vunpack.c.l.b16 %v1920
      %v2228 = vunpack.c.l.b16 %v1930
      %v2229 = vunpack.c.l.b16 %v1940
      %v2230 = vunpack.c.l.b16 %v1954
      %v2231 = vunpack.c.l.b16 %v1964
      %v2232 = vunpack.c.l.b16 %v1974
      %v2233 = vunpack.c.l.b16 %v1984
      %v2234 = vunpack.c.l.b16 %v1998
      %v2235 = vunpack.c.l.b16 %v2008
      %v2236 = vunpack.c.l.b16 %v2018
      %v2237 = vunpack.c.l.b16 %v2028
      %v2238 = vunpack.c.l.b16 %v2042
      %v2239 = vunpack.c.l.b16 %v2052
      %v2240 = vunpack.c.l.b16 %v2062
      %v2241 = vunpack.c.l.b16 %v2072
      %v2242 = vunpack.c.l.b16 %v2086
      %v2243 = vunpack.c.l.b16 %v2096
      %v2244 = vunpack.c.l.b16 %v2106
      %v2245 = vunpack.c.l.b16 %v2116
      %v2246 = vunpack.c.l.b16 %v2130
      %v2247 = vunpack.c.l.b16 %v2140
      %v2248 = vunpack.c.l.b16 %v2150
      %v2249 = vunpack.c.l.b16 %v2160
      %v2250 = vunpack.c.l.b16 %v2174
      %v2251 = vunpack.c.l.b16 %v2184
      %v2252 = vunpack.c.l.b16 %v2194
      %v2253 = vunpack.c.l.b16 %v2204
      %v2254 = vpack.c.b16 %v2223, %v2222
      %v2255 = vpack.c.b16 %v2225, %v2224
      %v2256 = vpack.c.b16 %v2227, %v2226
      %v2257 = vpack.c.b16 %v2229, %v2228
      %v2258 = vpack.c.b16 %v2231, %v2230
      %v2259 = vpack.c.b16 %v2233, %v2232
      %v2260 = vpack.c.b16 %v2235, %v2234
      %v2261 = vpack.c.b16 %v2237, %v2236
      %v2262 = vpack.c.b16 %v2239, %v2238
      %v2263 = vpack.c.b16 %v2241, %v2240
      %v2264 = vpack.c.b16 %v2243, %v2242
      %v2265 = vpack.c.b16 %v2245, %v2244
      %v2266 = vpack.c.b16 %v2247, %v2246
      %v2267 = vpack.c.b16 %v2249, %v2248
      %v2268 = vpack.c.b16 %v2251, %v2250
      %v2269 = vpack.c.b16 %v2253, %v2252
      %v2302 = vunpack.c.l.b16 %v2206
      %v2303 = vunpack.c.l.b16 %v2207
      %v2304 = vunpack.c.l.b16 %v2208
      %v2305 = vunpack.c.l.b16 %v2209
      %v2306 = vunpack.c.l.b16 %v2210
      %v2307 = vunpack.c.l.b16 %v2211
      %v2308 = vunpack.c.l.b16 %v2212
      %v2309 = vunpack.c.l.b16 %v2213
      %v2310 = vunpack.c.l.b16 %v2214
      %v2311 = vunpack.c.l.b16 %v2215
      %v2312 = vunpack.c.l.b16 %v2216
      %v2313 = vunpack.c.l.b16 %v2217
      %v2314 = vunpack.c.l.b16 %v2218
      %v2315 = vunpack.c.l.b16 %v2219
      %v2316 = vunpack.c.l.b16 %v2220
      %v2317 = vunpack.c.l.b16 %v2221
      %v2318 = vpack.c.b16 %v2303, %v2302
      %v2319 = vpack.c.b16 %v2305, %v2304
      %v2320 = vpack.c.b16 %v2307, %v2306
      %v2321 = vpack.c.b16 %v2309, %v2308
      %v2322 = vpack.c.b16 %v2311, %v2310
      %v2323 = vpack.c.b16 %v2313, %v2312
      %v2324 = vpack.c.b16 %v2315, %v2314
      %v2325 = vpack.c.b16 %v2317, %v2316
      %2334 = vmatpush.bf16.msra.mxu0 %v2325
      %2335 = vmatpush.bf16.msra.mxu0 %v2324
      %2336 = vmatpush.bf16.msra.mxu0 %v2323
      %2337 = vmatpush.bf16.msra.mxu0 %v2322
      %2338 = vmatpush.bf16.msra.mxu0 %v2321
      %2339 = vmatpush.bf16.msra.mxu0 %v2320
      %2340 = vmatpush.bf16.msra.mxu0 %v2319
      %2341 = vmatpush.bf16.msra.mxu0 %v2318
      %2342 = vmatmul.bf16.gmra.mxu0 %v2254
      %v2343 = vpop.f32.mrf.mxu0
      %v2344 = vadd.f32 0.0, %v2343
      %v2345 = vpop.f32.mrf.mxu0
      %v2346 = vadd.f32 0.0, %v2345
      %2347 = vmatmul.bf16.gmra.mxu0 %v2255
      %v2348 = vpop.f32.mrf.mxu0
      %v2349 = vadd.f32 0.0, %v2348
      %v2350 = vpop.f32.mrf.mxu0
      %v2351 = vadd.f32 0.0, %v2350
      %2352 = vmatmul.bf16.gmra.mxu0 %v2256
      %v2353 = vpop.f32.mrf.mxu0
      %v2354 = vadd.f32 0.0, %v2353
      %v2355 = vpop.f32.mrf.mxu0
      %v2356 = vadd.f32 0.0, %v2355
      %2357 = vmatmul.bf16.gmra.mxu0 %v2257
      %v2358 = vpop.f32.mrf.mxu0
      %v2359 = vadd.f32 0.0, %v2358
      %v2360 = vpop.f32.mrf.mxu0
      %v2361 = vadd.f32 0.0, %v2360
      %2362 = vmatmul.bf16.gmra.mxu0 %v2258
      %v2363 = vpop.f32.mrf.mxu0
      %v2364 = vadd.f32 0.0, %v2363
      %v2365 = vpop.f32.mrf.mxu0
      %v2366 = vadd.f32 0.0, %v2365
      %2367 = vmatmul.bf16.gmra.mxu0 %v2259
      %v2368 = vpop.f32.mrf.mxu0
      %v2369 = vadd.f32 0.0, %v2368
      %v2370 = vpop.f32.mrf.mxu0
      %v2371 = vadd.f32 0.0, %v2370
      %2372 = vmatmul.bf16.gmra.mxu0 %v2260
      %v2373 = vpop.f32.mrf.mxu0
      %v2374 = vadd.f32 0.0, %v2373
      %v2375 = vpop.f32.mrf.mxu0
      %v2376 = vadd.f32 0.0, %v2375
      %2377 = vmatmul.bf16.gmra.mxu0 %v2261
      %v2378 = vpop.f32.mrf.mxu0
      %v2379 = vadd.f32 0.0, %v2378
      %v2380 = vpop.f32.mrf.mxu0
      %v2381 = vadd.f32 0.0, %v2380
      %2382 = vmatmul.bf16.gmra.mxu0 %v2262
      %v2383 = vpop.f32.mrf.mxu0
      %v2384 = vadd.f32 0.0, %v2383
      %v2385 = vpop.f32.mrf.mxu0
      %v2386 = vadd.f32 0.0, %v2385
      %2387 = vmatmul.bf16.gmra.mxu0 %v2263
      %v2388 = vpop.f32.mrf.mxu0
      %v2389 = vadd.f32 0.0, %v2388
      %v2390 = vpop.f32.mrf.mxu0
      %v2391 = vadd.f32 0.0, %v2390
      %2392 = vmatmul.bf16.gmra.mxu0 %v2264
      %v2393 = vpop.f32.mrf.mxu0
      %v2394 = vadd.f32 0.0, %v2393
      %v2395 = vpop.f32.mrf.mxu0
      %v2396 = vadd.f32 0.0, %v2395
      %2397 = vmatmul.bf16.gmra.mxu0 %v2265
      %v2398 = vpop.f32.mrf.mxu0
      %v2399 = vadd.f32 0.0, %v2398
      %v2400 = vpop.f32.mrf.mxu0
      %v2401 = vadd.f32 0.0, %v2400
      %2402 = vmatmul.bf16.gmra.mxu0 %v2266
      %v2403 = vpop.f32.mrf.mxu0
      %v2404 = vadd.f32 0.0, %v2403
      %v2405 = vpop.f32.mrf.mxu0
      %v2406 = vadd.f32 0.0, %v2405
      %2407 = vmatmul.bf16.gmra.mxu0 %v2267
      %v2408 = vpop.f32.mrf.mxu0
      %v2409 = vadd.f32 0.0, %v2408
      %v2410 = vpop.f32.mrf.mxu0
      %v2411 = vadd.f32 0.0, %v2410
      %2412 = vmatmul.bf16.gmra.mxu0 %v2268
      %v2413 = vpop.f32.mrf.mxu0
      %v2414 = vadd.f32 0.0, %v2413
      %v2415 = vpop.f32.mrf.mxu0
      %v2416 = vadd.f32 0.0, %v2415
      %2417 = vmatmul.bf16.gmra.mxu0 %v2269
      %v2418 = vpop.f32.mrf.mxu0
      %v2419 = vadd.f32 0.0, %v2418
      %v2420 = vpop.f32.mrf.mxu0
      %v2421 = vadd.f32 0.0, %v2420
      %2422 = vdwg.mxu0
      %v2423 = vadd.f32 %v1781, %v2344
      %v2424 = vadd.f32 %v1782, %v2346
      %v2425 = vadd.f32 %v1783, %v2349
      %v2426 = vadd.f32 %v1784, %v2351
      %v2427 = vadd.f32 %v1785, %v2354
      %v2428 = vadd.f32 %v1786, %v2356
      %v2429 = vadd.f32 %v1787, %v2359
      %v2430 = vadd.f32 %v1788, %v2361
      %v2431 = vadd.f32 %v1789, %v2364
      %v2432 = vadd.f32 %v1790, %v2366
      %v2433 = vadd.f32 %v1791, %v2369
      %v2434 = vadd.f32 %v1792, %v2371
      %v2435 = vadd.f32 %v1793, %v2374
      %v2436 = vadd.f32 %v1794, %v2376
      %v2437 = vadd.f32 %v1795, %v2379
      %v2438 = vadd.f32 %v1796, %v2381
      %v2439 = vadd.f32 %v1797, %v2384
      %v2440 = vadd.f32 %v1798, %v2386
      %v2441 = vadd.f32 %v1799, %v2389
      %v2442 = vadd.f32 %v1800, %v2391
      %v2443 = vadd.f32 %v1801, %v2394
      %v2444 = vadd.f32 %v1802, %v2396
      %v2445 = vadd.f32 %v1803, %v2399
      %v2446 = vadd.f32 %v1804, %v2401
      %v2447 = vadd.f32 %v1805, %v2404
      %v2448 = vadd.f32 %v1806, %v2406
      %v2449 = vadd.f32 %v1807, %v2409
      %v2450 = vadd.f32 %v1808, %v2411
      %v2451 = vadd.f32 %v1809, %v2414
      %v2452 = vadd.f32 %v1810, %v2416
      %v2453 = vadd.f32 %v1811, %v2419
      %v2454 = vadd.f32 %v1812, %v2421
      %v2455 = vld [vmem:[%s1498] sm:$0xe]
      %v2456 = vld [vmem:[%s1498 + $0x14] sm:$0xe]
      %v2457 = vld [vmem:[%s1498 + $0x28] sm:$0xe]
      %v2458 = vld [vmem:[%s1498 + $0x3c] sm:$0xe]
      %v2459 = vld [vmem:[%s1498 + $0x50] sm:$0xe]
      %v2460 = vld [vmem:[%s1498 + $0x64] sm:$0xe]
      %v2461 = vld [vmem:[%s1498 + $0x78] sm:$0xe]
      %v2462 = vld [vmem:[%s1498 + $0x8c] sm:$0xe]
      %v2503 = vrot.slane %v2455, 5
      %v2504 = vrot.slane %v2503, 4
      %v2505 = vrot.slane %v1814, 5
      %v2506 = vsel %vm1143, %v2504, %v2505
      %v2507 = vrot.slane %v2505, 4
      %v2508 = vrot.slane %v1815, 5
      %v2509 = vsel %vm1143, %v2507, %v2508
      %v2510 = vrot.slane %v2508, 4
      %v2511 = vrot.slane %v1816, 5
      %v2512 = vsel %vm1143, %v2510, %v2511
      %v2513 = vrot.slane %v2511, 4
      %v2514 = vrot.slane %v1817, 5
      %v2515 = vsel %vm1143, %v2513, %v2514
      %v2516 = vrot.slane %v2456, 5
      %v2517 = vrot.slane %v2516, 4
      %v2518 = vrot.slane %v1819, 5
      %v2519 = vsel %vm1143, %v2517, %v2518
      %v2520 = vrot.slane %v2518, 4
      %v2521 = vrot.slane %v1820, 5
      %v2522 = vsel %vm1143, %v2520, %v2521
      %v2523 = vrot.slane %v2521, 4
      %v2524 = vrot.slane %v1821, 5
      %v2525 = vsel %vm1143, %v2523, %v2524
      %v2526 = vrot.slane %v2524, 4
      %v2527 = vrot.slane %v1822, 5
      %v2528 = vsel %vm1143, %v2526, %v2527
      %v2529 = vrot.slane %v2457, 5
      %v2530 = vrot.slane %v2529, 4
      %v2531 = vrot.slane %v1824, 5
      %v2532 = vsel %vm1143, %v2530, %v2531
      %v2533 = vrot.slane %v2531, 4
      %v2534 = vrot.slane %v1825, 5
      %v2535 = vsel %vm1143, %v2533, %v2534
      %v2536 = vrot.slane %v2534, 4
      %v2537 = vrot.slane %v1826, 5
      %v2538 = vsel %vm1143, %v2536, %v2537
      %v2539 = vrot.slane %v2537, 4
      %v2540 = vrot.slane %v1827, 5
      %v2541 = vsel %vm1143, %v2539, %v2540
      %v2542 = vrot.slane %v2458, 5
      %v2543 = vrot.slane %v2542, 4
      %v2544 = vrot.slane %v1829, 5
      %v2545 = vsel %vm1143, %v2543, %v2544
      %v2546 = vrot.slane %v2544, 4
      %v2547 = vrot.slane %v1830, 5
      %v2548 = vsel %vm1143, %v2546, %v2547
      %v2549 = vrot.slane %v2547, 4
      %v2550 = vrot.slane %v1831, 5
      %v2551 = vsel %vm1143, %v2549, %v2550
      %v2552 = vrot.slane %v2550, 4
      %v2553 = vrot.slane %v1832, 5
      %v2554 = vsel %vm1143, %v2552, %v2553
      %v2555 = vrot.slane %v2459, 5
      %v2556 = vrot.slane %v2555, 4
      %v2557 = vrot.slane %v1834, 5
      %v2558 = vsel %vm1143, %v2556, %v2557
      %v2559 = vrot.slane %v2557, 4
      %v2560 = vrot.slane %v1835, 5
      %v2561 = vsel %vm1143, %v2559, %v2560
      %v2562 = vrot.slane %v2560, 4
      %v2563 = vrot.slane %v1836, 5
      %v2564 = vsel %vm1143, %v2562, %v2563
      %v2565 = vrot.slane %v2563, 4
      %v2566 = vrot.slane %v1837, 5
      %v2567 = vsel %vm1143, %v2565, %v2566
      %v2568 = vrot.slane %v2460, 5
      %v2569 = vrot.slane %v2568, 4
      %v2570 = vrot.slane %v1839, 5
      %v2571 = vsel %vm1143, %v2569, %v2570
      %v2572 = vrot.slane %v2570, 4
      %v2573 = vrot.slane %v1840, 5
      %v2574 = vsel %vm1143, %v2572, %v2573
      %v2575 = vrot.slane %v2573, 4
      %v2576 = vrot.slane %v1841, 5
      %v2577 = vsel %vm1143, %v2575, %v2576
      %v2578 = vrot.slane %v2576, 4
      %v2579 = vrot.slane %v1842, 5
      %v2580 = vsel %vm1143, %v2578, %v2579
      %v2581 = vrot.slane %v2461, 5
      %v2582 = vrot.slane %v2581, 4
      %v2583 = vrot.slane %v1844, 5
      %v2584 = vsel %vm1143, %v2582, %v2583
      %v2585 = vrot.slane %v2583, 4
      %v2586 = vrot.slane %v1845, 5
      %v2587 = vsel %vm1143, %v2585, %v2586
      %v2588 = vrot.slane %v2586, 4
      %v2589 = vrot.slane %v1846, 5
      %v2590 = vsel %vm1143, %v2588, %v2589
      %v2591 = vrot.slane %v2589, 4
      %v2592 = vrot.slane %v1847, 5
      %v2593 = vsel %vm1143, %v2591, %v2592
      %v2594 = vrot.slane %v2462, 5
      %v2595 = vrot.slane %v2594, 4
      %v2596 = vrot.slane %v1849, 5
      %v2597 = vsel %vm1143, %v2595, %v2596
      %v2598 = vrot.slane %v2596, 4
      %v2599 = vrot.slane %v1850, 5
      %v2600 = vsel %vm1143, %v2598, %v2599
      %v2601 = vrot.slane %v2599, 4
      %v2602 = vrot.slane %v1851, 5
      %v2603 = vsel %vm1143, %v2601, %v2602
      %v2604 = vrot.slane %v2602, 4
      %v2605 = vrot.slane %v1852, 5
      %v2606 = vsel %vm1143, %v2604, %v2605
      %s2607 = scalar_lea.vmem %s1, 320
      %v2608 = vld [vmem:[%s2607] sm:$0xf]
      %v2609 = vld [vmem:[%s2607 + $0x4] sm:$0xf]
      %v2610 = vld [vmem:[%s2607 + $0x8] sm:$0xf]
      %v2611 = vld [vmem:[%s2607 + $0xc] sm:$0xf]
      %v2612 = vld [vmem:[%s2607 + $0x10] sm:$0xf]
      %v2613 = vld [vmem:[%s2607 + $0x14] sm:$0xf]
      %v2614 = vld [vmem:[%s2607 + $0x18] sm:$0xf]
      %v2615 = vld [vmem:[%s2607 + $0x1c] sm:$0xf]
      %v2616 = vld [vmem:[%s2607 + $0x20] sm:$0xf]
      %v2617 = vld [vmem:[%s2607 + $0x24] sm:$0xf]
      %v2618 = vld [vmem:[%s2607 + $0x28] sm:$0xf]
      %v2619 = vld [vmem:[%s2607 + $0x2c] sm:$0xf]
      %v2620 = vld [vmem:[%s2607 + $0x30] sm:$0xf]
      %v2621 = vld [vmem:[%s2607 + $0x34] sm:$0xf]
      %v2622 = vld [vmem:[%s2607 + $0x38] sm:$0xf]
      %v2623 = vld [vmem:[%s2607 + $0x3c] sm:$0xf]
      %v2624 = vunpack.c.l.b16 %v2506
      %v2625 = vunpack.c.l.b16 %v2509
      %v2626 = vunpack.c.l.b16 %v2512
      %v2627 = vunpack.c.l.b16 %v2515
      %v2628 = vunpack.c.l.b16 %v2519
      %v2629 = vunpack.c.l.b16 %v2522
      %v2630 = vunpack.c.l.b16 %v2525
      %v2631 = vunpack.c.l.b16 %v2528
      %v2632 = vunpack.c.l.b16 %v2532
      %v2633 = vunpack.c.l.b16 %v2535
      %v2634 = vunpack.c.l.b16 %v2538
      %v2635 = vunpack.c.l.b16 %v2541
      %v2636 = vunpack.c.l.b16 %v2545
      %v2637 = vunpack.c.l.b16 %v2548
      %v2638 = vunpack.c.l.b16 %v2551
      %v2639 = vunpack.c.l.b16 %v2554
      %v2640 = vunpack.c.l.b16 %v2558
      %v2641 = vunpack.c.l.b16 %v2561
      %v2642 = vunpack.c.l.b16 %v2564
      %v2643 = vunpack.c.l.b16 %v2567
      %v2644 = vunpack.c.l.b16 %v2571
      %v2645 = vunpack.c.l.b16 %v2574
      %v2646 = vunpack.c.l.b16 %v2577
      %v2647 = vunpack.c.l.b16 %v2580
      %v2648 = vunpack.c.l.b16 %v2584
      %v2649 = vunpack.c.l.b16 %v2587
      %v2650 = vunpack.c.l.b16 %v2590
      %v2651 = vunpack.c.l.b16 %v2593
      %v2652 = vunpack.c.l.b16 %v2597
      %v2653 = vunpack.c.l.b16 %v2600
      %v2654 = vunpack.c.l.b16 %v2603
      %v2655 = vunpack.c.l.b16 %v2606
      %v2656 = vpack.c.b16 %v2625, %v2624
      %v2657 = vpack.c.b16 %v2627, %v2626
      %v2658 = vpack.c.b16 %v2629, %v2628
      %v2659 = vpack.c.b16 %v2631, %v2630
      %v2660 = vpack.c.b16 %v2633, %v2632
      %v2661 = vpack.c.b16 %v2635, %v2634
      %v2662 = vpack.c.b16 %v2637, %v2636
      %v2663 = vpack.c.b16 %v2639, %v2638
      %v2664 = vpack.c.b16 %v2641, %v2640
      %v2665 = vpack.c.b16 %v2643, %v2642
      %v2666 = vpack.c.b16 %v2645, %v2644
      %v2667 = vpack.c.b16 %v2647, %v2646
      %v2668 = vpack.c.b16 %v2649, %v2648
      %v2669 = vpack.c.b16 %v2651, %v2650
      %v2670 = vpack.c.b16 %v2653, %v2652
      %v2671 = vpack.c.b16 %v2655, %v2654
      %v2704 = vunpack.c.l.b16 %v2608
      %v2705 = vunpack.c.l.b16 %v2609
      %v2706 = vunpack.c.l.b16 %v2610
      %v2707 = vunpack.c.l.b16 %v2611
      %v2708 = vunpack.c.l.b16 %v2612
      %v2709 = vunpack.c.l.b16 %v2613
      %v2710 = vunpack.c.l.b16 %v2614
      %v2711 = vunpack.c.l.b16 %v2615
      %v2712 = vunpack.c.l.b16 %v2616
      %v2713 = vunpack.c.l.b16 %v2617
      %v2714 = vunpack.c.l.b16 %v2618
      %v2715 = vunpack.c.l.b16 %v2619
      %v2716 = vunpack.c.l.b16 %v2620
      %v2717 = vunpack.c.l.b16 %v2621
      %v2718 = vunpack.c.l.b16 %v2622
      %v2719 = vunpack.c.l.b16 %v2623
      %v2720 = vpack.c.b16 %v2705, %v2704
      %v2721 = vpack.c.b16 %v2707, %v2706
      %v2722 = vpack.c.b16 %v2709, %v2708
      %v2723 = vpack.c.b16 %v2711, %v2710
      %v2724 = vpack.c.b16 %v2713, %v2712
      %v2725 = vpack.c.b16 %v2715, %v2714
      %v2726 = vpack.c.b16 %v2717, %v2716
      %v2727 = vpack.c.b16 %v2719, %v2718
      %2736 = vmatpush.bf16.msra.mxu0 %v2727
      %2737 = vmatpush.bf16.msra.mxu0 %v2726
      %2738 = vmatpush.bf16.msra.mxu0 %v2725
      %2739 = vmatpush.bf16.msra.mxu0 %v2724
      %2740 = vmatpush.bf16.msra.mxu0 %v2723
      %2741 = vmatpush.bf16.msra.mxu0 %v2722
      %2742 = vmatpush.bf16.msra.mxu0 %v2721
      %2743 = vmatpush.bf16.msra.mxu0 %v2720
      %2744 = vmatmul.bf16.gmra.mxu0 %v2656
      %v2745 = vpop.f32.mrf.mxu0
      %v2746 = vadd.f32 0.0, %v2745
      %v2747 = vpop.f32.mrf.mxu0
      %v2748 = vadd.f32 0.0, %v2747
      %2749 = vmatmul.bf16.gmra.mxu0 %v2657
      %v2750 = vpop.f32.mrf.mxu0
      %v2751 = vadd.f32 0.0, %v2750
      %v2752 = vpop.f32.mrf.mxu0
      %v2753 = vadd.f32 0.0, %v2752
      %2754 = vmatmul.bf16.gmra.mxu0 %v2658
      %v2755 = vpop.f32.mrf.mxu0
      %v2756 = vadd.f32 0.0, %v2755
      %v2757 = vpop.f32.mrf.mxu0
      %v2758 = vadd.f32 0.0, %v2757
      %2759 = vmatmul.bf16.gmra.mxu0 %v2659
      %v2760 = vpop.f32.mrf.mxu0
      %v2761 = vadd.f32 0.0, %v2760
      %v2762 = vpop.f32.mrf.mxu0
      %v2763 = vadd.f32 0.0, %v2762
      %2764 = vmatmul.bf16.gmra.mxu0 %v2660
      %v2765 = vpop.f32.mrf.mxu0
      %v2766 = vadd.f32 0.0, %v2765
      %v2767 = vpop.f32.mrf.mxu0
      %v2768 = vadd.f32 0.0, %v2767
      %2769 = vmatmul.bf16.gmra.mxu0 %v2661
      %v2770 = vpop.f32.mrf.mxu0
      %v2771 = vadd.f32 0.0, %v2770
      %v2772 = vpop.f32.mrf.mxu0
      %v2773 = vadd.f32 0.0, %v2772
      %2774 = vmatmul.bf16.gmra.mxu0 %v2662
      %v2775 = vpop.f32.mrf.mxu0
      %v2776 = vadd.f32 0.0, %v2775
      %v2777 = vpop.f32.mrf.mxu0
      %v2778 = vadd.f32 0.0, %v2777
      %2779 = vmatmul.bf16.gmra.mxu0 %v2663
      %v2780 = vpop.f32.mrf.mxu0
      %v2781 = vadd.f32 0.0, %v2780
      %v2782 = vpop.f32.mrf.mxu0
      %v2783 = vadd.f32 0.0, %v2782
      %2784 = vmatmul.bf16.gmra.mxu0 %v2664
      %v2785 = vpop.f32.mrf.mxu0
      %v2786 = vadd.f32 0.0, %v2785
      %v2787 = vpop.f32.mrf.mxu0
      %v2788 = vadd.f32 0.0, %v2787
      %2789 = vmatmul.bf16.gmra.mxu0 %v2665
      %v2790 = vpop.f32.mrf.mxu0
      %v2791 = vadd.f32 0.0, %v2790
      %v2792 = vpop.f32.mrf.mxu0
      %v2793 = vadd.f32 0.0, %v2792
      %2794 = vmatmul.bf16.gmra.mxu0 %v2666
      %v2795 = vpop.f32.mrf.mxu0
      %v2796 = vadd.f32 0.0, %v2795
      %v2797 = vpop.f32.mrf.mxu0
      %v2798 = vadd.f32 0.0, %v2797
      %2799 = vmatmul.bf16.gmra.mxu0 %v2667
      %v2800 = vpop.f32.mrf.mxu0
      %v2801 = vadd.f32 0.0, %v2800
      %v2802 = vpop.f32.mrf.mxu0
      %v2803 = vadd.f32 0.0, %v2802
      %2804 = vmatmul.bf16.gmra.mxu0 %v2668
      %v2805 = vpop.f32.mrf.mxu0
      %v2806 = vadd.f32 0.0, %v2805
      %v2807 = vpop.f32.mrf.mxu0
      %v2808 = vadd.f32 0.0, %v2807
      %2809 = vmatmul.bf16.gmra.mxu0 %v2669
      %v2810 = vpop.f32.mrf.mxu0
      %v2811 = vadd.f32 0.0, %v2810
      %v2812 = vpop.f32.mrf.mxu0
      %v2813 = vadd.f32 0.0, %v2812
      %2814 = vmatmul.bf16.gmra.mxu0 %v2670
      %v2815 = vpop.f32.mrf.mxu0
      %v2816 = vadd.f32 0.0, %v2815
      %v2817 = vpop.f32.mrf.mxu0
      %v2818 = vadd.f32 0.0, %v2817
      %2819 = vmatmul.bf16.gmra.mxu0 %v2671
      %v2820 = vpop.f32.mrf.mxu0
      %v2821 = vadd.f32 0.0, %v2820
      %v2822 = vpop.f32.mrf.mxu0
      %v2823 = vadd.f32 0.0, %v2822
      %2824 = vdwg.mxu0
      %v2825 = vadd.f32 %v2423, %v2746
      %v2826 = vadd.f32 %v2424, %v2748
      %v2827 = vadd.f32 %v2425, %v2751
      %v2828 = vadd.f32 %v2426, %v2753
      %v2829 = vadd.f32 %v2427, %v2756
      %v2830 = vadd.f32 %v2428, %v2758
      %v2831 = vadd.f32 %v2429, %v2761
      %v2832 = vadd.f32 %v2430, %v2763
      %v2833 = vadd.f32 %v2431, %v2766
      %v2834 = vadd.f32 %v2432, %v2768
      %v2835 = vadd.f32 %v2433, %v2771
      %v2836 = vadd.f32 %v2434, %v2773
      %v2837 = vadd.f32 %v2435, %v2776
      %v2838 = vadd.f32 %v2436, %v2778
      %v2839 = vadd.f32 %v2437, %v2781
      %v2840 = vadd.f32 %v2438, %v2783
      %v2841 = vadd.f32 %v2439, %v2786
      %v2842 = vadd.f32 %v2440, %v2788
      %v2843 = vadd.f32 %v2441, %v2791
      %v2844 = vadd.f32 %v2442, %v2793
      %v2845 = vadd.f32 %v2443, %v2796
      %v2846 = vadd.f32 %v2444, %v2798
      %v2847 = vadd.f32 %v2445, %v2801
      %v2848 = vadd.f32 %v2446, %v2803
      %v2849 = vadd.f32 %v2447, %v2806
      %v2850 = vadd.f32 %v2448, %v2808
      %v2851 = vadd.f32 %v2449, %v2811
      %v2852 = vadd.f32 %v2450, %v2813
      %v2853 = vadd.f32 %v2451, %v2816
      %v2854 = vadd.f32 %v2452, %v2818
      %v2855 = vadd.f32 %v2453, %v2821
      %v2856 = vadd.f32 %v2454, %v2823
      %s2857 = scalar_lea.vmem %s237, 40
      %v2858 = vld [vmem:[%s2857] sm:$0xf]
      %v2859 = vld [vmem:[%s2857 + $0x4] sm:$0xf]
      %v2860 = vld [vmem:[%s2857 + $0x8] sm:$0xf]
      %v2861 = vld [vmem:[%s2857 + $0xc] sm:$0xf]
      %v2862 = vld [vmem:[%s2857 + $0x14] sm:$0xf]
      %v2863 = vld [vmem:[%s2857 + $0x18] sm:$0xf]
      %v2864 = vld [vmem:[%s2857 + $0x1c] sm:$0xf]
      %v2865 = vld [vmem:[%s2857 + $0x20] sm:$0xf]
      %v2866 = vld [vmem:[%s2857 + $0x28] sm:$0xf]
      %v2867 = vld [vmem:[%s2857 + $0x2c] sm:$0xf]
      %v2868 = vld [vmem:[%s2857 + $0x30] sm:$0xf]
      %v2869 = vld [vmem:[%s2857 + $0x34] sm:$0xf]
      %v2870 = vld [vmem:[%s2857 + $0x3c] sm:$0xf]
      %v2871 = vld [vmem:[%s2857 + $0x40] sm:$0xf]
      %v2872 = vld [vmem:[%s2857 + $0x44] sm:$0xf]
      %v2873 = vld [vmem:[%s2857 + $0x48] sm:$0xf]
      %v2874 = vld [vmem:[%s2857 + $0x50] sm:$0xf]
      %v2875 = vld [vmem:[%s2857 + $0x54] sm:$0xf]
      %v2876 = vld [vmem:[%s2857 + $0x58] sm:$0xf]
      %v2877 = vld [vmem:[%s2857 + $0x5c] sm:$0xf]
      %v2878 = vld [vmem:[%s2857 + $0x64] sm:$0xf]
      %v2879 = vld [vmem:[%s2857 + $0x68] sm:$0xf]
      %v2880 = vld [vmem:[%s2857 + $0x6c] sm:$0xf]
      %v2881 = vld [vmem:[%s2857 + $0x70] sm:$0xf]
      %v2882 = vld [vmem:[%s2857 + $0x78] sm:$0xf]
      %v2883 = vld [vmem:[%s2857 + $0x7c] sm:$0xf]
      %v2884 = vld [vmem:[%s2857 + $0x80] sm:$0xf]
      %v2885 = vld [vmem:[%s2857 + $0x84] sm:$0xf]
      %v2886 = vld [vmem:[%s2857 + $0x8c] sm:$0xf]
      %v2887 = vld [vmem:[%s2857 + $0x90] sm:$0xf]
      %v2888 = vld [vmem:[%s2857 + $0x94] sm:$0xf]
      %v2889 = vld [vmem:[%s2857 + $0x98] sm:$0xf]
      %s2890 = scalar_lea.vmem %s1, 384
      %v2891 = vld [vmem:[%s2890] sm:$0xf]
      %v2892 = vld [vmem:[%s2890 + $0x4] sm:$0xf]
      %v2893 = vld [vmem:[%s2890 + $0x8] sm:$0xf]
      %v2894 = vld [vmem:[%s2890 + $0xc] sm:$0xf]
      %v2895 = vld [vmem:[%s2890 + $0x10] sm:$0xf]
      %v2896 = vld [vmem:[%s2890 + $0x14] sm:$0xf]
      %v2897 = vld [vmem:[%s2890 + $0x18] sm:$0xf]
      %v2898 = vld [vmem:[%s2890 + $0x1c] sm:$0xf]
      %v2899 = vld [vmem:[%s2890 + $0x20] sm:$0xf]
      %v2900 = vld [vmem:[%s2890 + $0x24] sm:$0xf]
      %v2901 = vld [vmem:[%s2890 + $0x28] sm:$0xf]
      %v2902 = vld [vmem:[%s2890 + $0x2c] sm:$0xf]
      %v2903 = vld [vmem:[%s2890 + $0x30] sm:$0xf]
      %v2904 = vld [vmem:[%s2890 + $0x34] sm:$0xf]
      %v2905 = vld [vmem:[%s2890 + $0x38] sm:$0xf]
      %v2906 = vld [vmem:[%s2890 + $0x3c] sm:$0xf]
      %v2939 = vunpack.c.l.b16 %v2858
      %v2940 = vunpack.c.l.b16 %v2859
      %v2941 = vunpack.c.l.b16 %v2860
      %v2942 = vunpack.c.l.b16 %v2861
      %v2943 = vunpack.c.l.b16 %v2862
      %v2944 = vunpack.c.l.b16 %v2863
      %v2945 = vunpack.c.l.b16 %v2864
      %v2946 = vunpack.c.l.b16 %v2865
      %v2947 = vunpack.c.l.b16 %v2866
      %v2948 = vunpack.c.l.b16 %v2867
      %v2949 = vunpack.c.l.b16 %v2868
      %v2950 = vunpack.c.l.b16 %v2869
      %v2951 = vunpack.c.l.b16 %v2870
      %v2952 = vunpack.c.l.b16 %v2871
      %v2953 = vunpack.c.l.b16 %v2872
      %v2954 = vunpack.c.l.b16 %v2873
      %v2955 = vunpack.c.l.b16 %v2874
      %v2956 = vunpack.c.l.b16 %v2875
      %v2957 = vunpack.c.l.b16 %v2876
      %v2958 = vunpack.c.l.b16 %v2877
      %v2959 = vunpack.c.l.b16 %v2878
      %v2960 = vunpack.c.l.b16 %v2879
      %v2961 = vunpack.c.l.b16 %v2880
      %v2962 = vunpack.c.l.b16 %v2881
      %v2963 = vunpack.c.l.b16 %v2882
      %v2964 = vunpack.c.l.b16 %v2883
      %v2965 = vunpack.c.l.b16 %v2884
      %v2966 = vunpack.c.l.b16 %v2885
      %v2967 = vunpack.c.l.b16 %v2886
      %v2968 = vunpack.c.l.b16 %v2887
      %v2969 = vunpack.c.l.b16 %v2888
      %v2970 = vunpack.c.l.b16 %v2889
      %v2971 = vpack.c.b16 %v2940, %v2939
      %v2972 = vpack.c.b16 %v2942, %v2941
      %v2973 = vpack.c.b16 %v2944, %v2943
      %v2974 = vpack.c.b16 %v2946, %v2945
      %v2975 = vpack.c.b16 %v2948, %v2947
      %v2976 = vpack.c.b16 %v2950, %v2949
      %v2977 = vpack.c.b16 %v2952, %v2951
      %v2978 = vpack.c.b16 %v2954, %v2953
      %v2979 = vpack.c.b16 %v2956, %v2955
      %v2980 = vpack.c.b16 %v2958, %v2957
      %v2981 = vpack.c.b16 %v2960, %v2959
      %v2982 = vpack.c.b16 %v2962, %v2961
      %v2983 = vpack.c.b16 %v2964, %v2963
      %v2984 = vpack.c.b16 %v2966, %v2965
      %v2985 = vpack.c.b16 %v2968, %v2967
      %v2986 = vpack.c.b16 %v2970, %v2969
      %v3019 = vunpack.c.l.b16 %v2891
      %v3020 = vunpack.c.l.b16 %v2892
      %v3021 = vunpack.c.l.b16 %v2893
      %v3022 = vunpack.c.l.b16 %v2894
      %v3023 = vunpack.c.l.b16 %v2895
      %v3024 = vunpack.c.l.b16 %v2896
      %v3025 = vunpack.c.l.b16 %v2897
      %v3026 = vunpack.c.l.b16 %v2898
      %v3027 = vunpack.c.l.b16 %v2899
      %v3028 = vunpack.c.l.b16 %v2900
      %v3029 = vunpack.c.l.b16 %v2901
      %v3030 = vunpack.c.l.b16 %v2902
      %v3031 = vunpack.c.l.b16 %v2903
      %v3032 = vunpack.c.l.b16 %v2904
      %v3033 = vunpack.c.l.b16 %v2905
      %v3034 = vunpack.c.l.b16 %v2906
      %v3035 = vpack.c.b16 %v3020, %v3019
      %v3036 = vpack.c.b16 %v3022, %v3021
      %v3037 = vpack.c.b16 %v3024, %v3023
      %v3038 = vpack.c.b16 %v3026, %v3025
      %v3039 = vpack.c.b16 %v3028, %v3027
      %v3040 = vpack.c.b16 %v3030, %v3029
      %v3041 = vpack.c.b16 %v3032, %v3031
      %v3042 = vpack.c.b16 %v3034, %v3033
      %3051 = vmatpush.bf16.msra.mxu0 %v3042
      %3052 = vmatpush.bf16.msra.mxu0 %v3041
      %3053 = vmatpush.bf16.msra.mxu0 %v3040
      %3054 = vmatpush.bf16.msra.mxu0 %v3039
      %3055 = vmatpush.bf16.msra.mxu0 %v3038
      %3056 = vmatpush.bf16.msra.mxu0 %v3037
      %3057 = vmatpush.bf16.msra.mxu0 %v3036
      %3058 = vmatpush.bf16.msra.mxu0 %v3035
      %3059 = vmatmul.bf16.gmra.mxu0 %v2971
      %v3060 = vpop.f32.mrf.mxu0
      %v3061 = vadd.f32 0.0, %v3060
      %v3062 = vpop.f32.mrf.mxu0
      %v3063 = vadd.f32 0.0, %v3062
      %3064 = vmatmul.bf16.gmra.mxu0 %v2972
      %v3065 = vpop.f32.mrf.mxu0
      %v3066 = vadd.f32 0.0, %v3065
      %v3067 = vpop.f32.mrf.mxu0
      %v3068 = vadd.f32 0.0, %v3067
      %3069 = vmatmul.bf16.gmra.mxu0 %v2973
      %v3070 = vpop.f32.mrf.mxu0
      %v3071 = vadd.f32 0.0, %v3070
      %v3072 = vpop.f32.mrf.mxu0
      %v3073 = vadd.f32 0.0, %v3072
      %3074 = vmatmul.bf16.gmra.mxu0 %v2974
      %v3075 = vpop.f32.mrf.mxu0
      %v3076 = vadd.f32 0.0, %v3075
      %v3077 = vpop.f32.mrf.mxu0
      %v3078 = vadd.f32 0.0, %v3077
      %3079 = vmatmul.bf16.gmra.mxu0 %v2975
      %v3080 = vpop.f32.mrf.mxu0
      %v3081 = vadd.f32 0.0, %v3080
      %v3082 = vpop.f32.mrf.mxu0
      %v3083 = vadd.f32 0.0, %v3082
      %3084 = vmatmul.bf16.gmra.mxu0 %v2976
      %v3085 = vpop.f32.mrf.mxu0
      %v3086 = vadd.f32 0.0, %v3085
      %v3087 = vpop.f32.mrf.mxu0
      %v3088 = vadd.f32 0.0, %v3087
      %3089 = vmatmul.bf16.gmra.mxu0 %v2977
      %v3090 = vpop.f32.mrf.mxu0
      %v3091 = vadd.f32 0.0, %v3090
      %v3092 = vpop.f32.mrf.mxu0
      %v3093 = vadd.f32 0.0, %v3092
      %3094 = vmatmul.bf16.gmra.mxu0 %v2978
      %v3095 = vpop.f32.mrf.mxu0
      %v3096 = vadd.f32 0.0, %v3095
      %v3097 = vpop.f32.mrf.mxu0
      %v3098 = vadd.f32 0.0, %v3097
      %3099 = vmatmul.bf16.gmra.mxu0 %v2979
      %v3100 = vpop.f32.mrf.mxu0
      %v3101 = vadd.f32 0.0, %v3100
      %v3102 = vpop.f32.mrf.mxu0
      %v3103 = vadd.f32 0.0, %v3102
      %3104 = vmatmul.bf16.gmra.mxu0 %v2980
      %v3105 = vpop.f32.mrf.mxu0
      %v3106 = vadd.f32 0.0, %v3105
      %v3107 = vpop.f32.mrf.mxu0
      %v3108 = vadd.f32 0.0, %v3107
      %3109 = vmatmul.bf16.gmra.mxu0 %v2981
      %v3110 = vpop.f32.mrf.mxu0
      %v3111 = vadd.f32 0.0, %v3110
      %v3112 = vpop.f32.mrf.mxu0
      %v3113 = vadd.f32 0.0, %v3112
      %3114 = vmatmul.bf16.gmra.mxu0 %v2982
      %v3115 = vpop.f32.mrf.mxu0
      %v3116 = vadd.f32 0.0, %v3115
      %v3117 = vpop.f32.mrf.mxu0
      %v3118 = vadd.f32 0.0, %v3117
      %3119 = vmatmul.bf16.gmra.mxu0 %v2983
      %v3120 = vpop.f32.mrf.mxu0
      %v3121 = vadd.f32 0.0, %v3120
      %v3122 = vpop.f32.mrf.mxu0
      %v3123 = vadd.f32 0.0, %v3122
      %3124 = vmatmul.bf16.gmra.mxu0 %v2984
      %v3125 = vpop.f32.mrf.mxu0
      %v3126 = vadd.f32 0.0, %v3125
      %v3127 = vpop.f32.mrf.mxu0
      %v3128 = vadd.f32 0.0, %v3127
      %3129 = vmatmul.bf16.gmra.mxu0 %v2985
      %v3130 = vpop.f32.mrf.mxu0
      %v3131 = vadd.f32 0.0, %v3130
      %v3132 = vpop.f32.mrf.mxu0
      %v3133 = vadd.f32 0.0, %v3132
      %3134 = vmatmul.bf16.gmra.mxu0 %v2986
      %v3135 = vpop.f32.mrf.mxu0
      %v3136 = vadd.f32 0.0, %v3135
      %v3137 = vpop.f32.mrf.mxu0
      %v3138 = vadd.f32 0.0, %v3137
      %3139 = vdwg.mxu0
      %v3140 = vadd.f32 %v2825, %v3061
      %v3141 = vadd.f32 %v2826, %v3063
      %v3142 = vadd.f32 %v2827, %v3066
      %v3143 = vadd.f32 %v2828, %v3068
      %v3144 = vadd.f32 %v2829, %v3071
      %v3145 = vadd.f32 %v2830, %v3073
      %v3146 = vadd.f32 %v2831, %v3076
      %v3147 = vadd.f32 %v2832, %v3078
      %v3148 = vadd.f32 %v2833, %v3081
      %v3149 = vadd.f32 %v2834, %v3083
      %v3150 = vadd.f32 %v2835, %v3086
      %v3151 = vadd.f32 %v2836, %v3088
      %v3152 = vadd.f32 %v2837, %v3091
      %v3153 = vadd.f32 %v2838, %v3093
      %v3154 = vadd.f32 %v2839, %v3096
      %v3155 = vadd.f32 %v2840, %v3098
      %v3156 = vadd.f32 %v2841, %v3101
      %v3157 = vadd.f32 %v2842, %v3103
      %v3158 = vadd.f32 %v2843, %v3106
      %v3159 = vadd.f32 %v2844, %v3108
      %v3160 = vadd.f32 %v2845, %v3111
      %v3161 = vadd.f32 %v2846, %v3113
      %v3162 = vadd.f32 %v2847, %v3116
      %v3163 = vadd.f32 %v2848, %v3118
      %v3164 = vadd.f32 %v2849, %v3121
      %v3165 = vadd.f32 %v2850, %v3123
      %v3166 = vadd.f32 %v2851, %v3126
      %v3167 = vadd.f32 %v2852, %v3128
      %v3168 = vadd.f32 %v2853, %v3131
      %v3169 = vadd.f32 %v2854, %v3133
      %v3170 = vadd.f32 %v2855, %v3136
      %v3171 = vadd.f32 %v2856, %v3138
      %v3172 = vld [vmem:[%s2857] sm:$0xf]
      %v3173 = vld [vmem:[%s2857 + $0x4] sm:$0xf]
      %v3174 = vld [vmem:[%s2857 + $0x8] sm:$0xf]
      %v3175 = vld [vmem:[%s2857 + $0xc] sm:$0xf]
      %v3176 = vld [vmem:[%s2857 + $0x10] sm:$0x1]
      %v3177 = vld [vmem:[%s2857 + $0x14] sm:$0xf]
      %v3178 = vld [vmem:[%s2857 + $0x18] sm:$0xf]
      %v3179 = vld [vmem:[%s2857 + $0x1c] sm:$0xf]
      %v3180 = vld [vmem:[%s2857 + $0x20] sm:$0xf]
      %v3181 = vld [vmem:[%s2857 + $0x24] sm:$0x1]
      %v3182 = vld [vmem:[%s2857 + $0x28] sm:$0xf]
      %v3183 = vld [vmem:[%s2857 + $0x2c] sm:$0xf]
      %v3184 = vld [vmem:[%s2857 + $0x30] sm:$0xf]
      %v3185 = vld [vmem:[%s2857 + $0x34] sm:$0xf]
      %v3186 = vld [vmem:[%s2857 + $0x38] sm:$0x1]
      %v3187 = vld [vmem:[%s2857 + $0x3c] sm:$0xf]
      %v3188 = vld [vmem:[%s2857 + $0x40] sm:$0xf]
      %v3189 = vld [vmem:[%s2857 + $0x44] sm:$0xf]
      %v3190 = vld [vmem:[%s2857 + $0x48] sm:$0xf]
      %v3191 = vld [vmem:[%s2857 + $0x4c] sm:$0x1]
      %v3192 = vld [vmem:[%s2857 + $0x50] sm:$0xf]
      %v3193 = vld [vmem:[%s2857 + $0x54] sm:$0xf]
      %v3194 = vld [vmem:[%s2857 + $0x58] sm:$0xf]
      %v3195 = vld [vmem:[%s2857 + $0x5c] sm:$0xf]
      %v3196 = vld [vmem:[%s2857 + $0x60] sm:$0x1]
      %v3197 = vld [vmem:[%s2857 + $0x64] sm:$0xf]
      %v3198 = vld [vmem:[%s2857 + $0x68] sm:$0xf]
      %v3199 = vld [vmem:[%s2857 + $0x6c] sm:$0xf]
      %v3200 = vld [vmem:[%s2857 + $0x70] sm:$0xf]
      %v3201 = vld [vmem:[%s2857 + $0x74] sm:$0x1]
      %v3202 = vld [vmem:[%s2857 + $0x78] sm:$0xf]
      %v3203 = vld [vmem:[%s2857 + $0x7c] sm:$0xf]
      %v3204 = vld [vmem:[%s2857 + $0x80] sm:$0xf]
      %v3205 = vld [vmem:[%s2857 + $0x84] sm:$0xf]
      %v3206 = vld [vmem:[%s2857 + $0x88] sm:$0x1]
      %v3207 = vld [vmem:[%s2857 + $0x8c] sm:$0xf]
      %v3208 = vld [vmem:[%s2857 + $0x90] sm:$0xf]
      %v3209 = vld [vmem:[%s2857 + $0x94] sm:$0xf]
      %v3210 = vld [vmem:[%s2857 + $0x98] sm:$0xf]
      %v3211 = vld [vmem:[%s2857 + $0x9c] sm:$0x1]
      %v3213 = vshrl.u32 %v3172, 16
      %v3215 = vrot.slane %v3213, 4
      %v3216 = vshll.u32 %v3172, 16
      %v3218 = vrot.slane %v3216, 5
      %v3219 = vor.u32 %v3215, %v3218
      %v3220 = vrot.slane %v3219, 4
      %v3222 = vshll.u32 %v3173, 16
      %v3224 = vrot.slane %v3222, 5
      %v3225 = vsel %vm313, %v3220, %v3224
      %v3226 = vshrl.u32 %v3173, 16
      %v3228 = vrot.slane %v3226, 4
      %v3229 = vor.u32 %v3228, %v3224
      %v3230 = vrot.slane %v3229, 4
      %v3232 = vshll.u32 %v3174, 16
      %v3234 = vrot.slane %v3232, 5
      %v3235 = vsel %vm313, %v3230, %v3234
      %v3236 = vshrl.u32 %v3174, 16
      %v3238 = vrot.slane %v3236, 4
      %v3239 = vor.u32 %v3238, %v3234
      %v3240 = vrot.slane %v3239, 4
      %v3242 = vshll.u32 %v3175, 16
      %v3244 = vrot.slane %v3242, 5
      %v3245 = vsel %vm313, %v3240, %v3244
      %v3246 = vshrl.u32 %v3175, 16
      %v3248 = vrot.slane %v3246, 4
      %v3249 = vor.u32 %v3248, %v3244
      %v3250 = vrot.slane %v3249, 4
      %v3252 = vshll.u32 %v3176, 16
      %v3254 = vrot.slane %v3252, 5
      %v3255 = vsel %vm313, %v3250, %v3254
      %v3257 = vshrl.u32 %v3177, 16
      %v3259 = vrot.slane %v3257, 4
      %v3260 = vshll.u32 %v3177, 16
      %v3262 = vrot.slane %v3260, 5
      %v3263 = vor.u32 %v3259, %v3262
      %v3264 = vrot.slane %v3263, 4
      %v3266 = vshll.u32 %v3178, 16
      %v3268 = vrot.slane %v3266, 5
      %v3269 = vsel %vm313, %v3264, %v3268
      %v3270 = vshrl.u32 %v3178, 16
      %v3272 = vrot.slane %v3270, 4
      %v3273 = vor.u32 %v3272, %v3268
      %v3274 = vrot.slane %v3273, 4
      %v3276 = vshll.u32 %v3179, 16
      %v3278 = vrot.slane %v3276, 5
      %v3279 = vsel %vm313, %v3274, %v3278
      %v3280 = vshrl.u32 %v3179, 16
      %v3282 = vrot.slane %v3280, 4
      %v3283 = vor.u32 %v3282, %v3278
      %v3284 = vrot.slane %v3283, 4
      %v3286 = vshll.u32 %v3180, 16
      %v3288 = vrot.slane %v3286, 5
      %v3289 = vsel %vm313, %v3284, %v3288
      %v3290 = vshrl.u32 %v3180, 16
      %v3292 = vrot.slane %v3290, 4
      %v3293 = vor.u32 %v3292, %v3288
      %v3294 = vrot.slane %v3293, 4
      %v3296 = vshll.u32 %v3181, 16
      %v3298 = vrot.slane %v3296, 5
      %v3299 = vsel %vm313, %v3294, %v3298
      %v3301 = vshrl.u32 %v3182, 16
      %v3303 = vrot.slane %v3301, 4
      %v3304 = vshll.u32 %v3182, 16
      %v3306 = vrot.slane %v3304, 5
      %v3307 = vor.u32 %v3303, %v3306
      %v3308 = vrot.slane %v3307, 4
      %v3310 = vshll.u32 %v3183, 16
      %v3312 = vrot.slane %v3310, 5
      %v3313 = vsel %vm313, %v3308, %v3312
      %v3314 = vshrl.u32 %v3183, 16
      %v3316 = vrot.slane %v3314, 4
      %v3317 = vor.u32 %v3316, %v3312
      %v3318 = vrot.slane %v3317, 4
      %v3320 = vshll.u32 %v3184, 16
      %v3322 = vrot.slane %v3320, 5
      %v3323 = vsel %vm313, %v3318, %v3322
      %v3324 = vshrl.u32 %v3184, 16
      %v3326 = vrot.slane %v3324, 4
      %v3327 = vor.u32 %v3326, %v3322
      %v3328 = vrot.slane %v3327, 4
      %v3330 = vshll.u32 %v3185, 16
      %v3332 = vrot.slane %v3330, 5
      %v3333 = vsel %vm313, %v3328, %v3332
      %v3334 = vshrl.u32 %v3185, 16
      %v3336 = vrot.slane %v3334, 4
      %v3337 = vor.u32 %v3336, %v3332
      %v3338 = vrot.slane %v3337, 4
      %v3340 = vshll.u32 %v3186, 16
      %v3342 = vrot.slane %v3340, 5
      %v3343 = vsel %vm313, %v3338, %v3342
      %v3345 = vshrl.u32 %v3187, 16
      %v3347 = vrot.slane %v3345, 4
      %v3348 = vshll.u32 %v3187, 16
      %v3350 = vrot.slane %v3348, 5
      %v3351 = vor.u32 %v3347, %v3350
      %v3352 = vrot.slane %v3351, 4
      %v3354 = vshll.u32 %v3188, 16
      %v3356 = vrot.slane %v3354, 5
      %v3357 = vsel %vm313, %v3352, %v3356
      %v3358 = vshrl.u32 %v3188, 16
      %v3360 = vrot.slane %v3358, 4
      %v3361 = vor.u32 %v3360, %v3356
      %v3362 = vrot.slane %v3361, 4
      %v3364 = vshll.u32 %v3189, 16
      %v3366 = vrot.slane %v3364, 5
      %v3367 = vsel %vm313, %v3362, %v3366
      %v3368 = vshrl.u32 %v3189, 16
      %v3370 = vrot.slane %v3368, 4
      %v3371 = vor.u32 %v3370, %v3366
      %v3372 = vrot.slane %v3371, 4
      %v3374 = vshll.u32 %v3190, 16
      %v3376 = vrot.slane %v3374, 5
      %v3377 = vsel %vm313, %v3372, %v3376
      %v3378 = vshrl.u32 %v3190, 16
      %v3380 = vrot.slane %v3378, 4
      %v3381 = vor.u32 %v3380, %v3376
      %v3382 = vrot.slane %v3381, 4
      %v3384 = vshll.u32 %v3191, 16
      %v3386 = vrot.slane %v3384, 5
      %v3387 = vsel %vm313, %v3382, %v3386
      %v3389 = vshrl.u32 %v3192, 16
      %v3391 = vrot.slane %v3389, 4
      %v3392 = vshll.u32 %v3192, 16
      %v3394 = vrot.slane %v3392, 5
      %v3395 = vor.u32 %v3391, %v3394
      %v3396 = vrot.slane %v3395, 4
      %v3398 = vshll.u32 %v3193, 16
      %v3400 = vrot.slane %v3398, 5
      %v3401 = vsel %vm313, %v3396, %v3400
      %v3402 = vshrl.u32 %v3193, 16
      %v3404 = vrot.slane %v3402, 4
      %v3405 = vor.u32 %v3404, %v3400
      %v3406 = vrot.slane %v3405, 4
      %v3408 = vshll.u32 %v3194, 16
      %v3410 = vrot.slane %v3408, 5
      %v3411 = vsel %vm313, %v3406, %v3410
      %v3412 = vshrl.u32 %v3194, 16
      %v3414 = vrot.slane %v3412, 4
      %v3415 = vor.u32 %v3414, %v3410
      %v3416 = vrot.slane %v3415, 4
      %v3418 = vshll.u32 %v3195, 16
      %v3420 = vrot.slane %v3418, 5
      %v3421 = vsel %vm313, %v3416, %v3420
      %v3422 = vshrl.u32 %v3195, 16
      %v3424 = vrot.slane %v3422, 4
      %v3425 = vor.u32 %v3424, %v3420
      %v3426 = vrot.slane %v3425, 4
      %v3428 = vshll.u32 %v3196, 16
      %v3430 = vrot.slane %v3428, 5
      %v3431 = vsel %vm313, %v3426, %v3430
      %v3433 = vshrl.u32 %v3197, 16
      %v3435 = vrot.slane %v3433, 4
      %v3436 = vshll.u32 %v3197, 16
      %v3438 = vrot.slane %v3436, 5
      %v3439 = vor.u32 %v3435, %v3438
      %v3440 = vrot.slane %v3439, 4
      %v3442 = vshll.u32 %v3198, 16
      %v3444 = vrot.slane %v3442, 5
      %v3445 = vsel %vm313, %v3440, %v3444
      %v3446 = vshrl.u32 %v3198, 16
      %v3448 = vrot.slane %v3446, 4
      %v3449 = vor.u32 %v3448, %v3444
      %v3450 = vrot.slane %v3449, 4
      %v3452 = vshll.u32 %v3199, 16
      %v3454 = vrot.slane %v3452, 5
      %v3455 = vsel %vm313, %v3450, %v3454
      %v3456 = vshrl.u32 %v3199, 16
      %v3458 = vrot.slane %v3456, 4
      %v3459 = vor.u32 %v3458, %v3454
      %v3460 = vrot.slane %v3459, 4
      %v3462 = vshll.u32 %v3200, 16
      %v3464 = vrot.slane %v3462, 5
      %v3465 = vsel %vm313, %v3460, %v3464
      %v3466 = vshrl.u32 %v3200, 16
      %v3468 = vrot.slane %v3466, 4
      %v3469 = vor.u32 %v3468, %v3464
      %v3470 = vrot.slane %v3469, 4
      %v3472 = vshll.u32 %v3201, 16
      %v3474 = vrot.slane %v3472, 5
      %v3475 = vsel %vm313, %v3470, %v3474
      %v3477 = vshrl.u32 %v3202, 16
      %v3479 = vrot.slane %v3477, 4
      %v3480 = vshll.u32 %v3202, 16
      %v3482 = vrot.slane %v3480, 5
      %v3483 = vor.u32 %v3479, %v3482
      %v3484 = vrot.slane %v3483, 4
      %v3486 = vshll.u32 %v3203, 16
      %v3488 = vrot.slane %v3486, 5
      %v3489 = vsel %vm313, %v3484, %v3488
      %v3490 = vshrl.u32 %v3203, 16
      %v3492 = vrot.slane %v3490, 4
      %v3493 = vor.u32 %v3492, %v3488
      %v3494 = vrot.slane %v3493, 4
      %v3496 = vshll.u32 %v3204, 16
      %v3498 = vrot.slane %v3496, 5
      %v3499 = vsel %vm313, %v3494, %v3498
      %v3500 = vshrl.u32 %v3204, 16
      %v3502 = vrot.slane %v3500, 4
      %v3503 = vor.u32 %v3502, %v3498
      %v3504 = vrot.slane %v3503, 4
      %v3506 = vshll.u32 %v3205, 16
      %v3508 = vrot.slane %v3506, 5
      %v3509 = vsel %vm313, %v3504, %v3508
      %v3510 = vshrl.u32 %v3205, 16
      %v3512 = vrot.slane %v3510, 4
      %v3513 = vor.u32 %v3512, %v3508
      %v3514 = vrot.slane %v3513, 4
      %v3516 = vshll.u32 %v3206, 16
      %v3518 = vrot.slane %v3516, 5
      %v3519 = vsel %vm313, %v3514, %v3518
      %v3521 = vshrl.u32 %v3207, 16
      %v3523 = vrot.slane %v3521, 4
      %v3524 = vshll.u32 %v3207, 16
      %v3526 = vrot.slane %v3524, 5
      %v3527 = vor.u32 %v3523, %v3526
      %v3528 = vrot.slane %v3527, 4
      %v3530 = vshll.u32 %v3208, 16
      %v3532 = vrot.slane %v3530, 5
      %v3533 = vsel %vm313, %v3528, %v3532
      %v3534 = vshrl.u32 %v3208, 16
      %v3536 = vrot.slane %v3534, 4
      %v3537 = vor.u32 %v3536, %v3532
      %v3538 = vrot.slane %v3537, 4
      %v3540 = vshll.u32 %v3209, 16
      %v3542 = vrot.slane %v3540, 5
      %v3543 = vsel %vm313, %v3538, %v3542
      %v3544 = vshrl.u32 %v3209, 16
      %v3546 = vrot.slane %v3544, 4
      %v3547 = vor.u32 %v3546, %v3542
      %v3548 = vrot.slane %v3547, 4
      %v3550 = vshll.u32 %v3210, 16
      %v3552 = vrot.slane %v3550, 5
      %v3553 = vsel %vm313, %v3548, %v3552
      %v3554 = vshrl.u32 %v3210, 16
      %v3556 = vrot.slane %v3554, 4
      %v3557 = vor.u32 %v3556, %v3552
      %v3558 = vrot.slane %v3557, 4
      %v3560 = vshll.u32 %v3211, 16
      %v3562 = vrot.slane %v3560, 5
      %v3563 = vsel %vm313, %v3558, %v3562
      %s3564 = scalar_lea.vmem %s1, 448
      %v3565 = vld [vmem:[%s3564] sm:$0xf]
      %v3566 = vld [vmem:[%s3564 + $0x4] sm:$0xf]
      %v3567 = vld [vmem:[%s3564 + $0x8] sm:$0xf]
      %v3568 = vld [vmem:[%s3564 + $0xc] sm:$0xf]
      %v3569 = vld [vmem:[%s3564 + $0x10] sm:$0xf]
      %v3570 = vld [vmem:[%s3564 + $0x14] sm:$0xf]
      %v3571 = vld [vmem:[%s3564 + $0x18] sm:$0xf]
      %v3572 = vld [vmem:[%s3564 + $0x1c] sm:$0xf]
      %v3573 = vld [vmem:[%s3564 + $0x20] sm:$0xf]
      %v3574 = vld [vmem:[%s3564 + $0x24] sm:$0xf]
      %v3575 = vld [vmem:[%s3564 + $0x28] sm:$0xf]
      %v3576 = vld [vmem:[%s3564 + $0x2c] sm:$0xf]
      %v3577 = vld [vmem:[%s3564 + $0x30] sm:$0xf]
      %v3578 = vld [vmem:[%s3564 + $0x34] sm:$0xf]
      %v3579 = vld [vmem:[%s3564 + $0x38] sm:$0xf]
      %v3580 = vld [vmem:[%s3564 + $0x3c] sm:$0xf]
      %v3581 = vunpack.c.l.b16 %v3225
      %v3582 = vunpack.c.l.b16 %v3235
      %v3583 = vunpack.c.l.b16 %v3245
      %v3584 = vunpack.c.l.b16 %v3255
      %v3585 = vunpack.c.l.b16 %v3269
      %v3586 = vunpack.c.l.b16 %v3279
      %v3587 = vunpack.c.l.b16 %v3289
      %v3588 = vunpack.c.l.b16 %v3299
      %v3589 = vunpack.c.l.b16 %v3313
      %v3590 = vunpack.c.l.b16 %v3323
      %v3591 = vunpack.c.l.b16 %v3333
      %v3592 = vunpack.c.l.b16 %v3343
      %v3593 = vunpack.c.l.b16 %v3357
      %v3594 = vunpack.c.l.b16 %v3367
      %v3595 = vunpack.c.l.b16 %v3377
      %v3596 = vunpack.c.l.b16 %v3387
      %v3597 = vunpack.c.l.b16 %v3401
      %v3598 = vunpack.c.l.b16 %v3411
      %v3599 = vunpack.c.l.b16 %v3421
      %v3600 = vunpack.c.l.b16 %v3431
      %v3601 = vunpack.c.l.b16 %v3445
      %v3602 = vunpack.c.l.b16 %v3455
      %v3603 = vunpack.c.l.b16 %v3465
      %v3604 = vunpack.c.l.b16 %v3475
      %v3605 = vunpack.c.l.b16 %v3489
      %v3606 = vunpack.c.l.b16 %v3499
      %v3607 = vunpack.c.l.b16 %v3509
      %v3608 = vunpack.c.l.b16 %v3519
      %v3609 = vunpack.c.l.b16 %v3533
      %v3610 = vunpack.c.l.b16 %v3543
      %v3611 = vunpack.c.l.b16 %v3553
      %v3612 = vunpack.c.l.b16 %v3563
      %v3613 = vpack.c.b16 %v3582, %v3581
      %v3614 = vpack.c.b16 %v3584, %v3583
      %v3615 = vpack.c.b16 %v3586, %v3585
      %v3616 = vpack.c.b16 %v3588, %v3587
      %v3617 = vpack.c.b16 %v3590, %v3589
      %v3618 = vpack.c.b16 %v3592, %v3591
      %v3619 = vpack.c.b16 %v3594, %v3593
      %v3620 = vpack.c.b16 %v3596, %v3595
      %v3621 = vpack.c.b16 %v3598, %v3597
      %v3622 = vpack.c.b16 %v3600, %v3599
      %v3623 = vpack.c.b16 %v3602, %v3601
      %v3624 = vpack.c.b16 %v3604, %v3603
      %v3625 = vpack.c.b16 %v3606, %v3605
      %v3626 = vpack.c.b16 %v3608, %v3607
      %v3627 = vpack.c.b16 %v3610, %v3609
      %v3628 = vpack.c.b16 %v3612, %v3611
      %v3661 = vunpack.c.l.b16 %v3565
      %v3662 = vunpack.c.l.b16 %v3566
      %v3663 = vunpack.c.l.b16 %v3567
      %v3664 = vunpack.c.l.b16 %v3568
      %v3665 = vunpack.c.l.b16 %v3569
      %v3666 = vunpack.c.l.b16 %v3570
      %v3667 = vunpack.c.l.b16 %v3571
      %v3668 = vunpack.c.l.b16 %v3572
      %v3669 = vunpack.c.l.b16 %v3573
      %v3670 = vunpack.c.l.b16 %v3574
      %v3671 = vunpack.c.l.b16 %v3575
      %v3672 = vunpack.c.l.b16 %v3576
      %v3673 = vunpack.c.l.b16 %v3577
      %v3674 = vunpack.c.l.b16 %v3578
      %v3675 = vunpack.c.l.b16 %v3579
      %v3676 = vunpack.c.l.b16 %v3580
      %v3677 = vpack.c.b16 %v3662, %v3661
      %v3678 = vpack.c.b16 %v3664, %v3663
      %v3679 = vpack.c.b16 %v3666, %v3665
      %v3680 = vpack.c.b16 %v3668, %v3667
      %v3681 = vpack.c.b16 %v3670, %v3669
      %v3682 = vpack.c.b16 %v3672, %v3671
      %v3683 = vpack.c.b16 %v3674, %v3673
      %v3684 = vpack.c.b16 %v3676, %v3675
      %3693 = vmatpush.bf16.msra.mxu0 %v3684
      %3694 = vmatpush.bf16.msra.mxu0 %v3683
      %3695 = vmatpush.bf16.msra.mxu0 %v3682
      %3696 = vmatpush.bf16.msra.mxu0 %v3681
      %3697 = vmatpush.bf16.msra.mxu0 %v3680
      %3698 = vmatpush.bf16.msra.mxu0 %v3679
      %3699 = vmatpush.bf16.msra.mxu0 %v3678
      %3700 = vmatpush.bf16.msra.mxu0 %v3677
      %3701 = vmatmul.bf16.gmra.mxu0 %v3613
      %v3702 = vpop.f32.mrf.mxu0
      %v3703 = vadd.f32 0.0, %v3702
      %v3704 = vpop.f32.mrf.mxu0
      %v3705 = vadd.f32 0.0, %v3704
      %3706 = vmatmul.bf16.gmra.mxu0 %v3614
      %v3707 = vpop.f32.mrf.mxu0
      %v3708 = vadd.f32 0.0, %v3707
      %v3709 = vpop.f32.mrf.mxu0
      %v3710 = vadd.f32 0.0, %v3709
      %3711 = vmatmul.bf16.gmra.mxu0 %v3615
      %v3712 = vpop.f32.mrf.mxu0
      %v3713 = vadd.f32 0.0, %v3712
      %v3714 = vpop.f32.mrf.mxu0
      %v3715 = vadd.f32 0.0, %v3714
      %3716 = vmatmul.bf16.gmra.mxu0 %v3616
      %v3717 = vpop.f32.mrf.mxu0
      %v3718 = vadd.f32 0.0, %v3717
      %v3719 = vpop.f32.mrf.mxu0
      %v3720 = vadd.f32 0.0, %v3719
      %3721 = vmatmul.bf16.gmra.mxu0 %v3617
      %v3722 = vpop.f32.mrf.mxu0
      %v3723 = vadd.f32 0.0, %v3722
      %v3724 = vpop.f32.mrf.mxu0
      %v3725 = vadd.f32 0.0, %v3724
      %3726 = vmatmul.bf16.gmra.mxu0 %v3618
      %v3727 = vpop.f32.mrf.mxu0
      %v3728 = vadd.f32 0.0, %v3727
      %v3729 = vpop.f32.mrf.mxu0
      %v3730 = vadd.f32 0.0, %v3729
      %3731 = vmatmul.bf16.gmra.mxu0 %v3619
      %v3732 = vpop.f32.mrf.mxu0
      %v3733 = vadd.f32 0.0, %v3732
      %v3734 = vpop.f32.mrf.mxu0
      %v3735 = vadd.f32 0.0, %v3734
      %3736 = vmatmul.bf16.gmra.mxu0 %v3620
      %v3737 = vpop.f32.mrf.mxu0
      %v3738 = vadd.f32 0.0, %v3737
      %v3739 = vpop.f32.mrf.mxu0
      %v3740 = vadd.f32 0.0, %v3739
      %3741 = vmatmul.bf16.gmra.mxu0 %v3621
      %v3742 = vpop.f32.mrf.mxu0
      %v3743 = vadd.f32 0.0, %v3742
      %v3744 = vpop.f32.mrf.mxu0
      %v3745 = vadd.f32 0.0, %v3744
      %3746 = vmatmul.bf16.gmra.mxu0 %v3622
      %v3747 = vpop.f32.mrf.mxu0
      %v3748 = vadd.f32 0.0, %v3747
      %v3749 = vpop.f32.mrf.mxu0
      %v3750 = vadd.f32 0.0, %v3749
      %3751 = vmatmul.bf16.gmra.mxu0 %v3623
      %v3752 = vpop.f32.mrf.mxu0
      %v3753 = vadd.f32 0.0, %v3752
      %v3754 = vpop.f32.mrf.mxu0
      %v3755 = vadd.f32 0.0, %v3754
      %3756 = vmatmul.bf16.gmra.mxu0 %v3624
      %v3757 = vpop.f32.mrf.mxu0
      %v3758 = vadd.f32 0.0, %v3757
      %v3759 = vpop.f32.mrf.mxu0
      %v3760 = vadd.f32 0.0, %v3759
      %3761 = vmatmul.bf16.gmra.mxu0 %v3625
      %v3762 = vpop.f32.mrf.mxu0
      %v3763 = vadd.f32 0.0, %v3762
      %v3764 = vpop.f32.mrf.mxu0
      %v3765 = vadd.f32 0.0, %v3764
      %3766 = vmatmul.bf16.gmra.mxu0 %v3626
      %v3767 = vpop.f32.mrf.mxu0
      %v3768 = vadd.f32 0.0, %v3767
      %v3769 = vpop.f32.mrf.mxu0
      %v3770 = vadd.f32 0.0, %v3769
      %3771 = vmatmul.bf16.gmra.mxu0 %v3627
      %v3772 = vpop.f32.mrf.mxu0
      %v3773 = vadd.f32 0.0, %v3772
      %v3774 = vpop.f32.mrf.mxu0
      %v3775 = vadd.f32 0.0, %v3774
      %3776 = vmatmul.bf16.gmra.mxu0 %v3628
      %v3777 = vpop.f32.mrf.mxu0
      %v3778 = vadd.f32 0.0, %v3777
      %v3779 = vpop.f32.mrf.mxu0
      %v3780 = vadd.f32 0.0, %v3779
      %3781 = vdwg.mxu0
      %v3782 = vadd.f32 %v3140, %v3703
      %v3783 = vadd.f32 %v3141, %v3705
      %v3784 = vadd.f32 %v3142, %v3708
      %v3785 = vadd.f32 %v3143, %v3710
      %v3786 = vadd.f32 %v3144, %v3713
      %v3787 = vadd.f32 %v3145, %v3715
      %v3788 = vadd.f32 %v3146, %v3718
      %v3789 = vadd.f32 %v3147, %v3720
      %v3790 = vadd.f32 %v3148, %v3723
      %v3791 = vadd.f32 %v3149, %v3725
      %v3792 = vadd.f32 %v3150, %v3728
      %v3793 = vadd.f32 %v3151, %v3730
      %v3794 = vadd.f32 %v3152, %v3733
      %v3795 = vadd.f32 %v3153, %v3735
      %v3796 = vadd.f32 %v3154, %v3738
      %v3797 = vadd.f32 %v3155, %v3740
      %v3798 = vadd.f32 %v3156, %v3743
      %v3799 = vadd.f32 %v3157, %v3745
      %v3800 = vadd.f32 %v3158, %v3748
      %v3801 = vadd.f32 %v3159, %v3750
      %v3802 = vadd.f32 %v3160, %v3753
      %v3803 = vadd.f32 %v3161, %v3755
      %v3804 = vadd.f32 %v3162, %v3758
      %v3805 = vadd.f32 %v3163, %v3760
      %v3806 = vadd.f32 %v3164, %v3763
      %v3807 = vadd.f32 %v3165, %v3765
      %v3808 = vadd.f32 %v3166, %v3768
      %v3809 = vadd.f32 %v3167, %v3770
      %v3810 = vadd.f32 %v3168, %v3773
      %v3811 = vadd.f32 %v3169, %v3775
      %v3812 = vadd.f32 %v3170, %v3778
      %v3813 = vadd.f32 %v3171, %v3780
      %v3814 = vld [vmem:[%s2857] sm:$0xe]
      %v3815 = vld [vmem:[%s2857 + $0x14] sm:$0xe]
      %v3816 = vld [vmem:[%s2857 + $0x28] sm:$0xe]
      %v3817 = vld [vmem:[%s2857 + $0x3c] sm:$0xe]
      %v3818 = vld [vmem:[%s2857 + $0x50] sm:$0xe]
      %v3819 = vld [vmem:[%s2857 + $0x64] sm:$0xe]
      %v3820 = vld [vmem:[%s2857 + $0x78] sm:$0xe]
      %v3821 = vld [vmem:[%s2857 + $0x8c] sm:$0xe]
      %v3862 = vrot.slane %v3814, 5
      %v3863 = vrot.slane %v3862, 4
      %v3864 = vrot.slane %v3173, 5
      %v3865 = vsel %vm1143, %v3863, %v3864
      %v3866 = vrot.slane %v3864, 4
      %v3867 = vrot.slane %v3174, 5
      %v3868 = vsel %vm1143, %v3866, %v3867
      %v3869 = vrot.slane %v3867, 4
      %v3870 = vrot.slane %v3175, 5
      %v3871 = vsel %vm1143, %v3869, %v3870
      %v3872 = vrot.slane %v3870, 4
      %v3873 = vrot.slane %v3176, 5
      %v3874 = vsel %vm1143, %v3872, %v3873
      %v3875 = vrot.slane %v3815, 5
      %v3876 = vrot.slane %v3875, 4
      %v3877 = vrot.slane %v3178, 5
      %v3878 = vsel %vm1143, %v3876, %v3877
      %v3879 = vrot.slane %v3877, 4
      %v3880 = vrot.slane %v3179, 5
      %v3881 = vsel %vm1143, %v3879, %v3880
      %v3882 = vrot.slane %v3880, 4
      %v3883 = vrot.slane %v3180, 5
      %v3884 = vsel %vm1143, %v3882, %v3883
      %v3885 = vrot.slane %v3883, 4
      %v3886 = vrot.slane %v3181, 5
      %v3887 = vsel %vm1143, %v3885, %v3886
      %v3888 = vrot.slane %v3816, 5
      %v3889 = vrot.slane %v3888, 4
      %v3890 = vrot.slane %v3183, 5
      %v3891 = vsel %vm1143, %v3889, %v3890
      %v3892 = vrot.slane %v3890, 4
      %v3893 = vrot.slane %v3184, 5
      %v3894 = vsel %vm1143, %v3892, %v3893
      %v3895 = vrot.slane %v3893, 4
      %v3896 = vrot.slane %v3185, 5
      %v3897 = vsel %vm1143, %v3895, %v3896
      %v3898 = vrot.slane %v3896, 4
      %v3899 = vrot.slane %v3186, 5
      %v3900 = vsel %vm1143, %v3898, %v3899
      %v3901 = vrot.slane %v3817, 5
      %v3902 = vrot.slane %v3901, 4
      %v3903 = vrot.slane %v3188, 5
      %v3904 = vsel %vm1143, %v3902, %v3903
      %v3905 = vrot.slane %v3903, 4
      %v3906 = vrot.slane %v3189, 5
      %v3907 = vsel %vm1143, %v3905, %v3906
      %v3908 = vrot.slane %v3906, 4
      %v3909 = vrot.slane %v3190, 5
      %v3910 = vsel %vm1143, %v3908, %v3909
      %v3911 = vrot.slane %v3909, 4
      %v3912 = vrot.slane %v3191, 5
      %v3913 = vsel %vm1143, %v3911, %v3912
      %v3914 = vrot.slane %v3818, 5
      %v3915 = vrot.slane %v3914, 4
      %v3916 = vrot.slane %v3193, 5
      %v3917 = vsel %vm1143, %v3915, %v3916
      %v3918 = vrot.slane %v3916, 4
      %v3919 = vrot.slane %v3194, 5
      %v3920 = vsel %vm1143, %v3918, %v3919
      %v3921 = vrot.slane %v3919, 4
      %v3922 = vrot.slane %v3195, 5
      %v3923 = vsel %vm1143, %v3921, %v3922
      %v3924 = vrot.slane %v3922, 4
      %v3925 = vrot.slane %v3196, 5
      %v3926 = vsel %vm1143, %v3924, %v3925
      %v3927 = vrot.slane %v3819, 5
      %v3928 = vrot.slane %v3927, 4
      %v3929 = vrot.slane %v3198, 5
      %v3930 = vsel %vm1143, %v3928, %v3929
      %v3931 = vrot.slane %v3929, 4
      %v3932 = vrot.slane %v3199, 5
      %v3933 = vsel %vm1143, %v3931, %v3932
      %v3934 = vrot.slane %v3932, 4
      %v3935 = vrot.slane %v3200, 5
      %v3936 = vsel %vm1143, %v3934, %v3935
      %v3937 = vrot.slane %v3935, 4
      %v3938 = vrot.slane %v3201, 5
      %v3939 = vsel %vm1143, %v3937, %v3938
      %v3940 = vrot.slane %v3820, 5
      %v3941 = vrot.slane %v3940, 4
      %v3942 = vrot.slane %v3203, 5
      %v3943 = vsel %vm1143, %v3941, %v3942
      %v3944 = vrot.slane %v3942, 4
      %v3945 = vrot.slane %v3204, 5
      %v3946 = vsel %vm1143, %v3944, %v3945
      %v3947 = vrot.slane %v3945, 4
      %v3948 = vrot.slane %v3205, 5
      %v3949 = vsel %vm1143, %v3947, %v3948
      %v3950 = vrot.slane %v3948, 4
      %v3951 = vrot.slane %v3206, 5
      %v3952 = vsel %vm1143, %v3950, %v3951
      %v3953 = vrot.slane %v3821, 5
      %v3954 = vrot.slane %v3953, 4
      %v3955 = vrot.slane %v3208, 5
      %v3956 = vsel %vm1143, %v3954, %v3955
      %v3957 = vrot.slane %v3955, 4
      %v3958 = vrot.slane %v3209, 5
      %v3959 = vsel %vm1143, %v3957, %v3958
      %v3960 = vrot.slane %v3958, 4
      %v3961 = vrot.slane %v3210, 5
      %v3962 = vsel %vm1143, %v3960, %v3961
      %v3963 = vrot.slane %v3961, 4
      %v3964 = vrot.slane %v3211, 5
      %v3965 = vsel %vm1143, %v3963, %v3964
      %s3966 = scalar_lea.vmem %s1, 512
      %v3967 = vld [vmem:[%s3966] sm:$0xf]
      %v3968 = vld [vmem:[%s3966 + $0x4] sm:$0xf]
      %v3969 = vld [vmem:[%s3966 + $0x8] sm:$0xf]
      %v3970 = vld [vmem:[%s3966 + $0xc] sm:$0xf]
      %v3971 = vld [vmem:[%s3966 + $0x10] sm:$0xf]
      %v3972 = vld [vmem:[%s3966 + $0x14] sm:$0xf]
      %v3973 = vld [vmem:[%s3966 + $0x18] sm:$0xf]
      %v3974 = vld [vmem:[%s3966 + $0x1c] sm:$0xf]
      %v3975 = vld [vmem:[%s3966 + $0x20] sm:$0xf]
      %v3976 = vld [vmem:[%s3966 + $0x24] sm:$0xf]
      %v3977 = vld [vmem:[%s3966 + $0x28] sm:$0xf]
      %v3978 = vld [vmem:[%s3966 + $0x2c] sm:$0xf]
      %v3979 = vld [vmem:[%s3966 + $0x30] sm:$0xf]
      %v3980 = vld [vmem:[%s3966 + $0x34] sm:$0xf]
      %v3981 = vld [vmem:[%s3966 + $0x38] sm:$0xf]
      %v3982 = vld [vmem:[%s3966 + $0x3c] sm:$0xf]
      %v3983 = vunpack.c.l.b16 %v3865
      %v3984 = vunpack.c.l.b16 %v3868
      %v3985 = vunpack.c.l.b16 %v3871
      %v3986 = vunpack.c.l.b16 %v3874
      %v3987 = vunpack.c.l.b16 %v3878
      %v3988 = vunpack.c.l.b16 %v3881
      %v3989 = vunpack.c.l.b16 %v3884
      %v3990 = vunpack.c.l.b16 %v3887
      %v3991 = vunpack.c.l.b16 %v3891
      %v3992 = vunpack.c.l.b16 %v3894
      %v3993 = vunpack.c.l.b16 %v3897
      %v3994 = vunpack.c.l.b16 %v3900
      %v3995 = vunpack.c.l.b16 %v3904
      %v3996 = vunpack.c.l.b16 %v3907
      %v3997 = vunpack.c.l.b16 %v3910
      %v3998 = vunpack.c.l.b16 %v3913
      %v3999 = vunpack.c.l.b16 %v3917
      %v4000 = vunpack.c.l.b16 %v3920
      %v4001 = vunpack.c.l.b16 %v3923
      %v4002 = vunpack.c.l.b16 %v3926
      %v4003 = vunpack.c.l.b16 %v3930
      %v4004 = vunpack.c.l.b16 %v3933
      %v4005 = vunpack.c.l.b16 %v3936
      %v4006 = vunpack.c.l.b16 %v3939
      %v4007 = vunpack.c.l.b16 %v3943
      %v4008 = vunpack.c.l.b16 %v3946
      %v4009 = vunpack.c.l.b16 %v3949
      %v4010 = vunpack.c.l.b16 %v3952
      %v4011 = vunpack.c.l.b16 %v3956
      %v4012 = vunpack.c.l.b16 %v3959
      %v4013 = vunpack.c.l.b16 %v3962
      %v4014 = vunpack.c.l.b16 %v3965
      %v4015 = vpack.c.b16 %v3984, %v3983
      %v4016 = vpack.c.b16 %v3986, %v3985
      %v4017 = vpack.c.b16 %v3988, %v3987
      %v4018 = vpack.c.b16 %v3990, %v3989
      %v4019 = vpack.c.b16 %v3992, %v3991
      %v4020 = vpack.c.b16 %v3994, %v3993
      %v4021 = vpack.c.b16 %v3996, %v3995
      %v4022 = vpack.c.b16 %v3998, %v3997
      %v4023 = vpack.c.b16 %v4000, %v3999
      %v4024 = vpack.c.b16 %v4002, %v4001
      %v4025 = vpack.c.b16 %v4004, %v4003
      %v4026 = vpack.c.b16 %v4006, %v4005
      %v4027 = vpack.c.b16 %v4008, %v4007
      %v4028 = vpack.c.b16 %v4010, %v4009
      %v4029 = vpack.c.b16 %v4012, %v4011
      %v4030 = vpack.c.b16 %v4014, %v4013
      %v4063 = vunpack.c.l.b16 %v3967
      %v4064 = vunpack.c.l.b16 %v3968
      %v4065 = vunpack.c.l.b16 %v3969
      %v4066 = vunpack.c.l.b16 %v3970
      %v4067 = vunpack.c.l.b16 %v3971
      %v4068 = vunpack.c.l.b16 %v3972
      %v4069 = vunpack.c.l.b16 %v3973
      %v4070 = vunpack.c.l.b16 %v3974
      %v4071 = vunpack.c.l.b16 %v3975
      %v4072 = vunpack.c.l.b16 %v3976
      %v4073 = vunpack.c.l.b16 %v3977
      %v4074 = vunpack.c.l.b16 %v3978
      %v4075 = vunpack.c.l.b16 %v3979
      %v4076 = vunpack.c.l.b16 %v3980
      %v4077 = vunpack.c.l.b16 %v3981
      %v4078 = vunpack.c.l.b16 %v3982
      %v4079 = vpack.c.b16 %v4064, %v4063
      %v4080 = vpack.c.b16 %v4066, %v4065
      %v4081 = vpack.c.b16 %v4068, %v4067
      %v4082 = vpack.c.b16 %v4070, %v4069
      %v4083 = vpack.c.b16 %v4072, %v4071
      %v4084 = vpack.c.b16 %v4074, %v4073
      %v4085 = vpack.c.b16 %v4076, %v4075
      %v4086 = vpack.c.b16 %v4078, %v4077
      %4095 = vmatpush.bf16.msra.mxu0 %v4086
      %4096 = vmatpush.bf16.msra.mxu0 %v4085
      %4097 = vmatpush.bf16.msra.mxu0 %v4084
      %4098 = vmatpush.bf16.msra.mxu0 %v4083
      %4099 = vmatpush.bf16.msra.mxu0 %v4082
      %4100 = vmatpush.bf16.msra.mxu0 %v4081
      %4101 = vmatpush.bf16.msra.mxu0 %v4080
      %4102 = vmatpush.bf16.msra.mxu0 %v4079
      %4103 = vmatmul.bf16.gmra.mxu0 %v4015
      %v4104 = vpop.f32.mrf.mxu0
      %v4105 = vadd.f32 0.0, %v4104
      %v4106 = vpop.f32.mrf.mxu0
      %v4107 = vadd.f32 0.0, %v4106
      %4108 = vmatmul.bf16.gmra.mxu0 %v4016
      %v4109 = vpop.f32.mrf.mxu0
      %v4110 = vadd.f32 0.0, %v4109
      %v4111 = vpop.f32.mrf.mxu0
      %v4112 = vadd.f32 0.0, %v4111
      %4113 = vmatmul.bf16.gmra.mxu0 %v4017
      %v4114 = vpop.f32.mrf.mxu0
      %v4115 = vadd.f32 0.0, %v4114
      %v4116 = vpop.f32.mrf.mxu0
      %v4117 = vadd.f32 0.0, %v4116
      %4118 = vmatmul.bf16.gmra.mxu0 %v4018
      %v4119 = vpop.f32.mrf.mxu0
      %v4120 = vadd.f32 0.0, %v4119
      %v4121 = vpop.f32.mrf.mxu0
      %v4122 = vadd.f32 0.0, %v4121
      %4123 = vmatmul.bf16.gmra.mxu0 %v4019
      %v4124 = vpop.f32.mrf.mxu0
      %v4125 = vadd.f32 0.0, %v4124
      %v4126 = vpop.f32.mrf.mxu0
      %v4127 = vadd.f32 0.0, %v4126
      %4128 = vmatmul.bf16.gmra.mxu0 %v4020
      %v4129 = vpop.f32.mrf.mxu0
      %v4130 = vadd.f32 0.0, %v4129
      %v4131 = vpop.f32.mrf.mxu0
      %v4132 = vadd.f32 0.0, %v4131
      %4133 = vmatmul.bf16.gmra.mxu0 %v4021
      %v4134 = vpop.f32.mrf.mxu0
      %v4135 = vadd.f32 0.0, %v4134
      %v4136 = vpop.f32.mrf.mxu0
      %v4137 = vadd.f32 0.0, %v4136
      %4138 = vmatmul.bf16.gmra.mxu0 %v4022
      %v4139 = vpop.f32.mrf.mxu0
      %v4140 = vadd.f32 0.0, %v4139
      %v4141 = vpop.f32.mrf.mxu0
      %v4142 = vadd.f32 0.0, %v4141
      %4143 = vmatmul.bf16.gmra.mxu0 %v4023
      %v4144 = vpop.f32.mrf.mxu0
      %v4145 = vadd.f32 0.0, %v4144
      %v4146 = vpop.f32.mrf.mxu0
      %v4147 = vadd.f32 0.0, %v4146
      %4148 = vmatmul.bf16.gmra.mxu0 %v4024
      %v4149 = vpop.f32.mrf.mxu0
      %v4150 = vadd.f32 0.0, %v4149
      %v4151 = vpop.f32.mrf.mxu0
      %v4152 = vadd.f32 0.0, %v4151
      %4153 = vmatmul.bf16.gmra.mxu0 %v4025
      %v4154 = vpop.f32.mrf.mxu0
      %v4155 = vadd.f32 0.0, %v4154
      %v4156 = vpop.f32.mrf.mxu0
      %v4157 = vadd.f32 0.0, %v4156
      %4158 = vmatmul.bf16.gmra.mxu0 %v4026
      %v4159 = vpop.f32.mrf.mxu0
      %v4160 = vadd.f32 0.0, %v4159
      %v4161 = vpop.f32.mrf.mxu0
      %v4162 = vadd.f32 0.0, %v4161
      %4163 = vmatmul.bf16.gmra.mxu0 %v4027
      %v4164 = vpop.f32.mrf.mxu0
      %v4165 = vadd.f32 0.0, %v4164
      %v4166 = vpop.f32.mrf.mxu0
      %v4167 = vadd.f32 0.0, %v4166
      %4168 = vmatmul.bf16.gmra.mxu0 %v4028
      %v4169 = vpop.f32.mrf.mxu0
      %v4170 = vadd.f32 0.0, %v4169
      %v4171 = vpop.f32.mrf.mxu0
      %v4172 = vadd.f32 0.0, %v4171
      %4173 = vmatmul.bf16.gmra.mxu0 %v4029
      %v4174 = vpop.f32.mrf.mxu0
      %v4175 = vadd.f32 0.0, %v4174
      %v4176 = vpop.f32.mrf.mxu0
      %v4177 = vadd.f32 0.0, %v4176
      %4178 = vmatmul.bf16.gmra.mxu0 %v4030
      %v4179 = vpop.f32.mrf.mxu0
      %v4180 = vadd.f32 0.0, %v4179
      %v4181 = vpop.f32.mrf.mxu0
      %v4182 = vadd.f32 0.0, %v4181
      %4183 = vdwg.mxu0
      %v4184 = vadd.f32 %v3782, %v4105
      %v4185 = vadd.f32 %v3783, %v4107
      %v4186 = vadd.f32 %v3784, %v4110
      %v4187 = vadd.f32 %v3785, %v4112
      %v4188 = vadd.f32 %v3786, %v4115
      %v4189 = vadd.f32 %v3787, %v4117
      %v4190 = vadd.f32 %v3788, %v4120
      %v4191 = vadd.f32 %v3789, %v4122
      %v4192 = vadd.f32 %v3790, %v4125
      %v4193 = vadd.f32 %v3791, %v4127
      %v4194 = vadd.f32 %v3792, %v4130
      %v4195 = vadd.f32 %v3793, %v4132
      %v4196 = vadd.f32 %v3794, %v4135
      %v4197 = vadd.f32 %v3795, %v4137
      %v4198 = vadd.f32 %v3796, %v4140
      %v4199 = vadd.f32 %v3797, %v4142
      %v4200 = vadd.f32 %v3798, %v4145
      %v4201 = vadd.f32 %v3799, %v4147
      %v4202 = vadd.f32 %v3800, %v4150
      %v4203 = vadd.f32 %v3801, %v4152
      %v4204 = vadd.f32 %v3802, %v4155
      %v4205 = vadd.f32 %v3803, %v4157
      %v4206 = vadd.f32 %v3804, %v4160
      %v4207 = vadd.f32 %v3805, %v4162
      %v4208 = vadd.f32 %v3806, %v4165
      %v4209 = vadd.f32 %v3807, %v4167
      %v4210 = vadd.f32 %v3808, %v4170
      %v4211 = vadd.f32 %v3809, %v4172
      %v4212 = vadd.f32 %v3810, %v4175
      %v4213 = vadd.f32 %v3811, %v4177
      %v4214 = vadd.f32 %v3812, %v4180
      %v4215 = vadd.f32 %v3813, %v4182
      %v4216 = vld [vmem:[%s2] sm:$0x1]
      %v4218 = vperm.slane %v4216, 0
      %v4220 = vadd.f32 %v4184, %v4218
      %v4221 = vadd.f32 %v4185, %v4218
      %v4222 = vadd.f32 %v4186, %v4218
      %v4223 = vadd.f32 %v4187, %v4218
      %v4224 = vadd.f32 %v4188, %v4218
      %v4225 = vadd.f32 %v4189, %v4218
      %v4226 = vadd.f32 %v4190, %v4218
      %v4227 = vadd.f32 %v4191, %v4218
      %v4228 = vadd.f32 %v4192, %v4218
      %v4229 = vadd.f32 %v4193, %v4218
      %v4230 = vadd.f32 %v4194, %v4218
      %v4231 = vadd.f32 %v4195, %v4218
      %v4232 = vadd.f32 %v4196, %v4218
      %v4233 = vadd.f32 %v4197, %v4218
      %v4234 = vadd.f32 %v4198, %v4218
      %v4235 = vadd.f32 %v4199, %v4218
      %v4236 = vadd.f32 %v4200, %v4218
      %v4237 = vadd.f32 %v4201, %v4218
      %v4238 = vadd.f32 %v4202, %v4218
      %v4239 = vadd.f32 %v4203, %v4218
      %v4240 = vadd.f32 %v4204, %v4218
      %v4241 = vadd.f32 %v4205, %v4218
      %v4242 = vadd.f32 %v4206, %v4218
      %v4243 = vadd.f32 %v4207, %v4218
      %v4244 = vadd.f32 %v4208, %v4218
      %v4245 = vadd.f32 %v4209, %v4218
      %v4246 = vadd.f32 %v4210, %v4218
      %v4247 = vadd.f32 %v4211, %v4218
      %v4248 = vadd.f32 %v4212, %v4218
      %v4249 = vadd.f32 %v4213, %v4218
      %v4250 = vadd.f32 %v4214, %v4218
      %v4251 = vadd.f32 %v4215, %v4218
      %4252 = vst [vmem:[%s246] sm:$0xff] %v4220
      %4253 = vst [vmem:[%s246 + $0x8] sm:$0xff] %v4221
      %4254 = vst [vmem:[%s246 + $0x10] sm:$0xff] %v4222
      %4255 = vst [vmem:[%s246 + $0x18] sm:$0xff] %v4223
      %4256 = vst [vmem:[%s246 + $0x20] sm:$0xff] %v4224
      %4257 = vst [vmem:[%s246 + $0x28] sm:$0xff] %v4225
      %4258 = vst [vmem:[%s246 + $0x30] sm:$0xff] %v4226
      %4259 = vst [vmem:[%s246 + $0x38] sm:$0xff] %v4227
      %4260 = vst [vmem:[%s246 + $0x40] sm:$0xff] %v4228
      %4261 = vst [vmem:[%s246 + $0x48] sm:$0xff] %v4229
      %4262 = vst [vmem:[%s246 + $0x50] sm:$0xff] %v4230
      %4263 = vst [vmem:[%s246 + $0x58] sm:$0xff] %v4231
      %4264 = vst [vmem:[%s246 + $0x60] sm:$0xff] %v4232
      %4265 = vst [vmem:[%s246 + $0x68] sm:$0xff] %v4233
      %4266 = vst [vmem:[%s246 + $0x70] sm:$0xff] %v4234
      %4267 = vst [vmem:[%s246 + $0x78] sm:$0xff] %v4235
      %4268 = vst [vmem:[%s246 + $0x80] sm:$0xff] %v4236
      %4269 = vst [vmem:[%s246 + $0x88] sm:$0xff] %v4237
      %4270 = vst [vmem:[%s246 + $0x90] sm:$0xff] %v4238
      %4271 = vst [vmem:[%s246 + $0x98] sm:$0xff] %v4239
      %4272 = vst [vmem:[%s246 + $0xa0] sm:$0xff] %v4240
      %4273 = vst [vmem:[%s246 + $0xa8] sm:$0xff] %v4241
      %4274 = vst [vmem:[%s246 + $0xb0] sm:$0xff] %v4242
      %4275 = vst [vmem:[%s246 + $0xb8] sm:$0xff] %v4243
      %4276 = vst [vmem:[%s246 + $0xc0] sm:$0xff] %v4244
      %4277 = vst [vmem:[%s246 + $0xc8] sm:$0xff] %v4245
      %4278 = vst [vmem:[%s246 + $0xd0] sm:$0xff] %v4246
      %4279 = vst [vmem:[%s246 + $0xd8] sm:$0xff] %v4247
      %4280 = vst [vmem:[%s246 + $0xe0] sm:$0xff] %v4248
      %4281 = vst [vmem:[%s246 + $0xe8] sm:$0xff] %v4249
      %4282 = vst [vmem:[%s246 + $0xf0] sm:$0xff] %v4250
      %4283 = vst [vmem:[%s246 + $0xf8] sm:$0xff] %v4251
      %v4284 = vadd.f32 %v4220, %v4221
      %v4285 = vadd.f32 %v4284, %v4222
      %v4286 = vadd.f32 %v4285, %v4223
      %v4287 = vadd.f32 %v4286, %v4224
      %v4288 = vadd.f32 %v4287, %v4225
      %v4289 = vadd.f32 %v4288, %v4226
      %v4290 = vadd.f32 %v4289, %v4227
      %v4291 = vadd.f32 %v4290, %v4228
      %v4292 = vadd.f32 %v4291, %v4229
      %v4293 = vadd.f32 %v4292, %v4230
      %v4294 = vadd.f32 %v4293, %v4231
      %v4295 = vadd.f32 %v4294, %v4232
      %v4296 = vadd.f32 %v4295, %v4233
      %v4297 = vadd.f32 %v4296, %v4234
      %v4298 = vadd.f32 %v4297, %v4235
      %v4299 = vadd.f32 %v4298, %v4236
      %v4300 = vadd.f32 %v4299, %v4237
      %v4301 = vadd.f32 %v4300, %v4238
      %v4302 = vadd.f32 %v4301, %v4239
      %v4303 = vadd.f32 %v4302, %v4240
      %v4304 = vadd.f32 %v4303, %v4241
      %v4305 = vadd.f32 %v4304, %v4242
      %v4306 = vadd.f32 %v4305, %v4243
      %v4307 = vadd.f32 %v4306, %v4244
      %v4308 = vadd.f32 %v4307, %v4245
      %v4309 = vadd.f32 %v4308, %v4246
      %v4310 = vadd.f32 %v4309, %v4247
      %v4311 = vadd.f32 %v4310, %v4248
      %v4312 = vadd.f32 %v4311, %v4249
      %v4313 = vadd.f32 %v4312, %v4250
      %v4314 = vadd.f32 %v4313, %v4251
      %v4315 = vrot.slane %v4314, 4
      %v4316 = vadd.f32 %v4314, %v4315
      %v4317 = vrot.slane %v4316, 2
      %v4318 = vadd.f32 %v4316, %v4317
      %v4319 = vrot.slane %v4318, 1
      %v4320 = vadd.f32 %v4318, %v4319
      %v4321 = vmul.f32 %v4220, %v4220
      %v4322 = vmul.f32 %v4221, %v4221
      %v4323 = vmul.f32 %v4222, %v4222
      %v4324 = vmul.f32 %v4223, %v4223
      %v4325 = vmul.f32 %v4224, %v4224
      %v4326 = vmul.f32 %v4225, %v4225
      %v4327 = vmul.f32 %v4226, %v4226
      %v4328 = vmul.f32 %v4227, %v4227
      %v4329 = vmul.f32 %v4228, %v4228
      %v4330 = vmul.f32 %v4229, %v4229
      %v4331 = vmul.f32 %v4230, %v4230
      %v4332 = vmul.f32 %v4231, %v4231
      %v4333 = vmul.f32 %v4232, %v4232
      %v4334 = vmul.f32 %v4233, %v4233
      %v4335 = vmul.f32 %v4234, %v4234
      %v4336 = vmul.f32 %v4235, %v4235
      %v4337 = vmul.f32 %v4236, %v4236
      %v4338 = vmul.f32 %v4237, %v4237
      %v4339 = vmul.f32 %v4238, %v4238
      %v4340 = vmul.f32 %v4239, %v4239
      %v4341 = vmul.f32 %v4240, %v4240
      %v4342 = vmul.f32 %v4241, %v4241
      %v4343 = vmul.f32 %v4242, %v4242
      %v4344 = vmul.f32 %v4243, %v4243
      %v4345 = vmul.f32 %v4244, %v4244
      %v4346 = vmul.f32 %v4245, %v4245
      %v4347 = vmul.f32 %v4246, %v4246
      %v4348 = vmul.f32 %v4247, %v4247
      %v4349 = vmul.f32 %v4248, %v4248
      %v4350 = vmul.f32 %v4249, %v4249
      %v4351 = vmul.f32 %v4250, %v4250
      %v4352 = vmul.f32 %v4251, %v4251
      %v4353 = vadd.f32 %v4321, %v4322
      %v4354 = vadd.f32 %v4353, %v4323
      %v4355 = vadd.f32 %v4354, %v4324
      %v4356 = vadd.f32 %v4355, %v4325
      %v4357 = vadd.f32 %v4356, %v4326
      %v4358 = vadd.f32 %v4357, %v4327
      %v4359 = vadd.f32 %v4358, %v4328
      %v4360 = vadd.f32 %v4359, %v4329
      %v4361 = vadd.f32 %v4360, %v4330
      %v4362 = vadd.f32 %v4361, %v4331
      %v4363 = vadd.f32 %v4362, %v4332
      %v4364 = vadd.f32 %v4363, %v4333
      %v4365 = vadd.f32 %v4364, %v4334
      %v4366 = vadd.f32 %v4365, %v4335
      %v4367 = vadd.f32 %v4366, %v4336
      %v4368 = vadd.f32 %v4367, %v4337
      %v4369 = vadd.f32 %v4368, %v4338
      %v4370 = vadd.f32 %v4369, %v4339
      %v4371 = vadd.f32 %v4370, %v4340
      %v4372 = vadd.f32 %v4371, %v4341
      %v4373 = vadd.f32 %v4372, %v4342
      %v4374 = vadd.f32 %v4373, %v4343
      %v4375 = vadd.f32 %v4374, %v4344
      %v4376 = vadd.f32 %v4375, %v4345
      %v4377 = vadd.f32 %v4376, %v4346
      %v4378 = vadd.f32 %v4377, %v4347
      %v4379 = vadd.f32 %v4378, %v4348
      %v4380 = vadd.f32 %v4379, %v4349
      %v4381 = vadd.f32 %v4380, %v4350
      %v4382 = vadd.f32 %v4381, %v4351
      %v4383 = vadd.f32 %v4382, %v4352
      %v4384 = vrot.slane %v4383, 4
      %v4385 = vadd.f32 %v4383, %v4384
      %v4386 = vrot.slane %v4385, 2
      %v4387 = vadd.f32 %v4385, %v4386
      %v4388 = vrot.slane %v4387, 1
      %v4389 = vadd.f32 %v4387, %v4388
      %vm4390 = vcmask 1040384
      %v4391 = vsel %vm4390, %v4320, %v4389
      %4392 = vst [vmem:[%s254] sm:$0x3] %v4391
      %p4393 = scmp.lt.s32.totalorder %s20, 1
      %s4394 = scalar_select %p4393, %s20, 1
      %p4395 = scmp.lt.s32.totalorder %s21, 3
      %s4396 = scalar_select %p4395, %s21, 3
      %s4397 = smul.addr %s4396, 32
      %s4398 = smul.addr %s4394, 128
      %s4399 = sadd.s32 %s4397, %s4398
      %s4400 = smul.addr %s4399, 8
      %s4401 = scalar_lea.vmem %s3, %s4400
      %p4402 = scmp.lt.s32.totalorder %s20, 1
      %s4403 = scalar_select %p4402, %s20, 1
      %p4404 = scmp.lt.s32.totalorder %s21, 3
      %s4405 = scalar_select %p4404, %s21, 3
      %s4406 = smul.addr %s4403, 4
      %s4407 = sadd.s32 %s4405, %s4406
      %s4408 = smul.addr %s4407, 2
      %s4409 = scalar_lea.vmem %s4, %s4408
      // Predicated region
      $region33: #{spp_forward.4} parent=31 // pred_check
        %p4410 = pneg %p118
      $region34: #{spp_forward.4} parent=31 // pred_check_branch
        %4412 = sbr.rel (%p4410) target = $region36
      $region35: #{spp_forward.4} parent=31 // pred_region
        _
      $region36: #{spp_forward.4} parent=31 // pred_fallthru
        _
      // Predicated region
      $region37: #{spp_forward.4} parent=31 // pred_check
        %p4413 = pneg %p146
      $region38: #{spp_forward.4} parent=31 // pred_check_branch
        %4415 = sbr.rel (%p4413) target = $region40
      $region39: #{spp_forward.4} parent=31 // pred_region
        _
      $region40: #{spp_forward.4} parent=31 // pred_fallthru
        _
    $region32: #{spp_forward.4} parent=5 // pred_fallthru
      _
    %p4416 = scmp.le.s32.totalorder 2, %s11
    // Predicated region
    $region41: #{spp_forward.4} parent=5 // pred_check
      %p4417 = pneg %p4416
    $region42: #{spp_forward.4} parent=5 // pred_check_branch
      %4419 = sbr.rel (%p4417) target = $region44
    $region43: #{spp_forward.4} parent=5 // pred_region
      %s4420 = ssub.s32 %s11, 2
      // Predicated region
      $region45: #{spp_forward.4} parent=43 // pred_check
        %p4421 = pneg %p124
      $region46: #{spp_forward.4} parent=43 // pred_check_branch
        %4423 = sbr.rel (%p4421) target = $region48
      $region47: #{spp_forward.4} parent=43 // pred_region
        %p4424 = scmp.lt.s32.totalorder %s22, 1
        %s4425 = scalar_select %p4424, %s22, 1
        %p4426 = scmp.lt.s32.totalorder %s23, 3
        %s4427 = scalar_select %p4426, %s23, 3
        %s4428 = smul.addr %s4427, 32
        %s4429 = smul.addr %s4425, 128
        %s4430 = sadd.s32 %s4428, %s4429
        %s4431 = smul.addr %s4430, 8
        %s4432 = scalar_lea.vmem %s3, %s4431
      $region48: #{spp_forward.4} parent=43 // pred_fallthru
        _
      // Predicated region
      $region49: #{spp_forward.4} parent=43 // pred_check
        %p4433 = pneg %p152
      $region50: #{spp_forward.4} parent=43 // pred_check_branch
        %4435 = sbr.rel (%p4433) target = $region52
      $region51: #{spp_forward.4} parent=43 // pred_region
        %p4436 = scmp.lt.s32.totalorder %s22, 1
        %s4437 = scalar_select %p4436, %s22, 1
        %p4438 = scmp.lt.s32.totalorder %s23, 3
        %s4439 = scalar_select %p4438, %s23, 3
        %s4440 = smul.addr %s4437, 4
        %s4441 = sadd.s32 %s4439, %s4440
        %s4442 = smul.addr %s4441, 2
        %s4443 = scalar_lea.vmem %s4, %s4442
      $region52: #{spp_forward.4} parent=43 // pred_fallthru
        _
    $region44: #{spp_forward.4} parent=5 // pred_fallthru
      _
  $region6: #{spp_forward.4} parent=0 // loop_footer
    %s15 = sadd.s32 1, %s11
  $region7: #{spp_forward.4} parent=0 // loop_footer_branch
    %10 = sbr.rel target = $region3
  $region8: #{spp_forward.4} parent=0 // loop_exit
    _

</llo_original>
